<compile_context>
chip_gen: v7x
topology: tpu7x:2x2x1
jax: 0.10.0
libtpu: 0.0.40
codegen_flags: <defaults>
</compile_context>

<pallas_src>
import functools
import math

import numpy as np
import jax
import jax.numpy as jnp
from jax.experimental import pallas as pl
from jax.experimental.pallas import tpu as pltpu


COMPUTE_DTYPE = jnp.bfloat16   # MXU-friendly activation / weight dtype (f32 accumulation)
LN_EPS = 1e-5                  # nn.LayerNorm default


# ----------------------------------------------------------------------------
# Tiling helpers
# ----------------------------------------------------------------------------

def _round_up(x, m):
    return (x + m - 1) // m * m


def _pick_tile(dim, max_tile, granule):
    """Return (tile, padded_dim) with tile % granule == 0 and tile | padded_dim."""
    d = _round_up(dim, granule)
    if d <= max_tile:
        return d, d
    for t in range(max_tile, granule - 1, -granule):
        if d % t == 0:
            return t, d
    return max_tile, _round_up(d, max_tile)


def _pick_tk(kp):
    """K tile: whole row if it fits a single slab, else a 256-multiple divisor."""
    if kp <= 1024:
        return kp
    for t in (1024, 768, 512, 256):
        if kp % t == 0:
            return t
    raise ValueError(f"K={kp} is not 256-aligned; prep_dense should have padded it")


def _pick_q_tile(s, max_t=256):
    """Query-tile for attention: divides S, multiple of 8 (or the whole S)."""
    if s <= max_t:
        return s
    for t in range(max_t, 7, -8):
        if s % t == 0:
            return t
    return s


# ----------------------------------------------------------------------------
# Weight prep (padding + cast done ONCE at init, not per forward)
# ----------------------------------------------------------------------------

def prep_dense(w_f32, b_f32=None):
    """Pad weight to (Kp, Np) bf16 and bias to (1, Np) f32; Np is 128-aligned."""
    K, N = w_f32.shape
    Kp = K if K <= 1024 else _round_up(K, 256)
    Np = _round_up(N, 128)
    w = jnp.pad(w_f32, ((0, Kp - K), (0, Np - N))).astype(COMPUTE_DTYPE)
    b = None
    if b_f32 is not None:
        b = jnp.pad(b_f32.reshape(1, N), ((0, 0), (0, Np - N))).astype(jnp.float32)
    return w, b


# ----------------------------------------------------------------------------
# Pallas kernels
# ----------------------------------------------------------------------------

def _make_single_slab_kernel(has_ln, has_bias, has_res, activation, eps):
    """Whole-K matmul with optional fused LayerNorm prologue and bias/GELU/residual epilogue."""

    def kernel(*refs):
        it = iter(refs)
        x_ref = next(it)
        g_ref = bb_ref = b_ref = r_ref = None
        if has_ln:
            g_ref = next(it)
            bb_ref = next(it)
        w_ref = next(it)
        if has_bias:
            b_ref = next(it)
        if has_res:
            r_ref = next(it)
        o_ref = next(it)

        x = x_ref[...]
        if has_ln:
            xf = x.astype(jnp.float32)                         # LN statistics in f32
            mean = jnp.mean(xf, axis=-1, keepdims=True)
            var = jnp.mean(jnp.square(xf - mean), axis=-1, keepdims=True)
            xf = (xf - mean) * jax.lax.rsqrt(var + eps)
            x = (xf * g_ref[...] + bb_ref[...]).astype(x_ref.dtype)

        y = jnp.dot(x, w_ref[...], preferred_element_type=jnp.float32)
        if has_bias:
            y = y + b_ref[...]
        if activation == "gelu":
            y = jax.nn.gelu(y, approximate=True)
        if has_res:
            y = y + r_ref[...].astype(jnp.float32)
        o_ref[...] = y.astype(o_ref.dtype)

    return kernel


def _make_multi_slab_kernel(has_bias, has_res, activation):
    """K-split matmul with f32 VMEM accumulator and pl.when init/finalize."""

    def kernel(*refs):
        it = iter(refs)
        x_ref = next(it)
        w_ref = next(it)
        b_ref = r_ref = None
        if has_bias:
            b_ref = next(it)
        if has_res:
            r_ref = next(it)
        o_ref = next(it)
        acc_ref = next(it)

        k = pl.program_id(2)

        @pl.when(k == 0)
        def _init():
            acc_ref[...] = jnp.zeros_like(acc_ref)

        acc_ref[...] += jnp.dot(x_ref[...], w_ref[...],
                                preferred_element_type=jnp.float32)

        @pl.when(k == pl.num_programs(2) - 1)
        def _finalize():
            y = acc_ref[...]
            if has_bias:
                y = y + b_ref[...]
            if activation == "gelu":
                y = jax.nn.gelu(y, approximate=True)
            if has_res:
                y = y + r_ref[...].astype(jnp.float32)
            o_ref[...] = y.astype(o_ref.dtype)

    return kernel


def pallas_linear(x, w, b=None, *, n=None, ln=None, activation=None,
                  residual=None, out_dtype=None):
    """y = act(LN(x) @ w + b) (+ residual) on the MXU with f32 accumulation.

    w / b come pre-padded from prep_dense; `n` is the logical output width;
    `ln` is an optional (gamma, beta) pair of (1, K) f32 arrays fused as a prologue.
    """
    Kp, Np = w.shape
    n = Np if n is None else n
    out_dtype = out_dtype or COMPUTE_DTYPE

    orig_shape = x.shape
    K = orig_shape[-1]
    x2 = x.reshape(-1, K).astype(COMPUTE_DTYPE)
    M = x2.shape[0]
    if K != Kp:
        x2 = jnp.pad(x2, ((0, 0), (0, Kp - K)))

    TM, Mp = _pick_tile(M, 512, 16)          # bf16 packs 16 rows per sublane group
    if Mp != M:
        x2 = jnp.pad(x2, ((0, Mp - M), (0, 0)))
    TN, _ = _pick_tile(Np, 1024, 128)        # Np already 128-aligned -> divisor
    TK = _pick_tk(Kp)

    has_bias = b is not None
    has_res = residual is not None
    has_ln = ln is not None

    if has_ln and (TK != Kp or K != Kp):
        raise ValueError("fused LayerNorm requires a single whole-K slab")

    r2 = None
    if has_res:
        r2 = residual.reshape(-1, n).astype(COMPUTE_DTYPE)
        if Mp != M or Np != n:
            r2 = jnp.pad(r2, ((0, Mp - M), (0, Np - n)))

    cparams = pltpu.CompilerParams(
        dimension_semantics=(("parallel", "parallel") if TK == Kp
                             else ("parallel", "parallel", "arbitrary")),
        vmem_limit_bytes=32 * 1024 * 1024)

    if TK == Kp:
        # ---- single K slab: optional fused LN, no accumulator needed ----
        inputs = [x2]
        in_specs = [pl.BlockSpec((TM, Kp), lambda i, j: (i, 0))]
        if has_ln:
            g, bb = ln
            inputs += [g, bb]
            in_specs += [pl.BlockSpec((1, Kp), lambda i, j: (0, 0)),
                         pl.BlockSpec((1, Kp), lambda i, j: (0, 0))]
        inputs.append(w)
        in_specs.append(pl.BlockSpec((Kp, TN), lambda i, j: (0, j)))
        if has_bias:
            inputs.append(b)
            in_specs.append(pl.BlockSpec((1, TN), lambda i, j: (0, j)))
        if has_res:
            inputs.append(r2)
            in_specs.append(pl.BlockSpec((TM, TN), lambda i, j: (i, j)))

        out = pl.pallas_call(
            _make_single_slab_kernel(has_ln, has_bias, has_res, activation, LN_EPS),
            out_shape=jax.ShapeDtypeStruct((Mp, Np), out_dtype),
            grid=(Mp // TM, Np // TN),
            in_specs=in_specs,
            out_specs=pl.BlockSpec((TM, TN), lambda i, j: (i, j)),
            compiler_params=cparams,
        )(*inputs)
    else:
        # ---- K split across the innermost ("arbitrary") grid axis ----
        inputs = [x2, w]
        in_specs = [pl.BlockSpec((TM, TK), lambda i, j, k: (i, k)),
                    pl.BlockSpec((TK, TN), lambda i, j, k: (k, j))]
        if has_bias:
            inputs.append(b)
            in_specs.append(pl.BlockSpec((1, TN), lambda i, j, k: (0, j)))
        if has_res:
            inputs.append(r2)
            in_specs.append(pl.BlockSpec((TM, TN), lambda i, j, k: (i, j)))

        out = pl.pallas_call(
            _make_multi_slab_kernel(has_bias, has_res, activation),
            out_shape=jax.ShapeDtypeStruct((Mp, Np), out_dtype),
            grid=(Mp // TM, Np // TN, Kp // TK),
            in_specs=in_specs,
            out_specs=pl.BlockSpec((TM, TN), lambda i, j, k: (i, j)),
            scratch_shapes=[pltpu.VMEM((TM, TN), jnp.float32)],
            compiler_params=cparams,
        )(*inputs)

    if Mp != M or Np != n:
        out = out[:M, :n]
    return out.reshape(orig_shape[:-1] + (n,))


def _attention_kernel(qkv_ref, o_ref, *, num_heads, head_dim, q_tile):
    """softmax(q k^T) v for one (batch, q-tile); q-scale already folded into qkv_w."""
    D = num_heads * head_dim
    S = qkv_ref.shape[1]
    single_q_tile = (q_tile == S)
    q0 = pl.multiple_of(pl.program_id(1) * q_tile, q_tile)
    for h in range(num_heads):                           # static loop over heads
        c = h * head_dim
        if single_q_tile:
            q = qkv_ref[0, :, c:c + head_dim]            # (TQ, dh) bf16 (pre-scaled)
        else:
            q = qkv_ref[0, pl.ds(q0, q_tile), c:c + head_dim]
        k = qkv_ref[0, :, D + c:D + c + head_dim]        # (S, dh)
        v = qkv_ref[0, :, 2 * D + c:2 * D + c + head_dim]
        s = jax.lax.dot_general(q, k, (((1,), (1,)), ((), ())),
                                preferred_element_type=jnp.float32)  # (TQ, S)
        s = s - jnp.max(s, axis=-1, keepdims=True)
        p = jnp.exp(s)
        p = p / jnp.sum(p, axis=-1, keepdims=True)       # exact division (bit parity)
        o = jnp.dot(p.astype(v.dtype), v, preferred_element_type=jnp.float32)
        # store each head directly into its output slice (no concat buffer)
        o_ref[0, :, c:c + head_dim] = o.astype(o_ref.dtype)


def pallas_attention(qkv, num_heads):
    """qkv: (B, S, 3*D) fused projection output; returns (B, S, D)."""
    B, S, D3 = qkv.shape
    D = D3 // 3
    head_dim = D // num_heads
    TQ = _pick_q_tile(S)
    return pl.pallas_call(
        functools.partial(_attention_kernel, num_heads=num_heads,
                          head_dim=head_dim, q_tile=TQ),
        out_shape=jax.ShapeDtypeStruct((B, S, D), qkv.dtype),
        grid=(B, S // TQ),
        in_specs=[pl.BlockSpec((1, S, D3), lambda b, q: (b, 0, 0))],
        out_specs=pl.BlockSpec((1, TQ, D), lambda b, q: (b, q, 0)),
        compiler_params=pltpu.CompilerParams(
            dimension_semantics=("parallel", "parallel"),
            vmem_limit_bytes=48 * 1024 * 1024),
    )(qkv)


# ----------------------------------------------------------------------------
# Transformer building blocks (VideoMAE-style Block, init_values=0.0 -> no gamma)
# ----------------------------------------------------------------------------

def transformer_block(x, p, num_heads, mlp_ratio=4.0):
    # init_values=0.0 => plain pre-norm residual block; dropout/drop_path = identity (eval).
    D = x.shape[-1]
    hidden = int(D * mlp_ratio)

    # ---- attention sub-layer: LN1 fused into qkv; residual fused into proj ----
    qkv = pallas_linear(x, p["qkv_w"], n=3 * D, ln=(p["ln1_g"], p["ln1_b"]))
    attn = pallas_attention(qkv, num_heads)
    x = pallas_linear(attn, p["proj_w"], p["proj_b"], n=D, residual=x)

    # ---- MLP sub-layer: LN2 + GELU fused into fc1; residual fused into fc2 ----
    h = pallas_linear(x, p["fc1_w"], p["fc1_b"], n=hidden,
                      ln=(p["ln2_g"], p["ln2_b"]), activation="gelu")
    x = pallas_linear(h, p["fc2_w"], p["fc2_b"], n=D, residual=x)
    return x


# ----------------------------------------------------------------------------
# Parameter init (deterministic, shapes follow the PyTorch module __init__)
# ----------------------------------------------------------------------------

def xavier_uniform(key, fan_in, fan_out):
    bound = math.sqrt(6.0 / (fan_in + fan_out))
    return jax.random.uniform(key, (fan_in, fan_out), jnp.float32, -bound, bound)


def init_block_params(key, dim, num_heads, mlp_ratio=4.0):
    hidden = int(dim * mlp_ratio)
    head_dim = dim // num_heads
    scale = head_dim ** -0.5
    ks = jax.random.split(key, 4)

    qkv_w = xavier_uniform(ks[0], dim, 3 * dim)
    qkv_w = qkv_w.at[:, :dim].multiply(scale)            # fold attention q-scale into weights
    qkv_w, _ = prep_dense(qkv_w)                         # qkv_bias=False

    proj_w, proj_b = prep_dense(xavier_uniform(ks[1], dim, dim), jnp.zeros((dim,), jnp.float32))
    fc1_w, fc1_b = prep_dense(xavier_uniform(ks[2], dim, hidden), jnp.zeros((hidden,), jnp.float32))
    fc2_w, fc2_b = prep_dense(xavier_uniform(ks[3], hidden, dim), jnp.zeros((dim,), jnp.float32))

    return {
        "ln1_g": jnp.ones((1, dim), jnp.float32), "ln1_b": jnp.zeros((1, dim), jnp.float32),
        "qkv_w": qkv_w,
        "proj_w": proj_w, "proj_b": proj_b,
        "ln2_g": jnp.ones((1, dim), jnp.float32), "ln2_b": jnp.zeros((1, dim), jnp.float32),
        "fc1_w": fc1_w, "fc1_b": fc1_b,
        "fc2_w": fc2_w, "fc2_b": fc2_b,
    }


def get_sinusoid_encoding_table(n_position, d_hid):
    pos = np.arange(n_position)[:, None].astype(np.float64)
    i = np.arange(d_hid)[None, :]
    angle = pos / np.power(10000, 2 * (i // 2) / d_hid)
    table = np.zeros((n_position, d_hid), dtype=np.float64)
    table[:, 0::2] = np.sin(angle[:, 0::2])
    table[:, 1::2] = np.cos(angle[:, 1::2])
    return jnp.asarray(table[None], dtype=jnp.float32)   # (1, N, D) kept in f32


def init_params(key, cfg):
    ks = iter(jax.random.split(key, 64))
    patch_dim = cfg["in_chans"] * cfg["tubelet"] * cfg["patch"] * cfg["patch"]
    N = cfg["num_patches"]

    patch_w, patch_b = prep_dense(xavier_uniform(next(ks), patch_dim, cfg["enc_dim"]),
                                  jnp.zeros((cfg["enc_dim"],), jnp.float32))
    probs_head_w, probs_head_b = prep_dense(xavier_uniform(next(ks), cfg["enc_dim"], 1),
                                            jnp.zeros((1,), jnp.float32))
    enc = {
        "patch_w": patch_w, "patch_b": patch_b,                   # Conv3d as matmul
        "pos_embed": get_sinusoid_encoding_table(N, cfg["enc_dim"]),
        "pos_embed_probs": jnp.zeros((1, N, cfg["enc_dim"]), jnp.float32),
        "probs_block": init_block_params(next(ks), cfg["enc_dim"], num_heads=8),
        "probs_head_w": probs_head_w, "probs_head_b": probs_head_b,
        "blocks": [init_block_params(next(ks), cfg["enc_dim"], cfg["enc_heads"])
                   for _ in range(cfg["enc_depth"])],
        "norm_g": jnp.ones((1, cfg["enc_dim"]), jnp.float32),
        "norm_b": jnp.zeros((1, cfg["enc_dim"]), jnp.float32),
    }

    head_w, head_b = prep_dense(xavier_uniform(next(ks), cfg["dec_dim"], cfg["dec_num_classes"]),
                                jnp.zeros((cfg["dec_num_classes"],), jnp.float32))
    dec = {
        "blocks": [init_block_params(next(ks), cfg["dec_dim"], cfg["dec_heads"])
                   for _ in range(cfg["dec_depth"])],
        "norm_g": jnp.ones((1, cfg["dec_dim"]), jnp.float32),
        "norm_b": jnp.zeros((1, cfg["dec_dim"]), jnp.float32),
        "head_w": head_w, "head_b": head_b,
    }

    enc_to_dec_w, _ = prep_dense(xavier_uniform(next(ks), cfg["enc_dim"], cfg["dec_dim"]))  # no bias
    params = {
        "encoder": enc,
        "decoder": dec,
        "enc_to_dec_w": enc_to_dec_w,
        "mask_token": 0.02 * jax.random.truncated_normal(
            next(ks), -1.0, 1.0, (1, 1, cfg["dec_dim"]), jnp.float32),
        "dec_pos_embed": get_sinusoid_encoding_table(N, cfg["dec_dim"]),
    }
    return params


# ----------------------------------------------------------------------------
# Model forward (matches PretrainVisionTransformer.forward semantics, eval mode)
# ----------------------------------------------------------------------------

def patch_embed(x, enc, cfg):
    # Conv3d(kernel=stride=(ts,p,p)) == linear projection of flattened tubelet patches.
    B, C, T, H, W = x.shape
    ts, p = cfg["tubelet"], cfg["patch"]
    x = x.reshape(B, C, T // ts, ts, H // p, p, W // p, p)
    x = x.transpose(0, 2, 4, 6, 1, 3, 5, 7)               # (B, T', H', W', C, ts, p, p)
    x = x.reshape(B, cfg["num_patches"], C * ts * p * p)
    return pallas_linear(x, enc["patch_w"], enc["patch_b"], n=cfg["enc_dim"])


def get_mask(enc, x, priors, prior_mask, delta, rng, cfg):
    # NOTE: like the PyTorch code, prior_mask is overridden to False inside get_mask,
    # so the mask always comes from the sampled visible indices; delta is always added
    # where priors is True.
    B, N, _ = x.shape
    xp = x + enc["pos_embed_probs"]
    h = transformer_block(xp, enc["probs_block"], num_heads=8)       # get_token_probs Block
    logits = pallas_linear(h, enc["probs_head_w"], enc["probs_head_b"], n=1,
                           out_dtype=jnp.float32).reshape(B, N)
    logits = jnp.nan_to_num(logits)
    logits = logits + delta * priors.astype(jnp.float32)
    p_x = jax.nn.softmax(logits, axis=-1)
    # torch.multinomial(p_x, k, replacement=False)  ==  Gumbel top-k over log p_x
    g = -jnp.log(-jnp.log(jax.random.uniform(rng, p_x.shape) + 1e-10) + 1e-10)
    keys = jnp.log(p_x + 1e-10) + g
    vis_idx = jax.lax.top_k(keys, cfg["visible"])[1]                 # (B, K_vis)
    mask = jax.vmap(lambda idx: jnp.ones((N,), jnp.bool_).at[idx].set(False))(vis_idx)
    return p_x, vis_idx, mask


def forward(params, x, priors, prior_mask, delta, rng, cfg):
    enc, dec = params["encoder"], params["decoder"]
    B = x.shape[0]
    N, Kvis = cfg["num_patches"], cfg["visible"]

    # ---- encoder.forward_features ----
    x_tok = patch_embed(x, enc, cfg)                                 # (B, N, enc_dim) bf16
    # NOTE: the PyTorch code calls get_mask twice; only the second call's result
    # (computed on x + pos_embed) is used, so we compute that one.
    x_tok = x_tok + enc["pos_embed"]                                 # f32 add
    p_x, vis_idx, mask = get_mask(enc, x_tok, priors, prior_mask, delta, rng, cfg)

    # boolean-mask gather x[~mask].reshape(B,-1,C): visible indices in ascending order
    order = jnp.argsort(mask.astype(jnp.int32), axis=-1, stable=True)
    vis_sorted = order[:, :Kvis]                                     # (B, Kvis)
    msk_sorted = order[:, Kvis:]                                     # (B, N-Kvis)

    x_vis = jnp.take_along_axis(x_tok, vis_sorted[..., None], axis=1)
    for blk in enc["blocks"]:
        x_vis = transformer_block(x_vis, blk, cfg["enc_heads"])
    # encoder final LayerNorm fused into encoder_to_decoder (encoder head is Identity)
    x_vis = pallas_linear(x_vis, params["enc_to_dec_w"], n=cfg["dec_dim"],
                          ln=(enc["norm_g"], enc["norm_b"]))         # (B, Kvis, dec_dim)

    # ---- token assembly ----
    expand_pos = jnp.broadcast_to(params["dec_pos_embed"], (B, N, cfg["dec_dim"]))
    pos_vis = jnp.take_along_axis(expand_pos, vis_sorted[..., None], axis=1)
    pos_msk = jnp.take_along_axis(expand_pos, msk_sorted[..., None], axis=1)
    x_full = jnp.concatenate([x_vis + pos_vis, params["mask_token"] + pos_msk], axis=1)

    # ---- decoder ----
    for blk in dec["blocks"]:
        x_full = transformer_block(x_full, blk, cfg["dec_heads"])
    n_mask = N - Kvis
    x_last = x_full[:, -n_mask:]
    # decoder final LayerNorm fused into the classification head
    x_mask = pallas_linear(x_last, dec["head_w"], dec["head_b"], n=cfg["dec_num_classes"],
                           ln=(dec["norm_g"], dec["norm_b"]),
                           out_dtype=jnp.float32)                    # (B, n_mask, dec_num_classes)

    return x_mask, p_x, mask


# ----------------------------------------------------------------------------
# Main
# ----------------------------------------------------------------------------

if __name__ == "__main__":
    # Small config consistent with the module structure.
    B, C, T, H, W = 2, 3, 4, 16, 16
    patch, tubelet = 8, 2
    num_patches = (T // tubelet) * (H // patch) * (W // patch)       # 8
    mask_ratio = 0.5
    cfg = {
        "in_chans": C, "patch": patch, "tubelet": tubelet, "num_patches": num_patches,
        "enc_dim": 64, "enc_depth": 2, "enc_heads": 4,
        "dec_dim": 32, "dec_depth": 2, "dec_heads": 4,
        "dec_num_classes": C * tubelet * patch * patch,              # 384
        "visible": int(num_patches * (1 - mask_ratio)),              # 4
    }

    key = jax.random.PRNGKey(0)
    pkey, xkey, skey = jax.random.split(key, 3)

    params = init_params(pkey, cfg)
    x = jax.random.normal(xkey, (B, C, T, H, W), jnp.float32)
    priors = jnp.broadcast_to((jnp.arange(num_patches) % 3 == 0)[None, :], (B, num_patches))

    fwd = jax.jit(functools.partial(forward, cfg=cfg))
    x_mask, p_x, mask = fwd(params, x, priors, False, 1.0, skey)
    jax.block_until_ready((x_mask, p_x, mask))

    assert x_mask.shape == (B, num_patches - cfg["visible"], cfg["dec_num_classes"])
    assert p_x.shape == (B, num_patches)
    assert mask.shape == (B, num_patches)
    assert bool(jnp.all(jnp.sum(~mask, axis=-1) == cfg["visible"]))
    assert bool(jnp.all(jnp.isfinite(x_mask)))
    print("KERNEL_OK")
</pallas_src>

<mosaic_0001>
module attributes {stable_mosaic.version = 11 : i64} {
  func.func @kernel(%arg0: i32, %arg1: i32, %arg2: memref<16x384xbf16, #tpu.memory_space<vmem>>, %arg3: memref<384x128xbf16, #tpu.memory_space<vmem>>, %arg4: memref<1x128xf32, #tpu.memory_space<vmem>>, %arg5: memref<16x128xbf16, #tpu.memory_space<vmem>>) attributes {dimension_semantics = [#tpu.dimension_semantics<parallel>, #tpu.dimension_semantics<parallel>], iteration_bounds = array<i64: 1, 1>, scalar_prefetch = 0 : i64, scratch_operands = 0 : i64, tpu.core_type = #tpu.core_type<tc>, window_params = [{transform_indices = @transform_0, window_bounds = array<i64: 16, 384>}, {transform_indices = @transform_1, window_bounds = array<i64: 384, 128>}, {transform_indices = @transform_2, window_bounds = array<i64: 1, 128>}, {transform_indices = @transform_3, window_bounds = array<i64: 16, 128>}]} {
    %c0 = arith.constant 0 : index
    %c0_0 = arith.constant 0 : index
    %0 = vector.load %arg2[%c0, %c0_0] : memref<16x384xbf16, #tpu.memory_space<vmem>>, vector<16x384xbf16>
    %c0_1 = arith.constant 0 : index
    %c0_2 = arith.constant 0 : index
    %1 = vector.load %arg3[%c0_1, %c0_2] : memref<384x128xbf16, #tpu.memory_space<vmem>>, vector<384x128xbf16>
    %cst = arith.constant dense<0.000000e+00> : vector<16x128xf32>
    %2 = tpu.matmul %0, %1, %cst {dimension_numbers = #tpu.dot_dimension_numbers<[1], [0], [0], [1], [0, 0, 1, 1], [], []>} : vector<16x384xbf16>, vector<384x128xbf16>, vector<16x128xf32> -> vector<16x128xf32>
    %c0_3 = arith.constant 0 : index
    %c0_4 = arith.constant 0 : index
    %3 = vector.load %arg4[%c0_3, %c0_4] : memref<1x128xf32, #tpu.memory_space<vmem>>, vector<1x128xf32>
    %4 = vector.broadcast %3 : vector<1x128xf32> to vector<16x128xf32>
    %5 = arith.addf %2, %4 : vector<16x128xf32>
    %6 = arith.truncf %5 : vector<16x128xf32> to vector<16x128xbf16>
    %c0_5 = arith.constant 0 : index
    %c0_6 = arith.constant 0 : index
    %7 = vector.load %arg5[%c0_5, %c0_6] : memref<16x128xbf16, #tpu.memory_space<vmem>>, vector<16x128xbf16>
    tpu.vector_store %arg5[%c0_5, %c0_6], %6 {strides = array<i32>} : memref<16x128xbf16, #tpu.memory_space<vmem>>, vector<16x128xbf16>,
    return
  }
  func.func @transform_0(%arg0: i32, %arg1: i32) -> (i32, i32) {
    %c0_i32 = arith.constant 0 : i32
    %c0_i32_0 = arith.constant 0 : i32
    return %arg0, %c0_i32 : i32, i32
  }
  func.func @transform_1(%arg0: i32, %arg1: i32) -> (i32, i32) {
    %c0_i32 = arith.constant 0 : i32
    %c0_i32_0 = arith.constant 0 : i32
    return %c0_i32, %arg1 : i32, i32
  }
  func.func @transform_2(%arg0: i32, %arg1: i32) -> (i32, i32) {
    %c0_i32 = arith.constant 0 : i32
    %c0_i32_0 = arith.constant 0 : i32
    return %c0_i32, %arg1 : i32, i32
  }
  func.func @transform_3(%arg0: i32, %arg1: i32) -> (i32, i32) {
    %c0_i32 = arith.constant 0 : i32
    return %arg0, %arg1 : i32, i32
  }
}

module attributes {stable_mosaic.version = 11 : i64} {
  func.func @kernel(%arg0: i32, %arg1: i32, %arg2: memref<16x64xbf16, #tpu.memory_space<vmem>>, %arg3: memref<1x64xf32, #tpu.memory_space<vmem>>, %arg4: memref<1x64xf32, #tpu.memory_space<vmem>>, %arg5: memref<64x256xbf16, #tpu.memory_space<vmem>>, %arg6: memref<16x256xbf16, #tpu.memory_space<vmem>>) attributes {dimension_semantics = [#tpu.dimension_semantics<parallel>, #tpu.dimension_semantics<parallel>], iteration_bounds = array<i64: 1, 1>, scalar_prefetch = 0 : i64, scratch_operands = 0 : i64, tpu.core_type = #tpu.core_type<tc>, window_params = [{transform_indices = @transform_0, window_bounds = array<i64: 16, 64>}, {pipeline_mode = #tpu.pipeline_mode<synchronous>, transform_indices = @transform_1, window_bounds = array<i64: 1, 64>}, {pipeline_mode = #tpu.pipeline_mode<synchronous>, transform_indices = @transform_2, window_bounds = array<i64: 1, 64>}, {transform_indices = @transform_3, window_bounds = array<i64: 64, 256>}, {transform_indices = @transform_4, window_bounds = array<i64: 16, 256>}]} {
    %c0 = arith.constant 0 : index
    %c0_0 = arith.constant 0 : index
    %0 = vector.load %arg2[%c0, %c0_0] : memref<16x64xbf16, #tpu.memory_space<vmem>>, vector<16x64xbf16>
    %1 = arith.extf %0 : vector<16x64xbf16> to vector<16x64xf32>
    %cst = arith.constant dense<0.000000e+00> : vector<16xf32>
    %2 = vector.multi_reduction <add>, %1, %cst [1] : vector<16x64xf32> to vector<16xf32>
    %3 = vector.shape_cast %2 : vector<16xf32> to vector<16x1xf32>
    %cst_1 = arith.constant 6.400000e+01 : f32
    %4 = vector.broadcast %cst_1 : f32 to vector<16x1xf32>
    %5 = arith.divf %3, %4 : vector<16x1xf32>
    %6 = vector.broadcast %5 : vector<16x1xf32> to vector<16x64xf32>
    %7 = arith.subf %1, %6 : vector<16x64xf32>
    %8 = arith.mulf %7, %7 : vector<16x64xf32>
    %cst_2 = arith.constant dense<0.000000e+00> : vector<16xf32>
    %9 = vector.multi_reduction <add>, %8, %cst_2 [1] : vector<16x64xf32> to vector<16xf32>
    %10 = vector.shape_cast %9 : vector<16xf32> to vector<16x1xf32>
    %cst_3 = arith.constant 6.400000e+01 : f32
    %11 = vector.broadcast %cst_3 : f32 to vector<16x1xf32>
    %12 = arith.divf %10, %11 : vector<16x1xf32>
    %13 = vector.broadcast %5 : vector<16x1xf32> to vector<16x64xf32>
    %14 = arith.subf %1, %13 : vector<16x64xf32>
    %cst_4 = arith.constant 9.99999974E-6 : f32
    %15 = vector.broadcast %cst_4 : f32 to vector<16x1xf32>
    %16 = arith.addf %12, %15 : vector<16x1xf32>
    %17 = math.rsqrt %16 : vector<16x1xf32>
    %18 = vector.broadcast %17 : vector<16x1xf32> to vector<16x64xf32>
    %19 = arith.mulf %14, %18 : vector<16x64xf32>
    %c0_5 = arith.constant 0 : index
    %c0_6 = arith.constant 0 : index
    %20 = vector.load %arg3[%c0_5, %c0_6] : memref<1x64xf32, #tpu.memory_space<vmem>>, vector<1x64xf32>
    %21 = vector.broadcast %20 : vector<1x64xf32> to vector<16x64xf32>
    %22 = arith.mulf %19, %21 : vector<16x64xf32>
    %c0_7 = arith.constant 0 : index
    %c0_8 = arith.constant 0 : index
    %23 = vector.load %arg4[%c0_7, %c0_8] : memref<1x64xf32, #tpu.memory_space<vmem>>, vector<1x64xf32>
    %24 = vector.broadcast %23 : vector<1x64xf32> to vector<16x64xf32>
    %25 = arith.addf %22, %24 : vector<16x64xf32>
    %26 = arith.truncf %25 : vector<16x64xf32> to vector<16x64xbf16>
    %c0_9 = arith.constant 0 : index
    %c0_10 = arith.constant 0 : index
    %27 = vector.load %arg5[%c0_9, %c0_10] : memref<64x256xbf16, #tpu.memory_space<vmem>>, vector<64x256xbf16>
    %cst_11 = arith.constant dense<0.000000e+00> : vector<16x256xf32>
    %28 = tpu.matmul %26, %27, %cst_11 {dimension_numbers = #tpu.dot_dimension_numbers<[1], [0], [0], [1], [0, 0, 1, 1], [], []>} : vector<16x64xbf16>, vector<64x256xbf16>, vector<16x256xf32> -> vector<16x256xf32>
    %29 = arith.truncf %28 : vector<16x256xf32> to vector<16x256xbf16>
    %c0_12 = arith.constant 0 : index
    %c0_13 = arith.constant 0 : index
    %30 = vector.load %arg6[%c0_12, %c0_13] : memref<16x256xbf16, #tpu.memory_space<vmem>>, vector<16x256xbf16>
    tpu.vector_store %arg6[%c0_12, %c0_13], %29 {strides = array<i32>} : memref<16x256xbf16, #tpu.memory_space<vmem>>, vector<16x256xbf16>,
    return
  }
  func.func @transform_0(%arg0: i32, %arg1: i32) -> (i32, i32) {
    %c0_i32 = arith.constant 0 : i32
    %c0_i32_0 = arith.constant 0 : i32
    return %arg0, %c0_i32 : i32, i32
  }
  func.func @transform_1(%arg0: i32, %arg1: i32) -> (i32, i32) {
    %c0_i32 = arith.constant 0 : i32
    %c0_i32_0 = arith.constant 0 : i32
    %c0_i32_1 = arith.constant 0 : i32
    return %c0_i32, %c0_i32_0 : i32, i32
  }
  func.func @transform_2(%arg0: i32, %arg1: i32) -> (i32, i32) {
    %c0_i32 = arith.constant 0 : i32
    %c0_i32_0 = arith.constant 0 : i32
    %c0_i32_1 = arith.constant 0 : i32
    return %c0_i32, %c0_i32_0 : i32, i32
  }
  func.func @transform_3(%arg0: i32, %arg1: i32) -> (i32, i32) {
    %c0_i32 = arith.constant 0 : i32
    %c0_i32_0 = arith.constant 0 : i32
    return %c0_i32, %arg1 : i32, i32
  }
  func.func @transform_4(%arg0: i32, %arg1: i32) -> (i32, i32) {
    %c0_i32 = arith.constant 0 : i32
    return %arg0, %arg1 : i32, i32
  }
}

module attributes {stable_mosaic.version = 11 : i64} {
  func.func @_attention_kernel(%arg0: i32, %arg1: i32, %arg2: memref<1x8x192xbf16, #tpu.memory_space<vmem>>, %arg3: memref<1x8x64xbf16, #tpu.memory_space<vmem>>) attributes {dimension_semantics = [#tpu.dimension_semantics<parallel>, #tpu.dimension_semantics<parallel>], iteration_bounds = array<i64: 2, 1>, scalar_prefetch = 0 : i64, scratch_operands = 0 : i64, tpu.core_type = #tpu.core_type<tc>, window_params = [{transform_indices = @transform_0, window_bounds = array<i64: 1, 8, 192>}, {transform_indices = @transform_1, window_bounds = array<i64: 1, 8, 64>}]} {
    %c0 = arith.constant 0 : index
    %c0_0 = arith.constant 0 : index
    %c0_1 = arith.constant 0 : index
    %0 = vector.load %arg2[%c0, %c0_0, %c0_1] : memref<1x8x192xbf16, #tpu.memory_space<vmem>>, vector<1x8x8xbf16>
    %1 = vector.shape_cast %0 : vector<1x8x8xbf16> to vector<8x8xbf16>
    %c0_2 = arith.constant 0 : index
    %c0_3 = arith.constant 0 : index
    %c64 = arith.constant 64 : index
    %2 = vector.load %arg2[%c0_2, %c0_3, %c64] : memref<1x8x192xbf16, #tpu.memory_space<vmem>>, vector<1x8x8xbf16>
    %3 = vector.shape_cast %2 : vector<1x8x8xbf16> to vector<8x8xbf16>
    %c0_4 = arith.constant 0 : index
    %c0_5 = arith.constant 0 : index
    %c128 = arith.constant 128 : index
    %4 = vector.load %arg2[%c0_4, %c0_5, %c128] : memref<1x8x192xbf16, #tpu.memory_space<vmem>>, vector<1x8x8xbf16>
    %5 = vector.shape_cast %4 : vector<1x8x8xbf16> to vector<8x8xbf16>
    %cst = arith.constant dense<0.000000e+00> : vector<8x8xf32>
    %6 = tpu.matmul %1, %3, %cst {dimension_numbers = #tpu.dot_dimension_numbers<[1], [1], [0], [0], [0, 0, 1, 0], [], []>} : vector<8x8xbf16>, vector<8x8xbf16>, vector<8x8xf32> -> vector<8x8xf32>
    %cst_6 = arith.constant dense<0xFF800000> : vector<8xf32>
    %7 = vector.multi_reduction <maximumf>, %6, %cst_6 [1] : vector<8x8xf32> to vector<8xf32>
    %8 = vector.shape_cast %7 : vector<8xf32> to vector<8x1xf32>
    %9 = vector.broadcast %8 : vector<8x1xf32> to vector<8x8xf32>
    %10 = arith.subf %6, %9 : vector<8x8xf32>
    %11 = math.exp %10 : vector<8x8xf32>
    %cst_7 = arith.constant dense<0.000000e+00> : vector<8xf32>
    %12 = vector.multi_reduction <add>, %11, %cst_7 [1] : vector<8x8xf32> to vector<8xf32>
    %13 = vector.shape_cast %12 : vector<8xf32> to vector<8x1xf32>
    %14 = vector.broadcast %13 : vector<8x1xf32> to vector<8x8xf32>
    %15 = arith.divf %11, %14 : vector<8x8xf32>
    %16 = arith.truncf %15 : vector<8x8xf32> to vector<8x8xbf16>
    %cst_8 = arith.constant dense<0.000000e+00> : vector<8x8xf32>
    %17 = tpu.matmul %16, %5, %cst_8 {dimension_numbers = #tpu.dot_dimension_numbers<[1], [0], [0], [1], [0, 0, 1, 1], [], []>} : vector<8x8xbf16>, vector<8x8xbf16>, vector<8x8xf32> -> vector<8x8xf32>
    %18 = arith.truncf %17 : vector<8x8xf32> to vector<8x8xbf16>
    %c0_9 = arith.constant 0 : index
    %c0_10 = arith.constant 0 : index
    %c0_11 = arith.constant 0 : index
    %19 = vector.load %arg3[%c0_9, %c0_10, %c0_11] : memref<1x8x64xbf16, #tpu.memory_space<vmem>>, vector<1x8x8xbf16>
    %20 = vector.shape_cast %19 : vector<1x8x8xbf16> to vector<8x8xbf16>
    %21 = vector.shape_cast %18 : vector<8x8xbf16> to vector<1x8x8xbf16>
    tpu.vector_store %arg3[%c0_9, %c0_10, %c0_11], %21 {strides = array<i32>} : memref<1x8x64xbf16, #tpu.memory_space<vmem>>, vector<1x8x8xbf16>,
    %c0_12 = arith.constant 0 : index
    %c0_13 = arith.constant 0 : index
    %c8 = arith.constant 8 : index
    %22 = vector.load %arg2[%c0_12, %c0_13, %c8] : memref<1x8x192xbf16, #tpu.memory_space<vmem>>, vector<1x8x8xbf16>
    %23 = vector.shape_cast %22 : vector<1x8x8xbf16> to vector<8x8xbf16>
    %c0_14 = arith.constant 0 : index
    %c0_15 = arith.constant 0 : index
    %c72 = arith.constant 72 : index
    %24 = vector.load %arg2[%c0_14, %c0_15, %c72] : memref<1x8x192xbf16, #tpu.memory_space<vmem>>, vector<1x8x8xbf16>
    %25 = vector.shape_cast %24 : vector<1x8x8xbf16> to vector<8x8xbf16>
    %c0_16 = arith.constant 0 : index
    %c0_17 = arith.constant 0 : index
    %c136 = arith.constant 136 : index
    %26 = vector.load %arg2[%c0_16, %c0_17, %c136] : memref<1x8x192xbf16, #tpu.memory_space<vmem>>, vector<1x8x8xbf16>
    %27 = vector.shape_cast %26 : vector<1x8x8xbf16> to vector<8x8xbf16>
    %cst_18 = arith.constant dense<0.000000e+00> : vector<8x8xf32>
    %28 = tpu.matmul %23, %25, %cst_18 {dimension_numbers = #tpu.dot_dimension_numbers<[1], [1], [0], [0], [0, 0, 1, 0], [], []>} : vector<8x8xbf16>, vector<8x8xbf16>, vector<8x8xf32> -> vector<8x8xf32>
    %cst_19 = arith.constant dense<0xFF800000> : vector<8xf32>
    %29 = vector.multi_reduction <maximumf>, %28, %cst_19 [1] : vector<8x8xf32> to vector<8xf32>
    %30 = vector.shape_cast %29 : vector<8xf32> to vector<8x1xf32>
    %31 = vector.broadcast %30 : vector<8x1xf32> to vector<8x8xf32>
    %32 = arith.subf %28, %31 : vector<8x8xf32>
    %33 = math.exp %32 : vector<8x8xf32>
    %cst_20 = arith.constant dense<0.000000e+00> : vector<8xf32>
    %34 = vector.multi_reduction <add>, %33, %cst_20 [1] : vector<8x8xf32> to vector<8xf32>
    %35 = vector.shape_cast %34 : vector<8xf32> to vector<8x1xf32>
    %36 = vector.broadcast %35 : vector<8x1xf32> to vector<8x8xf32>
    %37 = arith.divf %33, %36 : vector<8x8xf32>
    %38 = arith.truncf %37 : vector<8x8xf32> to vector<8x8xbf16>
    %cst_21 = arith.constant dense<0.000000e+00> : vector<8x8xf32>
    %39 = tpu.matmul %38, %27, %cst_21 {dimension_numbers = #tpu.dot_dimension_numbers<[1], [0], [0], [1], [0, 0, 1, 1], [], []>} : vector<8x8xbf16>, vector<8x8xbf16>, vector<8x8xf32> -> vector<8x8xf32>
    %40 = arith.truncf %39 : vector<8x8xf32> to vector<8x8xbf16>
    %c0_22 = arith.constant 0 : index
    %c0_23 = arith.constant 0 : index
    %c8_24 = arith.constant 8 : index
    %41 = vector.load %arg3[%c0_22, %c0_23, %c8_24] : memref<1x8x64xbf16, #tpu.memory_space<vmem>>, vector<1x8x8xbf16>
    %42 = vector.shape_cast %41 : vector<1x8x8xbf16> to vector<8x8xbf16>
    %43 = vector.shape_cast %40 : vector<8x8xbf16> to vector<1x8x8xbf16>
    tpu.vector_store %arg3[%c0_22, %c0_23, %c8_24], %43 {strides = array<i32>} : memref<1x8x64xbf16, #tpu.memory_space<vmem>>, vector<1x8x8xbf16>,
    %c0_25 = arith.constant 0 : index
    %c0_26 = arith.constant 0 : index
    %c16 = arith.constant 16 : index
    %44 = vector.load %arg2[%c0_25, %c0_26, %c16] : memref<1x8x192xbf16, #tpu.memory_space<vmem>>, vector<1x8x8xbf16>
    %45 = vector.shape_cast %44 : vector<1x8x8xbf16> to vector<8x8xbf16>
    %c0_27 = arith.constant 0 : index
    %c0_28 = arith.constant 0 : index
    %c80 = arith.constant 80 : index
    %46 = vector.load %arg2[%c0_27, %c0_28, %c80] : memref<1x8x192xbf16, #tpu.memory_space<vmem>>, vector<1x8x8xbf16>
    %47 = vector.shape_cast %46 : vector<1x8x8xbf16> to vector<8x8xbf16>
    %c0_29 = arith.constant 0 : index
    %c0_30 = arith.constant 0 : index
    %c144 = arith.constant 144 : index
    %48 = vector.load %arg2[%c0_29, %c0_30, %c144] : memref<1x8x192xbf16, #tpu.memory_space<vmem>>, vector<1x8x8xbf16>
    %49 = vector.shape_cast %48 : vector<1x8x8xbf16> to vector<8x8xbf16>
    %cst_31 = arith.constant dense<0.000000e+00> : vector<8x8xf32>
    %50 = tpu.matmul %45, %47, %cst_31 {dimension_numbers = #tpu.dot_dimension_numbers<[1], [1], [0], [0], [0, 0, 1, 0], [], []>} : vector<8x8xbf16>, vector<8x8xbf16>, vector<8x8xf32> -> vector<8x8xf32>
    %cst_32 = arith.constant dense<0xFF800000> : vector<8xf32>
    %51 = vector.multi_reduction <maximumf>, %50, %cst_32 [1] : vector<8x8xf32> to vector<8xf32>
    %52 = vector.shape_cast %51 : vector<8xf32> to vector<8x1xf32>
    %53 = vector.broadcast %52 : vector<8x1xf32> to vector<8x8xf32>
    %54 = arith.subf %50, %53 : vector<8x8xf32>
    %55 = math.exp %54 : vector<8x8xf32>
    %cst_33 = arith.constant dense<0.000000e+00> : vector<8xf32>
    %56 = vector.multi_reduction <add>, %55, %cst_33 [1] : vector<8x8xf32> to vector<8xf32>
    %57 = vector.shape_cast %56 : vector<8xf32> to vector<8x1xf32>
    %58 = vector.broadcast %57 : vector<8x1xf32> to vector<8x8xf32>
    %59 = arith.divf %55, %58 : vector<8x8xf32>
    %60 = arith.truncf %59 : vector<8x8xf32> to vector<8x8xbf16>
    %cst_34 = arith.constant dense<0.000000e+00> : vector<8x8xf32>
    %61 = tpu.matmul %60, %49, %cst_34 {dimension_numbers = #tpu.dot_dimension_numbers<[1], [0], [0], [1], [0, 0, 1, 1], [], []>} : vector<8x8xbf16>, vector<8x8xbf16>, vector<8x8xf32> -> vector<8x8xf32>
    %62 = arith.truncf %61 : vector<8x8xf32> to vector<8x8xbf16>
    %c0_35 = arith.constant 0 : index
    %c0_36 = arith.constant 0 : index
    %c16_37 = arith.constant 16 : index
    %63 = vector.load %arg3[%c0_35, %c0_36, %c16_37] : memref<1x8x64xbf16, #tpu.memory_space<vmem>>, vector<1x8x8xbf16>
    %64 = vector.shape_cast %63 : vector<1x8x8xbf16> to vector<8x8xbf16>
    %65 = vector.shape_cast %62 : vector<8x8xbf16> to vector<1x8x8xbf16>
    tpu.vector_store %arg3[%c0_35, %c0_36, %c16_37], %65 {strides = array<i32>} : memref<1x8x64xbf16, #tpu.memory_space<vmem>>, vector<1x8x8xbf16>,
    %c0_38 = arith.constant 0 : index
    %c0_39 = arith.constant 0 : index
    %c24 = arith.constant 24 : index
    %66 = vector.load %arg2[%c0_38, %c0_39, %c24] : memref<1x8x192xbf16, #tpu.memory_space<vmem>>, vector<1x8x8xbf16>
    %67 = vector.shape_cast %66 : vector<1x8x8xbf16> to vector<8x8xbf16>
    %c0_40 = arith.constant 0 : index
    %c0_41 = arith.constant 0 : index
    %c88 = arith.constant 88 : index
    %68 = vector.load %arg2[%c0_40, %c0_41, %c88] : memref<1x8x192xbf16, #tpu.memory_space<vmem>>, vector<1x8x8xbf16>
    %69 = vector.shape_cast %68 : vector<1x8x8xbf16> to vector<8x8xbf16>
    %c0_42 = arith.constant 0 : index
    %c0_43 = arith.constant 0 : index
    %c152 = arith.constant 152 : index
    %70 = vector.load %arg2[%c0_42, %c0_43, %c152] : memref<1x8x192xbf16, #tpu.memory_space<vmem>>, vector<1x8x8xbf16>
    %71 = vector.shape_cast %70 : vector<1x8x8xbf16> to vector<8x8xbf16>
    %cst_44 = arith.constant dense<0.000000e+00> : vector<8x8xf32>
    %72 = tpu.matmul %67, %69, %cst_44 {dimension_numbers = #tpu.dot_dimension_numbers<[1], [1], [0], [0], [0, 0, 1, 0], [], []>} : vector<8x8xbf16>, vector<8x8xbf16>, vector<8x8xf32> -> vector<8x8xf32>
    %cst_45 = arith.constant dense<0xFF800000> : vector<8xf32>
    %73 = vector.multi_reduction <maximumf>, %72, %cst_45 [1] : vector<8x8xf32> to vector<8xf32>
    %74 = vector.shape_cast %73 : vector<8xf32> to vector<8x1xf32>
    %75 = vector.broadcast %74 : vector<8x1xf32> to vector<8x8xf32>
    %76 = arith.subf %72, %75 : vector<8x8xf32>
    %77 = math.exp %76 : vector<8x8xf32>
    %cst_46 = arith.constant dense<0.000000e+00> : vector<8xf32>
    %78 = vector.multi_reduction <add>, %77, %cst_46 [1] : vector<8x8xf32> to vector<8xf32>
    %79 = vector.shape_cast %78 : vector<8xf32> to vector<8x1xf32>
    %80 = vector.broadcast %79 : vector<8x1xf32> to vector<8x8xf32>
    %81 = arith.divf %77, %80 : vector<8x8xf32>
    %82 = arith.truncf %81 : vector<8x8xf32> to vector<8x8xbf16>
    %cst_47 = arith.constant dense<0.000000e+00> : vector<8x8xf32>
    %83 = tpu.matmul %82, %71, %cst_47 {dimension_numbers = #tpu.dot_dimension_numbers<[1], [0], [0], [1], [0, 0, 1, 1], [], []>} : vector<8x8xbf16>, vector<8x8xbf16>, vector<8x8xf32> -> vector<8x8xf32>
    %84 = arith.truncf %83 : vector<8x8xf32> to vector<8x8xbf16>
    %c0_48 = arith.constant 0 : index
    %c0_49 = arith.constant 0 : index
    %c24_50 = arith.constant 24 : index
    %85 = vector.load %arg3[%c0_48, %c0_49, %c24_50] : memref<1x8x64xbf16, #tpu.memory_space<vmem>>, vector<1x8x8xbf16>
    %86 = vector.shape_cast %85 : vector<1x8x8xbf16> to vector<8x8xbf16>
    %87 = vector.shape_cast %84 : vector<8x8xbf16> to vector<1x8x8xbf16>
    tpu.vector_store %arg3[%c0_48, %c0_49, %c24_50], %87 {strides = array<i32>} : memref<1x8x64xbf16, #tpu.memory_space<vmem>>, vector<1x8x8xbf16>,
    %c0_51 = arith.constant 0 : index
    %c0_52 = arith.constant 0 : index
    %c32 = arith.constant 32 : index
    %88 = vector.load %arg2[%c0_51, %c0_52, %c32] : memref<1x8x192xbf16, #tpu.memory_space<vmem>>, vector<1x8x8xbf16>
    %89 = vector.shape_cast %88 : vector<1x8x8xbf16> to vector<8x8xbf16>
    %c0_53 = arith.constant 0 : index
    %c0_54 = arith.constant 0 : index
    %c96 = arith.constant 96 : index
    %90 = vector.load %arg2[%c0_53, %c0_54, %c96] : memref<1x8x192xbf16, #tpu.memory_space<vmem>>, vector<1x8x8xbf16>
    %91 = vector.shape_cast %90 : vector<1x8x8xbf16> to vector<8x8xbf16>
    %c0_55 = arith.constant 0 : index
    %c0_56 = arith.constant 0 : index
    %c160 = arith.constant 160 : index
    %92 = vector.load %arg2[%c0_55, %c0_56, %c160] : memref<1x8x192xbf16, #tpu.memory_space<vmem>>, vector<1x8x8xbf16>
    %93 = vector.shape_cast %92 : vector<1x8x8xbf16> to vector<8x8xbf16>
    %cst_57 = arith.constant dense<0.000000e+00> : vector<8x8xf32>
    %94 = tpu.matmul %89, %91, %cst_57 {dimension_numbers = #tpu.dot_dimension_numbers<[1], [1], [0], [0], [0, 0, 1, 0], [], []>} : vector<8x8xbf16>, vector<8x8xbf16>, vector<8x8xf32> -> vector<8x8xf32>
    %cst_58 = arith.constant dense<0xFF800000> : vector<8xf32>
    %95 = vector.multi_reduction <maximumf>, %94, %cst_58 [1] : vector<8x8xf32> to vector<8xf32>
    %96 = vector.shape_cast %95 : vector<8xf32> to vector<8x1xf32>
    %97 = vector.broadcast %96 : vector<8x1xf32> to vector<8x8xf32>
    %98 = arith.subf %94, %97 : vector<8x8xf32>
    %99 = math.exp %98 : vector<8x8xf32>
    %cst_59 = arith.constant dense<0.000000e+00> : vector<8xf32>
    %100 = vector.multi_reduction <add>, %99, %cst_59 [1] : vector<8x8xf32> to vector<8xf32>
    %101 = vector.shape_cast %100 : vector<8xf32> to vector<8x1xf32>
    %102 = vector.broadcast %101 : vector<8x1xf32> to vector<8x8xf32>
    %103 = arith.divf %99, %102 : vector<8x8xf32>
    %104 = arith.truncf %103 : vector<8x8xf32> to vector<8x8xbf16>
    %cst_60 = arith.constant dense<0.000000e+00> : vector<8x8xf32>
    %105 = tpu.matmul %104, %93, %cst_60 {dimension_numbers = #tpu.dot_dimension_numbers<[1], [0], [0], [1], [0, 0, 1, 1], [], []>} : vector<8x8xbf16>, vector<8x8xbf16>, vector<8x8xf32> -> vector<8x8xf32>
    %106 = arith.truncf %105 : vector<8x8xf32> to vector<8x8xbf16>
    %c0_61 = arith.constant 0 : index
    %c0_62 = arith.constant 0 : index
    %c32_63 = arith.constant 32 : index
    %107 = vector.load %arg3[%c0_61, %c0_62, %c32_63] : memref<1x8x64xbf16, #tpu.memory_space<vmem>>, vector<1x8x8xbf16>
    %108 = vector.shape_cast %107 : vector<1x8x8xbf16> to vector<8x8xbf16>
    %109 = vector.shape_cast %106 : vector<8x8xbf16> to vector<1x8x8xbf16>
    tpu.vector_store %arg3[%c0_61, %c0_62, %c32_63], %109 {strides = array<i32>} : memref<1x8x64xbf16, #tpu.memory_space<vmem>>, vector<1x8x8xbf16>,
    %c0_64 = arith.constant 0 : index
    %c0_65 = arith.constant 0 : index
    %c40 = arith.constant 40 : index
    %110 = vector.load %arg2[%c0_64, %c0_65, %c40] : memref<1x8x192xbf16, #tpu.memory_space<vmem>>, vector<1x8x8xbf16>
    %111 = vector.shape_cast %110 : vector<1x8x8xbf16> to vector<8x8xbf16>
    %c0_66 = arith.constant 0 : index
    %c0_67 = arith.constant 0 : index
    %c104 = arith.constant 104 : index
    %112 = vector.load %arg2[%c0_66, %c0_67, %c104] : memref<1x8x192xbf16, #tpu.memory_space<vmem>>, vector<1x8x8xbf16>
    %113 = vector.shape_cast %112 : vector<1x8x8xbf16> to vector<8x8xbf16>
    %c0_68 = arith.constant 0 : index
    %c0_69 = arith.constant 0 : index
    %c168 = arith.constant 168 : index
    %114 = vector.load %arg2[%c0_68, %c0_69, %c168] : memref<1x8x192xbf16, #tpu.memory_space<vmem>>, vector<1x8x8xbf16>
    %115 = vector.shape_cast %114 : vector<1x8x8xbf16> to vector<8x8xbf16>
    %cst_70 = arith.constant dense<0.000000e+00> : vector<8x8xf32>
    %116 = tpu.matmul %111, %113, %cst_70 {dimension_numbers = #tpu.dot_dimension_numbers<[1], [1], [0], [0], [0, 0, 1, 0], [], []>} : vector<8x8xbf16>, vector<8x8xbf16>, vector<8x8xf32> -> vector<8x8xf32>
    %cst_71 = arith.constant dense<0xFF800000> : vector<8xf32>
    %117 = vector.multi_reduction <maximumf>, %116, %cst_71 [1] : vector<8x8xf32> to vector<8xf32>
    %118 = vector.shape_cast %117 : vector<8xf32> to vector<8x1xf32>
    %119 = vector.broadcast %118 : vector<8x1xf32> to vector<8x8xf32>
    %120 = arith.subf %116, %119 : vector<8x8xf32>
    %121 = math.exp %120 : vector<8x8xf32>
    %cst_72 = arith.constant dense<0.000000e+00> : vector<8xf32>
    %122 = vector.multi_reduction <add>, %121, %cst_72 [1] : vector<8x8xf32> to vector<8xf32>
    %123 = vector.shape_cast %122 : vector<8xf32> to vector<8x1xf32>
    %124 = vector.broadcast %123 : vector<8x1xf32> to vector<8x8xf32>
    %125 = arith.divf %121, %124 : vector<8x8xf32>
    %126 = arith.truncf %125 : vector<8x8xf32> to vector<8x8xbf16>
    %cst_73 = arith.constant dense<0.000000e+00> : vector<8x8xf32>
    %127 = tpu.matmul %126, %115, %cst_73 {dimension_numbers = #tpu.dot_dimension_numbers<[1], [0], [0], [1], [0, 0, 1, 1], [], []>} : vector<8x8xbf16>, vector<8x8xbf16>, vector<8x8xf32> -> vector<8x8xf32>
    %128 = arith.truncf %127 : vector<8x8xf32> to vector<8x8xbf16>
    %c0_74 = arith.constant 0 : index
    %c0_75 = arith.constant 0 : index
    %c40_76 = arith.constant 40 : index
    %129 = vector.load %arg3[%c0_74, %c0_75, %c40_76] : memref<1x8x64xbf16, #tpu.memory_space<vmem>>, vector<1x8x8xbf16>
    %130 = vector.shape_cast %129 : vector<1x8x8xbf16> to vector<8x8xbf16>
    %131 = vector.shape_cast %128 : vector<8x8xbf16> to vector<1x8x8xbf16>
    tpu.vector_store %arg3[%c0_74, %c0_75, %c40_76], %131 {strides = array<i32>} : memref<1x8x64xbf16, #tpu.memory_space<vmem>>, vector<1x8x8xbf16>,
    %c0_77 = arith.constant 0 : index
    %c0_78 = arith.constant 0 : index
    %c48 = arith.constant 48 : index
    %132 = vector.load %arg2[%c0_77, %c0_78, %c48] : memref<1x8x192xbf16, #tpu.memory_space<vmem>>, vector<1x8x8xbf16>
    %133 = vector.shape_cast %132 : vector<1x8x8xbf16> to vector<8x8xbf16>
    %c0_79 = arith.constant 0 : index
    %c0_80 = arith.constant 0 : index
    %c112 = arith.constant 112 : index
    %134 = vector.load %arg2[%c0_79, %c0_80, %c112] : memref<1x8x192xbf16, #tpu.memory_space<vmem>>, vector<1x8x8xbf16>
    %135 = vector.shape_cast %134 : vector<1x8x8xbf16> to vector<8x8xbf16>
    %c0_81 = arith.constant 0 : index
    %c0_82 = arith.constant 0 : index
    %c176 = arith.constant 176 : index
    %136 = vector.load %arg2[%c0_81, %c0_82, %c176] : memref<1x8x192xbf16, #tpu.memory_space<vmem>>, vector<1x8x8xbf16>
    %137 = vector.shape_cast %136 : vector<1x8x8xbf16> to vector<8x8xbf16>
    %cst_83 = arith.constant dense<0.000000e+00> : vector<8x8xf32>
    %138 = tpu.matmul %133, %135, %cst_83 {dimension_numbers = #tpu.dot_dimension_numbers<[1], [1], [0], [0], [0, 0, 1, 0], [], []>} : vector<8x8xbf16>, vector<8x8xbf16>, vector<8x8xf32> -> vector<8x8xf32>
    %cst_84 = arith.constant dense<0xFF800000> : vector<8xf32>
    %139 = vector.multi_reduction <maximumf>, %138, %cst_84 [1] : vector<8x8xf32> to vector<8xf32>
    %140 = vector.shape_cast %139 : vector<8xf32> to vector<8x1xf32>
    %141 = vector.broadcast %140 : vector<8x1xf32> to vector<8x8xf32>
    %142 = arith.subf %138, %141 : vector<8x8xf32>
    %143 = math.exp %142 : vector<8x8xf32>
    %cst_85 = arith.constant dense<0.000000e+00> : vector<8xf32>
    %144 = vector.multi_reduction <add>, %143, %cst_85 [1] : vector<8x8xf32> to vector<8xf32>
    %145 = vector.shape_cast %144 : vector<8xf32> to vector<8x1xf32>
    %146 = vector.broadcast %145 : vector<8x1xf32> to vector<8x8xf32>
    %147 = arith.divf %143, %146 : vector<8x8xf32>
    %148 = arith.truncf %147 : vector<8x8xf32> to vector<8x8xbf16>
    %cst_86 = arith.constant dense<0.000000e+00> : vector<8x8xf32>
    %149 = tpu.matmul %148, %137, %cst_86 {dimension_numbers = #tpu.dot_dimension_numbers<[1], [0], [0], [1], [0, 0, 1, 1], [], []>} : vector<8x8xbf16>, vector<8x8xbf16>, vector<8x8xf32> -> vector<8x8xf32>
    %150 = arith.truncf %149 : vector<8x8xf32> to vector<8x8xbf16>
    %c0_87 = arith.constant 0 : index
    %c0_88 = arith.constant 0 : index
    %c48_89 = arith.constant 48 : index
    %151 = vector.load %arg3[%c0_87, %c0_88, %c48_89] : memref<1x8x64xbf16, #tpu.memory_space<vmem>>, vector<1x8x8xbf16>
    %152 = vector.shape_cast %151 : vector<1x8x8xbf16> to vector<8x8xbf16>
    %153 = vector.shape_cast %150 : vector<8x8xbf16> to vector<1x8x8xbf16>
    tpu.vector_store %arg3[%c0_87, %c0_88, %c48_89], %153 {strides = array<i32>} : memref<1x8x64xbf16, #tpu.memory_space<vmem>>, vector<1x8x8xbf16>,
    %c0_90 = arith.constant 0 : index
    %c0_91 = arith.constant 0 : index
    %c56 = arith.constant 56 : index
    %154 = vector.load %arg2[%c0_90, %c0_91, %c56] : memref<1x8x192xbf16, #tpu.memory_space<vmem>>, vector<1x8x8xbf16>
    %155 = vector.shape_cast %154 : vector<1x8x8xbf16> to vector<8x8xbf16>
    %c0_92 = arith.constant 0 : index
    %c0_93 = arith.constant 0 : index
    %c120 = arith.constant 120 : index
    %156 = vector.load %arg2[%c0_92, %c0_93, %c120] : memref<1x8x192xbf16, #tpu.memory_space<vmem>>, vector<1x8x8xbf16>
    %157 = vector.shape_cast %156 : vector<1x8x8xbf16> to vector<8x8xbf16>
    %c0_94 = arith.constant 0 : index
    %c0_95 = arith.constant 0 : index
    %c184 = arith.constant 184 : index
    %158 = vector.load %arg2[%c0_94, %c0_95, %c184] : memref<1x8x192xbf16, #tpu.memory_space<vmem>>, vector<1x8x8xbf16>
    %159 = vector.shape_cast %158 : vector<1x8x8xbf16> to vector<8x8xbf16>
    %cst_96 = arith.constant dense<0.000000e+00> : vector<8x8xf32>
    %160 = tpu.matmul %155, %157, %cst_96 {dimension_numbers = #tpu.dot_dimension_numbers<[1], [1], [0], [0], [0, 0, 1, 0], [], []>} : vector<8x8xbf16>, vector<8x8xbf16>, vector<8x8xf32> -> vector<8x8xf32>
    %cst_97 = arith.constant dense<0xFF800000> : vector<8xf32>
    %161 = vector.multi_reduction <maximumf>, %160, %cst_97 [1] : vector<8x8xf32> to vector<8xf32>
    %162 = vector.shape_cast %161 : vector<8xf32> to vector<8x1xf32>
    %163 = vector.broadcast %162 : vector<8x1xf32> to vector<8x8xf32>
    %164 = arith.subf %160, %163 : vector<8x8xf32>
    %165 = math.exp %164 : vector<8x8xf32>
    %cst_98 = arith.constant dense<0.000000e+00> : vector<8xf32>
    %166 = vector.multi_reduction <add>, %165, %cst_98 [1] : vector<8x8xf32> to vector<8xf32>
    %167 = vector.shape_cast %166 : vector<8xf32> to vector<8x1xf32>
    %168 = vector.broadcast %167 : vector<8x1xf32> to vector<8x8xf32>
    %169 = arith.divf %165, %168 : vector<8x8xf32>
    %170 = arith.truncf %169 : vector<8x8xf32> to vector<8x8xbf16>
    %cst_99 = arith.constant dense<0.000000e+00> : vector<8x8xf32>
    %171 = tpu.matmul %170, %159, %cst_99 {dimension_numbers = #tpu.dot_dimension_numbers<[1], [0], [0], [1], [0, 0, 1, 1], [], []>} : vector<8x8xbf16>, vector<8x8xbf16>, vector<8x8xf32> -> vector<8x8xf32>
    %172 = arith.truncf %171 : vector<8x8xf32> to vector<8x8xbf16>
    %c0_100 = arith.constant 0 : index
    %c0_101 = arith.constant 0 : index
    %c56_102 = arith.constant 56 : index
    %173 = vector.load %arg3[%c0_100, %c0_101, %c56_102] : memref<1x8x64xbf16, #tpu.memory_space<vmem>>, vector<1x8x8xbf16>
    %174 = vector.shape_cast %173 : vector<1x8x8xbf16> to vector<8x8xbf16>
    %175 = vector.shape_cast %172 : vector<8x8xbf16> to vector<1x8x8xbf16>
    tpu.vector_store %arg3[%c0_100, %c0_101, %c56_102], %175 {strides = array<i32>} : memref<1x8x64xbf16, #tpu.memory_space<vmem>>, vector<1x8x8xbf16>,
    return
  }
  func.func @transform_0(%arg0: i32, %arg1: i32) -> (i32, i32, i32) {
    %c0_i32 = arith.constant 0 : i32
    %c0_i32_0 = arith.constant 0 : i32
    %c0_i32_1 = arith.constant 0 : i32
    return %arg0, %c0_i32, %c0_i32_0 : i32, i32, i32
  }
  func.func @transform_1(%arg0: i32, %arg1: i32) -> (i32, i32, i32) {
    %c0_i32 = arith.constant 0 : i32
    %c0_i32_0 = arith.constant 0 : i32
    return %arg0, %arg1, %c0_i32 : i32, i32, i32
  }
}

module attributes {stable_mosaic.version = 11 : i64} {
  func.func @kernel(%arg0: i32, %arg1: i32, %arg2: memref<16x64xbf16, #tpu.memory_space<vmem>>, %arg3: memref<64x128xbf16, #tpu.memory_space<vmem>>, %arg4: memref<1x128xf32, #tpu.memory_space<vmem>>, %arg5: memref<16x128xbf16, #tpu.memory_space<vmem>>, %arg6: memref<16x128xbf16, #tpu.memory_space<vmem>>) attributes {dimension_semantics = [#tpu.dimension_semantics<parallel>, #tpu.dimension_semantics<parallel>], iteration_bounds = array<i64: 1, 1>, scalar_prefetch = 0 : i64, scratch_operands = 0 : i64, tpu.core_type = #tpu.core_type<tc>, window_params = [{transform_indices = @transform_0, window_bounds = array<i64: 16, 64>}, {transform_indices = @transform_1, window_bounds = array<i64: 64, 128>}, {transform_indices = @transform_2, window_bounds = array<i64: 1, 128>}, {transform_indices = @transform_3, window_bounds = array<i64: 16, 128>}, {transform_indices = @transform_4, window_bounds = array<i64: 16, 128>}]} {
    %c0 = arith.constant 0 : index
    %c0_0 = arith.constant 0 : index
    %0 = vector.load %arg2[%c0, %c0_0] : memref<16x64xbf16, #tpu.memory_space<vmem>>, vector<16x64xbf16>
    %c0_1 = arith.constant 0 : index
    %c0_2 = arith.constant 0 : index
    %1 = vector.load %arg3[%c0_1, %c0_2] : memref<64x128xbf16, #tpu.memory_space<vmem>>, vector<64x128xbf16>
    %cst = arith.constant dense<0.000000e+00> : vector<16x128xf32>
    %2 = tpu.matmul %0, %1, %cst {dimension_numbers = #tpu.dot_dimension_numbers<[1], [0], [0], [1], [0, 0, 1, 1], [], []>} : vector<16x64xbf16>, vector<64x128xbf16>, vector<16x128xf32> -> vector<16x128xf32>
    %c0_3 = arith.constant 0 : index
    %c0_4 = arith.constant 0 : index
    %3 = vector.load %arg4[%c0_3, %c0_4] : memref<1x128xf32, #tpu.memory_space<vmem>>, vector<1x128xf32>
    %4 = vector.broadcast %3 : vector<1x128xf32> to vector<16x128xf32>
    %5 = arith.addf %2, %4 : vector<16x128xf32>
    %c0_5 = arith.constant 0 : index
    %c0_6 = arith.constant 0 : index
    %6 = vector.load %arg5[%c0_5, %c0_6] : memref<16x128xbf16, #tpu.memory_space<vmem>>, vector<16x128xbf16>
    %7 = arith.extf %6 : vector<16x128xbf16> to vector<16x128xf32>
    %8 = arith.addf %5, %7 : vector<16x128xf32>
    %9 = arith.truncf %8 : vector<16x128xf32> to vector<16x128xbf16>
    %c0_7 = arith.constant 0 : index
    %c0_8 = arith.constant 0 : index
    %10 = vector.load %arg6[%c0_7, %c0_8] : memref<16x128xbf16, #tpu.memory_space<vmem>>, vector<16x128xbf16>
    tpu.vector_store %arg6[%c0_7, %c0_8], %9 {strides = array<i32>} : memref<16x128xbf16, #tpu.memory_space<vmem>>, vector<16x128xbf16>,
    return
  }
  func.func @transform_0(%arg0: i32, %arg1: i32) -> (i32, i32) {
    %c0_i32 = arith.constant 0 : i32
    %c0_i32_0 = arith.constant 0 : i32
    return %arg0, %c0_i32 : i32, i32
  }
  func.func @transform_1(%arg0: i32, %arg1: i32) -> (i32, i32) {
    %c0_i32 = arith.constant 0 : i32
    %c0_i32_0 = arith.constant 0 : i32
    return %c0_i32, %arg1 : i32, i32
  }
  func.func @transform_2(%arg0: i32, %arg1: i32) -> (i32, i32) {
    %c0_i32 = arith.constant 0 : i32
    %c0_i32_0 = arith.constant 0 : i32
    return %c0_i32, %arg1 : i32, i32
  }
  func.func @transform_3(%arg0: i32, %arg1: i32) -> (i32, i32) {
    %c0_i32 = arith.constant 0 : i32
    return %arg0, %arg1 : i32, i32
  }
  func.func @transform_4(%arg0: i32, %arg1: i32) -> (i32, i32) {
    %c0_i32 = arith.constant 0 : i32
    return %arg0, %arg1 : i32, i32
  }
}

module attributes {stable_mosaic.version = 11 : i64} {
  func.func @kernel(%arg0: i32, %arg1: i32, %arg2: memref<16x64xbf16, #tpu.memory_space<vmem>>, %arg3: memref<1x64xf32, #tpu.memory_space<vmem>>, %arg4: memref<1x64xf32, #tpu.memory_space<vmem>>, %arg5: memref<64x256xbf16, #tpu.memory_space<vmem>>, %arg6: memref<1x256xf32, #tpu.memory_space<vmem>>, %arg7: memref<16x256xbf16, #tpu.memory_space<vmem>>) attributes {dimension_semantics = [#tpu.dimension_semantics<parallel>, #tpu.dimension_semantics<parallel>], iteration_bounds = array<i64: 1, 1>, scalar_prefetch = 0 : i64, scratch_operands = 0 : i64, tpu.core_type = #tpu.core_type<tc>, window_params = [{transform_indices = @transform_0, window_bounds = array<i64: 16, 64>}, {pipeline_mode = #tpu.pipeline_mode<synchronous>, transform_indices = @transform_1, window_bounds = array<i64: 1, 64>}, {pipeline_mode = #tpu.pipeline_mode<synchronous>, transform_indices = @transform_2, window_bounds = array<i64: 1, 64>}, {transform_indices = @transform_3, window_bounds = array<i64: 64, 256>}, {transform_indices = @transform_4, window_bounds = array<i64: 1, 256>}, {transform_indices = @transform_5, window_bounds = array<i64: 16, 256>}]} {
    %c0 = arith.constant 0 : index
    %c0_0 = arith.constant 0 : index
    %0 = vector.load %arg2[%c0, %c0_0] : memref<16x64xbf16, #tpu.memory_space<vmem>>, vector<16x64xbf16>
    %1 = arith.extf %0 : vector<16x64xbf16> to vector<16x64xf32>
    %cst = arith.constant dense<0.000000e+00> : vector<16xf32>
    %2 = vector.multi_reduction <add>, %1, %cst [1] : vector<16x64xf32> to vector<16xf32>
    %3 = vector.shape_cast %2 : vector<16xf32> to vector<16x1xf32>
    %cst_1 = arith.constant 6.400000e+01 : f32
    %4 = vector.broadcast %cst_1 : f32 to vector<16x1xf32>
    %5 = arith.divf %3, %4 : vector<16x1xf32>
    %6 = vector.broadcast %5 : vector<16x1xf32> to vector<16x64xf32>
    %7 = arith.subf %1, %6 : vector<16x64xf32>
    %8 = arith.mulf %7, %7 : vector<16x64xf32>
    %cst_2 = arith.constant dense<0.000000e+00> : vector<16xf32>
    %9 = vector.multi_reduction <add>, %8, %cst_2 [1] : vector<16x64xf32> to vector<16xf32>
    %10 = vector.shape_cast %9 : vector<16xf32> to vector<16x1xf32>
    %cst_3 = arith.constant 6.400000e+01 : f32
    %11 = vector.broadcast %cst_3 : f32 to vector<16x1xf32>
    %12 = arith.divf %10, %11 : vector<16x1xf32>
    %13 = vector.broadcast %5 : vector<16x1xf32> to vector<16x64xf32>
    %14 = arith.subf %1, %13 : vector<16x64xf32>
    %cst_4 = arith.constant 9.99999974E-6 : f32
    %15 = vector.broadcast %cst_4 : f32 to vector<16x1xf32>
    %16 = arith.addf %12, %15 : vector<16x1xf32>
    %17 = math.rsqrt %16 : vector<16x1xf32>
    %18 = vector.broadcast %17 : vector<16x1xf32> to vector<16x64xf32>
    %19 = arith.mulf %14, %18 : vector<16x64xf32>
    %c0_5 = arith.constant 0 : index
    %c0_6 = arith.constant 0 : index
    %20 = vector.load %arg3[%c0_5, %c0_6] : memref<1x64xf32, #tpu.memory_space<vmem>>, vector<1x64xf32>
    %21 = vector.broadcast %20 : vector<1x64xf32> to vector<16x64xf32>
    %22 = arith.mulf %19, %21 : vector<16x64xf32>
    %c0_7 = arith.constant 0 : index
    %c0_8 = arith.constant 0 : index
    %23 = vector.load %arg4[%c0_7, %c0_8] : memref<1x64xf32, #tpu.memory_space<vmem>>, vector<1x64xf32>
    %24 = vector.broadcast %23 : vector<1x64xf32> to vector<16x64xf32>
    %25 = arith.addf %22, %24 : vector<16x64xf32>
    %26 = arith.truncf %25 : vector<16x64xf32> to vector<16x64xbf16>
    %c0_9 = arith.constant 0 : index
    %c0_10 = arith.constant 0 : index
    %27 = vector.load %arg5[%c0_9, %c0_10] : memref<64x256xbf16, #tpu.memory_space<vmem>>, vector<64x256xbf16>
    %cst_11 = arith.constant dense<0.000000e+00> : vector<16x256xf32>
    %28 = tpu.matmul %26, %27, %cst_11 {dimension_numbers = #tpu.dot_dimension_numbers<[1], [0], [0], [1], [0, 0, 1, 1], [], []>} : vector<16x64xbf16>, vector<64x256xbf16>, vector<16x256xf32> -> vector<16x256xf32>
    %c0_12 = arith.constant 0 : index
    %c0_13 = arith.constant 0 : index
    %29 = vector.load %arg6[%c0_12, %c0_13] : memref<1x256xf32, #tpu.memory_space<vmem>>, vector<1x256xf32>
    %30 = vector.broadcast %29 : vector<1x256xf32> to vector<16x256xf32>
    %31 = arith.addf %28, %30 : vector<16x256xf32>
    %32 = arith.mulf %31, %31 : vector<16x256xf32>
    %33 = arith.mulf %31, %32 : vector<16x256xf32>
    %cst_14 = arith.constant 4.471500e-02 : f32
    %34 = vector.broadcast %cst_14 : f32 to vector<16x256xf32>
    %35 = arith.mulf %34, %33 : vector<16x256xf32>
    %36 = arith.addf %31, %35 : vector<16x256xf32>
    %cst_15 = arith.constant 0.797884583 : f32
    %37 = vector.broadcast %cst_15 : f32 to vector<16x256xf32>
    %38 = arith.mulf %37, %36 : vector<16x256xf32>
    %39 = math.tanh %38 : vector<16x256xf32>
    %cst_16 = arith.constant 1.000000e+00 : f32
    %40 = vector.broadcast %cst_16 : f32 to vector<16x256xf32>
    %41 = arith.addf %40, %39 : vector<16x256xf32>
    %cst_17 = arith.constant 5.000000e-01 : f32
    %42 = vector.broadcast %cst_17 : f32 to vector<16x256xf32>
    %43 = arith.mulf %42, %41 : vector<16x256xf32>
    %44 = arith.mulf %31, %43 : vector<16x256xf32>
    %45 = arith.truncf %44 : vector<16x256xf32> to vector<16x256xbf16>
    %c0_18 = arith.constant 0 : index
    %c0_19 = arith.constant 0 : index
    %46 = vector.load %arg7[%c0_18, %c0_19] : memref<16x256xbf16, #tpu.memory_space<vmem>>, vector<16x256xbf16>
    tpu.vector_store %arg7[%c0_18, %c0_19], %45 {strides = array<i32>} : memref<16x256xbf16, #tpu.memory_space<vmem>>, vector<16x256xbf16>,
    return
  }
  func.func @transform_0(%arg0: i32, %arg1: i32) -> (i32, i32) {
    %c0_i32 = arith.constant 0 : i32
    %c0_i32_0 = arith.constant 0 : i32
    return %arg0, %c0_i32 : i32, i32
  }
  func.func @transform_1(%arg0: i32, %arg1: i32) -> (i32, i32) {
    %c0_i32 = arith.constant 0 : i32
    %c0_i32_0 = arith.constant 0 : i32
    %c0_i32_1 = arith.constant 0 : i32
    return %c0_i32, %c0_i32_0 : i32, i32
  }
  func.func @transform_2(%arg0: i32, %arg1: i32) -> (i32, i32) {
    %c0_i32 = arith.constant 0 : i32
    %c0_i32_0 = arith.constant 0 : i32
    %c0_i32_1 = arith.constant 0 : i32
    return %c0_i32, %c0_i32_0 : i32, i32
  }
  func.func @transform_3(%arg0: i32, %arg1: i32) -> (i32, i32) {
    %c0_i32 = arith.constant 0 : i32
    %c0_i32_0 = arith.constant 0 : i32
    return %c0_i32, %arg1 : i32, i32
  }
  func.func @transform_4(%arg0: i32, %arg1: i32) -> (i32, i32) {
    %c0_i32 = arith.constant 0 : i32
    %c0_i32_0 = arith.constant 0 : i32
    return %c0_i32, %arg1 : i32, i32
  }
  func.func @transform_5(%arg0: i32, %arg1: i32) -> (i32, i32) {
    %c0_i32 = arith.constant 0 : i32
    return %arg0, %arg1 : i32, i32
  }
}

module attributes {stable_mosaic.version = 11 : i64} {
  func.func @kernel(%arg0: i32, %arg1: i32, %arg2: memref<16x256xbf16, #tpu.memory_space<vmem>>, %arg3: memref<256x128xbf16, #tpu.memory_space<vmem>>, %arg4: memref<1x128xf32, #tpu.memory_space<vmem>>, %arg5: memref<16x128xbf16, #tpu.memory_space<vmem>>, %arg6: memref<16x128xbf16, #tpu.memory_space<vmem>>) attributes {dimension_semantics = [#tpu.dimension_semantics<parallel>, #tpu.dimension_semantics<parallel>], iteration_bounds = array<i64: 1, 1>, scalar_prefetch = 0 : i64, scratch_operands = 0 : i64, tpu.core_type = #tpu.core_type<tc>, window_params = [{transform_indices = @transform_0, window_bounds = array<i64: 16, 256>}, {transform_indices = @transform_1, window_bounds = array<i64: 256, 128>}, {transform_indices = @transform_2, window_bounds = array<i64: 1, 128>}, {transform_indices = @transform_3, window_bounds = array<i64: 16, 128>}, {transform_indices = @transform_4, window_bounds = array<i64: 16, 128>}]} {
    %c0 = arith.constant 0 : index
    %c0_0 = arith.constant 0 : index
    %0 = vector.load %arg2[%c0, %c0_0] : memref<16x256xbf16, #tpu.memory_space<vmem>>, vector<16x256xbf16>
    %c0_1 = arith.constant 0 : index
    %c0_2 = arith.constant 0 : index
    %1 = vector.load %arg3[%c0_1, %c0_2] : memref<256x128xbf16, #tpu.memory_space<vmem>>, vector<256x128xbf16>
    %cst = arith.constant dense<0.000000e+00> : vector<16x128xf32>
    %2 = tpu.matmul %0, %1, %cst {dimension_numbers = #tpu.dot_dimension_numbers<[1], [0], [0], [1], [0, 0, 1, 1], [], []>} : vector<16x256xbf16>, vector<256x128xbf16>, vector<16x128xf32> -> vector<16x128xf32>
    %c0_3 = arith.constant 0 : index
    %c0_4 = arith.constant 0 : index
    %3 = vector.load %arg4[%c0_3, %c0_4] : memref<1x128xf32, #tpu.memory_space<vmem>>, vector<1x128xf32>
    %4 = vector.broadcast %3 : vector<1x128xf32> to vector<16x128xf32>
    %5 = arith.addf %2, %4 : vector<16x128xf32>
    %c0_5 = arith.constant 0 : index
    %c0_6 = arith.constant 0 : index
    %6 = vector.load %arg5[%c0_5, %c0_6] : memref<16x128xbf16, #tpu.memory_space<vmem>>, vector<16x128xbf16>
    %7 = arith.extf %6 : vector<16x128xbf16> to vector<16x128xf32>
    %8 = arith.addf %5, %7 : vector<16x128xf32>
    %9 = arith.truncf %8 : vector<16x128xf32> to vector<16x128xbf16>
    %c0_7 = arith.constant 0 : index
    %c0_8 = arith.constant 0 : index
    %10 = vector.load %arg6[%c0_7, %c0_8] : memref<16x128xbf16, #tpu.memory_space<vmem>>, vector<16x128xbf16>
    tpu.vector_store %arg6[%c0_7, %c0_8], %9 {strides = array<i32>} : memref<16x128xbf16, #tpu.memory_space<vmem>>, vector<16x128xbf16>,
    return
  }
  func.func @transform_0(%arg0: i32, %arg1: i32) -> (i32, i32) {
    %c0_i32 = arith.constant 0 : i32
    %c0_i32_0 = arith.constant 0 : i32
    return %arg0, %c0_i32 : i32, i32
  }
  func.func @transform_1(%arg0: i32, %arg1: i32) -> (i32, i32) {
    %c0_i32 = arith.constant 0 : i32
    %c0_i32_0 = arith.constant 0 : i32
    return %c0_i32, %arg1 : i32, i32
  }
  func.func @transform_2(%arg0: i32, %arg1: i32) -> (i32, i32) {
    %c0_i32 = arith.constant 0 : i32
    %c0_i32_0 = arith.constant 0 : i32
    return %c0_i32, %arg1 : i32, i32
  }
  func.func @transform_3(%arg0: i32, %arg1: i32) -> (i32, i32) {
    %c0_i32 = arith.constant 0 : i32
    return %arg0, %arg1 : i32, i32
  }
  func.func @transform_4(%arg0: i32, %arg1: i32) -> (i32, i32) {
    %c0_i32 = arith.constant 0 : i32
    return %arg0, %arg1 : i32, i32
  }
}

module attributes {stable_mosaic.version = 11 : i64} {
  func.func @kernel(%arg0: i32, %arg1: i32, %arg2: memref<16x64xbf16, #tpu.memory_space<vmem>>, %arg3: memref<64x128xbf16, #tpu.memory_space<vmem>>, %arg4: memref<1x128xf32, #tpu.memory_space<vmem>>, %arg5: memref<16x128xf32, #tpu.memory_space<vmem>>) attributes {dimension_semantics = [#tpu.dimension_semantics<parallel>, #tpu.dimension_semantics<parallel>], iteration_bounds = array<i64: 1, 1>, scalar_prefetch = 0 : i64, scratch_operands = 0 : i64, tpu.core_type = #tpu.core_type<tc>, window_params = [{transform_indices = @transform_0, window_bounds = array<i64: 16, 64>}, {transform_indices = @transform_1, window_bounds = array<i64: 64, 128>}, {transform_indices = @transform_2, window_bounds = array<i64: 1, 128>}, {transform_indices = @transform_3, window_bounds = array<i64: 16, 128>}]} {
    %c0 = arith.constant 0 : index
    %c0_0 = arith.constant 0 : index
    %0 = vector.load %arg2[%c0, %c0_0] : memref<16x64xbf16, #tpu.memory_space<vmem>>, vector<16x64xbf16>
    %c0_1 = arith.constant 0 : index
    %c0_2 = arith.constant 0 : index
    %1 = vector.load %arg3[%c0_1, %c0_2] : memref<64x128xbf16, #tpu.memory_space<vmem>>, vector<64x128xbf16>
    %cst = arith.constant dense<0.000000e+00> : vector<16x128xf32>
    %2 = tpu.matmul %0, %1, %cst {dimension_numbers = #tpu.dot_dimension_numbers<[1], [0], [0], [1], [0, 0, 1, 1], [], []>} : vector<16x64xbf16>, vector<64x128xbf16>, vector<16x128xf32> -> vector<16x128xf32>
    %c0_3 = arith.constant 0 : index
    %c0_4 = arith.constant 0 : index
    %3 = vector.load %arg4[%c0_3, %c0_4] : memref<1x128xf32, #tpu.memory_space<vmem>>, vector<1x128xf32>
    %4 = vector.broadcast %3 : vector<1x128xf32> to vector<16x128xf32>
    %5 = arith.addf %2, %4 : vector<16x128xf32>
    %c0_5 = arith.constant 0 : index
    %c0_6 = arith.constant 0 : index
    %6 = vector.load %arg5[%c0_5, %c0_6] : memref<16x128xf32, #tpu.memory_space<vmem>>, vector<16x128xf32>
    tpu.vector_store %arg5[%c0_5, %c0_6], %5 {strides = array<i32>} : memref<16x128xf32, #tpu.memory_space<vmem>>, vector<16x128xf32>,
    return
  }
  func.func @transform_0(%arg0: i32, %arg1: i32) -> (i32, i32) {
    %c0_i32 = arith.constant 0 : i32
    %c0_i32_0 = arith.constant 0 : i32
    return %arg0, %c0_i32 : i32, i32
  }
  func.func @transform_1(%arg0: i32, %arg1: i32) -> (i32, i32) {
    %c0_i32 = arith.constant 0 : i32
    %c0_i32_0 = arith.constant 0 : i32
    return %c0_i32, %arg1 : i32, i32
  }
  func.func @transform_2(%arg0: i32, %arg1: i32) -> (i32, i32) {
    %c0_i32 = arith.constant 0 : i32
    %c0_i32_0 = arith.constant 0 : i32
    return %c0_i32, %arg1 : i32, i32
  }
  func.func @transform_3(%arg0: i32, %arg1: i32) -> (i32, i32) {
    %c0_i32 = arith.constant 0 : i32
    return %arg0, %arg1 : i32, i32
  }
}

module attributes {stable_mosaic.version = 11 : i64} {
  func.func @_attention_kernel(%arg0: i32, %arg1: i32, %arg2: memref<1x4x192xbf16, #tpu.memory_space<vmem>>, %arg3: memref<1x4x64xbf16, #tpu.memory_space<vmem>>) attributes {dimension_semantics = [#tpu.dimension_semantics<parallel>, #tpu.dimension_semantics<parallel>], iteration_bounds = array<i64: 2, 1>, scalar_prefetch = 0 : i64, scratch_operands = 0 : i64, tpu.core_type = #tpu.core_type<tc>, window_params = [{transform_indices = @transform_0, window_bounds = array<i64: 1, 4, 192>}, {transform_indices = @transform_1, window_bounds = array<i64: 1, 4, 64>}]} {
    %c0 = arith.constant 0 : index
    %c0_0 = arith.constant 0 : index
    %c0_1 = arith.constant 0 : index
    %0 = vector.load %arg2[%c0, %c0_0, %c0_1] : memref<1x4x192xbf16, #tpu.memory_space<vmem>>, vector<1x4x16xbf16>
    %1 = vector.shape_cast %0 : vector<1x4x16xbf16> to vector<4x16xbf16>
    %c0_2 = arith.constant 0 : index
    %c0_3 = arith.constant 0 : index
    %c64 = arith.constant 64 : index
    %2 = vector.load %arg2[%c0_2, %c0_3, %c64] : memref<1x4x192xbf16, #tpu.memory_space<vmem>>, vector<1x4x16xbf16>
    %3 = vector.shape_cast %2 : vector<1x4x16xbf16> to vector<4x16xbf16>
    %c0_4 = arith.constant 0 : index
    %c0_5 = arith.constant 0 : index
    %c128 = arith.constant 128 : index
    %4 = vector.load %arg2[%c0_4, %c0_5, %c128] : memref<1x4x192xbf16, #tpu.memory_space<vmem>>, vector<1x4x16xbf16>
    %5 = vector.shape_cast %4 : vector<1x4x16xbf16> to vector<4x16xbf16>
    %cst = arith.constant dense<0.000000e+00> : vector<4x4xf32>
    %6 = tpu.matmul %1, %3, %cst {dimension_numbers = #tpu.dot_dimension_numbers<[1], [1], [0], [0], [0, 0, 1, 0], [], []>} : vector<4x16xbf16>, vector<4x16xbf16>, vector<4x4xf32> -> vector<4x4xf32>
    %cst_6 = arith.constant dense<0xFF800000> : vector<4xf32>
    %7 = vector.multi_reduction <maximumf>, %6, %cst_6 [1] : vector<4x4xf32> to vector<4xf32>
    %8 = vector.shape_cast %7 : vector<4xf32> to vector<4x1xf32>
    %9 = vector.broadcast %8 : vector<4x1xf32> to vector<4x4xf32>
    %10 = arith.subf %6, %9 : vector<4x4xf32>
    %11 = math.exp %10 : vector<4x4xf32>
    %cst_7 = arith.constant dense<0.000000e+00> : vector<4xf32>
    %12 = vector.multi_reduction <add>, %11, %cst_7 [1] : vector<4x4xf32> to vector<4xf32>
    %13 = vector.shape_cast %12 : vector<4xf32> to vector<4x1xf32>
    %14 = vector.broadcast %13 : vector<4x1xf32> to vector<4x4xf32>
    %15 = arith.divf %11, %14 : vector<4x4xf32>
    %16 = arith.truncf %15 : vector<4x4xf32> to vector<4x4xbf16>
    %cst_8 = arith.constant dense<0.000000e+00> : vector<4x16xf32>
    %17 = tpu.matmul %16, %5, %cst_8 {dimension_numbers = #tpu.dot_dimension_numbers<[1], [0], [0], [1], [0, 0, 1, 1], [], []>} : vector<4x4xbf16>, vector<4x16xbf16>, vector<4x16xf32> -> vector<4x16xf32>
    %18 = arith.truncf %17 : vector<4x16xf32> to vector<4x16xbf16>
    %c0_9 = arith.constant 0 : index
    %c0_10 = arith.constant 0 : index
    %c0_11 = arith.constant 0 : index
    %19 = vector.load %arg3[%c0_9, %c0_10, %c0_11] : memref<1x4x64xbf16, #tpu.memory_space<vmem>>, vector<1x4x16xbf16>
    %20 = vector.shape_cast %19 : vector<1x4x16xbf16> to vector<4x16xbf16>
    %21 = vector.shape_cast %18 : vector<4x16xbf16> to vector<1x4x16xbf16>
    tpu.vector_store %arg3[%c0_9, %c0_10, %c0_11], %21 {strides = array<i32>} : memref<1x4x64xbf16, #tpu.memory_space<vmem>>, vector<1x4x16xbf16>,
    %c0_12 = arith.constant 0 : index
    %c0_13 = arith.constant 0 : index
    %c16 = arith.constant 16 : index
    %22 = vector.load %arg2[%c0_12, %c0_13, %c16] : memref<1x4x192xbf16, #tpu.memory_space<vmem>>, vector<1x4x16xbf16>
    %23 = vector.shape_cast %22 : vector<1x4x16xbf16> to vector<4x16xbf16>
    %c0_14 = arith.constant 0 : index
    %c0_15 = arith.constant 0 : index
    %c80 = arith.constant 80 : index
    %24 = vector.load %arg2[%c0_14, %c0_15, %c80] : memref<1x4x192xbf16, #tpu.memory_space<vmem>>, vector<1x4x16xbf16>
    %25 = vector.shape_cast %24 : vector<1x4x16xbf16> to vector<4x16xbf16>
    %c0_16 = arith.constant 0 : index
    %c0_17 = arith.constant 0 : index
    %c144 = arith.constant 144 : index
    %26 = vector.load %arg2[%c0_16, %c0_17, %c144] : memref<1x4x192xbf16, #tpu.memory_space<vmem>>, vector<1x4x16xbf16>
    %27 = vector.shape_cast %26 : vector<1x4x16xbf16> to vector<4x16xbf16>
    %cst_18 = arith.constant dense<0.000000e+00> : vector<4x4xf32>
    %28 = tpu.matmul %23, %25, %cst_18 {dimension_numbers = #tpu.dot_dimension_numbers<[1], [1], [0], [0], [0, 0, 1, 0], [], []>} : vector<4x16xbf16>, vector<4x16xbf16>, vector<4x4xf32> -> vector<4x4xf32>
    %cst_19 = arith.constant dense<0xFF800000> : vector<4xf32>
    %29 = vector.multi_reduction <maximumf>, %28, %cst_19 [1] : vector<4x4xf32> to vector<4xf32>
    %30 = vector.shape_cast %29 : vector<4xf32> to vector<4x1xf32>
    %31 = vector.broadcast %30 : vector<4x1xf32> to vector<4x4xf32>
    %32 = arith.subf %28, %31 : vector<4x4xf32>
    %33 = math.exp %32 : vector<4x4xf32>
    %cst_20 = arith.constant dense<0.000000e+00> : vector<4xf32>
    %34 = vector.multi_reduction <add>, %33, %cst_20 [1] : vector<4x4xf32> to vector<4xf32>
    %35 = vector.shape_cast %34 : vector<4xf32> to vector<4x1xf32>
    %36 = vector.broadcast %35 : vector<4x1xf32> to vector<4x4xf32>
    %37 = arith.divf %33, %36 : vector<4x4xf32>
    %38 = arith.truncf %37 : vector<4x4xf32> to vector<4x4xbf16>
    %cst_21 = arith.constant dense<0.000000e+00> : vector<4x16xf32>
    %39 = tpu.matmul %38, %27, %cst_21 {dimension_numbers = #tpu.dot_dimension_numbers<[1], [0], [0], [1], [0, 0, 1, 1], [], []>} : vector<4x4xbf16>, vector<4x16xbf16>, vector<4x16xf32> -> vector<4x16xf32>
    %40 = arith.truncf %39 : vector<4x16xf32> to vector<4x16xbf16>
    %c0_22 = arith.constant 0 : index
    %c0_23 = arith.constant 0 : index
    %c16_24 = arith.constant 16 : index
    %41 = vector.load %arg3[%c0_22, %c0_23, %c16_24] : memref<1x4x64xbf16, #tpu.memory_space<vmem>>, vector<1x4x16xbf16>
    %42 = vector.shape_cast %41 : vector<1x4x16xbf16> to vector<4x16xbf16>
    %43 = vector.shape_cast %40 : vector<4x16xbf16> to vector<1x4x16xbf16>
    tpu.vector_store %arg3[%c0_22, %c0_23, %c16_24], %43 {strides = array<i32>} : memref<1x4x64xbf16, #tpu.memory_space<vmem>>, vector<1x4x16xbf16>,
    %c0_25 = arith.constant 0 : index
    %c0_26 = arith.constant 0 : index
    %c32 = arith.constant 32 : index
    %44 = vector.load %arg2[%c0_25, %c0_26, %c32] : memref<1x4x192xbf16, #tpu.memory_space<vmem>>, vector<1x4x16xbf16>
    %45 = vector.shape_cast %44 : vector<1x4x16xbf16> to vector<4x16xbf16>
    %c0_27 = arith.constant 0 : index
    %c0_28 = arith.constant 0 : index
    %c96 = arith.constant 96 : index
    %46 = vector.load %arg2[%c0_27, %c0_28, %c96] : memref<1x4x192xbf16, #tpu.memory_space<vmem>>, vector<1x4x16xbf16>
    %47 = vector.shape_cast %46 : vector<1x4x16xbf16> to vector<4x16xbf16>
    %c0_29 = arith.constant 0 : index
    %c0_30 = arith.constant 0 : index
    %c160 = arith.constant 160 : index
    %48 = vector.load %arg2[%c0_29, %c0_30, %c160] : memref<1x4x192xbf16, #tpu.memory_space<vmem>>, vector<1x4x16xbf16>
    %49 = vector.shape_cast %48 : vector<1x4x16xbf16> to vector<4x16xbf16>
    %cst_31 = arith.constant dense<0.000000e+00> : vector<4x4xf32>
    %50 = tpu.matmul %45, %47, %cst_31 {dimension_numbers = #tpu.dot_dimension_numbers<[1], [1], [0], [0], [0, 0, 1, 0], [], []>} : vector<4x16xbf16>, vector<4x16xbf16>, vector<4x4xf32> -> vector<4x4xf32>
    %cst_32 = arith.constant dense<0xFF800000> : vector<4xf32>
    %51 = vector.multi_reduction <maximumf>, %50, %cst_32 [1] : vector<4x4xf32> to vector<4xf32>
    %52 = vector.shape_cast %51 : vector<4xf32> to vector<4x1xf32>
    %53 = vector.broadcast %52 : vector<4x1xf32> to vector<4x4xf32>
    %54 = arith.subf %50, %53 : vector<4x4xf32>
    %55 = math.exp %54 : vector<4x4xf32>
    %cst_33 = arith.constant dense<0.000000e+00> : vector<4xf32>
    %56 = vector.multi_reduction <add>, %55, %cst_33 [1] : vector<4x4xf32> to vector<4xf32>
    %57 = vector.shape_cast %56 : vector<4xf32> to vector<4x1xf32>
    %58 = vector.broadcast %57 : vector<4x1xf32> to vector<4x4xf32>
    %59 = arith.divf %55, %58 : vector<4x4xf32>
    %60 = arith.truncf %59 : vector<4x4xf32> to vector<4x4xbf16>
    %cst_34 = arith.constant dense<0.000000e+00> : vector<4x16xf32>
    %61 = tpu.matmul %60, %49, %cst_34 {dimension_numbers = #tpu.dot_dimension_numbers<[1], [0], [0], [1], [0, 0, 1, 1], [], []>} : vector<4x4xbf16>, vector<4x16xbf16>, vector<4x16xf32> -> vector<4x16xf32>
    %62 = arith.truncf %61 : vector<4x16xf32> to vector<4x16xbf16>
    %c0_35 = arith.constant 0 : index
    %c0_36 = arith.constant 0 : index
    %c32_37 = arith.constant 32 : index
    %63 = vector.load %arg3[%c0_35, %c0_36, %c32_37] : memref<1x4x64xbf16, #tpu.memory_space<vmem>>, vector<1x4x16xbf16>
    %64 = vector.shape_cast %63 : vector<1x4x16xbf16> to vector<4x16xbf16>
    %65 = vector.shape_cast %62 : vector<4x16xbf16> to vector<1x4x16xbf16>
    tpu.vector_store %arg3[%c0_35, %c0_36, %c32_37], %65 {strides = array<i32>} : memref<1x4x64xbf16, #tpu.memory_space<vmem>>, vector<1x4x16xbf16>,
    %c0_38 = arith.constant 0 : index
    %c0_39 = arith.constant 0 : index
    %c48 = arith.constant 48 : index
    %66 = vector.load %arg2[%c0_38, %c0_39, %c48] : memref<1x4x192xbf16, #tpu.memory_space<vmem>>, vector<1x4x16xbf16>
    %67 = vector.shape_cast %66 : vector<1x4x16xbf16> to vector<4x16xbf16>
    %c0_40 = arith.constant 0 : index
    %c0_41 = arith.constant 0 : index
    %c112 = arith.constant 112 : index
    %68 = vector.load %arg2[%c0_40, %c0_41, %c112] : memref<1x4x192xbf16, #tpu.memory_space<vmem>>, vector<1x4x16xbf16>
    %69 = vector.shape_cast %68 : vector<1x4x16xbf16> to vector<4x16xbf16>
    %c0_42 = arith.constant 0 : index
    %c0_43 = arith.constant 0 : index
    %c176 = arith.constant 176 : index
    %70 = vector.load %arg2[%c0_42, %c0_43, %c176] : memref<1x4x192xbf16, #tpu.memory_space<vmem>>, vector<1x4x16xbf16>
    %71 = vector.shape_cast %70 : vector<1x4x16xbf16> to vector<4x16xbf16>
    %cst_44 = arith.constant dense<0.000000e+00> : vector<4x4xf32>
    %72 = tpu.matmul %67, %69, %cst_44 {dimension_numbers = #tpu.dot_dimension_numbers<[1], [1], [0], [0], [0, 0, 1, 0], [], []>} : vector<4x16xbf16>, vector<4x16xbf16>, vector<4x4xf32> -> vector<4x4xf32>
    %cst_45 = arith.constant dense<0xFF800000> : vector<4xf32>
    %73 = vector.multi_reduction <maximumf>, %72, %cst_45 [1] : vector<4x4xf32> to vector<4xf32>
    %74 = vector.shape_cast %73 : vector<4xf32> to vector<4x1xf32>
    %75 = vector.broadcast %74 : vector<4x1xf32> to vector<4x4xf32>
    %76 = arith.subf %72, %75 : vector<4x4xf32>
    %77 = math.exp %76 : vector<4x4xf32>
    %cst_46 = arith.constant dense<0.000000e+00> : vector<4xf32>
    %78 = vector.multi_reduction <add>, %77, %cst_46 [1] : vector<4x4xf32> to vector<4xf32>
    %79 = vector.shape_cast %78 : vector<4xf32> to vector<4x1xf32>
    %80 = vector.broadcast %79 : vector<4x1xf32> to vector<4x4xf32>
    %81 = arith.divf %77, %80 : vector<4x4xf32>
    %82 = arith.truncf %81 : vector<4x4xf32> to vector<4x4xbf16>
    %cst_47 = arith.constant dense<0.000000e+00> : vector<4x16xf32>
    %83 = tpu.matmul %82, %71, %cst_47 {dimension_numbers = #tpu.dot_dimension_numbers<[1], [0], [0], [1], [0, 0, 1, 1], [], []>} : vector<4x4xbf16>, vector<4x16xbf16>, vector<4x16xf32> -> vector<4x16xf32>
    %84 = arith.truncf %83 : vector<4x16xf32> to vector<4x16xbf16>
    %c0_48 = arith.constant 0 : index
    %c0_49 = arith.constant 0 : index
    %c48_50 = arith.constant 48 : index
    %85 = vector.load %arg3[%c0_48, %c0_49, %c48_50] : memref<1x4x64xbf16, #tpu.memory_space<vmem>>, vector<1x4x16xbf16>
    %86 = vector.shape_cast %85 : vector<1x4x16xbf16> to vector<4x16xbf16>
    %87 = vector.shape_cast %84 : vector<4x16xbf16> to vector<1x4x16xbf16>
    tpu.vector_store %arg3[%c0_48, %c0_49, %c48_50], %87 {strides = array<i32>} : memref<1x4x64xbf16, #tpu.memory_space<vmem>>, vector<1x4x16xbf16>,
    return
  }
  func.func @transform_0(%arg0: i32, %arg1: i32) -> (i32, i32, i32) {
    %c0_i32 = arith.constant 0 : i32
    %c0_i32_0 = arith.constant 0 : i32
    %c0_i32_1 = arith.constant 0 : i32
    return %arg0, %c0_i32, %c0_i32_0 : i32, i32, i32
  }
  func.func @transform_1(%arg0: i32, %arg1: i32) -> (i32, i32, i32) {
    %c0_i32 = arith.constant 0 : i32
    %c0_i32_0 = arith.constant 0 : i32
    return %arg0, %arg1, %c0_i32 : i32, i32, i32
  }
}

module attributes {stable_mosaic.version = 11 : i64} {
  func.func @kernel(%arg0: i32, %arg1: i32, %arg2: memref<16x64xbf16, #tpu.memory_space<vmem>>, %arg3: memref<1x64xf32, #tpu.memory_space<vmem>>, %arg4: memref<1x64xf32, #tpu.memory_space<vmem>>, %arg5: memref<64x128xbf16, #tpu.memory_space<vmem>>, %arg6: memref<16x128xbf16, #tpu.memory_space<vmem>>) attributes {dimension_semantics = [#tpu.dimension_semantics<parallel>, #tpu.dimension_semantics<parallel>], iteration_bounds = array<i64: 1, 1>, scalar_prefetch = 0 : i64, scratch_operands = 0 : i64, tpu.core_type = #tpu.core_type<tc>, window_params = [{transform_indices = @transform_0, window_bounds = array<i64: 16, 64>}, {pipeline_mode = #tpu.pipeline_mode<synchronous>, transform_indices = @transform_1, window_bounds = array<i64: 1, 64>}, {pipeline_mode = #tpu.pipeline_mode<synchronous>, transform_indices = @transform_2, window_bounds = array<i64: 1, 64>}, {transform_indices = @transform_3, window_bounds = array<i64: 64, 128>}, {transform_indices = @transform_4, window_bounds = array<i64: 16, 128>}]} {
    %c0 = arith.constant 0 : index
    %c0_0 = arith.constant 0 : index
    %0 = vector.load %arg2[%c0, %c0_0] : memref<16x64xbf16, #tpu.memory_space<vmem>>, vector<16x64xbf16>
    %1 = arith.extf %0 : vector<16x64xbf16> to vector<16x64xf32>
    %cst = arith.constant dense<0.000000e+00> : vector<16xf32>
    %2 = vector.multi_reduction <add>, %1, %cst [1] : vector<16x64xf32> to vector<16xf32>
    %3 = vector.shape_cast %2 : vector<16xf32> to vector<16x1xf32>
    %cst_1 = arith.constant 6.400000e+01 : f32
    %4 = vector.broadcast %cst_1 : f32 to vector<16x1xf32>
    %5 = arith.divf %3, %4 : vector<16x1xf32>
    %6 = vector.broadcast %5 : vector<16x1xf32> to vector<16x64xf32>
    %7 = arith.subf %1, %6 : vector<16x64xf32>
    %8 = arith.mulf %7, %7 : vector<16x64xf32>
    %cst_2 = arith.constant dense<0.000000e+00> : vector<16xf32>
    %9 = vector.multi_reduction <add>, %8, %cst_2 [1] : vector<16x64xf32> to vector<16xf32>
    %10 = vector.shape_cast %9 : vector<16xf32> to vector<16x1xf32>
    %cst_3 = arith.constant 6.400000e+01 : f32
    %11 = vector.broadcast %cst_3 : f32 to vector<16x1xf32>
    %12 = arith.divf %10, %11 : vector<16x1xf32>
    %13 = vector.broadcast %5 : vector<16x1xf32> to vector<16x64xf32>
    %14 = arith.subf %1, %13 : vector<16x64xf32>
    %cst_4 = arith.constant 9.99999974E-6 : f32
    %15 = vector.broadcast %cst_4 : f32 to vector<16x1xf32>
    %16 = arith.addf %12, %15 : vector<16x1xf32>
    %17 = math.rsqrt %16 : vector<16x1xf32>
    %18 = vector.broadcast %17 : vector<16x1xf32> to vector<16x64xf32>
    %19 = arith.mulf %14, %18 : vector<16x64xf32>
    %c0_5 = arith.constant 0 : index
    %c0_6 = arith.constant 0 : index
    %20 = vector.load %arg3[%c0_5, %c0_6] : memref<1x64xf32, #tpu.memory_space<vmem>>, vector<1x64xf32>
    %21 = vector.broadcast %20 : vector<1x64xf32> to vector<16x64xf32>
    %22 = arith.mulf %19, %21 : vector<16x64xf32>
    %c0_7 = arith.constant 0 : index
    %c0_8 = arith.constant 0 : index
    %23 = vector.load %arg4[%c0_7, %c0_8] : memref<1x64xf32, #tpu.memory_space<vmem>>, vector<1x64xf32>
    %24 = vector.broadcast %23 : vector<1x64xf32> to vector<16x64xf32>
    %25 = arith.addf %22, %24 : vector<16x64xf32>
    %26 = arith.truncf %25 : vector<16x64xf32> to vector<16x64xbf16>
    %c0_9 = arith.constant 0 : index
    %c0_10 = arith.constant 0 : index
    %27 = vector.load %arg5[%c0_9, %c0_10] : memref<64x128xbf16, #tpu.memory_space<vmem>>, vector<64x128xbf16>
    %cst_11 = arith.constant dense<0.000000e+00> : vector<16x128xf32>
    %28 = tpu.matmul %26, %27, %cst_11 {dimension_numbers = #tpu.dot_dimension_numbers<[1], [0], [0], [1], [0, 0, 1, 1], [], []>} : vector<16x64xbf16>, vector<64x128xbf16>, vector<16x128xf32> -> vector<16x128xf32>
    %29 = arith.truncf %28 : vector<16x128xf32> to vector<16x128xbf16>
    %c0_12 = arith.constant 0 : index
    %c0_13 = arith.constant 0 : index
    %30 = vector.load %arg6[%c0_12, %c0_13] : memref<16x128xbf16, #tpu.memory_space<vmem>>, vector<16x128xbf16>
    tpu.vector_store %arg6[%c0_12, %c0_13], %29 {strides = array<i32>} : memref<16x128xbf16, #tpu.memory_space<vmem>>, vector<16x128xbf16>,
    return
  }
  func.func @transform_0(%arg0: i32, %arg1: i32) -> (i32, i32) {
    %c0_i32 = arith.constant 0 : i32
    %c0_i32_0 = arith.constant 0 : i32
    return %arg0, %c0_i32 : i32, i32
  }
  func.func @transform_1(%arg0: i32, %arg1: i32) -> (i32, i32) {
    %c0_i32 = arith.constant 0 : i32
    %c0_i32_0 = arith.constant 0 : i32
    %c0_i32_1 = arith.constant 0 : i32
    return %c0_i32, %c0_i32_0 : i32, i32
  }
  func.func @transform_2(%arg0: i32, %arg1: i32) -> (i32, i32) {
    %c0_i32 = arith.constant 0 : i32
    %c0_i32_0 = arith.constant 0 : i32
    %c0_i32_1 = arith.constant 0 : i32
    return %c0_i32, %c0_i32_0 : i32, i32
  }
  func.func @transform_3(%arg0: i32, %arg1: i32) -> (i32, i32) {
    %c0_i32 = arith.constant 0 : i32
    %c0_i32_0 = arith.constant 0 : i32
    return %c0_i32, %arg1 : i32, i32
  }
  func.func @transform_4(%arg0: i32, %arg1: i32) -> (i32, i32) {
    %c0_i32 = arith.constant 0 : i32
    return %arg0, %arg1 : i32, i32
  }
}

module attributes {stable_mosaic.version = 11 : i64} {
  func.func @kernel(%arg0: i32, %arg1: i32, %arg2: memref<16x32xbf16, #tpu.memory_space<vmem>>, %arg3: memref<1x32xf32, #tpu.memory_space<vmem>>, %arg4: memref<1x32xf32, #tpu.memory_space<vmem>>, %arg5: memref<32x128xbf16, #tpu.memory_space<vmem>>, %arg6: memref<16x128xbf16, #tpu.memory_space<vmem>>) attributes {dimension_semantics = [#tpu.dimension_semantics<parallel>, #tpu.dimension_semantics<parallel>], iteration_bounds = array<i64: 1, 1>, scalar_prefetch = 0 : i64, scratch_operands = 0 : i64, tpu.core_type = #tpu.core_type<tc>, window_params = [{transform_indices = @transform_0, window_bounds = array<i64: 16, 32>}, {pipeline_mode = #tpu.pipeline_mode<synchronous>, transform_indices = @transform_1, window_bounds = array<i64: 1, 32>}, {pipeline_mode = #tpu.pipeline_mode<synchronous>, transform_indices = @transform_2, window_bounds = array<i64: 1, 32>}, {transform_indices = @transform_3, window_bounds = array<i64: 32, 128>}, {transform_indices = @transform_4, window_bounds = array<i64: 16, 128>}]} {
    %c0 = arith.constant 0 : index
    %c0_0 = arith.constant 0 : index
    %0 = vector.load %arg2[%c0, %c0_0] : memref<16x32xbf16, #tpu.memory_space<vmem>>, vector<16x32xbf16>
    %1 = arith.extf %0 : vector<16x32xbf16> to vector<16x32xf32>
    %cst = arith.constant dense<0.000000e+00> : vector<16xf32>
    %2 = vector.multi_reduction <add>, %1, %cst [1] : vector<16x32xf32> to vector<16xf32>
    %3 = vector.shape_cast %2 : vector<16xf32> to vector<16x1xf32>
    %cst_1 = arith.constant 3.200000e+01 : f32
    %4 = vector.broadcast %cst_1 : f32 to vector<16x1xf32>
    %5 = arith.divf %3, %4 : vector<16x1xf32>
    %6 = vector.broadcast %5 : vector<16x1xf32> to vector<16x32xf32>
    %7 = arith.subf %1, %6 : vector<16x32xf32>
    %8 = arith.mulf %7, %7 : vector<16x32xf32>
    %cst_2 = arith.constant dense<0.000000e+00> : vector<16xf32>
    %9 = vector.multi_reduction <add>, %8, %cst_2 [1] : vector<16x32xf32> to vector<16xf32>
    %10 = vector.shape_cast %9 : vector<16xf32> to vector<16x1xf32>
    %cst_3 = arith.constant 3.200000e+01 : f32
    %11 = vector.broadcast %cst_3 : f32 to vector<16x1xf32>
    %12 = arith.divf %10, %11 : vector<16x1xf32>
    %13 = vector.broadcast %5 : vector<16x1xf32> to vector<16x32xf32>
    %14 = arith.subf %1, %13 : vector<16x32xf32>
    %cst_4 = arith.constant 9.99999974E-6 : f32
    %15 = vector.broadcast %cst_4 : f32 to vector<16x1xf32>
    %16 = arith.addf %12, %15 : vector<16x1xf32>
    %17 = math.rsqrt %16 : vector<16x1xf32>
    %18 = vector.broadcast %17 : vector<16x1xf32> to vector<16x32xf32>
    %19 = arith.mulf %14, %18 : vector<16x32xf32>
    %c0_5 = arith.constant 0 : index
    %c0_6 = arith.constant 0 : index
    %20 = vector.load %arg3[%c0_5, %c0_6] : memref<1x32xf32, #tpu.memory_space<vmem>>, vector<1x32xf32>
    %21 = vector.broadcast %20 : vector<1x32xf32> to vector<16x32xf32>
    %22 = arith.mulf %19, %21 : vector<16x32xf32>
    %c0_7 = arith.constant 0 : index
    %c0_8 = arith.constant 0 : index
    %23 = vector.load %arg4[%c0_7, %c0_8] : memref<1x32xf32, #tpu.memory_space<vmem>>, vector<1x32xf32>
    %24 = vector.broadcast %23 : vector<1x32xf32> to vector<16x32xf32>
    %25 = arith.addf %22, %24 : vector<16x32xf32>
    %26 = arith.truncf %25 : vector<16x32xf32> to vector<16x32xbf16>
    %c0_9 = arith.constant 0 : index
    %c0_10 = arith.constant 0 : index
    %27 = vector.load %arg5[%c0_9, %c0_10] : memref<32x128xbf16, #tpu.memory_space<vmem>>, vector<32x128xbf16>
    %cst_11 = arith.constant dense<0.000000e+00> : vector<16x128xf32>
    %28 = tpu.matmul %26, %27, %cst_11 {dimension_numbers = #tpu.dot_dimension_numbers<[1], [0], [0], [1], [0, 0, 1, 1], [], []>} : vector<16x32xbf16>, vector<32x128xbf16>, vector<16x128xf32> -> vector<16x128xf32>
    %29 = arith.truncf %28 : vector<16x128xf32> to vector<16x128xbf16>
    %c0_12 = arith.constant 0 : index
    %c0_13 = arith.constant 0 : index
    %30 = vector.load %arg6[%c0_12, %c0_13] : memref<16x128xbf16, #tpu.memory_space<vmem>>, vector<16x128xbf16>
    tpu.vector_store %arg6[%c0_12, %c0_13], %29 {strides = array<i32>} : memref<16x128xbf16, #tpu.memory_space<vmem>>, vector<16x128xbf16>,
    return
  }
  func.func @transform_0(%arg0: i32, %arg1: i32) -> (i32, i32) {
    %c0_i32 = arith.constant 0 : i32
    %c0_i32_0 = arith.constant 0 : i32
    return %arg0, %c0_i32 : i32, i32
  }
  func.func @transform_1(%arg0: i32, %arg1: i32) -> (i32, i32) {
    %c0_i32 = arith.constant 0 : i32
    %c0_i32_0 = arith.constant 0 : i32
    %c0_i32_1 = arith.constant 0 : i32
    return %c0_i32, %c0_i32_0 : i32, i32
  }
  func.func @transform_2(%arg0: i32, %arg1: i32) -> (i32, i32) {
    %c0_i32 = arith.constant 0 : i32
    %c0_i32_0 = arith.constant 0 : i32
    %c0_i32_1 = arith.constant 0 : i32
    return %c0_i32, %c0_i32_0 : i32, i32
  }
  func.func @transform_3(%arg0: i32, %arg1: i32) -> (i32, i32) {
    %c0_i32 = arith.constant 0 : i32
    %c0_i32_0 = arith.constant 0 : i32
    return %c0_i32, %arg1 : i32, i32
  }
  func.func @transform_4(%arg0: i32, %arg1: i32) -> (i32, i32) {
    %c0_i32 = arith.constant 0 : i32
    return %arg0, %arg1 : i32, i32
  }
}

module attributes {stable_mosaic.version = 11 : i64} {
  func.func @_attention_kernel(%arg0: i32, %arg1: i32, %arg2: memref<1x8x96xbf16, #tpu.memory_space<vmem>>, %arg3: memref<1x8x32xbf16, #tpu.memory_space<vmem>>) attributes {dimension_semantics = [#tpu.dimension_semantics<parallel>, #tpu.dimension_semantics<parallel>], iteration_bounds = array<i64: 2, 1>, scalar_prefetch = 0 : i64, scratch_operands = 0 : i64, tpu.core_type = #tpu.core_type<tc>, window_params = [{transform_indices = @transform_0, window_bounds = array<i64: 1, 8, 96>}, {transform_indices = @transform_1, window_bounds = array<i64: 1, 8, 32>}]} {
    %c0 = arith.constant 0 : index
    %c0_0 = arith.constant 0 : index
    %c0_1 = arith.constant 0 : index
    %0 = vector.load %arg2[%c0, %c0_0, %c0_1] : memref<1x8x96xbf16, #tpu.memory_space<vmem>>, vector<1x8x8xbf16>
    %1 = vector.shape_cast %0 : vector<1x8x8xbf16> to vector<8x8xbf16>
    %c0_2 = arith.constant 0 : index
    %c0_3 = arith.constant 0 : index
    %c32 = arith.constant 32 : index
    %2 = vector.load %arg2[%c0_2, %c0_3, %c32] : memref<1x8x96xbf16, #tpu.memory_space<vmem>>, vector<1x8x8xbf16>
    %3 = vector.shape_cast %2 : vector<1x8x8xbf16> to vector<8x8xbf16>
    %c0_4 = arith.constant 0 : index
    %c0_5 = arith.constant 0 : index
    %c64 = arith.constant 64 : index
    %4 = vector.load %arg2[%c0_4, %c0_5, %c64] : memref<1x8x96xbf16, #tpu.memory_space<vmem>>, vector<1x8x8xbf16>
    %5 = vector.shape_cast %4 : vector<1x8x8xbf16> to vector<8x8xbf16>
    %cst = arith.constant dense<0.000000e+00> : vector<8x8xf32>
    %6 = tpu.matmul %1, %3, %cst {dimension_numbers = #tpu.dot_dimension_numbers<[1], [1], [0], [0], [0, 0, 1, 0], [], []>} : vector<8x8xbf16>, vector<8x8xbf16>, vector<8x8xf32> -> vector<8x8xf32>
    %cst_6 = arith.constant dense<0xFF800000> : vector<8xf32>
    %7 = vector.multi_reduction <maximumf>, %6, %cst_6 [1] : vector<8x8xf32> to vector<8xf32>
    %8 = vector.shape_cast %7 : vector<8xf32> to vector<8x1xf32>
    %9 = vector.broadcast %8 : vector<8x1xf32> to vector<8x8xf32>
    %10 = arith.subf %6, %9 : vector<8x8xf32>
    %11 = math.exp %10 : vector<8x8xf32>
    %cst_7 = arith.constant dense<0.000000e+00> : vector<8xf32>
    %12 = vector.multi_reduction <add>, %11, %cst_7 [1] : vector<8x8xf32> to vector<8xf32>
    %13 = vector.shape_cast %12 : vector<8xf32> to vector<8x1xf32>
    %14 = vector.broadcast %13 : vector<8x1xf32> to vector<8x8xf32>
    %15 = arith.divf %11, %14 : vector<8x8xf32>
    %16 = arith.truncf %15 : vector<8x8xf32> to vector<8x8xbf16>
    %cst_8 = arith.constant dense<0.000000e+00> : vector<8x8xf32>
    %17 = tpu.matmul %16, %5, %cst_8 {dimension_numbers = #tpu.dot_dimension_numbers<[1], [0], [0], [1], [0, 0, 1, 1], [], []>} : vector<8x8xbf16>, vector<8x8xbf16>, vector<8x8xf32> -> vector<8x8xf32>
    %18 = arith.truncf %17 : vector<8x8xf32> to vector<8x8xbf16>
    %c0_9 = arith.constant 0 : index
    %c0_10 = arith.constant 0 : index
    %c0_11 = arith.constant 0 : index
    %19 = vector.load %arg3[%c0_9, %c0_10, %c0_11] : memref<1x8x32xbf16, #tpu.memory_space<vmem>>, vector<1x8x8xbf16>
    %20 = vector.shape_cast %19 : vector<1x8x8xbf16> to vector<8x8xbf16>
    %21 = vector.shape_cast %18 : vector<8x8xbf16> to vector<1x8x8xbf16>
    tpu.vector_store %arg3[%c0_9, %c0_10, %c0_11], %21 {strides = array<i32>} : memref<1x8x32xbf16, #tpu.memory_space<vmem>>, vector<1x8x8xbf16>,
    %c0_12 = arith.constant 0 : index
    %c0_13 = arith.constant 0 : index
    %c8 = arith.constant 8 : index
    %22 = vector.load %arg2[%c0_12, %c0_13, %c8] : memref<1x8x96xbf16, #tpu.memory_space<vmem>>, vector<1x8x8xbf16>
    %23 = vector.shape_cast %22 : vector<1x8x8xbf16> to vector<8x8xbf16>
    %c0_14 = arith.constant 0 : index
    %c0_15 = arith.constant 0 : index
    %c40 = arith.constant 40 : index
    %24 = vector.load %arg2[%c0_14, %c0_15, %c40] : memref<1x8x96xbf16, #tpu.memory_space<vmem>>, vector<1x8x8xbf16>
    %25 = vector.shape_cast %24 : vector<1x8x8xbf16> to vector<8x8xbf16>
    %c0_16 = arith.constant 0 : index
    %c0_17 = arith.constant 0 : index
    %c72 = arith.constant 72 : index
    %26 = vector.load %arg2[%c0_16, %c0_17, %c72] : memref<1x8x96xbf16, #tpu.memory_space<vmem>>, vector<1x8x8xbf16>
    %27 = vector.shape_cast %26 : vector<1x8x8xbf16> to vector<8x8xbf16>
    %cst_18 = arith.constant dense<0.000000e+00> : vector<8x8xf32>
    %28 = tpu.matmul %23, %25, %cst_18 {dimension_numbers = #tpu.dot_dimension_numbers<[1], [1], [0], [0], [0, 0, 1, 0], [], []>} : vector<8x8xbf16>, vector<8x8xbf16>, vector<8x8xf32> -> vector<8x8xf32>
    %cst_19 = arith.constant dense<0xFF800000> : vector<8xf32>
    %29 = vector.multi_reduction <maximumf>, %28, %cst_19 [1] : vector<8x8xf32> to vector<8xf32>
    %30 = vector.shape_cast %29 : vector<8xf32> to vector<8x1xf32>
    %31 = vector.broadcast %30 : vector<8x1xf32> to vector<8x8xf32>
    %32 = arith.subf %28, %31 : vector<8x8xf32>
    %33 = math.exp %32 : vector<8x8xf32>
    %cst_20 = arith.constant dense<0.000000e+00> : vector<8xf32>
    %34 = vector.multi_reduction <add>, %33, %cst_20 [1] : vector<8x8xf32> to vector<8xf32>
    %35 = vector.shape_cast %34 : vector<8xf32> to vector<8x1xf32>
    %36 = vector.broadcast %35 : vector<8x1xf32> to vector<8x8xf32>
    %37 = arith.divf %33, %36 : vector<8x8xf32>
    %38 = arith.truncf %37 : vector<8x8xf32> to vector<8x8xbf16>
    %cst_21 = arith.constant dense<0.000000e+00> : vector<8x8xf32>
    %39 = tpu.matmul %38, %27, %cst_21 {dimension_numbers = #tpu.dot_dimension_numbers<[1], [0], [0], [1], [0, 0, 1, 1], [], []>} : vector<8x8xbf16>, vector<8x8xbf16>, vector<8x8xf32> -> vector<8x8xf32>
    %40 = arith.truncf %39 : vector<8x8xf32> to vector<8x8xbf16>
    %c0_22 = arith.constant 0 : index
    %c0_23 = arith.constant 0 : index
    %c8_24 = arith.constant 8 : index
    %41 = vector.load %arg3[%c0_22, %c0_23, %c8_24] : memref<1x8x32xbf16, #tpu.memory_space<vmem>>, vector<1x8x8xbf16>
    %42 = vector.shape_cast %41 : vector<1x8x8xbf16> to vector<8x8xbf16>
    %43 = vector.shape_cast %40 : vector<8x8xbf16> to vector<1x8x8xbf16>
    tpu.vector_store %arg3[%c0_22, %c0_23, %c8_24], %43 {strides = array<i32>} : memref<1x8x32xbf16, #tpu.memory_space<vmem>>, vector<1x8x8xbf16>,
    %c0_25 = arith.constant 0 : index
    %c0_26 = arith.constant 0 : index
    %c16 = arith.constant 16 : index
    %44 = vector.load %arg2[%c0_25, %c0_26, %c16] : memref<1x8x96xbf16, #tpu.memory_space<vmem>>, vector<1x8x8xbf16>
    %45 = vector.shape_cast %44 : vector<1x8x8xbf16> to vector<8x8xbf16>
    %c0_27 = arith.constant 0 : index
    %c0_28 = arith.constant 0 : index
    %c48 = arith.constant 48 : index
    %46 = vector.load %arg2[%c0_27, %c0_28, %c48] : memref<1x8x96xbf16, #tpu.memory_space<vmem>>, vector<1x8x8xbf16>
    %47 = vector.shape_cast %46 : vector<1x8x8xbf16> to vector<8x8xbf16>
    %c0_29 = arith.constant 0 : index
    %c0_30 = arith.constant 0 : index
    %c80 = arith.constant 80 : index
    %48 = vector.load %arg2[%c0_29, %c0_30, %c80] : memref<1x8x96xbf16, #tpu.memory_space<vmem>>, vector<1x8x8xbf16>
    %49 = vector.shape_cast %48 : vector<1x8x8xbf16> to vector<8x8xbf16>
    %cst_31 = arith.constant dense<0.000000e+00> : vector<8x8xf32>
    %50 = tpu.matmul %45, %47, %cst_31 {dimension_numbers = #tpu.dot_dimension_numbers<[1], [1], [0], [0], [0, 0, 1, 0], [], []>} : vector<8x8xbf16>, vector<8x8xbf16>, vector<8x8xf32> -> vector<8x8xf32>
    %cst_32 = arith.constant dense<0xFF800000> : vector<8xf32>
    %51 = vector.multi_reduction <maximumf>, %50, %cst_32 [1] : vector<8x8xf32> to vector<8xf32>
    %52 = vector.shape_cast %51 : vector<8xf32> to vector<8x1xf32>
    %53 = vector.broadcast %52 : vector<8x1xf32> to vector<8x8xf32>
    %54 = arith.subf %50, %53 : vector<8x8xf32>
    %55 = math.exp %54 : vector<8x8xf32>
    %cst_33 = arith.constant dense<0.000000e+00> : vector<8xf32>
    %56 = vector.multi_reduction <add>, %55, %cst_33 [1] : vector<8x8xf32> to vector<8xf32>
    %57 = vector.shape_cast %56 : vector<8xf32> to vector<8x1xf32>
    %58 = vector.broadcast %57 : vector<8x1xf32> to vector<8x8xf32>
    %59 = arith.divf %55, %58 : vector<8x8xf32>
    %60 = arith.truncf %59 : vector<8x8xf32> to vector<8x8xbf16>
    %cst_34 = arith.constant dense<0.000000e+00> : vector<8x8xf32>
    %61 = tpu.matmul %60, %49, %cst_34 {dimension_numbers = #tpu.dot_dimension_numbers<[1], [0], [0], [1], [0, 0, 1, 1], [], []>} : vector<8x8xbf16>, vector<8x8xbf16>, vector<8x8xf32> -> vector<8x8xf32>
    %62 = arith.truncf %61 : vector<8x8xf32> to vector<8x8xbf16>
    %c0_35 = arith.constant 0 : index
    %c0_36 = arith.constant 0 : index
    %c16_37 = arith.constant 16 : index
    %63 = vector.load %arg3[%c0_35, %c0_36, %c16_37] : memref<1x8x32xbf16, #tpu.memory_space<vmem>>, vector<1x8x8xbf16>
    %64 = vector.shape_cast %63 : vector<1x8x8xbf16> to vector<8x8xbf16>
    %65 = vector.shape_cast %62 : vector<8x8xbf16> to vector<1x8x8xbf16>
    tpu.vector_store %arg3[%c0_35, %c0_36, %c16_37], %65 {strides = array<i32>} : memref<1x8x32xbf16, #tpu.memory_space<vmem>>, vector<1x8x8xbf16>,
    %c0_38 = arith.constant 0 : index
    %c0_39 = arith.constant 0 : index
    %c24 = arith.constant 24 : index
    %66 = vector.load %arg2[%c0_38, %c0_39, %c24] : memref<1x8x96xbf16, #tpu.memory_space<vmem>>, vector<1x8x8xbf16>
    %67 = vector.shape_cast %66 : vector<1x8x8xbf16> to vector<8x8xbf16>
    %c0_40 = arith.constant 0 : index
    %c0_41 = arith.constant 0 : index
    %c56 = arith.constant 56 : index
    %68 = vector.load %arg2[%c0_40, %c0_41, %c56] : memref<1x8x96xbf16, #tpu.memory_space<vmem>>, vector<1x8x8xbf16>
    %69 = vector.shape_cast %68 : vector<1x8x8xbf16> to vector<8x8xbf16>
    %c0_42 = arith.constant 0 : index
    %c0_43 = arith.constant 0 : index
    %c88 = arith.constant 88 : index
    %70 = vector.load %arg2[%c0_42, %c0_43, %c88] : memref<1x8x96xbf16, #tpu.memory_space<vmem>>, vector<1x8x8xbf16>
    %71 = vector.shape_cast %70 : vector<1x8x8xbf16> to vector<8x8xbf16>
    %cst_44 = arith.constant dense<0.000000e+00> : vector<8x8xf32>
    %72 = tpu.matmul %67, %69, %cst_44 {dimension_numbers = #tpu.dot_dimension_numbers<[1], [1], [0], [0], [0, 0, 1, 0], [], []>} : vector<8x8xbf16>, vector<8x8xbf16>, vector<8x8xf32> -> vector<8x8xf32>
    %cst_45 = arith.constant dense<0xFF800000> : vector<8xf32>
    %73 = vector.multi_reduction <maximumf>, %72, %cst_45 [1] : vector<8x8xf32> to vector<8xf32>
    %74 = vector.shape_cast %73 : vector<8xf32> to vector<8x1xf32>
    %75 = vector.broadcast %74 : vector<8x1xf32> to vector<8x8xf32>
    %76 = arith.subf %72, %75 : vector<8x8xf32>
    %77 = math.exp %76 : vector<8x8xf32>
    %cst_46 = arith.constant dense<0.000000e+00> : vector<8xf32>
    %78 = vector.multi_reduction <add>, %77, %cst_46 [1] : vector<8x8xf32> to vector<8xf32>
    %79 = vector.shape_cast %78 : vector<8xf32> to vector<8x1xf32>
    %80 = vector.broadcast %79 : vector<8x1xf32> to vector<8x8xf32>
    %81 = arith.divf %77, %80 : vector<8x8xf32>
    %82 = arith.truncf %81 : vector<8x8xf32> to vector<8x8xbf16>
    %cst_47 = arith.constant dense<0.000000e+00> : vector<8x8xf32>
    %83 = tpu.matmul %82, %71, %cst_47 {dimension_numbers = #tpu.dot_dimension_numbers<[1], [0], [0], [1], [0, 0, 1, 1], [], []>} : vector<8x8xbf16>, vector<8x8xbf16>, vector<8x8xf32> -> vector<8x8xf32>
    %84 = arith.truncf %83 : vector<8x8xf32> to vector<8x8xbf16>
    %c0_48 = arith.constant 0 : index
    %c0_49 = arith.constant 0 : index
    %c24_50 = arith.constant 24 : index
    %85 = vector.load %arg3[%c0_48, %c0_49, %c24_50] : memref<1x8x32xbf16, #tpu.memory_space<vmem>>, vector<1x8x8xbf16>
    %86 = vector.shape_cast %85 : vector<1x8x8xbf16> to vector<8x8xbf16>
    %87 = vector.shape_cast %84 : vector<8x8xbf16> to vector<1x8x8xbf16>
    tpu.vector_store %arg3[%c0_48, %c0_49, %c24_50], %87 {strides = array<i32>} : memref<1x8x32xbf16, #tpu.memory_space<vmem>>, vector<1x8x8xbf16>,
    return
  }
  func.func @transform_0(%arg0: i32, %arg1: i32) -> (i32, i32, i32) {
    %c0_i32 = arith.constant 0 : i32
    %c0_i32_0 = arith.constant 0 : i32
    %c0_i32_1 = arith.constant 0 : i32
    return %arg0, %c0_i32, %c0_i32_0 : i32, i32, i32
  }
  func.func @transform_1(%arg0: i32, %arg1: i32) -> (i32, i32, i32) {
    %c0_i32 = arith.constant 0 : i32
    %c0_i32_0 = arith.constant 0 : i32
    return %arg0, %arg1, %c0_i32 : i32, i32, i32
  }
}

module attributes {stable_mosaic.version = 11 : i64} {
  func.func @kernel(%arg0: i32, %arg1: i32, %arg2: memref<16x32xbf16, #tpu.memory_space<vmem>>, %arg3: memref<1x32xf32, #tpu.memory_space<vmem>>, %arg4: memref<1x32xf32, #tpu.memory_space<vmem>>, %arg5: memref<32x128xbf16, #tpu.memory_space<vmem>>, %arg6: memref<1x128xf32, #tpu.memory_space<vmem>>, %arg7: memref<16x128xbf16, #tpu.memory_space<vmem>>) attributes {dimension_semantics = [#tpu.dimension_semantics<parallel>, #tpu.dimension_semantics<parallel>], iteration_bounds = array<i64: 1, 1>, scalar_prefetch = 0 : i64, scratch_operands = 0 : i64, tpu.core_type = #tpu.core_type<tc>, window_params = [{transform_indices = @transform_0, window_bounds = array<i64: 16, 32>}, {pipeline_mode = #tpu.pipeline_mode<synchronous>, transform_indices = @transform_1, window_bounds = array<i64: 1, 32>}, {pipeline_mode = #tpu.pipeline_mode<synchronous>, transform_indices = @transform_2, window_bounds = array<i64: 1, 32>}, {transform_indices = @transform_3, window_bounds = array<i64: 32, 128>}, {transform_indices = @transform_4, window_bounds = array<i64: 1, 128>}, {transform_indices = @transform_5, window_bounds = array<i64: 16, 128>}]} {
    %c0 = arith.constant 0 : index
    %c0_0 = arith.constant 0 : index
    %0 = vector.load %arg2[%c0, %c0_0] : memref<16x32xbf16, #tpu.memory_space<vmem>>, vector<16x32xbf16>
    %1 = arith.extf %0 : vector<16x32xbf16> to vector<16x32xf32>
    %cst = arith.constant dense<0.000000e+00> : vector<16xf32>
    %2 = vector.multi_reduction <add>, %1, %cst [1] : vector<16x32xf32> to vector<16xf32>
    %3 = vector.shape_cast %2 : vector<16xf32> to vector<16x1xf32>
    %cst_1 = arith.constant 3.200000e+01 : f32
    %4 = vector.broadcast %cst_1 : f32 to vector<16x1xf32>
    %5 = arith.divf %3, %4 : vector<16x1xf32>
    %6 = vector.broadcast %5 : vector<16x1xf32> to vector<16x32xf32>
    %7 = arith.subf %1, %6 : vector<16x32xf32>
    %8 = arith.mulf %7, %7 : vector<16x32xf32>
    %cst_2 = arith.constant dense<0.000000e+00> : vector<16xf32>
    %9 = vector.multi_reduction <add>, %8, %cst_2 [1] : vector<16x32xf32> to vector<16xf32>
    %10 = vector.shape_cast %9 : vector<16xf32> to vector<16x1xf32>
    %cst_3 = arith.constant 3.200000e+01 : f32
    %11 = vector.broadcast %cst_3 : f32 to vector<16x1xf32>
    %12 = arith.divf %10, %11 : vector<16x1xf32>
    %13 = vector.broadcast %5 : vector<16x1xf32> to vector<16x32xf32>
    %14 = arith.subf %1, %13 : vector<16x32xf32>
    %cst_4 = arith.constant 9.99999974E-6 : f32
    %15 = vector.broadcast %cst_4 : f32 to vector<16x1xf32>
    %16 = arith.addf %12, %15 : vector<16x1xf32>
    %17 = math.rsqrt %16 : vector<16x1xf32>
    %18 = vector.broadcast %17 : vector<16x1xf32> to vector<16x32xf32>
    %19 = arith.mulf %14, %18 : vector<16x32xf32>
    %c0_5 = arith.constant 0 : index
    %c0_6 = arith.constant 0 : index
    %20 = vector.load %arg3[%c0_5, %c0_6] : memref<1x32xf32, #tpu.memory_space<vmem>>, vector<1x32xf32>
    %21 = vector.broadcast %20 : vector<1x32xf32> to vector<16x32xf32>
    %22 = arith.mulf %19, %21 : vector<16x32xf32>
    %c0_7 = arith.constant 0 : index
    %c0_8 = arith.constant 0 : index
    %23 = vector.load %arg4[%c0_7, %c0_8] : memref<1x32xf32, #tpu.memory_space<vmem>>, vector<1x32xf32>
    %24 = vector.broadcast %23 : vector<1x32xf32> to vector<16x32xf32>
    %25 = arith.addf %22, %24 : vector<16x32xf32>
    %26 = arith.truncf %25 : vector<16x32xf32> to vector<16x32xbf16>
    %c0_9 = arith.constant 0 : index
    %c0_10 = arith.constant 0 : index
    %27 = vector.load %arg5[%c0_9, %c0_10] : memref<32x128xbf16, #tpu.memory_space<vmem>>, vector<32x128xbf16>
    %cst_11 = arith.constant dense<0.000000e+00> : vector<16x128xf32>
    %28 = tpu.matmul %26, %27, %cst_11 {dimension_numbers = #tpu.dot_dimension_numbers<[1], [0], [0], [1], [0, 0, 1, 1], [], []>} : vector<16x32xbf16>, vector<32x128xbf16>, vector<16x128xf32> -> vector<16x128xf32>
    %c0_12 = arith.constant 0 : index
    %c0_13 = arith.constant 0 : index
    %29 = vector.load %arg6[%c0_12, %c0_13] : memref<1x128xf32, #tpu.memory_space<vmem>>, vector<1x128xf32>
    %30 = vector.broadcast %29 : vector<1x128xf32> to vector<16x128xf32>
    %31 = arith.addf %28, %30 : vector<16x128xf32>
    %32 = arith.mulf %31, %31 : vector<16x128xf32>
    %33 = arith.mulf %31, %32 : vector<16x128xf32>
    %cst_14 = arith.constant 4.471500e-02 : f32
    %34 = vector.broadcast %cst_14 : f32 to vector<16x128xf32>
    %35 = arith.mulf %34, %33 : vector<16x128xf32>
    %36 = arith.addf %31, %35 : vector<16x128xf32>
    %cst_15 = arith.constant 0.797884583 : f32
    %37 = vector.broadcast %cst_15 : f32 to vector<16x128xf32>
    %38 = arith.mulf %37, %36 : vector<16x128xf32>
    %39 = math.tanh %38 : vector<16x128xf32>
    %cst_16 = arith.constant 1.000000e+00 : f32
    %40 = vector.broadcast %cst_16 : f32 to vector<16x128xf32>
    %41 = arith.addf %40, %39 : vector<16x128xf32>
    %cst_17 = arith.constant 5.000000e-01 : f32
    %42 = vector.broadcast %cst_17 : f32 to vector<16x128xf32>
    %43 = arith.mulf %42, %41 : vector<16x128xf32>
    %44 = arith.mulf %31, %43 : vector<16x128xf32>
    %45 = arith.truncf %44 : vector<16x128xf32> to vector<16x128xbf16>
    %c0_18 = arith.constant 0 : index
    %c0_19 = arith.constant 0 : index
    %46 = vector.load %arg7[%c0_18, %c0_19] : memref<16x128xbf16, #tpu.memory_space<vmem>>, vector<16x128xbf16>
    tpu.vector_store %arg7[%c0_18, %c0_19], %45 {strides = array<i32>} : memref<16x128xbf16, #tpu.memory_space<vmem>>, vector<16x128xbf16>,
    return
  }
  func.func @transform_0(%arg0: i32, %arg1: i32) -> (i32, i32) {
    %c0_i32 = arith.constant 0 : i32
    %c0_i32_0 = arith.constant 0 : i32
    return %arg0, %c0_i32 : i32, i32
  }
  func.func @transform_1(%arg0: i32, %arg1: i32) -> (i32, i32) {
    %c0_i32 = arith.constant 0 : i32
    %c0_i32_0 = arith.constant 0 : i32
    %c0_i32_1 = arith.constant 0 : i32
    return %c0_i32, %c0_i32_0 : i32, i32
  }
  func.func @transform_2(%arg0: i32, %arg1: i32) -> (i32, i32) {
    %c0_i32 = arith.constant 0 : i32
    %c0_i32_0 = arith.constant 0 : i32
    %c0_i32_1 = arith.constant 0 : i32
    return %c0_i32, %c0_i32_0 : i32, i32
  }
  func.func @transform_3(%arg0: i32, %arg1: i32) -> (i32, i32) {
    %c0_i32 = arith.constant 0 : i32
    %c0_i32_0 = arith.constant 0 : i32
    return %c0_i32, %arg1 : i32, i32
  }
  func.func @transform_4(%arg0: i32, %arg1: i32) -> (i32, i32) {
    %c0_i32 = arith.constant 0 : i32
    %c0_i32_0 = arith.constant 0 : i32
    return %c0_i32, %arg1 : i32, i32
  }
  func.func @transform_5(%arg0: i32, %arg1: i32) -> (i32, i32) {
    %c0_i32 = arith.constant 0 : i32
    return %arg0, %arg1 : i32, i32
  }
}

module attributes {stable_mosaic.version = 11 : i64} {
  func.func @kernel(%arg0: i32, %arg1: i32, %arg2: memref<16x128xbf16, #tpu.memory_space<vmem>>, %arg3: memref<128x128xbf16, #tpu.memory_space<vmem>>, %arg4: memref<1x128xf32, #tpu.memory_space<vmem>>, %arg5: memref<16x128xbf16, #tpu.memory_space<vmem>>, %arg6: memref<16x128xbf16, #tpu.memory_space<vmem>>) attributes {dimension_semantics = [#tpu.dimension_semantics<parallel>, #tpu.dimension_semantics<parallel>], iteration_bounds = array<i64: 1, 1>, scalar_prefetch = 0 : i64, scratch_operands = 0 : i64, tpu.core_type = #tpu.core_type<tc>, window_params = [{transform_indices = @transform_0, window_bounds = array<i64: 16, 128>}, {transform_indices = @transform_1, window_bounds = array<i64: 128, 128>}, {transform_indices = @transform_2, window_bounds = array<i64: 1, 128>}, {transform_indices = @transform_3, window_bounds = array<i64: 16, 128>}, {transform_indices = @transform_4, window_bounds = array<i64: 16, 128>}]} {
    %c0 = arith.constant 0 : index
    %c0_0 = arith.constant 0 : index
    %0 = vector.load %arg2[%c0, %c0_0] : memref<16x128xbf16, #tpu.memory_space<vmem>>, vector<16x128xbf16>
    %c0_1 = arith.constant 0 : index
    %c0_2 = arith.constant 0 : index
    %1 = vector.load %arg3[%c0_1, %c0_2] : memref<128x128xbf16, #tpu.memory_space<vmem>>, vector<128x128xbf16>
    %cst = arith.constant dense<0.000000e+00> : vector<16x128xf32>
    %2 = tpu.matmul %0, %1, %cst {dimension_numbers = #tpu.dot_dimension_numbers<[1], [0], [0], [1], [0, 0, 1, 1], [], []>} : vector<16x128xbf16>, vector<128x128xbf16>, vector<16x128xf32> -> vector<16x128xf32>
    %c0_3 = arith.constant 0 : index
    %c0_4 = arith.constant 0 : index
    %3 = vector.load %arg4[%c0_3, %c0_4] : memref<1x128xf32, #tpu.memory_space<vmem>>, vector<1x128xf32>
    %4 = vector.broadcast %3 : vector<1x128xf32> to vector<16x128xf32>
    %5 = arith.addf %2, %4 : vector<16x128xf32>
    %c0_5 = arith.constant 0 : index
    %c0_6 = arith.constant 0 : index
    %6 = vector.load %arg5[%c0_5, %c0_6] : memref<16x128xbf16, #tpu.memory_space<vmem>>, vector<16x128xbf16>
    %7 = arith.extf %6 : vector<16x128xbf16> to vector<16x128xf32>
    %8 = arith.addf %5, %7 : vector<16x128xf32>
    %9 = arith.truncf %8 : vector<16x128xf32> to vector<16x128xbf16>
    %c0_7 = arith.constant 0 : index
    %c0_8 = arith.constant 0 : index
    %10 = vector.load %arg6[%c0_7, %c0_8] : memref<16x128xbf16, #tpu.memory_space<vmem>>, vector<16x128xbf16>
    tpu.vector_store %arg6[%c0_7, %c0_8], %9 {strides = array<i32>} : memref<16x128xbf16, #tpu.memory_space<vmem>>, vector<16x128xbf16>,
    return
  }
  func.func @transform_0(%arg0: i32, %arg1: i32) -> (i32, i32) {
    %c0_i32 = arith.constant 0 : i32
    %c0_i32_0 = arith.constant 0 : i32
    return %arg0, %c0_i32 : i32, i32
  }
  func.func @transform_1(%arg0: i32, %arg1: i32) -> (i32, i32) {
    %c0_i32 = arith.constant 0 : i32
    %c0_i32_0 = arith.constant 0 : i32
    return %c0_i32, %arg1 : i32, i32
  }
  func.func @transform_2(%arg0: i32, %arg1: i32) -> (i32, i32) {
    %c0_i32 = arith.constant 0 : i32
    %c0_i32_0 = arith.constant 0 : i32
    return %c0_i32, %arg1 : i32, i32
  }
  func.func @transform_3(%arg0: i32, %arg1: i32) -> (i32, i32) {
    %c0_i32 = arith.constant 0 : i32
    return %arg0, %arg1 : i32, i32
  }
  func.func @transform_4(%arg0: i32, %arg1: i32) -> (i32, i32) {
    %c0_i32 = arith.constant 0 : i32
    return %arg0, %arg1 : i32, i32
  }
}

module attributes {stable_mosaic.version = 11 : i64} {
  func.func @kernel(%arg0: i32, %arg1: i32, %arg2: memref<16x32xbf16, #tpu.memory_space<vmem>>, %arg3: memref<32x128xbf16, #tpu.memory_space<vmem>>, %arg4: memref<1x128xf32, #tpu.memory_space<vmem>>, %arg5: memref<16x128xbf16, #tpu.memory_space<vmem>>, %arg6: memref<16x128xbf16, #tpu.memory_space<vmem>>) attributes {dimension_semantics = [#tpu.dimension_semantics<parallel>, #tpu.dimension_semantics<parallel>], iteration_bounds = array<i64: 1, 1>, scalar_prefetch = 0 : i64, scratch_operands = 0 : i64, tpu.core_type = #tpu.core_type<tc>, window_params = [{transform_indices = @transform_0, window_bounds = array<i64: 16, 32>}, {transform_indices = @transform_1, window_bounds = array<i64: 32, 128>}, {transform_indices = @transform_2, window_bounds = array<i64: 1, 128>}, {transform_indices = @transform_3, window_bounds = array<i64: 16, 128>}, {transform_indices = @transform_4, window_bounds = array<i64: 16, 128>}]} {
    %c0 = arith.constant 0 : index
    %c0_0 = arith.constant 0 : index
    %0 = vector.load %arg2[%c0, %c0_0] : memref<16x32xbf16, #tpu.memory_space<vmem>>, vector<16x32xbf16>
    %c0_1 = arith.constant 0 : index
    %c0_2 = arith.constant 0 : index
    %1 = vector.load %arg3[%c0_1, %c0_2] : memref<32x128xbf16, #tpu.memory_space<vmem>>, vector<32x128xbf16>
    %cst = arith.constant dense<0.000000e+00> : vector<16x128xf32>
    %2 = tpu.matmul %0, %1, %cst {dimension_numbers = #tpu.dot_dimension_numbers<[1], [0], [0], [1], [0, 0, 1, 1], [], []>} : vector<16x32xbf16>, vector<32x128xbf16>, vector<16x128xf32> -> vector<16x128xf32>
    %c0_3 = arith.constant 0 : index
    %c0_4 = arith.constant 0 : index
    %3 = vector.load %arg4[%c0_3, %c0_4] : memref<1x128xf32, #tpu.memory_space<vmem>>, vector<1x128xf32>
    %4 = vector.broadcast %3 : vector<1x128xf32> to vector<16x128xf32>
    %5 = arith.addf %2, %4 : vector<16x128xf32>
    %c0_5 = arith.constant 0 : index
    %c0_6 = arith.constant 0 : index
    %6 = vector.load %arg5[%c0_5, %c0_6] : memref<16x128xbf16, #tpu.memory_space<vmem>>, vector<16x128xbf16>
    %7 = arith.extf %6 : vector<16x128xbf16> to vector<16x128xf32>
    %8 = arith.addf %5, %7 : vector<16x128xf32>
    %9 = arith.truncf %8 : vector<16x128xf32> to vector<16x128xbf16>
    %c0_7 = arith.constant 0 : index
    %c0_8 = arith.constant 0 : index
    %10 = vector.load %arg6[%c0_7, %c0_8] : memref<16x128xbf16, #tpu.memory_space<vmem>>, vector<16x128xbf16>
    tpu.vector_store %arg6[%c0_7, %c0_8], %9 {strides = array<i32>} : memref<16x128xbf16, #tpu.memory_space<vmem>>, vector<16x128xbf16>,
    return
  }
  func.func @transform_0(%arg0: i32, %arg1: i32) -> (i32, i32) {
    %c0_i32 = arith.constant 0 : i32
    %c0_i32_0 = arith.constant 0 : i32
    return %arg0, %c0_i32 : i32, i32
  }
  func.func @transform_1(%arg0: i32, %arg1: i32) -> (i32, i32) {
    %c0_i32 = arith.constant 0 : i32
    %c0_i32_0 = arith.constant 0 : i32
    return %c0_i32, %arg1 : i32, i32
  }
  func.func @transform_2(%arg0: i32, %arg1: i32) -> (i32, i32) {
    %c0_i32 = arith.constant 0 : i32
    %c0_i32_0 = arith.constant 0 : i32
    return %c0_i32, %arg1 : i32, i32
  }
  func.func @transform_3(%arg0: i32, %arg1: i32) -> (i32, i32) {
    %c0_i32 = arith.constant 0 : i32
    return %arg0, %arg1 : i32, i32
  }
  func.func @transform_4(%arg0: i32, %arg1: i32) -> (i32, i32) {
    %c0_i32 = arith.constant 0 : i32
    return %arg0, %arg1 : i32, i32
  }
}

module attributes {stable_mosaic.version = 11 : i64} {
  func.func @kernel(%arg0: i32, %arg1: i32, %arg2: memref<16x32xbf16, #tpu.memory_space<vmem>>, %arg3: memref<1x32xf32, #tpu.memory_space<vmem>>, %arg4: memref<1x32xf32, #tpu.memory_space<vmem>>, %arg5: memref<32x384xbf16, #tpu.memory_space<vmem>>, %arg6: memref<1x384xf32, #tpu.memory_space<vmem>>, %arg7: memref<16x384xf32, #tpu.memory_space<vmem>>) attributes {dimension_semantics = [#tpu.dimension_semantics<parallel>, #tpu.dimension_semantics<parallel>], iteration_bounds = array<i64: 1, 1>, scalar_prefetch = 0 : i64, scratch_operands = 0 : i64, tpu.core_type = #tpu.core_type<tc>, window_params = [{transform_indices = @transform_0, window_bounds = array<i64: 16, 32>}, {pipeline_mode = #tpu.pipeline_mode<synchronous>, transform_indices = @transform_1, window_bounds = array<i64: 1, 32>}, {pipeline_mode = #tpu.pipeline_mode<synchronous>, transform_indices = @transform_2, window_bounds = array<i64: 1, 32>}, {transform_indices = @transform_3, window_bounds = array<i64: 32, 384>}, {transform_indices = @transform_4, window_bounds = array<i64: 1, 384>}, {transform_indices = @transform_5, window_bounds = array<i64: 16, 384>}]} {
    %c0 = arith.constant 0 : index
    %c0_0 = arith.constant 0 : index
    %0 = vector.load %arg2[%c0, %c0_0] : memref<16x32xbf16, #tpu.memory_space<vmem>>, vector<16x32xbf16>
    %1 = arith.extf %0 : vector<16x32xbf16> to vector<16x32xf32>
    %cst = arith.constant dense<0.000000e+00> : vector<16xf32>
    %2 = vector.multi_reduction <add>, %1, %cst [1] : vector<16x32xf32> to vector<16xf32>
    %3 = vector.shape_cast %2 : vector<16xf32> to vector<16x1xf32>
    %cst_1 = arith.constant 3.200000e+01 : f32
    %4 = vector.broadcast %cst_1 : f32 to vector<16x1xf32>
    %5 = arith.divf %3, %4 : vector<16x1xf32>
    %6 = vector.broadcast %5 : vector<16x1xf32> to vector<16x32xf32>
    %7 = arith.subf %1, %6 : vector<16x32xf32>
    %8 = arith.mulf %7, %7 : vector<16x32xf32>
    %cst_2 = arith.constant dense<0.000000e+00> : vector<16xf32>
    %9 = vector.multi_reduction <add>, %8, %cst_2 [1] : vector<16x32xf32> to vector<16xf32>
    %10 = vector.shape_cast %9 : vector<16xf32> to vector<16x1xf32>
    %cst_3 = arith.constant 3.200000e+01 : f32
    %11 = vector.broadcast %cst_3 : f32 to vector<16x1xf32>
    %12 = arith.divf %10, %11 : vector<16x1xf32>
    %13 = vector.broadcast %5 : vector<16x1xf32> to vector<16x32xf32>
    %14 = arith.subf %1, %13 : vector<16x32xf32>
    %cst_4 = arith.constant 9.99999974E-6 : f32
    %15 = vector.broadcast %cst_4 : f32 to vector<16x1xf32>
    %16 = arith.addf %12, %15 : vector<16x1xf32>
    %17 = math.rsqrt %16 : vector<16x1xf32>
    %18 = vector.broadcast %17 : vector<16x1xf32> to vector<16x32xf32>
    %19 = arith.mulf %14, %18 : vector<16x32xf32>
    %c0_5 = arith.constant 0 : index
    %c0_6 = arith.constant 0 : index
    %20 = vector.load %arg3[%c0_5, %c0_6] : memref<1x32xf32, #tpu.memory_space<vmem>>, vector<1x32xf32>
    %21 = vector.broadcast %20 : vector<1x32xf32> to vector<16x32xf32>
    %22 = arith.mulf %19, %21 : vector<16x32xf32>
    %c0_7 = arith.constant 0 : index
    %c0_8 = arith.constant 0 : index
    %23 = vector.load %arg4[%c0_7, %c0_8] : memref<1x32xf32, #tpu.memory_space<vmem>>, vector<1x32xf32>
    %24 = vector.broadcast %23 : vector<1x32xf32> to vector<16x32xf32>
    %25 = arith.addf %22, %24 : vector<16x32xf32>
    %26 = arith.truncf %25 : vector<16x32xf32> to vector<16x32xbf16>
    %c0_9 = arith.constant 0 : index
    %c0_10 = arith.constant 0 : index
    %27 = vector.load %arg5[%c0_9, %c0_10] : memref<32x384xbf16, #tpu.memory_space<vmem>>, vector<32x384xbf16>
    %cst_11 = arith.constant dense<0.000000e+00> : vector<16x384xf32>
    %28 = tpu.matmul %26, %27, %cst_11 {dimension_numbers = #tpu.dot_dimension_numbers<[1], [0], [0], [1], [0, 0, 1, 1], [], []>} : vector<16x32xbf16>, vector<32x384xbf16>, vector<16x384xf32> -> vector<16x384xf32>
    %c0_12 = arith.constant 0 : index
    %c0_13 = arith.constant 0 : index
    %29 = vector.load %arg6[%c0_12, %c0_13] : memref<1x384xf32, #tpu.memory_space<vmem>>, vector<1x384xf32>
    %30 = vector.broadcast %29 : vector<1x384xf32> to vector<16x384xf32>
    %31 = arith.addf %28, %30 : vector<16x384xf32>
    %c0_14 = arith.constant 0 : index
    %c0_15 = arith.constant 0 : index
    %32 = vector.load %arg7[%c0_14, %c0_15] : memref<16x384xf32, #tpu.memory_space<vmem>>, vector<16x384xf32>
    tpu.vector_store %arg7[%c0_14, %c0_15], %31 {strides = array<i32>} : memref<16x384xf32, #tpu.memory_space<vmem>>, vector<16x384xf32>,
    return
  }
  func.func @transform_0(%arg0: i32, %arg1: i32) -> (i32, i32) {
    %c0_i32 = arith.constant 0 : i32
    %c0_i32_0 = arith.constant 0 : i32
    return %arg0, %c0_i32 : i32, i32
  }
  func.func @transform_1(%arg0: i32, %arg1: i32) -> (i32, i32) {
    %c0_i32 = arith.constant 0 : i32
    %c0_i32_0 = arith.constant 0 : i32
    %c0_i32_1 = arith.constant 0 : i32
    return %c0_i32, %c0_i32_0 : i32, i32
  }
  func.func @transform_2(%arg0: i32, %arg1: i32) -> (i32, i32) {
    %c0_i32 = arith.constant 0 : i32
    %c0_i32_0 = arith.constant 0 : i32
    %c0_i32_1 = arith.constant 0 : i32
    return %c0_i32, %c0_i32_0 : i32, i32
  }
  func.func @transform_3(%arg0: i32, %arg1: i32) -> (i32, i32) {
    %c0_i32 = arith.constant 0 : i32
    %c0_i32_0 = arith.constant 0 : i32
    return %c0_i32, %arg1 : i32, i32
  }
  func.func @transform_4(%arg0: i32, %arg1: i32) -> (i32, i32) {
    %c0_i32 = arith.constant 0 : i32
    %c0_i32_0 = arith.constant 0 : i32
    return %c0_i32, %arg1 : i32, i32
  }
  func.func @transform_5(%arg0: i32, %arg1: i32) -> (i32, i32) {
    %c0_i32 = arith.constant 0 : i32
    return %arg0, %arg1 : i32, i32
  }
}

</mosaic_0001>

<llo_original>
// kernel: forward.30
$region0: #{forward.30}
  #allocation0 [shape = 'u32[]', space=smem, size = 0x4, offset = 0x4, fixed_abs, tag = 'smem constant byte address 0x4 - core index']
  #allocation1 [shape = 'u32[144,128]{1,0:T(1,128)}', space=vmem, size = 0x12000, scoped, tag = 'internal scratch']
  %s0 = inlined_call_operand.vmem [shape: bf16[16,64], index: 0, kind: input, shape index: {}]
  %s1 = inlined_call_operand.vmem [shape: f32[1,64], index: 1, kind: input, shape index: {}]
  %s2 = inlined_call_operand.vmem [shape: f32[1,64], index: 2, kind: input, shape index: {}]
  %s3 = inlined_call_operand.vmem [shape: bf16[64,256], index: 3, kind: input, shape index: {}]
  %s4 = inlined_call_operand.vmem [shape: bf16[16,256], index: 4, kind: output, shape index: {}]
  %s5 = sld [smem:[#allocation0]]
  $region26: #{forward.30} parent=0
    _
  %s7 = ssub.s32 1, %s5
  %s8 = scalar_select 0, %s7, %s5
  // Predicated region
  $region2: #{forward.30} parent=0 // pred_check
    _
  $region3: #{forward.30} parent=0 // pred_check_branch
    %10 = sbr.rel (0) target = $region5
  $region4: #{forward.30} parent=0 // pred_region
    _
  $region5: #{forward.30} parent=0 // pred_fallthru
    _
  // Predicated region
  $region6: #{forward.30} parent=0 // pred_check
    _
  $region7: #{forward.30} parent=0 // pred_check_branch
    %12 = sbr.rel (0) target = $region9
  $region8: #{forward.30} parent=0 // pred_region
    _
  $region9: #{forward.30} parent=0 // pred_fallthru
    _
  // Predicated region
  $region10: #{forward.30} parent=0 // pred_check
    _
  $region11: #{forward.30} parent=0 // pred_check_branch
    %14 = sbr.rel (0) target = $region13
  $region12: #{forward.30} parent=0 // pred_region
    _
  $region13: #{forward.30} parent=0 // pred_fallthru
    _
  // Predicated region
  $region14: #{forward.30} parent=0 // pred_check
    _
  $region15: #{forward.30} parent=0 // pred_check_branch
    %16 = sbr.rel (0) target = $region17
  $region16: #{forward.30} parent=0 // pred_region
    _
  $region17: #{forward.30} parent=0 // pred_fallthru
    _
  %v18 = vld [vmem:[%s0] sm:$0xf]
  %v19 = vld [vmem:[%s0 + $0x4] sm:$0xf]
  %v20 = vunpack.c.l.bf16 %v18
  %v21 = vunpack.c.l.bf16 %v19
  %vm22 = vcmask 523264
  %v23 = vsel %vm22, %v20, 0.0
  %24 = vadd.xlane.f32.xlu0 %v23
  %v25 = vpop.xlane.xlu0 %24
  %v26 = vsel %vm22, %v21, 0.0
  %27 = vadd.xlane.f32.xlu0 %v26
  %v28 = vpop.xlane.xlu0 %27
  %v29 = vrcp.pop 64.0
  %v30 = vmul.f32 %v25, %v29
  %v31 = vmul.f32 %v28, %v29
  %v32 = vsub.f32 %v20, %v30
  %v33 = vsub.f32 %v21, %v31
  %v34 = vmul.f32 %v32, %v32
  %v35 = vmul.f32 %v33, %v33
  %v36 = vsel %vm22, %v34, 0.0
  %37 = vadd.xlane.f32.xlu0 %v36
  %v38 = vpop.xlane.xlu0 %37
  %v39 = vsel %vm22, %v35, 0.0
  %40 = vadd.xlane.f32.xlu0 %v39
  %v41 = vpop.xlane.xlu0 %40
  %v42 = vmul.f32 %v38, %v29
  %v43 = vmul.f32 %v41, %v29
  %v44 = vadd.f32 %v42, 1e-05
  %v45 = vadd.f32 %v43, 1e-05
  %v46 = vrsqrt.pop %v44
  %v47 = vrsqrt.pop %v45
  %v48 = vmul.f32 %v32, %v46
  %v49 = vmul.f32 %v33, %v47
  %v50 = vld [vmem:[%s1] sm:$0x1]
  %v52 = vlaneseq
  %v53 = vshrl.u32 %v52, 7
  %v54 = vsub.s32 0, %v53
  %v55 = vrot.slane %v50, %v54
  %v57 = vmul.f32 %v48, %v55
  %v58 = vmul.f32 %v49, %v55
  %v59 = vld [vmem:[%s2] sm:$0x1]
  %v61 = vlaneseq
  %v62 = vshrl.u32 %v61, 7
  %v63 = vsub.s32 0, %v62
  %v64 = vrot.slane %v59, %v63
  %v66 = vadd.f32 %v57, %v64
  %v67 = vadd.f32 %v58, %v64
  %v68 = vpack.c.bf16 %v67, %v66
  %v69 = vld [vmem:[%s3] sm:$0xff]
  %v70 = vld [vmem:[%s3 + $0x8] sm:$0xff]
  %v71 = vld [vmem:[%s3 + $0x10] sm:$0xff]
  %v72 = vld [vmem:[%s3 + $0x18] sm:$0xff]
  %v73 = vld [vmem:[%s3 + $0x20] sm:$0xff]
  %v74 = vld [vmem:[%s3 + $0x28] sm:$0xff]
  %v75 = vld [vmem:[%s3 + $0x30] sm:$0xff]
  %v76 = vld [vmem:[%s3 + $0x38] sm:$0xff]
  %v85 = vunpack.c.l.b16 %v69
  %v86 = vunpack.c.h.b16 %v69
  %v87 = vunpack.c.l.b16 %v70
  %v88 = vunpack.c.h.b16 %v70
  %v89 = vunpack.c.l.b16 %v71
  %v90 = vunpack.c.h.b16 %v71
  %v91 = vunpack.c.l.b16 %v72
  %v92 = vunpack.c.h.b16 %v72
  %v93 = vunpack.c.l.b16 %v73
  %v94 = vunpack.c.h.b16 %v73
  %v95 = vunpack.c.l.b16 %v74
  %v96 = vunpack.c.h.b16 %v74
  %v97 = vunpack.c.l.b16 %v75
  %v98 = vunpack.c.h.b16 %v75
  %v99 = vunpack.c.l.b16 %v76
  %v100 = vunpack.c.h.b16 %v76
  %v101 = vpack.c.b16 %v87, %v85
  %v102 = vpack.c.b16 %v88, %v86
  %v103 = vpack.c.b16 %v91, %v89
  %v104 = vpack.c.b16 %v92, %v90
  %v105 = vpack.c.b16 %v95, %v93
  %v106 = vpack.c.b16 %v96, %v94
  %v107 = vpack.c.b16 %v99, %v97
  %v108 = vpack.c.b16 %v100, %v98
  %v118 = vsel %vm22, %v68, 0
  %120 = vmatprep.subr.bf16.mxu0 %v102
  %121 = vmatpush1.bf16.msra.mxu0 %v101
  %122 = vmatprep.subr.bf16.mxu0 %v104
  %123 = vmatpush1.bf16.msra.mxu0 %v103
  %124 = vmatprep.subr.bf16.mxu0 %v106
  %125 = vmatpush1.bf16.msra.mxu0 %v105
  %126 = vmatprep.subr.bf16.mxu0 %v108
  %127 = vmatpush1.bf16.msra.mxu0 %v107
  %128 = vmatprep.subr.bf16.mxu0 0
  %129 = vmatpush1.bf16.msra.mxu0 0
  %130 = vmatprep.subr.bf16.mxu0 0
  %131 = vmatpush1.bf16.msra.mxu0 0
  %132 = vmatprep.subr.bf16.mxu0 0
  %133 = vmatpush1.bf16.msra.mxu0 0
  %134 = vmatprep.subr.bf16.mxu0 0
  %135 = vmatpush1.bf16.msra.mxu0 0
  %136 = vmatprep.subr.bf16.mxu0 0
  %137 = vmatpush1.bf16.msra.mxu0 0
  %138 = vmatprep.subr.bf16.mxu0 0
  %139 = vmatpush1.bf16.msra.mxu0 0
  %140 = vmatprep.subr.bf16.mxu0 0
  %141 = vmatpush1.bf16.msra.mxu0 0
  %142 = vmatprep.subr.bf16.mxu0 0
  %143 = vmatpush1.bf16.msra.mxu0 0
  %144 = vmatprep.subr.bf16.mxu0 0
  %145 = vmatpush1.bf16.msra.mxu0 0
  %146 = vmatprep.subr.bf16.mxu0 0
  %147 = vmatpush1.bf16.msra.mxu0 0
  %148 = vmatprep.subr.bf16.mxu0 0
  %149 = vmatpush1.bf16.msra.mxu0 0
  %150 = vmatprep.subr.bf16.mxu0 0
  %151 = vmatpush1.bf16.msra.mxu0 0
  %152 = vmatprep.mubr.bf16.mxu0 0
  %153 = vmatmul.mubr.bf16.gmra.mrb[0].mxu0 %v118
  %v154 = vpop.f32.mrb[0].mxu0
  %v155 = vadd.f32 0.0, %v154
  %v156 = vpop.f32.mrb[0].mxu0
  %v157 = vadd.f32 0.0, %v156
  %v158 = vpop.f32.mrb[0].mxu0
  %v159 = vadd.f32 0.0, %v158
  %v160 = vpop.f32.mrb[0].mxu0
  %v161 = vadd.f32 0.0, %v160
  %162 = vdwg.mxu0
  %v163 = vpack.c.bf16 %v159, %v155
  %v164 = vpack.c.bf16 %v161, %v157
  %v167 = vunpack.c.l.b16 %v163
  %v168 = vunpack.c.l.b16 %v164
  %v169 = vunpack.c.h.b16 %v163
  %v170 = vunpack.c.h.b16 %v164
  %v171 = vpack.c.b16 %v168, %v167
  %v172 = vpack.c.b16 %v170, %v169
  %175 = vst [vmem:[%s4] sm:$0xff] %v171
  %176 = vst [vmem:[%s4 + $0x8] sm:$0xff] %v172
  // Predicated region
  $region18: #{forward.30} parent=0 // pred_check
    _
  $region19: #{forward.30} parent=0 // pred_check_branch
    %178 = sbr.rel (0) target = $region21
  $region20: #{forward.30} parent=0 // pred_region
    _
  $region21: #{forward.30} parent=0 // pred_fallthru
    _
  // Predicated region
  $region22: #{forward.30} parent=0 // pred_check
    _
  $region23: #{forward.30} parent=0 // pred_check_branch
    %180 = sbr.rel (0) target = $region25
  $region24: #{forward.30} parent=0 // pred_region
    _
  $region25: #{forward.30} parent=0 // pred_fallthru
    _

// kernel: forward.29
$region0: #{forward.29}
  #allocation0 [shape = 'u32[]', space=smem, size = 0x4, offset = 0x4, fixed_abs, tag = 'smem constant byte address 0x4 - core index']
  #allocation1 [shape = 'u32[144,128]{1,0:T(1,128)}', space=vmem, size = 0x12000, scoped, tag = 'internal scratch']
  %s0 = inlined_call_operand.vmem [shape: bf16[16,384], index: 0, kind: input, shape index: {}]
  %s1 = inlined_call_operand.vmem [shape: bf16[384,128], index: 1, kind: input, shape index: {}]
  %s2 = inlined_call_operand.vmem [shape: f32[1,128], index: 2, kind: input, shape index: {}]
  %s3 = inlined_call_operand.vmem [shape: bf16[16,128], index: 3, kind: output, shape index: {}]
  %s4 = sld [smem:[#allocation0]]
  $region22: #{forward.29} parent=0
    _
  %s6 = ssub.s32 1, %s4
  %s7 = scalar_select 0, %s6, %s4
  // Predicated region
  $region2: #{forward.29} parent=0 // pred_check
    _
  $region3: #{forward.29} parent=0 // pred_check_branch
    %9 = sbr.rel (0) target = $region5
  $region4: #{forward.29} parent=0 // pred_region
    _
  $region5: #{forward.29} parent=0 // pred_fallthru
    _
  // Predicated region
  $region6: #{forward.29} parent=0 // pred_check
    _
  $region7: #{forward.29} parent=0 // pred_check_branch
    %11 = sbr.rel (0) target = $region9
  $region8: #{forward.29} parent=0 // pred_region
    _
  $region9: #{forward.29} parent=0 // pred_fallthru
    _
  // Predicated region
  $region10: #{forward.29} parent=0 // pred_check
    _
  $region11: #{forward.29} parent=0 // pred_check_branch
    %13 = sbr.rel (0) target = $region13
  $region12: #{forward.29} parent=0 // pred_region
    _
  $region13: #{forward.29} parent=0 // pred_fallthru
    _
  %v15 = vld [vmem:[%s0] sm:$0xff]
  %v16 = vld [vmem:[%s0 + $0x8] sm:$0xf]
  %v17 = vld [vmem:[%s0 + $0xc] sm:$0xff]
  %v18 = vld [vmem:[%s0 + $0x14] sm:$0xf]
  %v19 = vld [vmem:[%s1] sm:$0xf]
  %v20 = vld [vmem:[%s1 + $0x4] sm:$0xf]
  %v21 = vld [vmem:[%s1 + $0x8] sm:$0xf]
  %v22 = vld [vmem:[%s1 + $0xc] sm:$0xf]
  %v23 = vld [vmem:[%s1 + $0x10] sm:$0xf]
  %v24 = vld [vmem:[%s1 + $0x14] sm:$0xf]
  %v25 = vld [vmem:[%s1 + $0x18] sm:$0xf]
  %v26 = vld [vmem:[%s1 + $0x1c] sm:$0xf]
  %v27 = vld [vmem:[%s1 + $0x20] sm:$0xf]
  %v28 = vld [vmem:[%s1 + $0x24] sm:$0xf]
  %v29 = vld [vmem:[%s1 + $0x28] sm:$0xf]
  %v30 = vld [vmem:[%s1 + $0x2c] sm:$0xf]
  %v31 = vld [vmem:[%s1 + $0x30] sm:$0xf]
  %v32 = vld [vmem:[%s1 + $0x34] sm:$0xf]
  %v33 = vld [vmem:[%s1 + $0x38] sm:$0xf]
  %v34 = vld [vmem:[%s1 + $0x3c] sm:$0xf]
  %v35 = vld [vmem:[%s1 + $0x40] sm:$0xf]
  %v36 = vld [vmem:[%s1 + $0x44] sm:$0xf]
  %v37 = vld [vmem:[%s1 + $0x48] sm:$0xf]
  %v38 = vld [vmem:[%s1 + $0x4c] sm:$0xf]
  %v39 = vld [vmem:[%s1 + $0x50] sm:$0xf]
  %v40 = vld [vmem:[%s1 + $0x54] sm:$0xf]
  %v41 = vld [vmem:[%s1 + $0x58] sm:$0xf]
  %v42 = vld [vmem:[%s1 + $0x5c] sm:$0xf]
  %v43 = vld [vmem:[%s1 + $0x60] sm:$0xf]
  %v44 = vld [vmem:[%s1 + $0x64] sm:$0xf]
  %v45 = vld [vmem:[%s1 + $0x68] sm:$0xf]
  %v46 = vld [vmem:[%s1 + $0x6c] sm:$0xf]
  %v47 = vld [vmem:[%s1 + $0x70] sm:$0xf]
  %v48 = vld [vmem:[%s1 + $0x74] sm:$0xf]
  %v49 = vld [vmem:[%s1 + $0x78] sm:$0xf]
  %v50 = vld [vmem:[%s1 + $0x7c] sm:$0xf]
  %v51 = vld [vmem:[%s1 + $0x80] sm:$0xf]
  %v52 = vld [vmem:[%s1 + $0x84] sm:$0xf]
  %v53 = vld [vmem:[%s1 + $0x88] sm:$0xf]
  %v54 = vld [vmem:[%s1 + $0x8c] sm:$0xf]
  %v55 = vld [vmem:[%s1 + $0x90] sm:$0xf]
  %v56 = vld [vmem:[%s1 + $0x94] sm:$0xf]
  %v57 = vld [vmem:[%s1 + $0x98] sm:$0xf]
  %v58 = vld [vmem:[%s1 + $0x9c] sm:$0xf]
  %v59 = vld [vmem:[%s1 + $0xa0] sm:$0xf]
  %v60 = vld [vmem:[%s1 + $0xa4] sm:$0xf]
  %v61 = vld [vmem:[%s1 + $0xa8] sm:$0xf]
  %v62 = vld [vmem:[%s1 + $0xac] sm:$0xf]
  %v63 = vld [vmem:[%s1 + $0xb0] sm:$0xf]
  %v64 = vld [vmem:[%s1 + $0xb4] sm:$0xf]
  %v65 = vld [vmem:[%s1 + $0xb8] sm:$0xf]
  %v66 = vld [vmem:[%s1 + $0xbc] sm:$0xf]
  %v67 = vld [vmem:[%s2] sm:$0x1]
  %v69 = vlaneseq
  %v70 = vshrl.u32 %v69, 7
  %v71 = vsub.s32 0, %v70
  %v72 = vrot.slane %v67, %v71
  %v78 = vunpack.c.l.b16 %v15
  %v79 = vunpack.c.h.b16 %v15
  %v80 = vunpack.c.l.b16 %v16
  %v81 = vunpack.c.l.b16 %v17
  %v82 = vunpack.c.h.b16 %v17
  %v83 = vunpack.c.l.b16 %v18
  %v84 = vpack.c.b16 %v81, %v78
  %v85 = vpack.c.b16 %v82, %v79
  %v86 = vpack.c.b16 %v83, %v80
  %v138 = vunpack.c.l.b16 %v19
  %v139 = vunpack.c.l.b16 %v20
  %v140 = vunpack.c.l.b16 %v21
  %v141 = vunpack.c.l.b16 %v22
  %v142 = vunpack.c.l.b16 %v23
  %v143 = vunpack.c.l.b16 %v24
  %v144 = vunpack.c.l.b16 %v25
  %v145 = vunpack.c.l.b16 %v26
  %v146 = vunpack.c.l.b16 %v27
  %v147 = vunpack.c.l.b16 %v28
  %v148 = vunpack.c.l.b16 %v29
  %v149 = vunpack.c.l.b16 %v30
  %v150 = vunpack.c.l.b16 %v31
  %v151 = vunpack.c.l.b16 %v32
  %v152 = vunpack.c.l.b16 %v33
  %v153 = vunpack.c.l.b16 %v34
  %v154 = vunpack.c.l.b16 %v35
  %v155 = vunpack.c.l.b16 %v36
  %v156 = vunpack.c.l.b16 %v37
  %v157 = vunpack.c.l.b16 %v38
  %v158 = vunpack.c.l.b16 %v39
  %v159 = vunpack.c.l.b16 %v40
  %v160 = vunpack.c.l.b16 %v41
  %v161 = vunpack.c.l.b16 %v42
  %v162 = vunpack.c.l.b16 %v43
  %v163 = vunpack.c.l.b16 %v44
  %v164 = vunpack.c.l.b16 %v45
  %v165 = vunpack.c.l.b16 %v46
  %v166 = vunpack.c.l.b16 %v47
  %v167 = vunpack.c.l.b16 %v48
  %v168 = vunpack.c.l.b16 %v49
  %v169 = vunpack.c.l.b16 %v50
  %v170 = vunpack.c.l.b16 %v51
  %v171 = vunpack.c.l.b16 %v52
  %v172 = vunpack.c.l.b16 %v53
  %v173 = vunpack.c.l.b16 %v54
  %v174 = vunpack.c.l.b16 %v55
  %v175 = vunpack.c.l.b16 %v56
  %v176 = vunpack.c.l.b16 %v57
  %v177 = vunpack.c.l.b16 %v58
  %v178 = vunpack.c.l.b16 %v59
  %v179 = vunpack.c.l.b16 %v60
  %v180 = vunpack.c.l.b16 %v61
  %v181 = vunpack.c.l.b16 %v62
  %v182 = vunpack.c.l.b16 %v63
  %v183 = vunpack.c.l.b16 %v64
  %v184 = vunpack.c.l.b16 %v65
  %v185 = vunpack.c.l.b16 %v66
  %v186 = vpack.c.b16 %v139, %v138
  %v187 = vpack.c.b16 %v141, %v140
  %v188 = vpack.c.b16 %v143, %v142
  %v189 = vpack.c.b16 %v145, %v144
  %v190 = vpack.c.b16 %v147, %v146
  %v191 = vpack.c.b16 %v149, %v148
  %v192 = vpack.c.b16 %v151, %v150
  %v193 = vpack.c.b16 %v153, %v152
  %v194 = vpack.c.b16 %v155, %v154
  %v195 = vpack.c.b16 %v157, %v156
  %v196 = vpack.c.b16 %v159, %v158
  %v197 = vpack.c.b16 %v161, %v160
  %v198 = vpack.c.b16 %v163, %v162
  %v199 = vpack.c.b16 %v165, %v164
  %v200 = vpack.c.b16 %v167, %v166
  %v201 = vpack.c.b16 %v169, %v168
  %v202 = vpack.c.b16 %v171, %v170
  %v203 = vpack.c.b16 %v173, %v172
  %v204 = vpack.c.b16 %v175, %v174
  %v205 = vpack.c.b16 %v177, %v176
  %v206 = vpack.c.b16 %v179, %v178
  %v207 = vpack.c.b16 %v181, %v180
  %v208 = vpack.c.b16 %v183, %v182
  %v209 = vpack.c.b16 %v185, %v184
  %234 = vmatprep.subr.bf16.mxu0 0
  %235 = vmatpush1.bf16.msra.mxu0 %v186
  %236 = vmatprep.subr.bf16.mxu0 0
  %237 = vmatpush1.bf16.msra.mxu0 %v187
  %238 = vmatprep.subr.bf16.mxu0 0
  %239 = vmatpush1.bf16.msra.mxu0 %v188
  %240 = vmatprep.subr.bf16.mxu0 0
  %241 = vmatpush1.bf16.msra.mxu0 %v189
  %242 = vmatprep.subr.bf16.mxu0 0
  %243 = vmatpush1.bf16.msra.mxu0 %v190
  %244 = vmatprep.subr.bf16.mxu0 0
  %245 = vmatpush1.bf16.msra.mxu0 %v191
  %246 = vmatprep.subr.bf16.mxu0 0
  %247 = vmatpush1.bf16.msra.mxu0 %v192
  %248 = vmatprep.subr.bf16.mxu0 0
  %249 = vmatpush1.bf16.msra.mxu0 %v193
  %250 = vmatprep.subr.bf16.mxu0 0
  %251 = vmatpush1.bf16.msra.mxu0 %v194
  %252 = vmatprep.subr.bf16.mxu0 0
  %253 = vmatpush1.bf16.msra.mxu0 %v195
  %254 = vmatprep.subr.bf16.mxu0 0
  %255 = vmatpush1.bf16.msra.mxu0 %v196
  %256 = vmatprep.subr.bf16.mxu0 0
  %257 = vmatpush1.bf16.msra.mxu0 %v197
  %258 = vmatprep.subr.bf16.mxu0 0
  %259 = vmatpush1.bf16.msra.mxu0 %v198
  %260 = vmatprep.subr.bf16.mxu0 0
  %261 = vmatpush1.bf16.msra.mxu0 %v199
  %262 = vmatprep.subr.bf16.mxu0 0
  %263 = vmatpush1.bf16.msra.mxu0 %v200
  %264 = vmatprep.subr.bf16.mxu0 0
  %265 = vmatpush1.bf16.msra.mxu0 %v201
  %266 = vmatprep.mubr.bf16.mxu0 %v85
  %267 = vmatmul.mubr.bf16.gmra.mrb[0].mxu0 %v84
  %v268 = vpop.f32.mrb[0].mxu0
  %v269 = vadd.f32 %v72, %v268
  %v270 = vpop.f32.mrb[0].mxu0
  %v271 = vpop.f32.mrb[0].mxu0
  %v272 = vadd.f32 %v72, %v271
  %v273 = vpop.f32.mrb[0].mxu0
  %274 = vdwg.mxu0
  %275 = vmatprep.subr.bf16.mxu0 0
  %276 = vmatpush1.bf16.msra.mxu0 %v202
  %277 = vmatprep.subr.bf16.mxu0 0
  %278 = vmatpush1.bf16.msra.mxu0 %v203
  %279 = vmatprep.subr.bf16.mxu0 0
  %280 = vmatpush1.bf16.msra.mxu0 %v204
  %281 = vmatprep.subr.bf16.mxu0 0
  %282 = vmatpush1.bf16.msra.mxu0 %v205
  %283 = vmatprep.subr.bf16.mxu0 0
  %284 = vmatpush1.bf16.msra.mxu0 %v206
  %285 = vmatprep.subr.bf16.mxu0 0
  %286 = vmatpush1.bf16.msra.mxu0 %v207
  %287 = vmatprep.subr.bf16.mxu0 0
  %288 = vmatpush1.bf16.msra.mxu0 %v208
  %289 = vmatprep.subr.bf16.mxu0 0
  %290 = vmatpush1.bf16.msra.mxu0 %v209
  %291 = vmatprep.subr.bf16.mxu0 0
  %292 = vmatpush1.bf16.msra.mxu0 0
  %293 = vmatprep.subr.bf16.mxu0 0
  %294 = vmatpush1.bf16.msra.mxu0 0
  %295 = vmatprep.subr.bf16.mxu0 0
  %296 = vmatpush1.bf16.msra.mxu0 0
  %297 = vmatprep.subr.bf16.mxu0 0
  %298 = vmatpush1.bf16.msra.mxu0 0
  %299 = vmatprep.subr.bf16.mxu0 0
  %300 = vmatpush1.bf16.msra.mxu0 0
  %301 = vmatprep.subr.bf16.mxu0 0
  %302 = vmatpush1.bf16.msra.mxu0 0
  %303 = vmatprep.subr.bf16.mxu0 0
  %304 = vmatpush1.bf16.msra.mxu0 0
  %305 = vmatprep.subr.bf16.mxu0 0
  %306 = vmatpush1.bf16.msra.mxu0 0
  %307 = vmatprep.mubr.bf16.mxu0 0
  %308 = vmatmul.mubr.bf16.gmra.mrb[0].mxu0 %v86
  %v309 = vpop.f32.mrb[0].mxu0
  %v310 = vadd.f32 %v269, %v309
  %v311 = vpop.f32.mrb[0].mxu0
  %v312 = vpop.f32.mrb[0].mxu0
  %v313 = vadd.f32 %v272, %v312
  %v314 = vpop.f32.mrb[0].mxu0
  %315 = vdwg.mxu0
  %v316 = vpack.c.bf16 %v313, %v310
  %v318 = vunpack.c.l.b16 %v316
  %v319 = vunpack.c.h.b16 %v316
  %v320 = vpack.c.b16 %v318, %v318
  %v321 = vpack.c.b16 %v319, %v319
  %324 = vst [vmem:[%s3] sm:$0xf] %v320
  %325 = vst [vmem:[%s3 + $0x4] sm:$0xf] %v321
  // Predicated region
  $region14: #{forward.29} parent=0 // pred_check
    _
  $region15: #{forward.29} parent=0 // pred_check_branch
    %327 = sbr.rel (0) target = $region17
  $region16: #{forward.29} parent=0 // pred_region
    _
  $region17: #{forward.29} parent=0 // pred_fallthru
    _
  // Predicated region
  $region18: #{forward.29} parent=0 // pred_check
    _
  $region19: #{forward.29} parent=0 // pred_check_branch
    %329 = sbr.rel (0) target = $region21
  $region20: #{forward.29} parent=0 // pred_region
    _
  $region21: #{forward.29} parent=0 // pred_fallthru
    _

// kernel: forward.32
$region0: #{forward.32}
  #allocation0 [shape = 'u32[]', space=smem, size = 0x4, offset = 0x4, fixed_abs, tag = 'smem constant byte address 0x4 - core index']
  #allocation1 [shape = 'u32[144,128]{1,0:T(1,128)}', space=vmem, size = 0x12000, scoped, tag = 'internal scratch']
  %s0 = inlined_call_operand.vmem [shape: bf16[16,64], index: 0, kind: input, shape index: {}]
  %s1 = inlined_call_operand.vmem [shape: bf16[64,128], index: 1, kind: input, shape index: {}]
  %s2 = inlined_call_operand.vmem [shape: f32[1,128], index: 2, kind: input, shape index: {}]
  %s3 = inlined_call_operand.vmem [shape: bf16[16,128], index: 3, kind: input, shape index: {}]
  %s4 = inlined_call_operand.vmem [shape: bf16[16,128], index: 4, kind: output, shape index: {}]
  %s5 = sld [smem:[#allocation0]]
  $region26: #{forward.32} parent=0
    _
  %s7 = ssub.s32 1, %s5
  %s8 = scalar_select 0, %s7, %s5
  // Predicated region
  $region2: #{forward.32} parent=0 // pred_check
    _
  $region3: #{forward.32} parent=0 // pred_check_branch
    %10 = sbr.rel (0) target = $region5
  $region4: #{forward.32} parent=0 // pred_region
    _
  $region5: #{forward.32} parent=0 // pred_fallthru
    _
  // Predicated region
  $region6: #{forward.32} parent=0 // pred_check
    _
  $region7: #{forward.32} parent=0 // pred_check_branch
    %12 = sbr.rel (0) target = $region9
  $region8: #{forward.32} parent=0 // pred_region
    _
  $region9: #{forward.32} parent=0 // pred_fallthru
    _
  // Predicated region
  $region10: #{forward.32} parent=0 // pred_check
    _
  $region11: #{forward.32} parent=0 // pred_check_branch
    %14 = sbr.rel (0) target = $region13
  $region12: #{forward.32} parent=0 // pred_region
    _
  $region13: #{forward.32} parent=0 // pred_fallthru
    _
  // Predicated region
  $region14: #{forward.32} parent=0 // pred_check
    _
  $region15: #{forward.32} parent=0 // pred_check_branch
    %16 = sbr.rel (0) target = $region17
  $region16: #{forward.32} parent=0 // pred_region
    _
  $region17: #{forward.32} parent=0 // pred_fallthru
    _
  %v18 = vld [vmem:[%s0] sm:$0xf]
  %v19 = vld [vmem:[%s0 + $0x4] sm:$0xf]
  %v20 = vld [vmem:[%s1] sm:$0xf]
  %v21 = vld [vmem:[%s1 + $0x4] sm:$0xf]
  %v22 = vld [vmem:[%s1 + $0x8] sm:$0xf]
  %v23 = vld [vmem:[%s1 + $0xc] sm:$0xf]
  %v24 = vld [vmem:[%s1 + $0x10] sm:$0xf]
  %v25 = vld [vmem:[%s1 + $0x14] sm:$0xf]
  %v26 = vld [vmem:[%s1 + $0x18] sm:$0xf]
  %v27 = vld [vmem:[%s1 + $0x1c] sm:$0xf]
  %v28 = vld [vmem:[%s2] sm:$0x1]
  %v30 = vlaneseq
  %v31 = vshrl.u32 %v30, 7
  %v32 = vsub.s32 0, %v31
  %v33 = vrot.slane %v28, %v32
  %v37 = vunpack.c.l.b16 %v18
  %v38 = vunpack.c.l.b16 %v19
  %v39 = vpack.c.b16 %v38, %v37
  %v48 = vunpack.c.l.b16 %v20
  %v49 = vunpack.c.l.b16 %v21
  %v50 = vunpack.c.l.b16 %v22
  %v51 = vunpack.c.l.b16 %v23
  %v52 = vunpack.c.l.b16 %v24
  %v53 = vunpack.c.l.b16 %v25
  %v54 = vunpack.c.l.b16 %v26
  %v55 = vunpack.c.l.b16 %v27
  %v56 = vpack.c.b16 %v49, %v48
  %v57 = vpack.c.b16 %v51, %v50
  %v58 = vpack.c.b16 %v53, %v52
  %v59 = vpack.c.b16 %v55, %v54
  %vm64 = vcmask 523264
  %v66 = vsel %vm64, %v39, 0
  %68 = vmatprep.subr.bf16.mxu0 0
  %69 = vmatpush1.bf16.msra.mxu0 %v56
  %70 = vmatprep.subr.bf16.mxu0 0
  %71 = vmatpush1.bf16.msra.mxu0 %v57
  %72 = vmatprep.subr.bf16.mxu0 0
  %73 = vmatpush1.bf16.msra.mxu0 %v58
  %74 = vmatprep.subr.bf16.mxu0 0
  %75 = vmatpush1.bf16.msra.mxu0 %v59
  %76 = vmatprep.subr.bf16.mxu0 0
  %77 = vmatpush1.bf16.msra.mxu0 0
  %78 = vmatprep.subr.bf16.mxu0 0
  %79 = vmatpush1.bf16.msra.mxu0 0
  %80 = vmatprep.subr.bf16.mxu0 0
  %81 = vmatpush1.bf16.msra.mxu0 0
  %82 = vmatprep.subr.bf16.mxu0 0
  %83 = vmatpush1.bf16.msra.mxu0 0
  %84 = vmatprep.subr.bf16.mxu0 0
  %85 = vmatpush1.bf16.msra.mxu0 0
  %86 = vmatprep.subr.bf16.mxu0 0
  %87 = vmatpush1.bf16.msra.mxu0 0
  %88 = vmatprep.subr.bf16.mxu0 0
  %89 = vmatpush1.bf16.msra.mxu0 0
  %90 = vmatprep.subr.bf16.mxu0 0
  %91 = vmatpush1.bf16.msra.mxu0 0
  %92 = vmatprep.subr.bf16.mxu0 0
  %93 = vmatpush1.bf16.msra.mxu0 0
  %94 = vmatprep.subr.bf16.mxu0 0
  %95 = vmatpush1.bf16.msra.mxu0 0
  %96 = vmatprep.subr.bf16.mxu0 0
  %97 = vmatpush1.bf16.msra.mxu0 0
  %98 = vmatprep.subr.bf16.mxu0 0
  %99 = vmatpush1.bf16.msra.mxu0 0
  %100 = vmatprep.mubr.bf16.mxu0 0
  %101 = vmatmul.mubr.bf16.gmra.mrb[0].mxu0 %v66
  %v102 = vpop.f32.mrb[0].mxu0
  %v103 = vadd.f32 %v33, %v102
  %v104 = vpop.f32.mrb[0].mxu0
  %v105 = vpop.f32.mrb[0].mxu0
  %v106 = vadd.f32 %v33, %v105
  %v107 = vpop.f32.mrb[0].mxu0
  %108 = vdwg.mxu0
  %v109 = vld [vmem:[%s3] sm:$0xf]
  %v110 = vld [vmem:[%s3 + $0x4] sm:$0xf]
  %v111 = vunpack.c.l.bf16 %v109
  %v112 = vunpack.c.l.bf16 %v110
  %v113 = vadd.f32 %v103, %v111
  %v114 = vadd.f32 %v106, %v112
  %v115 = vpack.c.bf16 %v114, %v113
  %v117 = vunpack.c.l.b16 %v115
  %v118 = vunpack.c.h.b16 %v115
  %v119 = vpack.c.b16 %v117, %v117
  %v120 = vpack.c.b16 %v118, %v118
  %123 = vst [vmem:[%s4] sm:$0xf] %v119
  %124 = vst [vmem:[%s4 + $0x4] sm:$0xf] %v120
  // Predicated region
  $region18: #{forward.32} parent=0 // pred_check
    _
  $region19: #{forward.32} parent=0 // pred_check_branch
    %126 = sbr.rel (0) target = $region21
  $region20: #{forward.32} parent=0 // pred_region
    _
  $region21: #{forward.32} parent=0 // pred_fallthru
    _
  // Predicated region
  $region22: #{forward.32} parent=0 // pred_check
    _
  $region23: #{forward.32} parent=0 // pred_check_branch
    %128 = sbr.rel (0) target = $region25
  $region24: #{forward.32} parent=0 // pred_region
    _
  $region25: #{forward.32} parent=0 // pred_fallthru
    _

// kernel: forward.34
$region0: #{forward.34}
  #allocation0 [shape = 'u32[]', space=smem, size = 0x4, offset = 0x4, fixed_abs, tag = 'smem constant byte address 0x4 - core index']
  #allocation1 [shape = 'u32[144,128]{1,0:T(1,128)}', space=vmem, size = 0x12000, scoped, tag = 'internal scratch']
  %s0 = inlined_call_operand.vmem [shape: bf16[16,256], index: 0, kind: input, shape index: {}]
  %s1 = inlined_call_operand.vmem [shape: bf16[256,128], index: 1, kind: input, shape index: {}]
  %s2 = inlined_call_operand.vmem [shape: f32[1,128], index: 2, kind: input, shape index: {}]
  %s3 = inlined_call_operand.vmem [shape: bf16[16,128], index: 3, kind: input, shape index: {}]
  %s4 = inlined_call_operand.vmem [shape: bf16[16,128], index: 4, kind: output, shape index: {}]
  %s5 = sld [smem:[#allocation0]]
  $region26: #{forward.34} parent=0
    _
  %s7 = ssub.s32 1, %s5
  %s8 = scalar_select 0, %s7, %s5
  // Predicated region
  $region2: #{forward.34} parent=0 // pred_check
    _
  $region3: #{forward.34} parent=0 // pred_check_branch
    %10 = sbr.rel (0) target = $region5
  $region4: #{forward.34} parent=0 // pred_region
    _
  $region5: #{forward.34} parent=0 // pred_fallthru
    _
  // Predicated region
  $region6: #{forward.34} parent=0 // pred_check
    _
  $region7: #{forward.34} parent=0 // pred_check_branch
    %12 = sbr.rel (0) target = $region9
  $region8: #{forward.34} parent=0 // pred_region
    _
  $region9: #{forward.34} parent=0 // pred_fallthru
    _
  // Predicated region
  $region10: #{forward.34} parent=0 // pred_check
    _
  $region11: #{forward.34} parent=0 // pred_check_branch
    %14 = sbr.rel (0) target = $region13
  $region12: #{forward.34} parent=0 // pred_region
    _
  $region13: #{forward.34} parent=0 // pred_fallthru
    _
  // Predicated region
  $region14: #{forward.34} parent=0 // pred_check
    _
  $region15: #{forward.34} parent=0 // pred_check_branch
    %16 = sbr.rel (0) target = $region17
  $region16: #{forward.34} parent=0 // pred_region
    _
  $region17: #{forward.34} parent=0 // pred_fallthru
    _
  %v18 = vld [vmem:[%s0] sm:$0xff]
  %v19 = vld [vmem:[%s0 + $0x8] sm:$0xff]
  %v20 = vld [vmem:[%s1] sm:$0xf]
  %v21 = vld [vmem:[%s1 + $0x4] sm:$0xf]
  %v22 = vld [vmem:[%s1 + $0x8] sm:$0xf]
  %v23 = vld [vmem:[%s1 + $0xc] sm:$0xf]
  %v24 = vld [vmem:[%s1 + $0x10] sm:$0xf]
  %v25 = vld [vmem:[%s1 + $0x14] sm:$0xf]
  %v26 = vld [vmem:[%s1 + $0x18] sm:$0xf]
  %v27 = vld [vmem:[%s1 + $0x1c] sm:$0xf]
  %v28 = vld [vmem:[%s1 + $0x20] sm:$0xf]
  %v29 = vld [vmem:[%s1 + $0x24] sm:$0xf]
  %v30 = vld [vmem:[%s1 + $0x28] sm:$0xf]
  %v31 = vld [vmem:[%s1 + $0x2c] sm:$0xf]
  %v32 = vld [vmem:[%s1 + $0x30] sm:$0xf]
  %v33 = vld [vmem:[%s1 + $0x34] sm:$0xf]
  %v34 = vld [vmem:[%s1 + $0x38] sm:$0xf]
  %v35 = vld [vmem:[%s1 + $0x3c] sm:$0xf]
  %v36 = vld [vmem:[%s1 + $0x40] sm:$0xf]
  %v37 = vld [vmem:[%s1 + $0x44] sm:$0xf]
  %v38 = vld [vmem:[%s1 + $0x48] sm:$0xf]
  %v39 = vld [vmem:[%s1 + $0x4c] sm:$0xf]
  %v40 = vld [vmem:[%s1 + $0x50] sm:$0xf]
  %v41 = vld [vmem:[%s1 + $0x54] sm:$0xf]
  %v42 = vld [vmem:[%s1 + $0x58] sm:$0xf]
  %v43 = vld [vmem:[%s1 + $0x5c] sm:$0xf]
  %v44 = vld [vmem:[%s1 + $0x60] sm:$0xf]
  %v45 = vld [vmem:[%s1 + $0x64] sm:$0xf]
  %v46 = vld [vmem:[%s1 + $0x68] sm:$0xf]
  %v47 = vld [vmem:[%s1 + $0x6c] sm:$0xf]
  %v48 = vld [vmem:[%s1 + $0x70] sm:$0xf]
  %v49 = vld [vmem:[%s1 + $0x74] sm:$0xf]
  %v50 = vld [vmem:[%s1 + $0x78] sm:$0xf]
  %v51 = vld [vmem:[%s1 + $0x7c] sm:$0xf]
  %v52 = vld [vmem:[%s2] sm:$0x1]
  %v54 = vlaneseq
  %v55 = vshrl.u32 %v54, 7
  %v56 = vsub.s32 0, %v55
  %v57 = vrot.slane %v52, %v56
  %v61 = vunpack.c.l.b16 %v18
  %v62 = vunpack.c.h.b16 %v18
  %v63 = vunpack.c.l.b16 %v19
  %v64 = vunpack.c.h.b16 %v19
  %v65 = vpack.c.b16 %v63, %v61
  %v66 = vpack.c.b16 %v64, %v62
  %v101 = vunpack.c.l.b16 %v20
  %v102 = vunpack.c.l.b16 %v21
  %v103 = vunpack.c.l.b16 %v22
  %v104 = vunpack.c.l.b16 %v23
  %v105 = vunpack.c.l.b16 %v24
  %v106 = vunpack.c.l.b16 %v25
  %v107 = vunpack.c.l.b16 %v26
  %v108 = vunpack.c.l.b16 %v27
  %v109 = vunpack.c.l.b16 %v28
  %v110 = vunpack.c.l.b16 %v29
  %v111 = vunpack.c.l.b16 %v30
  %v112 = vunpack.c.l.b16 %v31
  %v113 = vunpack.c.l.b16 %v32
  %v114 = vunpack.c.l.b16 %v33
  %v115 = vunpack.c.l.b16 %v34
  %v116 = vunpack.c.l.b16 %v35
  %v117 = vunpack.c.l.b16 %v36
  %v118 = vunpack.c.l.b16 %v37
  %v119 = vunpack.c.l.b16 %v38
  %v120 = vunpack.c.l.b16 %v39
  %v121 = vunpack.c.l.b16 %v40
  %v122 = vunpack.c.l.b16 %v41
  %v123 = vunpack.c.l.b16 %v42
  %v124 = vunpack.c.l.b16 %v43
  %v125 = vunpack.c.l.b16 %v44
  %v126 = vunpack.c.l.b16 %v45
  %v127 = vunpack.c.l.b16 %v46
  %v128 = vunpack.c.l.b16 %v47
  %v129 = vunpack.c.l.b16 %v48
  %v130 = vunpack.c.l.b16 %v49
  %v131 = vunpack.c.l.b16 %v50
  %v132 = vunpack.c.l.b16 %v51
  %v133 = vpack.c.b16 %v102, %v101
  %v134 = vpack.c.b16 %v104, %v103
  %v135 = vpack.c.b16 %v106, %v105
  %v136 = vpack.c.b16 %v108, %v107
  %v137 = vpack.c.b16 %v110, %v109
  %v138 = vpack.c.b16 %v112, %v111
  %v139 = vpack.c.b16 %v114, %v113
  %v140 = vpack.c.b16 %v116, %v115
  %v141 = vpack.c.b16 %v118, %v117
  %v142 = vpack.c.b16 %v120, %v119
  %v143 = vpack.c.b16 %v122, %v121
  %v144 = vpack.c.b16 %v124, %v123
  %v145 = vpack.c.b16 %v126, %v125
  %v146 = vpack.c.b16 %v128, %v127
  %v147 = vpack.c.b16 %v130, %v129
  %v148 = vpack.c.b16 %v132, %v131
  %165 = vmatprep.subr.bf16.mxu0 0
  %166 = vmatpush1.bf16.msra.mxu0 %v133
  %167 = vmatprep.subr.bf16.mxu0 0
  %168 = vmatpush1.bf16.msra.mxu0 %v134
  %169 = vmatprep.subr.bf16.mxu0 0
  %170 = vmatpush1.bf16.msra.mxu0 %v135
  %171 = vmatprep.subr.bf16.mxu0 0
  %172 = vmatpush1.bf16.msra.mxu0 %v136
  %173 = vmatprep.subr.bf16.mxu0 0
  %174 = vmatpush1.bf16.msra.mxu0 %v137
  %175 = vmatprep.subr.bf16.mxu0 0
  %176 = vmatpush1.bf16.msra.mxu0 %v138
  %177 = vmatprep.subr.bf16.mxu0 0
  %178 = vmatpush1.bf16.msra.mxu0 %v139
  %179 = vmatprep.subr.bf16.mxu0 0
  %180 = vmatpush1.bf16.msra.mxu0 %v140
  %181 = vmatprep.subr.bf16.mxu0 0
  %182 = vmatpush1.bf16.msra.mxu0 %v141
  %183 = vmatprep.subr.bf16.mxu0 0
  %184 = vmatpush1.bf16.msra.mxu0 %v142
  %185 = vmatprep.subr.bf16.mxu0 0
  %186 = vmatpush1.bf16.msra.mxu0 %v143
  %187 = vmatprep.subr.bf16.mxu0 0
  %188 = vmatpush1.bf16.msra.mxu0 %v144
  %189 = vmatprep.subr.bf16.mxu0 0
  %190 = vmatpush1.bf16.msra.mxu0 %v145
  %191 = vmatprep.subr.bf16.mxu0 0
  %192 = vmatpush1.bf16.msra.mxu0 %v146
  %193 = vmatprep.subr.bf16.mxu0 0
  %194 = vmatpush1.bf16.msra.mxu0 %v147
  %195 = vmatprep.subr.bf16.mxu0 0
  %196 = vmatpush1.bf16.msra.mxu0 %v148
  %197 = vmatprep.mubr.bf16.mxu0 %v66
  %198 = vmatmul.mubr.bf16.gmra.mrb[0].mxu0 %v65
  %v199 = vpop.f32.mrb[0].mxu0
  %v200 = vadd.f32 %v57, %v199
  %v201 = vpop.f32.mrb[0].mxu0
  %v202 = vpop.f32.mrb[0].mxu0
  %v203 = vadd.f32 %v57, %v202
  %v204 = vpop.f32.mrb[0].mxu0
  %205 = vdwg.mxu0
  %v206 = vld [vmem:[%s3] sm:$0xf]
  %v207 = vld [vmem:[%s3 + $0x4] sm:$0xf]
  %v208 = vunpack.c.l.bf16 %v206
  %v209 = vunpack.c.l.bf16 %v207
  %v210 = vadd.f32 %v200, %v208
  %v211 = vadd.f32 %v203, %v209
  %v212 = vpack.c.bf16 %v211, %v210
  %v214 = vunpack.c.l.b16 %v212
  %v215 = vunpack.c.h.b16 %v212
  %v216 = vpack.c.b16 %v214, %v214
  %v217 = vpack.c.b16 %v215, %v215
  %220 = vst [vmem:[%s4] sm:$0xf] %v216
  %221 = vst [vmem:[%s4 + $0x4] sm:$0xf] %v217
  // Predicated region
  $region18: #{forward.34} parent=0 // pred_check
    _
  $region19: #{forward.34} parent=0 // pred_check_branch
    %223 = sbr.rel (0) target = $region21
  $region20: #{forward.34} parent=0 // pred_region
    _
  $region21: #{forward.34} parent=0 // pred_fallthru
    _
  // Predicated region
  $region22: #{forward.34} parent=0 // pred_check
    _
  $region23: #{forward.34} parent=0 // pred_check_branch
    %225 = sbr.rel (0) target = $region25
  $region24: #{forward.34} parent=0 // pred_region
    _
  $region25: #{forward.34} parent=0 // pred_fallthru
    _

// kernel: forward.33
$region0: #{forward.33}
  #allocation0 [shape = 'u32[]', space=smem, size = 0x4, offset = 0x4, fixed_abs, tag = 'smem constant byte address 0x4 - core index']
  #allocation1 [shape = 'u32[144,128]{1,0:T(1,128)}', space=vmem, size = 0x12000, scoped, tag = 'internal scratch']
  %s0 = inlined_call_operand.vmem [shape: bf16[16,64], index: 0, kind: input, shape index: {}]
  %s1 = inlined_call_operand.vmem [shape: f32[1,64], index: 1, kind: input, shape index: {}]
  %s2 = inlined_call_operand.vmem [shape: f32[1,64], index: 2, kind: input, shape index: {}]
  %s3 = inlined_call_operand.vmem [shape: bf16[64,256], index: 3, kind: input, shape index: {}]
  %s4 = inlined_call_operand.vmem [shape: f32[1,256], index: 4, kind: input, shape index: {}]
  %s5 = inlined_call_operand.vmem [shape: bf16[16,256], index: 5, kind: output, shape index: {}]
  %s6 = sld [smem:[#allocation0]]
  $region30: #{forward.33} parent=0
    _
  %s8 = ssub.s32 1, %s6
  %s9 = scalar_select 0, %s8, %s6
  // Predicated region
  $region2: #{forward.33} parent=0 // pred_check
    _
  $region3: #{forward.33} parent=0 // pred_check_branch
    %11 = sbr.rel (0) target = $region5
  $region4: #{forward.33} parent=0 // pred_region
    _
  $region5: #{forward.33} parent=0 // pred_fallthru
    _
  // Predicated region
  $region6: #{forward.33} parent=0 // pred_check
    _
  $region7: #{forward.33} parent=0 // pred_check_branch
    %13 = sbr.rel (0) target = $region9
  $region8: #{forward.33} parent=0 // pred_region
    _
  $region9: #{forward.33} parent=0 // pred_fallthru
    _
  // Predicated region
  $region10: #{forward.33} parent=0 // pred_check
    _
  $region11: #{forward.33} parent=0 // pred_check_branch
    %15 = sbr.rel (0) target = $region13
  $region12: #{forward.33} parent=0 // pred_region
    _
  $region13: #{forward.33} parent=0 // pred_fallthru
    _
  // Predicated region
  $region14: #{forward.33} parent=0 // pred_check
    _
  $region15: #{forward.33} parent=0 // pred_check_branch
    %17 = sbr.rel (0) target = $region17
  $region16: #{forward.33} parent=0 // pred_region
    _
  $region17: #{forward.33} parent=0 // pred_fallthru
    _
  // Predicated region
  $region18: #{forward.33} parent=0 // pred_check
    _
  $region19: #{forward.33} parent=0 // pred_check_branch
    %19 = sbr.rel (0) target = $region21
  $region20: #{forward.33} parent=0 // pred_region
    _
  $region21: #{forward.33} parent=0 // pred_fallthru
    _
  %v21 = vld [vmem:[%s0] sm:$0xf]
  %v22 = vld [vmem:[%s0 + $0x4] sm:$0xf]
  %v23 = vunpack.c.l.bf16 %v21
  %v24 = vunpack.c.l.bf16 %v22
  %vm25 = vcmask 523264
  %v26 = vsel %vm25, %v23, 0.0
  %27 = vadd.xlane.f32.xlu0 %v26
  %v28 = vpop.xlane.xlu0 %27
  %v29 = vsel %vm25, %v24, 0.0
  %30 = vadd.xlane.f32.xlu0 %v29
  %v31 = vpop.xlane.xlu0 %30
  %v32 = vrcp.pop 64.0
  %v33 = vmul.f32 %v28, %v32
  %v34 = vmul.f32 %v31, %v32
  %v35 = vsub.f32 %v23, %v33
  %v36 = vsub.f32 %v24, %v34
  %v37 = vmul.f32 %v35, %v35
  %v38 = vmul.f32 %v36, %v36
  %v39 = vsel %vm25, %v37, 0.0
  %40 = vadd.xlane.f32.xlu0 %v39
  %v41 = vpop.xlane.xlu0 %40
  %v42 = vsel %vm25, %v38, 0.0
  %43 = vadd.xlane.f32.xlu0 %v42
  %v44 = vpop.xlane.xlu0 %43
  %v45 = vmul.f32 %v41, %v32
  %v46 = vmul.f32 %v44, %v32
  %v47 = vadd.f32 %v45, 1e-05
  %v48 = vadd.f32 %v46, 1e-05
  %v49 = vrsqrt.pop %v47
  %v50 = vrsqrt.pop %v48
  %v51 = vmul.f32 %v35, %v49
  %v52 = vmul.f32 %v36, %v50
  %v53 = vld [vmem:[%s1] sm:$0x1]
  %v55 = vlaneseq
  %v56 = vshrl.u32 %v55, 7
  %v57 = vsub.s32 0, %v56
  %v58 = vrot.slane %v53, %v57
  %v60 = vmul.f32 %v51, %v58
  %v61 = vmul.f32 %v52, %v58
  %v62 = vld [vmem:[%s2] sm:$0x1]
  %v64 = vlaneseq
  %v65 = vshrl.u32 %v64, 7
  %v66 = vsub.s32 0, %v65
  %v67 = vrot.slane %v62, %v66
  %v69 = vadd.f32 %v60, %v67
  %v70 = vadd.f32 %v61, %v67
  %v71 = vpack.c.bf16 %v70, %v69
  %v72 = vld [vmem:[%s3] sm:$0xff]
  %v73 = vld [vmem:[%s3 + $0x8] sm:$0xff]
  %v74 = vld [vmem:[%s3 + $0x10] sm:$0xff]
  %v75 = vld [vmem:[%s3 + $0x18] sm:$0xff]
  %v76 = vld [vmem:[%s3 + $0x20] sm:$0xff]
  %v77 = vld [vmem:[%s3 + $0x28] sm:$0xff]
  %v78 = vld [vmem:[%s3 + $0x30] sm:$0xff]
  %v79 = vld [vmem:[%s3 + $0x38] sm:$0xff]
  %v80 = vld [vmem:[%s4] sm:$0x3]
  %v82 = vlaneseq
  %v83 = vshrl.u32 %v82, 7
  %v84 = vsub.s32 0, %v83
  %v85 = vrot.slane %v80, %v84
  %v86 = vlaneseq
  %v87 = vshrl.u32 %v86, 7
  %v88 = vsub.s32 1, %v87
  %v89 = vrot.slane %v80, %v88
  %v100 = vunpack.c.l.b16 %v72
  %v101 = vunpack.c.h.b16 %v72
  %v102 = vunpack.c.l.b16 %v73
  %v103 = vunpack.c.h.b16 %v73
  %v104 = vunpack.c.l.b16 %v74
  %v105 = vunpack.c.h.b16 %v74
  %v106 = vunpack.c.l.b16 %v75
  %v107 = vunpack.c.h.b16 %v75
  %v108 = vunpack.c.l.b16 %v76
  %v109 = vunpack.c.h.b16 %v76
  %v110 = vunpack.c.l.b16 %v77
  %v111 = vunpack.c.h.b16 %v77
  %v112 = vunpack.c.l.b16 %v78
  %v113 = vunpack.c.h.b16 %v78
  %v114 = vunpack.c.l.b16 %v79
  %v115 = vunpack.c.h.b16 %v79
  %v116 = vpack.c.b16 %v102, %v100
  %v117 = vpack.c.b16 %v103, %v101
  %v118 = vpack.c.b16 %v106, %v104
  %v119 = vpack.c.b16 %v107, %v105
  %v120 = vpack.c.b16 %v110, %v108
  %v121 = vpack.c.b16 %v111, %v109
  %v122 = vpack.c.b16 %v114, %v112
  %v123 = vpack.c.b16 %v115, %v113
  %v133 = vsel %vm25, %v71, 0
  %135 = vmatprep.subr.bf16.mxu0 %v117
  %136 = vmatpush1.bf16.msra.mxu0 %v116
  %137 = vmatprep.subr.bf16.mxu0 %v119
  %138 = vmatpush1.bf16.msra.mxu0 %v118
  %139 = vmatprep.subr.bf16.mxu0 %v121
  %140 = vmatpush1.bf16.msra.mxu0 %v120
  %141 = vmatprep.subr.bf16.mxu0 %v123
  %142 = vmatpush1.bf16.msra.mxu0 %v122
  %143 = vmatprep.subr.bf16.mxu0 0
  %144 = vmatpush1.bf16.msra.mxu0 0
  %145 = vmatprep.subr.bf16.mxu0 0
  %146 = vmatpush1.bf16.msra.mxu0 0
  %147 = vmatprep.subr.bf16.mxu0 0
  %148 = vmatpush1.bf16.msra.mxu0 0
  %149 = vmatprep.subr.bf16.mxu0 0
  %150 = vmatpush1.bf16.msra.mxu0 0
  %151 = vmatprep.subr.bf16.mxu0 0
  %152 = vmatpush1.bf16.msra.mxu0 0
  %153 = vmatprep.subr.bf16.mxu0 0
  %154 = vmatpush1.bf16.msra.mxu0 0
  %155 = vmatprep.subr.bf16.mxu0 0
  %156 = vmatpush1.bf16.msra.mxu0 0
  %157 = vmatprep.subr.bf16.mxu0 0
  %158 = vmatpush1.bf16.msra.mxu0 0
  %159 = vmatprep.subr.bf16.mxu0 0
  %160 = vmatpush1.bf16.msra.mxu0 0
  %161 = vmatprep.subr.bf16.mxu0 0
  %162 = vmatpush1.bf16.msra.mxu0 0
  %163 = vmatprep.subr.bf16.mxu0 0
  %164 = vmatpush1.bf16.msra.mxu0 0
  %165 = vmatprep.subr.bf16.mxu0 0
  %166 = vmatpush1.bf16.msra.mxu0 0
  %167 = vmatprep.mubr.bf16.mxu0 0
  %168 = vmatmul.mubr.bf16.gmra.mrb[0].mxu0 %v133
  %v169 = vpop.f32.mrb[0].mxu0
  %v170 = vadd.f32 %v85, %v169
  %v171 = vpop.f32.mrb[0].mxu0
  %v172 = vadd.f32 %v89, %v171
  %v173 = vpop.f32.mrb[0].mxu0
  %v174 = vadd.f32 %v85, %v173
  %v175 = vpop.f32.mrb[0].mxu0
  %v176 = vadd.f32 %v89, %v175
  %177 = vdwg.mxu0
  %v178 = vmul.f32 %v170, %v170
  %v179 = vmul.f32 %v172, %v172
  %v180 = vmul.f32 %v174, %v174
  %v181 = vmul.f32 %v176, %v176
  %v182 = vmul.f32 %v170, %v178
  %v183 = vmul.f32 %v172, %v179
  %v184 = vmul.f32 %v174, %v180
  %v185 = vmul.f32 %v176, %v181
  %v186 = vmul.f32 %v182, 0.044715
  %v187 = vmul.f32 %v183, 0.044715
  %v188 = vmul.f32 %v184, 0.044715
  %v189 = vmul.f32 %v185, 0.044715
  %v190 = vadd.f32 %v170, %v186
  %v191 = vadd.f32 %v172, %v187
  %v192 = vadd.f32 %v174, %v188
  %v193 = vadd.f32 %v176, %v189
  %v194 = vmul.f32 %v190, 0.7978846
  %v195 = vmul.f32 %v191, 0.7978846
  %v196 = vmul.f32 %v192, 0.7978846
  %v197 = vmul.f32 %v193, 0.7978846
  %v198 = vtanh.pop %v194
  %v199 = vtanh.pop %v195
  %v200 = vtanh.pop %v196
  %v201 = vtanh.pop %v197
  %v202 = vadd.f32 %v198, 1.0
  %v203 = vadd.f32 %v199, 1.0
  %v204 = vadd.f32 %v200, 1.0
  %v205 = vadd.f32 %v201, 1.0
  %v206 = vmul.f32 %v202, 0.5
  %v207 = vmul.f32 %v203, 0.5
  %v208 = vmul.f32 %v204, 0.5
  %v209 = vmul.f32 %v205, 0.5
  %v210 = vmul.f32 %v170, %v206
  %v211 = vmul.f32 %v172, %v207
  %v212 = vmul.f32 %v174, %v208
  %v213 = vmul.f32 %v176, %v209
  %v214 = vpack.c.bf16 %v212, %v210
  %v215 = vpack.c.bf16 %v213, %v211
  %v218 = vunpack.c.l.b16 %v214
  %v219 = vunpack.c.l.b16 %v215
  %v220 = vunpack.c.h.b16 %v214
  %v221 = vunpack.c.h.b16 %v215
  %v222 = vpack.c.b16 %v219, %v218
  %v223 = vpack.c.b16 %v221, %v220
  %226 = vst [vmem:[%s5] sm:$0xff] %v222
  %227 = vst [vmem:[%s5 + $0x8] sm:$0xff] %v223
  // Predicated region
  $region22: #{forward.33} parent=0 // pred_check
    _
  $region23: #{forward.33} parent=0 // pred_check_branch
    %229 = sbr.rel (0) target = $region25
  $region24: #{forward.33} parent=0 // pred_region
    _
  $region25: #{forward.33} parent=0 // pred_fallthru
    _
  // Predicated region
  $region26: #{forward.33} parent=0 // pred_check
    _
  $region27: #{forward.33} parent=0 // pred_check_branch
    %231 = sbr.rel (0) target = $region29
  $region28: #{forward.33} parent=0 // pred_region
    _
  $region29: #{forward.33} parent=0 // pred_fallthru
    _

// kernel: forward.31
$region0: #{forward.31}
  #allocation0 [shape = 'u32[]', space=smem, size = 0x4, offset = 0x4, fixed_abs, tag = 'smem constant byte address 0x4 - core index']
  #allocation1 [shape = 'u32[144,128]{1,0:T(1,128)}', space=vmem, size = 0x12000, scoped, tag = 'internal scratch']
  %s0 = inlined_call_operand.vmem [shape: bf16[2,8,192], index: 0, kind: input, shape index: {}]
  %s1 = inlined_call_operand.vmem [shape: bf16[2,8,64], index: 1, kind: output, shape index: {}]
  %s2 = sld [smem:[#allocation0]]
  $region37: #{forward.31} parent=0
    _
  %s4 = ssub.s32 1, %s2
  %s5 = scalar_select 0, %s4, %s2
  loop: start=0, step=1, limit=4
  $region2: #{forward.31} parent=0 // loop_pre_header
    _
  $region3: #{forward.31} parent=0 // loop_header
    %s7 = sphi 0, %s11
    %p8 = scmp.ge.s32.totalorder %s7, 4
    %s14 = sphi 0, %s26
    %s15 = sphi 0, %s22
    %s16 = sphi 0, %s14
    %s17 = sphi 0, %s15
    %s18 = sphi 0, %s16
    %s19 = sphi 0, %s17
    %s29 = sphi 0, %s31
    %s32 = sphi 0, %s29
    %s33 = sphi 0, %s32
    %s49 = sphi 0, %s33
    %s57 = sphi 0, %s59
    %s60 = sphi 0, %s57
    %s61 = sphi 0, %s60
    %s77 = sphi 0, %s61
  $region4: #{forward.31} parent=0 // loop_header_branch
    %10 = sbr.rel (%p8) target = $region8
  $region5: #{forward.31} parent=0 // loop_body
    %s12 = ssub.s32 %s7, 1
    %s13 = ssub.s32 %s7, 2
    %s20 = sadd.s32 1, %s15
    %p21 = scmp.ge.s32.totalorder %s20, 1
    %s22 = scalar_select %p21, 0, %s20
    %s23 = sadd.s32 1, %s14
    %s24 = scalar_select %p21, %s23, %s14
    %p25 = scmp.ge.s32.totalorder %s24, 2
    %s26 = scalar_select %p25, 0, %s24
    %s27 = ssub.s32 %s14, %s26
    %p28 = scmp.eq.s32.totalorder %s27, 0
    %s30 = sadd.s32 %s29, 1
    %s31 = scalar_select %p28, %s29, %s30
    %p34 = pneg %p28
    %p35 = scmp.eq.s32.totalorder %s7, 1
    %p36 = por %p34, %p35
    %p37 = scmp.ne.s32.totalorder %s29, %s32
    %p38 = scmp.eq.s32.totalorder %s7, 0
    %p39 = por %p37, %p38
    %p40 = scmp.ne.s32.totalorder %s29, %s32
    %p41 = scmp.eq.s32.totalorder %s12, 1
    %p42 = por %p40, %p41
    %p43 = scmp.ne.s32.totalorder %s32, %s33
    %p44 = scmp.eq.s32.totalorder %s12, 0
    %p45 = por %p43, %p44
    %p46 = scmp.ne.s32.totalorder %s32, %s33
    %p47 = scmp.eq.s32.totalorder %s13, 1
    %p48 = por %p46, %p47
    %p50 = scmp.ne.s32.totalorder %s33, %s49
    %p51 = scmp.eq.s32.totalorder %s13, 0
    %p52 = por %p50, %p51
    %s53 = ssub.s32 %s14, %s26
    %s54 = ssub.s32 %s15, %s22
    %s55 = sor.u32 %s53, %s54
    %p56 = scmp.eq.s32.totalorder %s55, 0
    %s58 = sadd.s32 %s57, 1
    %s59 = scalar_select %p56, %s57, %s58
    %p62 = pneg %p56
    %p63 = scmp.eq.s32.totalorder %s7, 1
    %p64 = por %p62, %p63
    %p65 = scmp.ne.s32.totalorder %s57, %s60
    %p66 = scmp.eq.s32.totalorder %s7, 0
    %p67 = por %p65, %p66
    %p68 = scmp.ne.s32.totalorder %s57, %s60
    %p69 = scmp.eq.s32.totalorder %s12, 1
    %p70 = por %p68, %p69
    %p71 = scmp.ne.s32.totalorder %s60, %s61
    %p72 = scmp.eq.s32.totalorder %s12, 0
    %p73 = por %p71, %p72
    %p74 = scmp.ne.s32.totalorder %s60, %s61
    %p75 = scmp.eq.s32.totalorder %s13, 1
    %p76 = por %p74, %p75
    %p78 = scmp.ne.s32.totalorder %s61, %s77
    %p79 = scmp.eq.s32.totalorder %s13, 0
    %p80 = por %p78, %p79
    %p81 = scmp.le.s32.totalorder 1, %s7
    %p82 = scmp.lt.s32.totalorder %s7, 3
    %p83 = pnand %p81, %p82
    %p84 = pneg %p83
    // Predicated region
    $region9: #{forward.31} parent=5 // pred_check
      _
    $region10: #{forward.31} parent=5 // pred_check_branch
      %86 = sbr.rel (%p83) target = $region12
    $region11: #{forward.31} parent=5 // pred_region
      %s87 = ssub.s32 %s7, 1
    $region12: #{forward.31} parent=5 // pred_fallthru
      _
    %p88 = scmp.lt.s32.totalorder %s7, 2
    // Predicated region
    $region13: #{forward.31} parent=5 // pred_check
      %p89 = pneg %p88
    $region14: #{forward.31} parent=5 // pred_check_branch
      %91 = sbr.rel (%p89) target = $region16
    $region15: #{forward.31} parent=5 // pred_region
      // Predicated region
      $region17: #{forward.31} parent=15 // pred_check
        %p92 = pneg %p39
      $region18: #{forward.31} parent=15 // pred_check_branch
        %94 = sbr.rel (%p92) target = $region20
      $region19: #{forward.31} parent=15 // pred_region
        %p95 = scmp.lt.s32.totalorder %s14, 1
        %s96 = scalar_select %p95, %s14, 1
        %s97 = smul.addr %s96, 2
        %s98 = smul.addr %s97, 4
        %s99 = scalar_lea.vmem %s0, %s98
      $region20: #{forward.31} parent=15 // pred_fallthru
        _
    $region16: #{forward.31} parent=5 // pred_fallthru
      _
    %p100 = scmp.le.s32.totalorder 1, %s7
    %p101 = scmp.lt.s32.totalorder %s7, 3
    %p102 = pnand %p100, %p101
    %p103 = pneg %p102
    // Predicated region
    $region21: #{forward.31} parent=5 // pred_check
      _
    $region22: #{forward.31} parent=5 // pred_check_branch
      %105 = sbr.rel (%p102) target = $region24
    $region23: #{forward.31} parent=5 // pred_region
      %s106 = ssub.s32 %s7, 1
      %p107 = scmp.lt.s32.totalorder %s16, 1
      %s108 = scalar_select %p107, %s16, 1
      %s109 = smul.addr %s108, 2
      %s110 = smul.addr %s109, 4
      %s111 = scalar_lea.vmem %s0, %s110
      %p112 = pneg %p45
      %p113 = pneg %p42
      %p114 = pneg %p73
      %p115 = pneg %p70
      %p116 = scmp.lt.s32.totalorder %s16, 1
      %s117 = scalar_select %p116, %s16, 1
      %p118 = scmp.lt.s32.totalorder %s17, 0
      %s119 = scalar_select %p118, %s17, 0
      %s120 = sadd.s32 %s119, %s117
      %s121 = smul.addr %s120, 4
      %s122 = scalar_lea.vmem %s1, %s121
      %p123 = scmp.lt.s32.totalorder %s16, 1
      %s124 = scalar_select %p123, %s16, 1
      %s125 = smul.addr %s124, 2
      %s126 = smul.addr %s125, 4
      %s127 = scalar_lea.vmem %s0, %s126
      %p128 = scmp.lt.s32.totalorder %s16, 1
      %s129 = scalar_select %p128, %s16, 1
      %p130 = scmp.lt.s32.totalorder %s17, 0
      %s131 = scalar_select %p130, %s17, 0
      %s132 = sadd.s32 %s131, %s129
      %s133 = smul.addr %s132, 4
      %s134 = scalar_lea.vmem %s1, %s133
      %v136 = vld [vmem:[%s127] sm:$0xf]
      %v137 = vld [vmem:[%s127 + $0x4] sm:$0xf]
      %v139 = vunpack.c.l.b16 %v136
      %v140 = vpack.c.b16 %v139, %v139
      %141 = vrot.lane.b32.xlu0 %v140, 64
      %v142 = vpop.permute.xlu0 %141
      %vm143 = vcmask 64512
      %v145 = vsel %vm143, %v136, 0
      %v148 = vsel %vm143, %v142, 0
      %150 = vmatprep.subr.bf16.mxu0 0
      %151 = vmatpush1.bf16.xpose.msra.mxu0 %v148
      %152 = vmatprep.subr.bf16.mxu0 0
      %153 = vmatpush1.bf16.xpose.msra.mxu0 0
      %154 = vmatprep.subr.bf16.mxu0 0
      %155 = vmatpush1.bf16.xpose.msra.mxu0 0
      %156 = vmatprep.subr.bf16.mxu0 0
      %157 = vmatpush1.bf16.xpose.msra.mxu0 0
      %158 = vmatprep.subr.bf16.mxu0 0
      %159 = vmatpush1.bf16.xpose.msra.mxu0 0
      %160 = vmatprep.subr.bf16.mxu0 0
      %161 = vmatpush1.bf16.xpose.msra.mxu0 0
      %162 = vmatprep.subr.bf16.mxu0 0
      %163 = vmatpush1.bf16.xpose.msra.mxu0 0
      %164 = vmatprep.subr.bf16.mxu0 0
      %165 = vmatpush1.bf16.xpose.msra.mxu0 0
      %166 = vmatprep.subr.bf16.mxu0 0
      %167 = vmatpush1.bf16.xpose.msra.mxu0 0
      %168 = vmatprep.subr.bf16.mxu0 0
      %169 = vmatpush1.bf16.xpose.msra.mxu0 0
      %170 = vmatprep.subr.bf16.mxu0 0
      %171 = vmatpush1.bf16.xpose.msra.mxu0 0
      %172 = vmatprep.subr.bf16.mxu0 0
      %173 = vmatpush1.bf16.xpose.msra.mxu0 0
      %174 = vmatprep.subr.bf16.mxu0 0
      %175 = vmatpush1.bf16.xpose.msra.mxu0 0
      %176 = vmatprep.subr.bf16.mxu0 0
      %177 = vmatpush1.bf16.xpose.msra.mxu0 0
      %178 = vmatprep.subr.bf16.mxu0 0
      %179 = vmatpush1.bf16.xpose.msra.mxu0 0
      %180 = vmatprep.subr.bf16.mxu0 0
      %181 = vmatpush1.bf16.xpose.msra.mxu0 0
      %182 = vmatprep.mubr.bf16.mxu0 0
      %183 = vmatmul.mubr.bf16.gmra.mrb[0].mxu0 %v145
      %v184 = vpop.f32.mrb[0].mxu0
      %v185 = vadd.f32 0.0, %v184
      %v186 = vpop.f32.mrb[0].mxu0
      %v187 = vpop.f32.mrb[0].mxu0
      %v188 = vpop.f32.mrb[0].mxu0
      %189 = vdwg.mxu0
      %v190 = vsel %vm143, %v185, -inf
      %191 = vmax.xlane.f32.xlu0 %v190
      %v192 = vpop.xlane.xlu0 %191
      %v193 = vsub.f32 %v185, %v192
      %v194 = vmul.f32 %v193, 1.442695
      %v195 = vpow.pop %v194
      %v196 = vsel %vm143, %v195, 0.0
      %197 = vadd.xlane.f32.xlu0 %v196
      %v198 = vpop.xlane.xlu0 %197
      %v199 = vrcp.pop %v198
      %v200 = vmul.f32 %v195, %v199
      %v201 = vpack.c.bf16 %v200, %v200
      %v203 = vsel %vm143, %v201, 0
      %vm205 = vcmask 1043456
      %v207 = vsel %vm205, %v137, 0
      %209 = vmatprep.subr.bf16.mxu0 0
      %210 = vmatpush1.bf16.msra.mxu0 %v207
      %211 = vmatprep.subr.bf16.mxu0 0
      %212 = vmatpush1.bf16.msra.mxu0 0
      %213 = vmatprep.subr.bf16.mxu0 0
      %214 = vmatpush1.bf16.msra.mxu0 0
      %215 = vmatprep.subr.bf16.mxu0 0
      %216 = vmatpush1.bf16.msra.mxu0 0
      %217 = vmatprep.subr.bf16.mxu0 0
      %218 = vmatpush1.bf16.msra.mxu0 0
      %219 = vmatprep.subr.bf16.mxu0 0
      %220 = vmatpush1.bf16.msra.mxu0 0
      %221 = vmatprep.subr.bf16.mxu0 0
      %222 = vmatpush1.bf16.msra.mxu0 0
      %223 = vmatprep.subr.bf16.mxu0 0
      %224 = vmatpush1.bf16.msra.mxu0 0
      %225 = vmatprep.subr.bf16.mxu0 0
      %226 = vmatpush1.bf16.msra.mxu0 0
      %227 = vmatprep.subr.bf16.mxu0 0
      %228 = vmatpush1.bf16.msra.mxu0 0
      %229 = vmatprep.subr.bf16.mxu0 0
      %230 = vmatpush1.bf16.msra.mxu0 0
      %231 = vmatprep.subr.bf16.mxu0 0
      %232 = vmatpush1.bf16.msra.mxu0 0
      %233 = vmatprep.subr.bf16.mxu0 0
      %234 = vmatpush1.bf16.msra.mxu0 0
      %235 = vmatprep.subr.bf16.mxu0 0
      %236 = vmatpush1.bf16.msra.mxu0 0
      %237 = vmatprep.subr.bf16.mxu0 0
      %238 = vmatpush1.bf16.msra.mxu0 0
      %239 = vmatprep.subr.bf16.mxu0 0
      %240 = vmatpush1.bf16.msra.mxu0 0
      %241 = vmatprep.mubr.bf16.mxu0 0
      %242 = vmatmul.mubr.bf16.gmra.mrb[0].mxu0 %v203
      %v243 = vpop.f32.mrb[0].mxu0
      %v244 = vadd.f32 0.0, %v243
      %v245 = vpop.f32.mrb[0].mxu0
      %v246 = vpop.f32.mrb[0].mxu0
      %v247 = vpop.f32.mrb[0].mxu0
      %248 = vdwg.mxu0
      %v249 = vpack.c.bf16 %v244, %v244
      %vm250 = vcmask 60416
      %251 = vst.msk [vmem:[%s134] sm:$0xf] %vm250, %v249
      %v252 = vld [vmem:[%s127] sm:$0xf]
      %v253 = vld [vmem:[%s127 + $0x4] sm:$0xf]
      %v255 = vunpack.c.l.b16 %v252
      %v256 = vpack.c.b16 %v255, %v255
      %257 = vrot.lane.b32.xlu0 %v256, 120
      %v258 = vpop.permute.xlu0 %257
      %259 = vrot.lane.b32.xlu0 %v256, 56
      %v260 = vpop.permute.xlu0 %259
      %v262 = vsel %vm143, %v258, 0
      %v265 = vsel %vm143, %v260, 0
      %267 = vmatprep.subr.bf16.mxu0 0
      %268 = vmatpush1.bf16.xpose.msra.mxu0 %v265
      %269 = vmatprep.subr.bf16.mxu0 0
      %270 = vmatpush1.bf16.xpose.msra.mxu0 0
      %271 = vmatprep.subr.bf16.mxu0 0
      %272 = vmatpush1.bf16.xpose.msra.mxu0 0
      %273 = vmatprep.subr.bf16.mxu0 0
      %274 = vmatpush1.bf16.xpose.msra.mxu0 0
      %275 = vmatprep.subr.bf16.mxu0 0
      %276 = vmatpush1.bf16.xpose.msra.mxu0 0
      %277 = vmatprep.subr.bf16.mxu0 0
      %278 = vmatpush1.bf16.xpose.msra.mxu0 0
      %279 = vmatprep.subr.bf16.mxu0 0
      %280 = vmatpush1.bf16.xpose.msra.mxu0 0
      %281 = vmatprep.subr.bf16.mxu0 0
      %282 = vmatpush1.bf16.xpose.msra.mxu0 0
      %283 = vmatprep.subr.bf16.mxu0 0
      %284 = vmatpush1.bf16.xpose.msra.mxu0 0
      %285 = vmatprep.subr.bf16.mxu0 0
      %286 = vmatpush1.bf16.xpose.msra.mxu0 0
      %287 = vmatprep.subr.bf16.mxu0 0
      %288 = vmatpush1.bf16.xpose.msra.mxu0 0
      %289 = vmatprep.subr.bf16.mxu0 0
      %290 = vmatpush1.bf16.xpose.msra.mxu0 0
      %291 = vmatprep.subr.bf16.mxu0 0
      %292 = vmatpush1.bf16.xpose.msra.mxu0 0
      %293 = vmatprep.subr.bf16.mxu0 0
      %294 = vmatpush1.bf16.xpose.msra.mxu0 0
      %295 = vmatprep.subr.bf16.mxu0 0
      %296 = vmatpush1.bf16.xpose.msra.mxu0 0
      %297 = vmatprep.subr.bf16.mxu0 0
      %298 = vmatpush1.bf16.xpose.msra.mxu0 0
      %299 = vmatprep.mubr.bf16.mxu0 0
      %300 = vmatmul.mubr.bf16.gmra.mrb[0].mxu0 %v262
      %v301 = vpop.f32.mrb[0].mxu0
      %v302 = vadd.f32 0.0, %v301
      %v303 = vpop.f32.mrb[0].mxu0
      %v304 = vpop.f32.mrb[0].mxu0
      %v305 = vpop.f32.mrb[0].mxu0
      %306 = vdwg.mxu0
      %v307 = vsel %vm143, %v302, -inf
      %308 = vmax.xlane.f32.xlu0 %v307
      %v309 = vpop.xlane.xlu0 %308
      %v310 = vsub.f32 %v302, %v309
      %v311 = vmul.f32 %v310, 1.442695
      %v312 = vpow.pop %v311
      %v313 = vsel %vm143, %v312, 0.0
      %314 = vadd.xlane.f32.xlu0 %v313
      %v315 = vpop.xlane.xlu0 %314
      %v316 = vrcp.pop %v315
      %v317 = vmul.f32 %v312, %v316
      %v318 = vpack.c.bf16 %v317, %v317
      %v320 = vunpack.c.l.b16 %v253
      %v321 = vpack.c.b16 %v320, %v320
      %322 = vrot.lane.b32.xlu0 %v321, 120
      %v323 = vpop.permute.xlu0 %322
      %v325 = vsel %vm143, %v318, 0
      %v328 = vsel %vm205, %v323, 0
      %330 = vmatprep.subr.bf16.mxu0 0
      %331 = vmatpush1.bf16.msra.mxu0 %v328
      %332 = vmatprep.subr.bf16.mxu0 0
      %333 = vmatpush1.bf16.msra.mxu0 0
      %334 = vmatprep.subr.bf16.mxu0 0
      %335 = vmatpush1.bf16.msra.mxu0 0
      %336 = vmatprep.subr.bf16.mxu0 0
      %337 = vmatpush1.bf16.msra.mxu0 0
      %338 = vmatprep.subr.bf16.mxu0 0
      %339 = vmatpush1.bf16.msra.mxu0 0
      %340 = vmatprep.subr.bf16.mxu0 0
      %341 = vmatpush1.bf16.msra.mxu0 0
      %342 = vmatprep.subr.bf16.mxu0 0
      %343 = vmatpush1.bf16.msra.mxu0 0
      %344 = vmatprep.subr.bf16.mxu0 0
      %345 = vmatpush1.bf16.msra.mxu0 0
      %346 = vmatprep.subr.bf16.mxu0 0
      %347 = vmatpush1.bf16.msra.mxu0 0
      %348 = vmatprep.subr.bf16.mxu0 0
      %349 = vmatpush1.bf16.msra.mxu0 0
      %350 = vmatprep.subr.bf16.mxu0 0
      %351 = vmatpush1.bf16.msra.mxu0 0
      %352 = vmatprep.subr.bf16.mxu0 0
      %353 = vmatpush1.bf16.msra.mxu0 0
      %354 = vmatprep.subr.bf16.mxu0 0
      %355 = vmatpush1.bf16.msra.mxu0 0
      %356 = vmatprep.subr.bf16.mxu0 0
      %357 = vmatpush1.bf16.msra.mxu0 0
      %358 = vmatprep.subr.bf16.mxu0 0
      %359 = vmatpush1.bf16.msra.mxu0 0
      %360 = vmatprep.subr.bf16.mxu0 0
      %361 = vmatpush1.bf16.msra.mxu0 0
      %362 = vmatprep.mubr.bf16.mxu0 0
      %363 = vmatmul.mubr.bf16.gmra.mrb[0].mxu0 %v325
      %v364 = vpop.f32.mrb[0].mxu0
      %v365 = vadd.f32 0.0, %v364
      %v366 = vpop.f32.mrb[0].mxu0
      %v367 = vpop.f32.mrb[0].mxu0
      %v368 = vpop.f32.mrb[0].mxu0
      %369 = vdwg.mxu0
      %v370 = vpack.c.bf16 %v365, %v365
      %v372 = vunpack.c.l.b16 %v370
      %v373 = vpack.c.b16 %v372, %v372
      %374 = vrot.lane.b32.xlu0 %v373, 8
      %v375 = vpop.permute.xlu0 %374
      %vm377 = vcmask 126016
      %378 = vst.msk [vmem:[%s134] sm:$0xf] %vm377, %v375
      %v379 = vld [vmem:[%s127] sm:$0xf]
      %v380 = vld [vmem:[%s127 + $0x4] sm:$0xf]
      %v382 = vunpack.c.l.b16 %v379
      %v383 = vpack.c.b16 %v382, %v382
      %384 = vrot.lane.b32.xlu0 %v383, 112
      %v385 = vpop.permute.xlu0 %384
      %386 = vrot.lane.b32.xlu0 %v383, 48
      %v387 = vpop.permute.xlu0 %386
      %v389 = vsel %vm143, %v385, 0
      %v392 = vsel %vm143, %v387, 0
      %394 = vmatprep.subr.bf16.mxu0 0
      %395 = vmatpush1.bf16.xpose.msra.mxu0 %v392
      %396 = vmatprep.subr.bf16.mxu0 0
      %397 = vmatpush1.bf16.xpose.msra.mxu0 0
      %398 = vmatprep.subr.bf16.mxu0 0
      %399 = vmatpush1.bf16.xpose.msra.mxu0 0
      %400 = vmatprep.subr.bf16.mxu0 0
      %401 = vmatpush1.bf16.xpose.msra.mxu0 0
      %402 = vmatprep.subr.bf16.mxu0 0
      %403 = vmatpush1.bf16.xpose.msra.mxu0 0
      %404 = vmatprep.subr.bf16.mxu0 0
      %405 = vmatpush1.bf16.xpose.msra.mxu0 0
      %406 = vmatprep.subr.bf16.mxu0 0
      %407 = vmatpush1.bf16.xpose.msra.mxu0 0
      %408 = vmatprep.subr.bf16.mxu0 0
      %409 = vmatpush1.bf16.xpose.msra.mxu0 0
      %410 = vmatprep.subr.bf16.mxu0 0
      %411 = vmatpush1.bf16.xpose.msra.mxu0 0
      %412 = vmatprep.subr.bf16.mxu0 0
      %413 = vmatpush1.bf16.xpose.msra.mxu0 0
      %414 = vmatprep.subr.bf16.mxu0 0
      %415 = vmatpush1.bf16.xpose.msra.mxu0 0
      %416 = vmatprep.subr.bf16.mxu0 0
      %417 = vmatpush1.bf16.xpose.msra.mxu0 0
      %418 = vmatprep.subr.bf16.mxu0 0
      %419 = vmatpush1.bf16.xpose.msra.mxu0 0
      %420 = vmatprep.subr.bf16.mxu0 0
      %421 = vmatpush1.bf16.xpose.msra.mxu0 0
      %422 = vmatprep.subr.bf16.mxu0 0
      %423 = vmatpush1.bf16.xpose.msra.mxu0 0
      %424 = vmatprep.subr.bf16.mxu0 0
      %425 = vmatpush1.bf16.xpose.msra.mxu0 0
      %426 = vmatprep.mubr.bf16.mxu0 0
      %427 = vmatmul.mubr.bf16.gmra.mrb[0].mxu0 %v389
      %v428 = vpop.f32.mrb[0].mxu0
      %v429 = vadd.f32 0.0, %v428
      %v430 = vpop.f32.mrb[0].mxu0
      %v431 = vpop.f32.mrb[0].mxu0
      %v432 = vpop.f32.mrb[0].mxu0
      %433 = vdwg.mxu0
      %v434 = vsel %vm143, %v429, -inf
      %435 = vmax.xlane.f32.xlu0 %v434
      %v436 = vpop.xlane.xlu0 %435
      %v437 = vsub.f32 %v429, %v436
      %v438 = vmul.f32 %v437, 1.442695
      %v439 = vpow.pop %v438
      %v440 = vsel %vm143, %v439, 0.0
      %441 = vadd.xlane.f32.xlu0 %v440
      %v442 = vpop.xlane.xlu0 %441
      %v443 = vrcp.pop %v442
      %v444 = vmul.f32 %v439, %v443
      %v445 = vpack.c.bf16 %v444, %v444
      %v447 = vunpack.c.l.b16 %v380
      %v448 = vpack.c.b16 %v447, %v447
      %449 = vrot.lane.b32.xlu0 %v448, 112
      %v450 = vpop.permute.xlu0 %449
      %v452 = vsel %vm143, %v445, 0
      %v455 = vsel %vm205, %v450, 0
      %457 = vmatprep.subr.bf16.mxu0 0
      %458 = vmatpush1.bf16.msra.mxu0 %v455
      %459 = vmatprep.subr.bf16.mxu0 0
      %460 = vmatpush1.bf16.msra.mxu0 0
      %461 = vmatprep.subr.bf16.mxu0 0
      %462 = vmatpush1.bf16.msra.mxu0 0
      %463 = vmatprep.subr.bf16.mxu0 0
      %464 = vmatpush1.bf16.msra.mxu0 0
      %465 = vmatprep.subr.bf16.mxu0 0
      %466 = vmatpush1.bf16.msra.mxu0 0
      %467 = vmatprep.subr.bf16.mxu0 0
      %468 = vmatpush1.bf16.msra.mxu0 0
      %469 = vmatprep.subr.bf16.mxu0 0
      %470 = vmatpush1.bf16.msra.mxu0 0
      %471 = vmatprep.subr.bf16.mxu0 0
      %472 = vmatpush1.bf16.msra.mxu0 0
      %473 = vmatprep.subr.bf16.mxu0 0
      %474 = vmatpush1.bf16.msra.mxu0 0
      %475 = vmatprep.subr.bf16.mxu0 0
      %476 = vmatpush1.bf16.msra.mxu0 0
      %477 = vmatprep.subr.bf16.mxu0 0
      %478 = vmatpush1.bf16.msra.mxu0 0
      %479 = vmatprep.subr.bf16.mxu0 0
      %480 = vmatpush1.bf16.msra.mxu0 0
      %481 = vmatprep.subr.bf16.mxu0 0
      %482 = vmatpush1.bf16.msra.mxu0 0
      %483 = vmatprep.subr.bf16.mxu0 0
      %484 = vmatpush1.bf16.msra.mxu0 0
      %485 = vmatprep.subr.bf16.mxu0 0
      %486 = vmatpush1.bf16.msra.mxu0 0
      %487 = vmatprep.subr.bf16.mxu0 0
      %488 = vmatpush1.bf16.msra.mxu0 0
      %489 = vmatprep.mubr.bf16.mxu0 0
      %490 = vmatmul.mubr.bf16.gmra.mrb[0].mxu0 %v452
      %v491 = vpop.f32.mrb[0].mxu0
      %v492 = vadd.f32 0.0, %v491
      %v493 = vpop.f32.mrb[0].mxu0
      %v494 = vpop.f32.mrb[0].mxu0
      %v495 = vpop.f32.mrb[0].mxu0
      %496 = vdwg.mxu0
      %v497 = vpack.c.bf16 %v492, %v492
      %v499 = vunpack.c.l.b16 %v497
      %v500 = vpack.c.b16 %v499, %v499
      %501 = vrot.lane.b32.xlu0 %v500, 16
      %v502 = vpop.permute.xlu0 %501
      %vm504 = vcmask 191616
      %505 = vst.msk [vmem:[%s134] sm:$0xf] %vm504, %v502
      %v506 = vld [vmem:[%s127] sm:$0xf]
      %v507 = vld [vmem:[%s127 + $0x4] sm:$0xf]
      %v509 = vunpack.c.l.b16 %v506
      %v510 = vpack.c.b16 %v509, %v509
      %511 = vrot.lane.b32.xlu0 %v510, 104
      %v512 = vpop.permute.xlu0 %511
      %513 = vrot.lane.b32.xlu0 %v510, 40
      %v514 = vpop.permute.xlu0 %513
      %v516 = vsel %vm143, %v512, 0
      %v519 = vsel %vm143, %v514, 0
      %521 = vmatprep.subr.bf16.mxu0 0
      %522 = vmatpush1.bf16.xpose.msra.mxu0 %v519
      %523 = vmatprep.subr.bf16.mxu0 0
      %524 = vmatpush1.bf16.xpose.msra.mxu0 0
      %525 = vmatprep.subr.bf16.mxu0 0
      %526 = vmatpush1.bf16.xpose.msra.mxu0 0
      %527 = vmatprep.subr.bf16.mxu0 0
      %528 = vmatpush1.bf16.xpose.msra.mxu0 0
      %529 = vmatprep.subr.bf16.mxu0 0
      %530 = vmatpush1.bf16.xpose.msra.mxu0 0
      %531 = vmatprep.subr.bf16.mxu0 0
      %532 = vmatpush1.bf16.xpose.msra.mxu0 0
      %533 = vmatprep.subr.bf16.mxu0 0
      %534 = vmatpush1.bf16.xpose.msra.mxu0 0
      %535 = vmatprep.subr.bf16.mxu0 0
      %536 = vmatpush1.bf16.xpose.msra.mxu0 0
      %537 = vmatprep.subr.bf16.mxu0 0
      %538 = vmatpush1.bf16.xpose.msra.mxu0 0
      %539 = vmatprep.subr.bf16.mxu0 0
      %540 = vmatpush1.bf16.xpose.msra.mxu0 0
      %541 = vmatprep.subr.bf16.mxu0 0
      %542 = vmatpush1.bf16.xpose.msra.mxu0 0
      %543 = vmatprep.subr.bf16.mxu0 0
      %544 = vmatpush1.bf16.xpose.msra.mxu0 0
      %545 = vmatprep.subr.bf16.mxu0 0
      %546 = vmatpush1.bf16.xpose.msra.mxu0 0
      %547 = vmatprep.subr.bf16.mxu0 0
      %548 = vmatpush1.bf16.xpose.msra.mxu0 0
      %549 = vmatprep.subr.bf16.mxu0 0
      %550 = vmatpush1.bf16.xpose.msra.mxu0 0
      %551 = vmatprep.subr.bf16.mxu0 0
      %552 = vmatpush1.bf16.xpose.msra.mxu0 0
      %553 = vmatprep.mubr.bf16.mxu0 0
      %554 = vmatmul.mubr.bf16.gmra.mrb[0].mxu0 %v516
      %v555 = vpop.f32.mrb[0].mxu0
      %v556 = vadd.f32 0.0, %v555
      %v557 = vpop.f32.mrb[0].mxu0
      %v558 = vpop.f32.mrb[0].mxu0
      %v559 = vpop.f32.mrb[0].mxu0
      %560 = vdwg.mxu0
      %v561 = vsel %vm143, %v556, -inf
      %562 = vmax.xlane.f32.xlu0 %v561
      %v563 = vpop.xlane.xlu0 %562
      %v564 = vsub.f32 %v556, %v563
      %v565 = vmul.f32 %v564, 1.442695
      %v566 = vpow.pop %v565
      %v567 = vsel %vm143, %v566, 0.0
      %568 = vadd.xlane.f32.xlu0 %v567
      %v569 = vpop.xlane.xlu0 %568
      %v570 = vrcp.pop %v569
      %v571 = vmul.f32 %v566, %v570
      %v572 = vpack.c.bf16 %v571, %v571
      %v574 = vunpack.c.l.b16 %v507
      %v575 = vpack.c.b16 %v574, %v574
      %576 = vrot.lane.b32.xlu0 %v575, 104
      %v577 = vpop.permute.xlu0 %576
      %v579 = vsel %vm143, %v572, 0
      %v582 = vsel %vm205, %v577, 0
      %584 = vmatprep.subr.bf16.mxu0 0
      %585 = vmatpush1.bf16.msra.mxu0 %v582
      %586 = vmatprep.subr.bf16.mxu0 0
      %587 = vmatpush1.bf16.msra.mxu0 0
      %588 = vmatprep.subr.bf16.mxu0 0
      %589 = vmatpush1.bf16.msra.mxu0 0
      %590 = vmatprep.subr.bf16.mxu0 0
      %591 = vmatpush1.bf16.msra.mxu0 0
      %592 = vmatprep.subr.bf16.mxu0 0
      %593 = vmatpush1.bf16.msra.mxu0 0
      %594 = vmatprep.subr.bf16.mxu0 0
      %595 = vmatpush1.bf16.msra.mxu0 0
      %596 = vmatprep.subr.bf16.mxu0 0
      %597 = vmatpush1.bf16.msra.mxu0 0
      %598 = vmatprep.subr.bf16.mxu0 0
      %599 = vmatpush1.bf16.msra.mxu0 0
      %600 = vmatprep.subr.bf16.mxu0 0
      %601 = vmatpush1.bf16.msra.mxu0 0
      %602 = vmatprep.subr.bf16.mxu0 0
      %603 = vmatpush1.bf16.msra.mxu0 0
      %604 = vmatprep.subr.bf16.mxu0 0
      %605 = vmatpush1.bf16.msra.mxu0 0
      %606 = vmatprep.subr.bf16.mxu0 0
      %607 = vmatpush1.bf16.msra.mxu0 0
      %608 = vmatprep.subr.bf16.mxu0 0
      %609 = vmatpush1.bf16.msra.mxu0 0
      %610 = vmatprep.subr.bf16.mxu0 0
      %611 = vmatpush1.bf16.msra.mxu0 0
      %612 = vmatprep.subr.bf16.mxu0 0
      %613 = vmatpush1.bf16.msra.mxu0 0
      %614 = vmatprep.subr.bf16.mxu0 0
      %615 = vmatpush1.bf16.msra.mxu0 0
      %616 = vmatprep.mubr.bf16.mxu0 0
      %617 = vmatmul.mubr.bf16.gmra.mrb[0].mxu0 %v579
      %v618 = vpop.f32.mrb[0].mxu0
      %v619 = vadd.f32 0.0, %v618
      %v620 = vpop.f32.mrb[0].mxu0
      %v621 = vpop.f32.mrb[0].mxu0
      %v622 = vpop.f32.mrb[0].mxu0
      %623 = vdwg.mxu0
      %v624 = vpack.c.bf16 %v619, %v619
      %v626 = vunpack.c.l.b16 %v624
      %v627 = vpack.c.b16 %v626, %v626
      %628 = vrot.lane.b32.xlu0 %v627, 24
      %v629 = vpop.permute.xlu0 %628
      %vm631 = vcmask 257216
      %632 = vst.msk [vmem:[%s134] sm:$0xf] %vm631, %v629
      %v633 = vld [vmem:[%s127] sm:$0xf]
      %v634 = vld [vmem:[%s127 + $0x4] sm:$0xf]
      %v636 = vunpack.c.l.b16 %v633
      %v637 = vpack.c.b16 %v636, %v636
      %638 = vrot.lane.b32.xlu0 %v637, 96
      %v639 = vpop.permute.xlu0 %638
      %640 = vrot.lane.b32.xlu0 %v637, 32
      %v641 = vpop.permute.xlu0 %640
      %v643 = vsel %vm143, %v639, 0
      %v646 = vsel %vm143, %v641, 0
      %648 = vmatprep.subr.bf16.mxu0 0
      %649 = vmatpush1.bf16.xpose.msra.mxu0 %v646
      %650 = vmatprep.subr.bf16.mxu0 0
      %651 = vmatpush1.bf16.xpose.msra.mxu0 0
      %652 = vmatprep.subr.bf16.mxu0 0
      %653 = vmatpush1.bf16.xpose.msra.mxu0 0
      %654 = vmatprep.subr.bf16.mxu0 0
      %655 = vmatpush1.bf16.xpose.msra.mxu0 0
      %656 = vmatprep.subr.bf16.mxu0 0
      %657 = vmatpush1.bf16.xpose.msra.mxu0 0
      %658 = vmatprep.subr.bf16.mxu0 0
      %659 = vmatpush1.bf16.xpose.msra.mxu0 0
      %660 = vmatprep.subr.bf16.mxu0 0
      %661 = vmatpush1.bf16.xpose.msra.mxu0 0
      %662 = vmatprep.subr.bf16.mxu0 0
      %663 = vmatpush1.bf16.xpose.msra.mxu0 0
      %664 = vmatprep.subr.bf16.mxu0 0
      %665 = vmatpush1.bf16.xpose.msra.mxu0 0
      %666 = vmatprep.subr.bf16.mxu0 0
      %667 = vmatpush1.bf16.xpose.msra.mxu0 0
      %668 = vmatprep.subr.bf16.mxu0 0
      %669 = vmatpush1.bf16.xpose.msra.mxu0 0
      %670 = vmatprep.subr.bf16.mxu0 0
      %671 = vmatpush1.bf16.xpose.msra.mxu0 0
      %672 = vmatprep.subr.bf16.mxu0 0
      %673 = vmatpush1.bf16.xpose.msra.mxu0 0
      %674 = vmatprep.subr.bf16.mxu0 0
      %675 = vmatpush1.bf16.xpose.msra.mxu0 0
      %676 = vmatprep.subr.bf16.mxu0 0
      %677 = vmatpush1.bf16.xpose.msra.mxu0 0
      %678 = vmatprep.subr.bf16.mxu0 0
      %679 = vmatpush1.bf16.xpose.msra.mxu0 0
      %680 = vmatprep.mubr.bf16.mxu0 0
      %681 = vmatmul.mubr.bf16.gmra.mrb[0].mxu0 %v643
      %v682 = vpop.f32.mrb[0].mxu0
      %v683 = vadd.f32 0.0, %v682
      %v684 = vpop.f32.mrb[0].mxu0
      %v685 = vpop.f32.mrb[0].mxu0
      %v686 = vpop.f32.mrb[0].mxu0
      %687 = vdwg.mxu0
      %v688 = vsel %vm143, %v683, -inf
      %689 = vmax.xlane.f32.xlu0 %v688
      %v690 = vpop.xlane.xlu0 %689
      %v691 = vsub.f32 %v683, %v690
      %v692 = vmul.f32 %v691, 1.442695
      %v693 = vpow.pop %v692
      %v694 = vsel %vm143, %v693, 0.0
      %695 = vadd.xlane.f32.xlu0 %v694
      %v696 = vpop.xlane.xlu0 %695
      %v697 = vrcp.pop %v696
      %v698 = vmul.f32 %v693, %v697
      %v699 = vpack.c.bf16 %v698, %v698
      %v701 = vunpack.c.l.b16 %v634
      %v702 = vpack.c.b16 %v701, %v701
      %703 = vrot.lane.b32.xlu0 %v702, 96
      %v704 = vpop.permute.xlu0 %703
      %v706 = vsel %vm143, %v699, 0
      %v709 = vsel %vm205, %v704, 0
      %711 = vmatprep.subr.bf16.mxu0 0
      %712 = vmatpush1.bf16.msra.mxu0 %v709
      %713 = vmatprep.subr.bf16.mxu0 0
      %714 = vmatpush1.bf16.msra.mxu0 0
      %715 = vmatprep.subr.bf16.mxu0 0
      %716 = vmatpush1.bf16.msra.mxu0 0
      %717 = vmatprep.subr.bf16.mxu0 0
      %718 = vmatpush1.bf16.msra.mxu0 0
      %719 = vmatprep.subr.bf16.mxu0 0
      %720 = vmatpush1.bf16.msra.mxu0 0
      %721 = vmatprep.subr.bf16.mxu0 0
      %722 = vmatpush1.bf16.msra.mxu0 0
      %723 = vmatprep.subr.bf16.mxu0 0
      %724 = vmatpush1.bf16.msra.mxu0 0
      %725 = vmatprep.subr.bf16.mxu0 0
      %726 = vmatpush1.bf16.msra.mxu0 0
      %727 = vmatprep.subr.bf16.mxu0 0
      %728 = vmatpush1.bf16.msra.mxu0 0
      %729 = vmatprep.subr.bf16.mxu0 0
      %730 = vmatpush1.bf16.msra.mxu0 0
      %731 = vmatprep.subr.bf16.mxu0 0
      %732 = vmatpush1.bf16.msra.mxu0 0
      %733 = vmatprep.subr.bf16.mxu0 0
      %734 = vmatpush1.bf16.msra.mxu0 0
      %735 = vmatprep.subr.bf16.mxu0 0
      %736 = vmatpush1.bf16.msra.mxu0 0
      %737 = vmatprep.subr.bf16.mxu0 0
      %738 = vmatpush1.bf16.msra.mxu0 0
      %739 = vmatprep.subr.bf16.mxu0 0
      %740 = vmatpush1.bf16.msra.mxu0 0
      %741 = vmatprep.subr.bf16.mxu0 0
      %742 = vmatpush1.bf16.msra.mxu0 0
      %743 = vmatprep.mubr.bf16.mxu0 0
      %744 = vmatmul.mubr.bf16.gmra.mrb[0].mxu0 %v706
      %v745 = vpop.f32.mrb[0].mxu0
      %v746 = vadd.f32 0.0, %v745
      %v747 = vpop.f32.mrb[0].mxu0
      %v748 = vpop.f32.mrb[0].mxu0
      %v749 = vpop.f32.mrb[0].mxu0
      %750 = vdwg.mxu0
      %v751 = vpack.c.bf16 %v746, %v746
      %v753 = vunpack.c.l.b16 %v751
      %v754 = vpack.c.b16 %v753, %v753
      %755 = vrot.lane.b32.xlu0 %v754, 32
      %v756 = vpop.permute.xlu0 %755
      %vm758 = vcmask 322816
      %759 = vst.msk [vmem:[%s134] sm:$0xf] %vm758, %v756
      %v760 = vld [vmem:[%s127] sm:$0xf]
      %v761 = vld [vmem:[%s127 + $0x4] sm:$0xf]
      %v763 = vunpack.c.l.b16 %v760
      %v764 = vpack.c.b16 %v763, %v763
      %765 = vrot.lane.b32.xlu0 %v764, 88
      %v766 = vpop.permute.xlu0 %765
      %767 = vrot.lane.b32.xlu0 %v764, 24
      %v768 = vpop.permute.xlu0 %767
      %v770 = vsel %vm143, %v766, 0
      %v773 = vsel %vm143, %v768, 0
      %775 = vmatprep.subr.bf16.mxu0 0
      %776 = vmatpush1.bf16.xpose.msra.mxu0 %v773
      %777 = vmatprep.subr.bf16.mxu0 0
      %778 = vmatpush1.bf16.xpose.msra.mxu0 0
      %779 = vmatprep.subr.bf16.mxu0 0
      %780 = vmatpush1.bf16.xpose.msra.mxu0 0
      %781 = vmatprep.subr.bf16.mxu0 0
      %782 = vmatpush1.bf16.xpose.msra.mxu0 0
      %783 = vmatprep.subr.bf16.mxu0 0
      %784 = vmatpush1.bf16.xpose.msra.mxu0 0
      %785 = vmatprep.subr.bf16.mxu0 0
      %786 = vmatpush1.bf16.xpose.msra.mxu0 0
      %787 = vmatprep.subr.bf16.mxu0 0
      %788 = vmatpush1.bf16.xpose.msra.mxu0 0
      %789 = vmatprep.subr.bf16.mxu0 0
      %790 = vmatpush1.bf16.xpose.msra.mxu0 0
      %791 = vmatprep.subr.bf16.mxu0 0
      %792 = vmatpush1.bf16.xpose.msra.mxu0 0
      %793 = vmatprep.subr.bf16.mxu0 0
      %794 = vmatpush1.bf16.xpose.msra.mxu0 0
      %795 = vmatprep.subr.bf16.mxu0 0
      %796 = vmatpush1.bf16.xpose.msra.mxu0 0
      %797 = vmatprep.subr.bf16.mxu0 0
      %798 = vmatpush1.bf16.xpose.msra.mxu0 0
      %799 = vmatprep.subr.bf16.mxu0 0
      %800 = vmatpush1.bf16.xpose.msra.mxu0 0
      %801 = vmatprep.subr.bf16.mxu0 0
      %802 = vmatpush1.bf16.xpose.msra.mxu0 0
      %803 = vmatprep.subr.bf16.mxu0 0
      %804 = vmatpush1.bf16.xpose.msra.mxu0 0
      %805 = vmatprep.subr.bf16.mxu0 0
      %806 = vmatpush1.bf16.xpose.msra.mxu0 0
      %807 = vmatprep.mubr.bf16.mxu0 0
      %808 = vmatmul.mubr.bf16.gmra.mrb[0].mxu0 %v770
      %v809 = vpop.f32.mrb[0].mxu0
      %v810 = vadd.f32 0.0, %v809
      %v811 = vpop.f32.mrb[0].mxu0
      %v812 = vpop.f32.mrb[0].mxu0
      %v813 = vpop.f32.mrb[0].mxu0
      %814 = vdwg.mxu0
      %v815 = vsel %vm143, %v810, -inf
      %816 = vmax.xlane.f32.xlu0 %v815
      %v817 = vpop.xlane.xlu0 %816
      %v818 = vsub.f32 %v810, %v817
      %v819 = vmul.f32 %v818, 1.442695
      %v820 = vpow.pop %v819
      %v821 = vsel %vm143, %v820, 0.0
      %822 = vadd.xlane.f32.xlu0 %v821
      %v823 = vpop.xlane.xlu0 %822
      %v824 = vrcp.pop %v823
      %v825 = vmul.f32 %v820, %v824
      %v826 = vpack.c.bf16 %v825, %v825
      %v828 = vunpack.c.l.b16 %v761
      %v829 = vpack.c.b16 %v828, %v828
      %830 = vrot.lane.b32.xlu0 %v829, 88
      %v831 = vpop.permute.xlu0 %830
      %v833 = vsel %vm143, %v826, 0
      %v836 = vsel %vm205, %v831, 0
      %838 = vmatprep.subr.bf16.mxu0 0
      %839 = vmatpush1.bf16.msra.mxu0 %v836
      %840 = vmatprep.subr.bf16.mxu0 0
      %841 = vmatpush1.bf16.msra.mxu0 0
      %842 = vmatprep.subr.bf16.mxu0 0
      %843 = vmatpush1.bf16.msra.mxu0 0
      %844 = vmatprep.subr.bf16.mxu0 0
      %845 = vmatpush1.bf16.msra.mxu0 0
      %846 = vmatprep.subr.bf16.mxu0 0
      %847 = vmatpush1.bf16.msra.mxu0 0
      %848 = vmatprep.subr.bf16.mxu0 0
      %849 = vmatpush1.bf16.msra.mxu0 0
      %850 = vmatprep.subr.bf16.mxu0 0
      %851 = vmatpush1.bf16.msra.mxu0 0
      %852 = vmatprep.subr.bf16.mxu0 0
      %853 = vmatpush1.bf16.msra.mxu0 0
      %854 = vmatprep.subr.bf16.mxu0 0
      %855 = vmatpush1.bf16.msra.mxu0 0
      %856 = vmatprep.subr.bf16.mxu0 0
      %857 = vmatpush1.bf16.msra.mxu0 0
      %858 = vmatprep.subr.bf16.mxu0 0
      %859 = vmatpush1.bf16.msra.mxu0 0
      %860 = vmatprep.subr.bf16.mxu0 0
      %861 = vmatpush1.bf16.msra.mxu0 0
      %862 = vmatprep.subr.bf16.mxu0 0
      %863 = vmatpush1.bf16.msra.mxu0 0
      %864 = vmatprep.subr.bf16.mxu0 0
      %865 = vmatpush1.bf16.msra.mxu0 0
      %866 = vmatprep.subr.bf16.mxu0 0
      %867 = vmatpush1.bf16.msra.mxu0 0
      %868 = vmatprep.subr.bf16.mxu0 0
      %869 = vmatpush1.bf16.msra.mxu0 0
      %870 = vmatprep.mubr.bf16.mxu0 0
      %871 = vmatmul.mubr.bf16.gmra.mrb[0].mxu0 %v833
      %v872 = vpop.f32.mrb[0].mxu0
      %v873 = vadd.f32 0.0, %v872
      %v874 = vpop.f32.mrb[0].mxu0
      %v875 = vpop.f32.mrb[0].mxu0
      %v876 = vpop.f32.mrb[0].mxu0
      %877 = vdwg.mxu0
      %v878 = vpack.c.bf16 %v873, %v873
      %v880 = vunpack.c.l.b16 %v878
      %v881 = vpack.c.b16 %v880, %v880
      %882 = vrot.lane.b32.xlu0 %v881, 40
      %v883 = vpop.permute.xlu0 %882
      %vm885 = vcmask 388416
      %886 = vst.msk [vmem:[%s134] sm:$0xf] %vm885, %v883
      %v887 = vld [vmem:[%s127] sm:$0xf]
      %v888 = vld [vmem:[%s127 + $0x4] sm:$0xf]
      %v890 = vunpack.c.l.b16 %v887
      %v891 = vpack.c.b16 %v890, %v890
      %892 = vrot.lane.b32.xlu0 %v891, 80
      %v893 = vpop.permute.xlu0 %892
      %894 = vrot.lane.b32.xlu0 %v891, 16
      %v895 = vpop.permute.xlu0 %894
      %v897 = vsel %vm143, %v893, 0
      %v900 = vsel %vm143, %v895, 0
      %902 = vmatprep.subr.bf16.mxu0 0
      %903 = vmatpush1.bf16.xpose.msra.mxu0 %v900
      %904 = vmatprep.subr.bf16.mxu0 0
      %905 = vmatpush1.bf16.xpose.msra.mxu0 0
      %906 = vmatprep.subr.bf16.mxu0 0
      %907 = vmatpush1.bf16.xpose.msra.mxu0 0
      %908 = vmatprep.subr.bf16.mxu0 0
      %909 = vmatpush1.bf16.xpose.msra.mxu0 0
      %910 = vmatprep.subr.bf16.mxu0 0
      %911 = vmatpush1.bf16.xpose.msra.mxu0 0
      %912 = vmatprep.subr.bf16.mxu0 0
      %913 = vmatpush1.bf16.xpose.msra.mxu0 0
      %914 = vmatprep.subr.bf16.mxu0 0
      %915 = vmatpush1.bf16.xpose.msra.mxu0 0
      %916 = vmatprep.subr.bf16.mxu0 0
      %917 = vmatpush1.bf16.xpose.msra.mxu0 0
      %918 = vmatprep.subr.bf16.mxu0 0
      %919 = vmatpush1.bf16.xpose.msra.mxu0 0
      %920 = vmatprep.subr.bf16.mxu0 0
      %921 = vmatpush1.bf16.xpose.msra.mxu0 0
      %922 = vmatprep.subr.bf16.mxu0 0
      %923 = vmatpush1.bf16.xpose.msra.mxu0 0
      %924 = vmatprep.subr.bf16.mxu0 0
      %925 = vmatpush1.bf16.xpose.msra.mxu0 0
      %926 = vmatprep.subr.bf16.mxu0 0
      %927 = vmatpush1.bf16.xpose.msra.mxu0 0
      %928 = vmatprep.subr.bf16.mxu0 0
      %929 = vmatpush1.bf16.xpose.msra.mxu0 0
      %930 = vmatprep.subr.bf16.mxu0 0
      %931 = vmatpush1.bf16.xpose.msra.mxu0 0
      %932 = vmatprep.subr.bf16.mxu0 0
      %933 = vmatpush1.bf16.xpose.msra.mxu0 0
      %934 = vmatprep.mubr.bf16.mxu0 0
      %935 = vmatmul.mubr.bf16.gmra.mrb[0].mxu0 %v897
      %v936 = vpop.f32.mrb[0].mxu0
      %v937 = vadd.f32 0.0, %v936
      %v938 = vpop.f32.mrb[0].mxu0
      %v939 = vpop.f32.mrb[0].mxu0
      %v940 = vpop.f32.mrb[0].mxu0
      %941 = vdwg.mxu0
      %v942 = vsel %vm143, %v937, -inf
      %943 = vmax.xlane.f32.xlu0 %v942
      %v944 = vpop.xlane.xlu0 %943
      %v945 = vsub.f32 %v937, %v944
      %v946 = vmul.f32 %v945, 1.442695
      %v947 = vpow.pop %v946
      %v948 = vsel %vm143, %v947, 0.0
      %949 = vadd.xlane.f32.xlu0 %v948
      %v950 = vpop.xlane.xlu0 %949
      %v951 = vrcp.pop %v950
      %v952 = vmul.f32 %v947, %v951
      %v953 = vpack.c.bf16 %v952, %v952
      %v955 = vunpack.c.l.b16 %v888
      %v956 = vpack.c.b16 %v955, %v955
      %957 = vrot.lane.b32.xlu0 %v956, 80
      %v958 = vpop.permute.xlu0 %957
      %v960 = vsel %vm143, %v953, 0
      %v963 = vsel %vm205, %v958, 0
      %965 = vmatprep.subr.bf16.mxu0 0
      %966 = vmatpush1.bf16.msra.mxu0 %v963
      %967 = vmatprep.subr.bf16.mxu0 0
      %968 = vmatpush1.bf16.msra.mxu0 0
      %969 = vmatprep.subr.bf16.mxu0 0
      %970 = vmatpush1.bf16.msra.mxu0 0
      %971 = vmatprep.subr.bf16.mxu0 0
      %972 = vmatpush1.bf16.msra.mxu0 0
      %973 = vmatprep.subr.bf16.mxu0 0
      %974 = vmatpush1.bf16.msra.mxu0 0
      %975 = vmatprep.subr.bf16.mxu0 0
      %976 = vmatpush1.bf16.msra.mxu0 0
      %977 = vmatprep.subr.bf16.mxu0 0
      %978 = vmatpush1.bf16.msra.mxu0 0
      %979 = vmatprep.subr.bf16.mxu0 0
      %980 = vmatpush1.bf16.msra.mxu0 0
      %981 = vmatprep.subr.bf16.mxu0 0
      %982 = vmatpush1.bf16.msra.mxu0 0
      %983 = vmatprep.subr.bf16.mxu0 0
      %984 = vmatpush1.bf16.msra.mxu0 0
      %985 = vmatprep.subr.bf16.mxu0 0
      %986 = vmatpush1.bf16.msra.mxu0 0
      %987 = vmatprep.subr.bf16.mxu0 0
      %988 = vmatpush1.bf16.msra.mxu0 0
      %989 = vmatprep.subr.bf16.mxu0 0
      %990 = vmatpush1.bf16.msra.mxu0 0
      %991 = vmatprep.subr.bf16.mxu0 0
      %992 = vmatpush1.bf16.msra.mxu0 0
      %993 = vmatprep.subr.bf16.mxu0 0
      %994 = vmatpush1.bf16.msra.mxu0 0
      %995 = vmatprep.subr.bf16.mxu0 0
      %996 = vmatpush1.bf16.msra.mxu0 0
      %997 = vmatprep.mubr.bf16.mxu0 0
      %998 = vmatmul.mubr.bf16.gmra.mrb[0].mxu0 %v960
      %v999 = vpop.f32.mrb[0].mxu0
      %v1000 = vadd.f32 0.0, %v999
      %v1001 = vpop.f32.mrb[0].mxu0
      %v1002 = vpop.f32.mrb[0].mxu0
      %v1003 = vpop.f32.mrb[0].mxu0
      %1004 = vdwg.mxu0
      %v1005 = vpack.c.bf16 %v1000, %v1000
      %v1007 = vunpack.c.l.b16 %v1005
      %v1008 = vpack.c.b16 %v1007, %v1007
      %1009 = vrot.lane.b32.xlu0 %v1008, 48
      %v1010 = vpop.permute.xlu0 %1009
      %vm1012 = vcmask 454016
      %1013 = vst.msk [vmem:[%s134] sm:$0xf] %vm1012, %v1010
      %v1014 = vld [vmem:[%s127] sm:$0xf]
      %v1015 = vld [vmem:[%s127 + $0x4] sm:$0xf]
      %v1017 = vunpack.c.l.b16 %v1014
      %v1018 = vpack.c.b16 %v1017, %v1017
      %1019 = vrot.lane.b32.xlu0 %v1018, 72
      %v1020 = vpop.permute.xlu0 %1019
      %1021 = vrot.lane.b32.xlu0 %v1018, 8
      %v1022 = vpop.permute.xlu0 %1021
      %v1024 = vsel %vm143, %v1020, 0
      %v1027 = vsel %vm143, %v1022, 0
      %1029 = vmatprep.subr.bf16.mxu0 0
      %1030 = vmatpush1.bf16.xpose.msra.mxu0 %v1027
      %1031 = vmatprep.subr.bf16.mxu0 0
      %1032 = vmatpush1.bf16.xpose.msra.mxu0 0
      %1033 = vmatprep.subr.bf16.mxu0 0
      %1034 = vmatpush1.bf16.xpose.msra.mxu0 0
      %1035 = vmatprep.subr.bf16.mxu0 0
      %1036 = vmatpush1.bf16.xpose.msra.mxu0 0
      %1037 = vmatprep.subr.bf16.mxu0 0
      %1038 = vmatpush1.bf16.xpose.msra.mxu0 0
      %1039 = vmatprep.subr.bf16.mxu0 0
      %1040 = vmatpush1.bf16.xpose.msra.mxu0 0
      %1041 = vmatprep.subr.bf16.mxu0 0
      %1042 = vmatpush1.bf16.xpose.msra.mxu0 0
      %1043 = vmatprep.subr.bf16.mxu0 0
      %1044 = vmatpush1.bf16.xpose.msra.mxu0 0
      %1045 = vmatprep.subr.bf16.mxu0 0
      %1046 = vmatpush1.bf16.xpose.msra.mxu0 0
      %1047 = vmatprep.subr.bf16.mxu0 0
      %1048 = vmatpush1.bf16.xpose.msra.mxu0 0
      %1049 = vmatprep.subr.bf16.mxu0 0
      %1050 = vmatpush1.bf16.xpose.msra.mxu0 0
      %1051 = vmatprep.subr.bf16.mxu0 0
      %1052 = vmatpush1.bf16.xpose.msra.mxu0 0
      %1053 = vmatprep.subr.bf16.mxu0 0
      %1054 = vmatpush1.bf16.xpose.msra.mxu0 0
      %1055 = vmatprep.subr.bf16.mxu0 0
      %1056 = vmatpush1.bf16.xpose.msra.mxu0 0
      %1057 = vmatprep.subr.bf16.mxu0 0
      %1058 = vmatpush1.bf16.xpose.msra.mxu0 0
      %1059 = vmatprep.subr.bf16.mxu0 0
      %1060 = vmatpush1.bf16.xpose.msra.mxu0 0
      %1061 = vmatprep.mubr.bf16.mxu0 0
      %1062 = vmatmul.mubr.bf16.gmra.mrb[0].mxu0 %v1024
      %v1063 = vpop.f32.mrb[0].mxu0
      %v1064 = vadd.f32 0.0, %v1063
      %v1065 = vpop.f32.mrb[0].mxu0
      %v1066 = vpop.f32.mrb[0].mxu0
      %v1067 = vpop.f32.mrb[0].mxu0
      %1068 = vdwg.mxu0
      %v1069 = vsel %vm143, %v1064, -inf
      %1070 = vmax.xlane.f32.xlu0 %v1069
      %v1071 = vpop.xlane.xlu0 %1070
      %v1072 = vsub.f32 %v1064, %v1071
      %v1073 = vmul.f32 %v1072, 1.442695
      %v1074 = vpow.pop %v1073
      %v1075 = vsel %vm143, %v1074, 0.0
      %1076 = vadd.xlane.f32.xlu0 %v1075
      %v1077 = vpop.xlane.xlu0 %1076
      %v1078 = vrcp.pop %v1077
      %v1079 = vmul.f32 %v1074, %v1078
      %v1080 = vpack.c.bf16 %v1079, %v1079
      %v1082 = vunpack.c.l.b16 %v1015
      %v1083 = vpack.c.b16 %v1082, %v1082
      %1084 = vrot.lane.b32.xlu0 %v1083, 72
      %v1085 = vpop.permute.xlu0 %1084
      %v1087 = vsel %vm143, %v1080, 0
      %v1090 = vsel %vm205, %v1085, 0
      %1092 = vmatprep.subr.bf16.mxu0 0
      %1093 = vmatpush1.bf16.msra.mxu0 %v1090
      %1094 = vmatprep.subr.bf16.mxu0 0
      %1095 = vmatpush1.bf16.msra.mxu0 0
      %1096 = vmatprep.subr.bf16.mxu0 0
      %1097 = vmatpush1.bf16.msra.mxu0 0
      %1098 = vmatprep.subr.bf16.mxu0 0
      %1099 = vmatpush1.bf16.msra.mxu0 0
      %1100 = vmatprep.subr.bf16.mxu0 0
      %1101 = vmatpush1.bf16.msra.mxu0 0
      %1102 = vmatprep.subr.bf16.mxu0 0
      %1103 = vmatpush1.bf16.msra.mxu0 0
      %1104 = vmatprep.subr.bf16.mxu0 0
      %1105 = vmatpush1.bf16.msra.mxu0 0
      %1106 = vmatprep.subr.bf16.mxu0 0
      %1107 = vmatpush1.bf16.msra.mxu0 0
      %1108 = vmatprep.subr.bf16.mxu0 0
      %1109 = vmatpush1.bf16.msra.mxu0 0
      %1110 = vmatprep.subr.bf16.mxu0 0
      %1111 = vmatpush1.bf16.msra.mxu0 0
      %1112 = vmatprep.subr.bf16.mxu0 0
      %1113 = vmatpush1.bf16.msra.mxu0 0
      %1114 = vmatprep.subr.bf16.mxu0 0
      %1115 = vmatpush1.bf16.msra.mxu0 0
      %1116 = vmatprep.subr.bf16.mxu0 0
      %1117 = vmatpush1.bf16.msra.mxu0 0
      %1118 = vmatprep.subr.bf16.mxu0 0
      %1119 = vmatpush1.bf16.msra.mxu0 0
      %1120 = vmatprep.subr.bf16.mxu0 0
      %1121 = vmatpush1.bf16.msra.mxu0 0
      %1122 = vmatprep.subr.bf16.mxu0 0
      %1123 = vmatpush1.bf16.msra.mxu0 0
      %1124 = vmatprep.mubr.bf16.mxu0 0
      %1125 = vmatmul.mubr.bf16.gmra.mrb[0].mxu0 %v1087
      %v1126 = vpop.f32.mrb[0].mxu0
      %v1127 = vadd.f32 0.0, %v1126
      %v1128 = vpop.f32.mrb[0].mxu0
      %v1129 = vpop.f32.mrb[0].mxu0
      %v1130 = vpop.f32.mrb[0].mxu0
      %1131 = vdwg.mxu0
      %v1132 = vpack.c.bf16 %v1127, %v1127
      %v1134 = vunpack.c.l.b16 %v1132
      %v1135 = vpack.c.b16 %v1134, %v1134
      %1136 = vrot.lane.b32.xlu0 %v1135, 56
      %v1137 = vpop.permute.xlu0 %1136
      %vm1139 = vcmask 519616
      %1140 = vst.msk [vmem:[%s134] sm:$0xf] %vm1139, %v1137
      %p1141 = scmp.lt.s32.totalorder %s16, 1
      %s1142 = scalar_select %p1141, %s16, 1
      %p1143 = scmp.lt.s32.totalorder %s17, 0
      %s1144 = scalar_select %p1143, %s17, 0
      %s1145 = sadd.s32 %s1144, %s1142
      %s1146 = smul.addr %s1145, 4
      %s1147 = scalar_lea.vmem %s1, %s1146
      // Predicated region
      $region25: #{forward.31} parent=23 // pred_check
        %p1148 = pneg %p70
      $region26: #{forward.31} parent=23 // pred_check_branch
        %1150 = sbr.rel (%p1148) target = $region28
      $region27: #{forward.31} parent=23 // pred_region
        _
      $region28: #{forward.31} parent=23 // pred_fallthru
        _
    $region24: #{forward.31} parent=5 // pred_fallthru
      _
    %p1151 = scmp.le.s32.totalorder 2, %s7
    // Predicated region
    $region29: #{forward.31} parent=5 // pred_check
      %p1152 = pneg %p1151
    $region30: #{forward.31} parent=5 // pred_check_branch
      %1154 = sbr.rel (%p1152) target = $region32
    $region31: #{forward.31} parent=5 // pred_region
      %s1155 = ssub.s32 %s7, 2
      // Predicated region
      $region33: #{forward.31} parent=31 // pred_check
        %p1156 = pneg %p76
      $region34: #{forward.31} parent=31 // pred_check_branch
        %1158 = sbr.rel (%p1156) target = $region36
      $region35: #{forward.31} parent=31 // pred_region
        %p1159 = scmp.lt.s32.totalorder %s18, 1
        %s1160 = scalar_select %p1159, %s18, 1
        %p1161 = scmp.lt.s32.totalorder %s19, 0
        %s1162 = scalar_select %p1161, %s19, 0
        %s1163 = sadd.s32 %s1162, %s1160
        %s1164 = smul.addr %s1163, 4
        %s1165 = scalar_lea.vmem %s1, %s1164
      $region36: #{forward.31} parent=31 // pred_fallthru
        _
    $region32: #{forward.31} parent=5 // pred_fallthru
      _
  $region6: #{forward.31} parent=0 // loop_footer
    %s11 = sadd.s32 1, %s7
  $region7: #{forward.31} parent=0 // loop_footer_branch
    %6 = sbr.rel target = $region3
  $region8: #{forward.31} parent=0 // loop_exit
    _

// kernel: forward.35
$region0: #{forward.35}
  #allocation0 [shape = 'u32[]', space=smem, size = 0x4, offset = 0x4, fixed_abs, tag = 'smem constant byte address 0x4 - core index']
  #allocation1 [shape = 'u32[144,128]{1,0:T(1,128)}', space=vmem, size = 0x12000, scoped, tag = 'internal scratch']
  %s0 = inlined_call_operand.vmem [shape: bf16[16,64], index: 0, kind: input, shape index: {}]
  %s1 = inlined_call_operand.vmem [shape: bf16[64,128], index: 1, kind: input, shape index: {}]
  %s2 = inlined_call_operand.vmem [shape: f32[1,128], index: 2, kind: input, shape index: {}]
  %s3 = inlined_call_operand.vmem [shape: f32[16,128], index: 3, kind: output, shape index: {}]
  %s4 = sld [smem:[#allocation0]]
  $region22: #{forward.35} parent=0
    _
  %s6 = ssub.s32 1, %s4
  %s7 = scalar_select 0, %s6, %s4
  // Predicated region
  $region2: #{forward.35} parent=0 // pred_check
    _
  $region3: #{forward.35} parent=0 // pred_check_branch
    %9 = sbr.rel (0) target = $region5
  $region4: #{forward.35} parent=0 // pred_region
    _
  $region5: #{forward.35} parent=0 // pred_fallthru
    _
  // Predicated region
  $region6: #{forward.35} parent=0 // pred_check
    _
  $region7: #{forward.35} parent=0 // pred_check_branch
    %11 = sbr.rel (0) target = $region9
  $region8: #{forward.35} parent=0 // pred_region
    _
  $region9: #{forward.35} parent=0 // pred_fallthru
    _
  // Predicated region
  $region10: #{forward.35} parent=0 // pred_check
    _
  $region11: #{forward.35} parent=0 // pred_check_branch
    %13 = sbr.rel (0) target = $region13
  $region12: #{forward.35} parent=0 // pred_region
    _
  $region13: #{forward.35} parent=0 // pred_fallthru
    _
  %v15 = vld [vmem:[%s0] sm:$0xf]
  %v16 = vld [vmem:[%s0 + $0x4] sm:$0xf]
  %v17 = vld [vmem:[%s1] sm:$0xf]
  %v18 = vld [vmem:[%s1 + $0x4] sm:$0xf]
  %v19 = vld [vmem:[%s1 + $0x8] sm:$0xf]
  %v20 = vld [vmem:[%s1 + $0xc] sm:$0xf]
  %v21 = vld [vmem:[%s1 + $0x10] sm:$0xf]
  %v22 = vld [vmem:[%s1 + $0x14] sm:$0xf]
  %v23 = vld [vmem:[%s1 + $0x18] sm:$0xf]
  %v24 = vld [vmem:[%s1 + $0x1c] sm:$0xf]
  %v25 = vld [vmem:[%s2] sm:$0x1]
  %v27 = vlaneseq
  %v28 = vshrl.u32 %v27, 7
  %v29 = vsub.s32 0, %v28
  %v30 = vrot.slane %v25, %v29
  %v34 = vunpack.c.l.b16 %v15
  %v35 = vunpack.c.l.b16 %v16
  %v36 = vpack.c.b16 %v35, %v34
  %v45 = vunpack.c.l.b16 %v17
  %v46 = vunpack.c.l.b16 %v18
  %v47 = vunpack.c.l.b16 %v19
  %v48 = vunpack.c.l.b16 %v20
  %v49 = vunpack.c.l.b16 %v21
  %v50 = vunpack.c.l.b16 %v22
  %v51 = vunpack.c.l.b16 %v23
  %v52 = vunpack.c.l.b16 %v24
  %v53 = vpack.c.b16 %v46, %v45
  %v54 = vpack.c.b16 %v48, %v47
  %v55 = vpack.c.b16 %v50, %v49
  %v56 = vpack.c.b16 %v52, %v51
  %vm61 = vcmask 523264
  %v63 = vsel %vm61, %v36, 0
  %65 = vmatprep.subr.bf16.mxu0 0
  %66 = vmatpush1.bf16.msra.mxu0 %v53
  %67 = vmatprep.subr.bf16.mxu0 0
  %68 = vmatpush1.bf16.msra.mxu0 %v54
  %69 = vmatprep.subr.bf16.mxu0 0
  %70 = vmatpush1.bf16.msra.mxu0 %v55
  %71 = vmatprep.subr.bf16.mxu0 0
  %72 = vmatpush1.bf16.msra.mxu0 %v56
  %73 = vmatprep.subr.bf16.mxu0 0
  %74 = vmatpush1.bf16.msra.mxu0 0
  %75 = vmatprep.subr.bf16.mxu0 0
  %76 = vmatpush1.bf16.msra.mxu0 0
  %77 = vmatprep.subr.bf16.mxu0 0
  %78 = vmatpush1.bf16.msra.mxu0 0
  %79 = vmatprep.subr.bf16.mxu0 0
  %80 = vmatpush1.bf16.msra.mxu0 0
  %81 = vmatprep.subr.bf16.mxu0 0
  %82 = vmatpush1.bf16.msra.mxu0 0
  %83 = vmatprep.subr.bf16.mxu0 0
  %84 = vmatpush1.bf16.msra.mxu0 0
  %85 = vmatprep.subr.bf16.mxu0 0
  %86 = vmatpush1.bf16.msra.mxu0 0
  %87 = vmatprep.subr.bf16.mxu0 0
  %88 = vmatpush1.bf16.msra.mxu0 0
  %89 = vmatprep.subr.bf16.mxu0 0
  %90 = vmatpush1.bf16.msra.mxu0 0
  %91 = vmatprep.subr.bf16.mxu0 0
  %92 = vmatpush1.bf16.msra.mxu0 0
  %93 = vmatprep.subr.bf16.mxu0 0
  %94 = vmatpush1.bf16.msra.mxu0 0
  %95 = vmatprep.subr.bf16.mxu0 0
  %96 = vmatpush1.bf16.msra.mxu0 0
  %97 = vmatprep.mubr.bf16.mxu0 0
  %98 = vmatmul.mubr.bf16.gmra.mrb[0].mxu0 %v63
  %v99 = vpop.f32.mrb[0].mxu0
  %v100 = vadd.f32 %v30, %v99
  %v101 = vpop.f32.mrb[0].mxu0
  %v102 = vpop.f32.mrb[0].mxu0
  %v103 = vadd.f32 %v30, %v102
  %v104 = vpop.f32.mrb[0].mxu0
  %105 = vdwg.mxu0
  %106 = vst [vmem:[%s3] sm:$0xff] %v100
  %107 = vst [vmem:[%s3 + $0x8] sm:$0xff] %v103
  // Predicated region
  $region14: #{forward.35} parent=0 // pred_check
    _
  $region15: #{forward.35} parent=0 // pred_check_branch
    %109 = sbr.rel (0) target = $region17
  $region16: #{forward.35} parent=0 // pred_region
    _
  $region17: #{forward.35} parent=0 // pred_fallthru
    _
  // Predicated region
  $region18: #{forward.35} parent=0 // pred_check
    _
  $region19: #{forward.35} parent=0 // pred_check_branch
    %111 = sbr.rel (0) target = $region21
  $region20: #{forward.35} parent=0 // pred_region
    _
  $region21: #{forward.35} parent=0 // pred_fallthru
    _

// kernel: forward.47
$region0: #{forward.47}
  #allocation0 [shape = 'u32[]', space=smem, size = 0x4, offset = 0x4, fixed_abs, tag = 'smem constant byte address 0x4 - core index']
  #allocation1 [shape = 'u32[144,128]{1,0:T(1,128)}', space=vmem, size = 0x12000, scoped, tag = 'internal scratch']
  %s0 = inlined_call_operand.vmem [shape: bf16[16,32], index: 0, kind: input, shape index: {}]
  %s1 = inlined_call_operand.vmem [shape: f32[1,32], index: 1, kind: input, shape index: {}]
  %s2 = inlined_call_operand.vmem [shape: f32[1,32], index: 2, kind: input, shape index: {}]
  %s3 = inlined_call_operand.vmem [shape: bf16[32,128], index: 3, kind: input, shape index: {}]
  %s4 = inlined_call_operand.vmem [shape: bf16[16,128], index: 4, kind: output, shape index: {}]
  %s5 = sld [smem:[#allocation0]]
  $region26: #{forward.47} parent=0
    _
  %s7 = ssub.s32 1, %s5
  %s8 = scalar_select 0, %s7, %s5
  // Predicated region
  $region2: #{forward.47} parent=0 // pred_check
    _
  $region3: #{forward.47} parent=0 // pred_check_branch
    %10 = sbr.rel (0) target = $region5
  $region4: #{forward.47} parent=0 // pred_region
    _
  $region5: #{forward.47} parent=0 // pred_fallthru
    _
  // Predicated region
  $region6: #{forward.47} parent=0 // pred_check
    _
  $region7: #{forward.47} parent=0 // pred_check_branch
    %12 = sbr.rel (0) target = $region9
  $region8: #{forward.47} parent=0 // pred_region
    _
  $region9: #{forward.47} parent=0 // pred_fallthru
    _
  // Predicated region
  $region10: #{forward.47} parent=0 // pred_check
    _
  $region11: #{forward.47} parent=0 // pred_check_branch
    %14 = sbr.rel (0) target = $region13
  $region12: #{forward.47} parent=0 // pred_region
    _
  $region13: #{forward.47} parent=0 // pred_fallthru
    _
  // Predicated region
  $region14: #{forward.47} parent=0 // pred_check
    _
  $region15: #{forward.47} parent=0 // pred_check_branch
    %16 = sbr.rel (0) target = $region17
  $region16: #{forward.47} parent=0 // pred_region
    _
  $region17: #{forward.47} parent=0 // pred_fallthru
    _
  %v18 = vld [vmem:[%s0] sm:$0xf]
  %v19 = vld [vmem:[%s0 + $0x4] sm:$0xf]
  %v20 = vunpack.c.l.bf16 %v18
  %v21 = vunpack.c.l.bf16 %v19
  %vm22 = vcmask 261120
  %v23 = vsel %vm22, %v20, 0.0
  %24 = vadd.xlane.f32.xlu0 %v23
  %v25 = vpop.xlane.xlu0 %24
  %v26 = vsel %vm22, %v21, 0.0
  %27 = vadd.xlane.f32.xlu0 %v26
  %v28 = vpop.xlane.xlu0 %27
  %v29 = vrcp.pop 32.0
  %v30 = vmul.f32 %v25, %v29
  %v31 = vmul.f32 %v28, %v29
  %v32 = vsub.f32 %v20, %v30
  %v33 = vsub.f32 %v21, %v31
  %v34 = vmul.f32 %v32, %v32
  %v35 = vmul.f32 %v33, %v33
  %v36 = vsel %vm22, %v34, 0.0
  %37 = vadd.xlane.f32.xlu0 %v36
  %v38 = vpop.xlane.xlu0 %37
  %v39 = vsel %vm22, %v35, 0.0
  %40 = vadd.xlane.f32.xlu0 %v39
  %v41 = vpop.xlane.xlu0 %40
  %v42 = vmul.f32 %v38, %v29
  %v43 = vmul.f32 %v41, %v29
  %v44 = vadd.f32 %v42, 1e-05
  %v45 = vadd.f32 %v43, 1e-05
  %v46 = vrsqrt.pop %v44
  %v47 = vrsqrt.pop %v45
  %v48 = vmul.f32 %v32, %v46
  %v49 = vmul.f32 %v33, %v47
  %v50 = vld [vmem:[%s1] sm:$0x1]
  %v52 = vlaneseq
  %v53 = vshrl.u32 %v52, 7
  %v54 = vsub.s32 0, %v53
  %v55 = vrot.slane %v50, %v54
  %v57 = vmul.f32 %v48, %v55
  %v58 = vmul.f32 %v49, %v55
  %v59 = vld [vmem:[%s2] sm:$0x1]
  %v61 = vlaneseq
  %v62 = vshrl.u32 %v61, 7
  %v63 = vsub.s32 0, %v62
  %v64 = vrot.slane %v59, %v63
  %v66 = vadd.f32 %v57, %v64
  %v67 = vadd.f32 %v58, %v64
  %v68 = vpack.c.bf16 %v67, %v66
  %v69 = vld [vmem:[%s3] sm:$0xf]
  %v70 = vld [vmem:[%s3 + $0x4] sm:$0xf]
  %v71 = vld [vmem:[%s3 + $0x8] sm:$0xf]
  %v72 = vld [vmem:[%s3 + $0xc] sm:$0xf]
  %v77 = vunpack.c.l.b16 %v69
  %v78 = vunpack.c.l.b16 %v70
  %v79 = vunpack.c.l.b16 %v71
  %v80 = vunpack.c.l.b16 %v72
  %v81 = vpack.c.b16 %v78, %v77
  %v82 = vpack.c.b16 %v80, %v79
  %v86 = vsel %vm22, %v68, 0
  %88 = vmatprep.subr.bf16.mxu0 0
  %89 = vmatpush1.bf16.msra.mxu0 %v81
  %90 = vmatprep.subr.bf16.mxu0 0
  %91 = vmatpush1.bf16.msra.mxu0 %v82
  %92 = vmatprep.subr.bf16.mxu0 0
  %93 = vmatpush1.bf16.msra.mxu0 0
  %94 = vmatprep.subr.bf16.mxu0 0
  %95 = vmatpush1.bf16.msra.mxu0 0
  %96 = vmatprep.subr.bf16.mxu0 0
  %97 = vmatpush1.bf16.msra.mxu0 0
  %98 = vmatprep.subr.bf16.mxu0 0
  %99 = vmatpush1.bf16.msra.mxu0 0
  %100 = vmatprep.subr.bf16.mxu0 0
  %101 = vmatpush1.bf16.msra.mxu0 0
  %102 = vmatprep.subr.bf16.mxu0 0
  %103 = vmatpush1.bf16.msra.mxu0 0
  %104 = vmatprep.subr.bf16.mxu0 0
  %105 = vmatpush1.bf16.msra.mxu0 0
  %106 = vmatprep.subr.bf16.mxu0 0
  %107 = vmatpush1.bf16.msra.mxu0 0
  %108 = vmatprep.subr.bf16.mxu0 0
  %109 = vmatpush1.bf16.msra.mxu0 0
  %110 = vmatprep.subr.bf16.mxu0 0
  %111 = vmatpush1.bf16.msra.mxu0 0
  %112 = vmatprep.subr.bf16.mxu0 0
  %113 = vmatpush1.bf16.msra.mxu0 0
  %114 = vmatprep.subr.bf16.mxu0 0
  %115 = vmatpush1.bf16.msra.mxu0 0
  %116 = vmatprep.subr.bf16.mxu0 0
  %117 = vmatpush1.bf16.msra.mxu0 0
  %118 = vmatprep.subr.bf16.mxu0 0
  %119 = vmatpush1.bf16.msra.mxu0 0
  %120 = vmatprep.mubr.bf16.mxu0 0
  %121 = vmatmul.mubr.bf16.gmra.mrb[0].mxu0 %v86
  %v122 = vpop.f32.mrb[0].mxu0
  %v123 = vadd.f32 0.0, %v122
  %v124 = vpop.f32.mrb[0].mxu0
  %v125 = vpop.f32.mrb[0].mxu0
  %v126 = vadd.f32 0.0, %v125
  %v127 = vpop.f32.mrb[0].mxu0
  %128 = vdwg.mxu0
  %v129 = vpack.c.bf16 %v126, %v123
  %v131 = vunpack.c.l.b16 %v129
  %v132 = vunpack.c.h.b16 %v129
  %v133 = vpack.c.b16 %v131, %v131
  %v134 = vpack.c.b16 %v132, %v132
  %137 = vst [vmem:[%s4] sm:$0xf] %v133
  %138 = vst [vmem:[%s4 + $0x4] sm:$0xf] %v134
  // Predicated region
  $region18: #{forward.47} parent=0 // pred_check
    _
  $region19: #{forward.47} parent=0 // pred_check_branch
    %140 = sbr.rel (0) target = $region21
  $region20: #{forward.47} parent=0 // pred_region
    _
  $region21: #{forward.47} parent=0 // pred_fallthru
    _
  // Predicated region
  $region22: #{forward.47} parent=0 // pred_check
    _
  $region23: #{forward.47} parent=0 // pred_check_branch
    %142 = sbr.rel (0) target = $region25
  $region24: #{forward.47} parent=0 // pred_region
    _
  $region25: #{forward.47} parent=0 // pred_fallthru
    _

// kernel: forward.46
$region0: #{forward.46}
  #allocation0 [shape = 'u32[]', space=smem, size = 0x4, offset = 0x4, fixed_abs, tag = 'smem constant byte address 0x4 - core index']
  #allocation1 [shape = 'u32[144,128]{1,0:T(1,128)}', space=vmem, size = 0x12000, scoped, tag = 'internal scratch']
  %s0 = inlined_call_operand.vmem [shape: bf16[16,64], index: 0, kind: input, shape index: {}]
  %s1 = inlined_call_operand.vmem [shape: f32[1,64], index: 1, kind: input, shape index: {}]
  %s2 = inlined_call_operand.vmem [shape: f32[1,64], index: 2, kind: input, shape index: {}]
  %s3 = inlined_call_operand.vmem [shape: bf16[64,128], index: 3, kind: input, shape index: {}]
  %s4 = inlined_call_operand.vmem [shape: bf16[16,128], index: 4, kind: output, shape index: {}]
  %s5 = sld [smem:[#allocation0]]
  $region26: #{forward.46} parent=0
    _
  %s7 = ssub.s32 1, %s5
  %s8 = scalar_select 0, %s7, %s5
  // Predicated region
  $region2: #{forward.46} parent=0 // pred_check
    _
  $region3: #{forward.46} parent=0 // pred_check_branch
    %10 = sbr.rel (0) target = $region5
  $region4: #{forward.46} parent=0 // pred_region
    _
  $region5: #{forward.46} parent=0 // pred_fallthru
    _
  // Predicated region
  $region6: #{forward.46} parent=0 // pred_check
    _
  $region7: #{forward.46} parent=0 // pred_check_branch
    %12 = sbr.rel (0) target = $region9
  $region8: #{forward.46} parent=0 // pred_region
    _
  $region9: #{forward.46} parent=0 // pred_fallthru
    _
  // Predicated region
  $region10: #{forward.46} parent=0 // pred_check
    _
  $region11: #{forward.46} parent=0 // pred_check_branch
    %14 = sbr.rel (0) target = $region13
  $region12: #{forward.46} parent=0 // pred_region
    _
  $region13: #{forward.46} parent=0 // pred_fallthru
    _
  // Predicated region
  $region14: #{forward.46} parent=0 // pred_check
    _
  $region15: #{forward.46} parent=0 // pred_check_branch
    %16 = sbr.rel (0) target = $region17
  $region16: #{forward.46} parent=0 // pred_region
    _
  $region17: #{forward.46} parent=0 // pred_fallthru
    _
  %v18 = vld [vmem:[%s0] sm:$0xf]
  %v19 = vld [vmem:[%s0 + $0x4] sm:$0xf]
  %v20 = vunpack.c.l.bf16 %v18
  %v21 = vunpack.c.l.bf16 %v19
  %vm22 = vcmask 523264
  %v23 = vsel %vm22, %v20, 0.0
  %24 = vadd.xlane.f32.xlu0 %v23
  %v25 = vpop.xlane.xlu0 %24
  %v26 = vsel %vm22, %v21, 0.0
  %27 = vadd.xlane.f32.xlu0 %v26
  %v28 = vpop.xlane.xlu0 %27
  %v29 = vrcp.pop 64.0
  %v30 = vmul.f32 %v25, %v29
  %v31 = vmul.f32 %v28, %v29
  %v32 = vsub.f32 %v20, %v30
  %v33 = vsub.f32 %v21, %v31
  %v34 = vmul.f32 %v32, %v32
  %v35 = vmul.f32 %v33, %v33
  %v36 = vsel %vm22, %v34, 0.0
  %37 = vadd.xlane.f32.xlu0 %v36
  %v38 = vpop.xlane.xlu0 %37
  %v39 = vsel %vm22, %v35, 0.0
  %40 = vadd.xlane.f32.xlu0 %v39
  %v41 = vpop.xlane.xlu0 %40
  %v42 = vmul.f32 %v38, %v29
  %v43 = vmul.f32 %v41, %v29
  %v44 = vadd.f32 %v42, 1e-05
  %v45 = vadd.f32 %v43, 1e-05
  %v46 = vrsqrt.pop %v44
  %v47 = vrsqrt.pop %v45
  %v48 = vmul.f32 %v32, %v46
  %v49 = vmul.f32 %v33, %v47
  %v50 = vld [vmem:[%s1] sm:$0x1]
  %v52 = vlaneseq
  %v53 = vshrl.u32 %v52, 7
  %v54 = vsub.s32 0, %v53
  %v55 = vrot.slane %v50, %v54
  %v57 = vmul.f32 %v48, %v55
  %v58 = vmul.f32 %v49, %v55
  %v59 = vld [vmem:[%s2] sm:$0x1]
  %v61 = vlaneseq
  %v62 = vshrl.u32 %v61, 7
  %v63 = vsub.s32 0, %v62
  %v64 = vrot.slane %v59, %v63
  %v66 = vadd.f32 %v57, %v64
  %v67 = vadd.f32 %v58, %v64
  %v68 = vpack.c.bf16 %v67, %v66
  %v69 = vld [vmem:[%s3] sm:$0xf]
  %v70 = vld [vmem:[%s3 + $0x4] sm:$0xf]
  %v71 = vld [vmem:[%s3 + $0x8] sm:$0xf]
  %v72 = vld [vmem:[%s3 + $0xc] sm:$0xf]
  %v73 = vld [vmem:[%s3 + $0x10] sm:$0xf]
  %v74 = vld [vmem:[%s3 + $0x14] sm:$0xf]
  %v75 = vld [vmem:[%s3 + $0x18] sm:$0xf]
  %v76 = vld [vmem:[%s3 + $0x1c] sm:$0xf]
  %v85 = vunpack.c.l.b16 %v69
  %v86 = vunpack.c.l.b16 %v70
  %v87 = vunpack.c.l.b16 %v71
  %v88 = vunpack.c.l.b16 %v72
  %v89 = vunpack.c.l.b16 %v73
  %v90 = vunpack.c.l.b16 %v74
  %v91 = vunpack.c.l.b16 %v75
  %v92 = vunpack.c.l.b16 %v76
  %v93 = vpack.c.b16 %v86, %v85
  %v94 = vpack.c.b16 %v88, %v87
  %v95 = vpack.c.b16 %v90, %v89
  %v96 = vpack.c.b16 %v92, %v91
  %v102 = vsel %vm22, %v68, 0
  %104 = vmatprep.subr.bf16.mxu0 0
  %105 = vmatpush1.bf16.msra.mxu0 %v93
  %106 = vmatprep.subr.bf16.mxu0 0
  %107 = vmatpush1.bf16.msra.mxu0 %v94
  %108 = vmatprep.subr.bf16.mxu0 0
  %109 = vmatpush1.bf16.msra.mxu0 %v95
  %110 = vmatprep.subr.bf16.mxu0 0
  %111 = vmatpush1.bf16.msra.mxu0 %v96
  %112 = vmatprep.subr.bf16.mxu0 0
  %113 = vmatpush1.bf16.msra.mxu0 0
  %114 = vmatprep.subr.bf16.mxu0 0
  %115 = vmatpush1.bf16.msra.mxu0 0
  %116 = vmatprep.subr.bf16.mxu0 0
  %117 = vmatpush1.bf16.msra.mxu0 0
  %118 = vmatprep.subr.bf16.mxu0 0
  %119 = vmatpush1.bf16.msra.mxu0 0
  %120 = vmatprep.subr.bf16.mxu0 0
  %121 = vmatpush1.bf16.msra.mxu0 0
  %122 = vmatprep.subr.bf16.mxu0 0
  %123 = vmatpush1.bf16.msra.mxu0 0
  %124 = vmatprep.subr.bf16.mxu0 0
  %125 = vmatpush1.bf16.msra.mxu0 0
  %126 = vmatprep.subr.bf16.mxu0 0
  %127 = vmatpush1.bf16.msra.mxu0 0
  %128 = vmatprep.subr.bf16.mxu0 0
  %129 = vmatpush1.bf16.msra.mxu0 0
  %130 = vmatprep.subr.bf16.mxu0 0
  %131 = vmatpush1.bf16.msra.mxu0 0
  %132 = vmatprep.subr.bf16.mxu0 0
  %133 = vmatpush1.bf16.msra.mxu0 0
  %134 = vmatprep.subr.bf16.mxu0 0
  %135 = vmatpush1.bf16.msra.mxu0 0
  %136 = vmatprep.mubr.bf16.mxu0 0
  %137 = vmatmul.mubr.bf16.gmra.mrb[0].mxu0 %v102
  %v138 = vpop.f32.mrb[0].mxu0
  %v139 = vadd.f32 0.0, %v138
  %v140 = vpop.f32.mrb[0].mxu0
  %v141 = vpop.f32.mrb[0].mxu0
  %v142 = vadd.f32 0.0, %v141
  %v143 = vpop.f32.mrb[0].mxu0
  %144 = vdwg.mxu0
  %v145 = vpack.c.bf16 %v142, %v139
  %v147 = vunpack.c.l.b16 %v145
  %v148 = vunpack.c.h.b16 %v145
  %v149 = vpack.c.b16 %v147, %v147
  %v150 = vpack.c.b16 %v148, %v148
  %153 = vst [vmem:[%s4] sm:$0xf] %v149
  %154 = vst [vmem:[%s4 + $0x4] sm:$0xf] %v150
  // Predicated region
  $region18: #{forward.46} parent=0 // pred_check
    _
  $region19: #{forward.46} parent=0 // pred_check_branch
    %156 = sbr.rel (0) target = $region21
  $region20: #{forward.46} parent=0 // pred_region
    _
  $region21: #{forward.46} parent=0 // pred_fallthru
    _
  // Predicated region
  $region22: #{forward.46} parent=0 // pred_check
    _
  $region23: #{forward.46} parent=0 // pred_check_branch
    %158 = sbr.rel (0) target = $region25
  $region24: #{forward.46} parent=0 // pred_region
    _
  $region25: #{forward.46} parent=0 // pred_fallthru
    _

// kernel: forward.37
$region0: #{forward.37}
  #allocation0 [shape = 'u32[]', space=smem, size = 0x4, offset = 0x4, fixed_abs, tag = 'smem constant byte address 0x4 - core index']
  #allocation1 [shape = 'u32[144,128]{1,0:T(1,128)}', space=vmem, size = 0x12000, scoped, tag = 'internal scratch']
  %s0 = inlined_call_operand.vmem [shape: bf16[2,4,192], index: 0, kind: input, shape index: {}]
  %s1 = inlined_call_operand.vmem [shape: bf16[2,4,64], index: 1, kind: output, shape index: {}]
  %s2 = sld [smem:[#allocation0]]
  $region37: #{forward.37} parent=0
    _
  %s4 = ssub.s32 1, %s2
  %s5 = scalar_select 0, %s4, %s2
  loop: start=0, step=1, limit=4
  $region2: #{forward.37} parent=0 // loop_pre_header
    _
  $region3: #{forward.37} parent=0 // loop_header
    %s7 = sphi 0, %s11
    %p8 = scmp.ge.s32.totalorder %s7, 4
    %s14 = sphi 0, %s26
    %s15 = sphi 0, %s22
    %s16 = sphi 0, %s14
    %s17 = sphi 0, %s15
    %s18 = sphi 0, %s16
    %s19 = sphi 0, %s17
    %s29 = sphi 0, %s31
    %s32 = sphi 0, %s29
    %s33 = sphi 0, %s32
    %s49 = sphi 0, %s33
    %s57 = sphi 0, %s59
    %s60 = sphi 0, %s57
    %s61 = sphi 0, %s60
    %s77 = sphi 0, %s61
  $region4: #{forward.37} parent=0 // loop_header_branch
    %10 = sbr.rel (%p8) target = $region8
  $region5: #{forward.37} parent=0 // loop_body
    %s12 = ssub.s32 %s7, 1
    %s13 = ssub.s32 %s7, 2
    %s20 = sadd.s32 1, %s15
    %p21 = scmp.ge.s32.totalorder %s20, 1
    %s22 = scalar_select %p21, 0, %s20
    %s23 = sadd.s32 1, %s14
    %s24 = scalar_select %p21, %s23, %s14
    %p25 = scmp.ge.s32.totalorder %s24, 2
    %s26 = scalar_select %p25, 0, %s24
    %s27 = ssub.s32 %s14, %s26
    %p28 = scmp.eq.s32.totalorder %s27, 0
    %s30 = sadd.s32 %s29, 1
    %s31 = scalar_select %p28, %s29, %s30
    %p34 = pneg %p28
    %p35 = scmp.eq.s32.totalorder %s7, 1
    %p36 = por %p34, %p35
    %p37 = scmp.ne.s32.totalorder %s29, %s32
    %p38 = scmp.eq.s32.totalorder %s7, 0
    %p39 = por %p37, %p38
    %p40 = scmp.ne.s32.totalorder %s29, %s32
    %p41 = scmp.eq.s32.totalorder %s12, 1
    %p42 = por %p40, %p41
    %p43 = scmp.ne.s32.totalorder %s32, %s33
    %p44 = scmp.eq.s32.totalorder %s12, 0
    %p45 = por %p43, %p44
    %p46 = scmp.ne.s32.totalorder %s32, %s33
    %p47 = scmp.eq.s32.totalorder %s13, 1
    %p48 = por %p46, %p47
    %p50 = scmp.ne.s32.totalorder %s33, %s49
    %p51 = scmp.eq.s32.totalorder %s13, 0
    %p52 = por %p50, %p51
    %s53 = ssub.s32 %s14, %s26
    %s54 = ssub.s32 %s15, %s22
    %s55 = sor.u32 %s53, %s54
    %p56 = scmp.eq.s32.totalorder %s55, 0
    %s58 = sadd.s32 %s57, 1
    %s59 = scalar_select %p56, %s57, %s58
    %p62 = pneg %p56
    %p63 = scmp.eq.s32.totalorder %s7, 1
    %p64 = por %p62, %p63
    %p65 = scmp.ne.s32.totalorder %s57, %s60
    %p66 = scmp.eq.s32.totalorder %s7, 0
    %p67 = por %p65, %p66
    %p68 = scmp.ne.s32.totalorder %s57, %s60
    %p69 = scmp.eq.s32.totalorder %s12, 1
    %p70 = por %p68, %p69
    %p71 = scmp.ne.s32.totalorder %s60, %s61
    %p72 = scmp.eq.s32.totalorder %s12, 0
    %p73 = por %p71, %p72
    %p74 = scmp.ne.s32.totalorder %s60, %s61
    %p75 = scmp.eq.s32.totalorder %s13, 1
    %p76 = por %p74, %p75
    %p78 = scmp.ne.s32.totalorder %s61, %s77
    %p79 = scmp.eq.s32.totalorder %s13, 0
    %p80 = por %p78, %p79
    %p81 = scmp.le.s32.totalorder 1, %s7
    %p82 = scmp.lt.s32.totalorder %s7, 3
    %p83 = pnand %p81, %p82
    %p84 = pneg %p83
    // Predicated region
    $region9: #{forward.37} parent=5 // pred_check
      _
    $region10: #{forward.37} parent=5 // pred_check_branch
      %86 = sbr.rel (%p83) target = $region12
    $region11: #{forward.37} parent=5 // pred_region
      %s87 = ssub.s32 %s7, 1
    $region12: #{forward.37} parent=5 // pred_fallthru
      _
    %p88 = scmp.lt.s32.totalorder %s7, 2
    // Predicated region
    $region13: #{forward.37} parent=5 // pred_check
      %p89 = pneg %p88
    $region14: #{forward.37} parent=5 // pred_check_branch
      %91 = sbr.rel (%p89) target = $region16
    $region15: #{forward.37} parent=5 // pred_region
      // Predicated region
      $region17: #{forward.37} parent=15 // pred_check
        %p92 = pneg %p39
      $region18: #{forward.37} parent=15 // pred_check_branch
        %94 = sbr.rel (%p92) target = $region20
      $region19: #{forward.37} parent=15 // pred_region
        %p95 = scmp.lt.s32.totalorder %s14, 1
        %s96 = scalar_select %p95, %s14, 1
        %s97 = smul.addr %s96, 2
        %s98 = smul.addr %s97, 2
        %s99 = scalar_lea.vmem %s0, %s98
      $region20: #{forward.37} parent=15 // pred_fallthru
        _
    $region16: #{forward.37} parent=5 // pred_fallthru
      _
    %p100 = scmp.le.s32.totalorder 1, %s7
    %p101 = scmp.lt.s32.totalorder %s7, 3
    %p102 = pnand %p100, %p101
    %p103 = pneg %p102
    // Predicated region
    $region21: #{forward.37} parent=5 // pred_check
      _
    $region22: #{forward.37} parent=5 // pred_check_branch
      %105 = sbr.rel (%p102) target = $region24
    $region23: #{forward.37} parent=5 // pred_region
      %s106 = ssub.s32 %s7, 1
      %p107 = scmp.lt.s32.totalorder %s16, 1
      %s108 = scalar_select %p107, %s16, 1
      %s109 = smul.addr %s108, 2
      %s110 = smul.addr %s109, 2
      %s111 = scalar_lea.vmem %s0, %s110
      %p112 = pneg %p45
      %p113 = pneg %p42
      %p114 = pneg %p73
      %p115 = pneg %p70
      %p116 = scmp.lt.s32.totalorder %s16, 1
      %s117 = scalar_select %p116, %s16, 1
      %p118 = scmp.lt.s32.totalorder %s17, 0
      %s119 = scalar_select %p118, %s17, 0
      %s120 = sadd.s32 %s119, %s117
      %s121 = smul.addr %s120, 2
      %s122 = scalar_lea.vmem %s1, %s121
      %p123 = scmp.lt.s32.totalorder %s16, 1
      %s124 = scalar_select %p123, %s16, 1
      %s125 = smul.addr %s124, 2
      %s126 = smul.addr %s125, 2
      %s127 = scalar_lea.vmem %s0, %s126
      %p128 = scmp.lt.s32.totalorder %s16, 1
      %s129 = scalar_select %p128, %s16, 1
      %p130 = scmp.lt.s32.totalorder %s17, 0
      %s131 = scalar_select %p130, %s17, 0
      %s132 = sadd.s32 %s131, %s129
      %s133 = smul.addr %s132, 2
      %s134 = scalar_lea.vmem %s1, %s133
      %v136 = vld [vmem:[%s127] sm:$0x3]
      %v137 = vld [vmem:[%s127 + $0x2] sm:$0x3]
      %v140 = vunpack.c.l.s4 1983009808
      %v141 = vunpack.c.0.s8 %v140
      %v142 = vlaneseq
      %v143 = vshrl.u32 %v142, 7
      %v144 = vsub.s32 %v141, %v143
      %v145 = vrot.slane %v136, %v144
      %146 = vrot.lane.b32.xlu0 %v145, 64
      %v147 = vpop.permute.xlu0 %146
      %vm148 = vcmask 130048
      %v150 = vsel %vm148, %v136, 0
      %v153 = vsel %vm148, %v147, 0
      %155 = vmatprep.subr.bf16.mxu0 0
      %156 = vmatpush1.bf16.xpose.msra.mxu0 %v153
      %157 = vmatprep.subr.bf16.mxu0 0
      %158 = vmatpush1.bf16.xpose.msra.mxu0 0
      %159 = vmatprep.subr.bf16.mxu0 0
      %160 = vmatpush1.bf16.xpose.msra.mxu0 0
      %161 = vmatprep.subr.bf16.mxu0 0
      %162 = vmatpush1.bf16.xpose.msra.mxu0 0
      %163 = vmatprep.subr.bf16.mxu0 0
      %164 = vmatpush1.bf16.xpose.msra.mxu0 0
      %165 = vmatprep.subr.bf16.mxu0 0
      %166 = vmatpush1.bf16.xpose.msra.mxu0 0
      %167 = vmatprep.subr.bf16.mxu0 0
      %168 = vmatpush1.bf16.xpose.msra.mxu0 0
      %169 = vmatprep.subr.bf16.mxu0 0
      %170 = vmatpush1.bf16.xpose.msra.mxu0 0
      %171 = vmatprep.subr.bf16.mxu0 0
      %172 = vmatpush1.bf16.xpose.msra.mxu0 0
      %173 = vmatprep.subr.bf16.mxu0 0
      %174 = vmatpush1.bf16.xpose.msra.mxu0 0
      %175 = vmatprep.subr.bf16.mxu0 0
      %176 = vmatpush1.bf16.xpose.msra.mxu0 0
      %177 = vmatprep.subr.bf16.mxu0 0
      %178 = vmatpush1.bf16.xpose.msra.mxu0 0
      %179 = vmatprep.subr.bf16.mxu0 0
      %180 = vmatpush1.bf16.xpose.msra.mxu0 0
      %181 = vmatprep.subr.bf16.mxu0 0
      %182 = vmatpush1.bf16.xpose.msra.mxu0 0
      %183 = vmatprep.subr.bf16.mxu0 0
      %184 = vmatpush1.bf16.xpose.msra.mxu0 0
      %185 = vmatprep.subr.bf16.mxu0 0
      %186 = vmatpush1.bf16.xpose.msra.mxu0 0
      %187 = vmatprep.mubr.bf16.mxu0 0
      %188 = vmatmul.mubr.bf16.gmra.mrb[0].mxu0 %v150
      %v189 = vpop.f32.mrb[0].mxu0
      %v190 = vadd.f32 0.0, %v189
      %v191 = vpop.f32.mrb[0].mxu0
      %v192 = vpop.f32.mrb[0].mxu0
      %v193 = vpop.f32.mrb[0].mxu0
      %194 = vdwg.mxu0
      %vm195 = vcmask 27648
      %v196 = vsel %vm195, %v190, -inf
      %197 = vmax.xlane.f32.xlu0 %v196
      %v198 = vpop.xlane.xlu0 %197
      %v199 = vsub.f32 %v190, %v198
      %v200 = vmul.f32 %v199, 1.442695
      %v201 = vpow.pop %v200
      %v202 = vsel %vm195, %v201, 0.0
      %203 = vadd.xlane.f32.xlu0 %v202
      %v204 = vpop.xlane.xlu0 %203
      %v205 = vrcp.pop %v204
      %v206 = vmul.f32 %v201, %v205
      %v207 = vpack.c.bf16 %v206, %v206
      %vm208 = vcmask 31744
      %v210 = vsel %vm208, %v207, 0
      %vm212 = vcmask 1041408
      %v214 = vsel %vm212, %v137, 0
      %216 = vmatprep.subr.bf16.mxu0 0
      %217 = vmatpush1.bf16.msra.mxu0 %v214
      %218 = vmatprep.subr.bf16.mxu0 0
      %219 = vmatpush1.bf16.msra.mxu0 0
      %220 = vmatprep.subr.bf16.mxu0 0
      %221 = vmatpush1.bf16.msra.mxu0 0
      %222 = vmatprep.subr.bf16.mxu0 0
      %223 = vmatpush1.bf16.msra.mxu0 0
      %224 = vmatprep.subr.bf16.mxu0 0
      %225 = vmatpush1.bf16.msra.mxu0 0
      %226 = vmatprep.subr.bf16.mxu0 0
      %227 = vmatpush1.bf16.msra.mxu0 0
      %228 = vmatprep.subr.bf16.mxu0 0
      %229 = vmatpush1.bf16.msra.mxu0 0
      %230 = vmatprep.subr.bf16.mxu0 0
      %231 = vmatpush1.bf16.msra.mxu0 0
      %232 = vmatprep.subr.bf16.mxu0 0
      %233 = vmatpush1.bf16.msra.mxu0 0
      %234 = vmatprep.subr.bf16.mxu0 0
      %235 = vmatpush1.bf16.msra.mxu0 0
      %236 = vmatprep.subr.bf16.mxu0 0
      %237 = vmatpush1.bf16.msra.mxu0 0
      %238 = vmatprep.subr.bf16.mxu0 0
      %239 = vmatpush1.bf16.msra.mxu0 0
      %240 = vmatprep.subr.bf16.mxu0 0
      %241 = vmatpush1.bf16.msra.mxu0 0
      %242 = vmatprep.subr.bf16.mxu0 0
      %243 = vmatpush1.bf16.msra.mxu0 0
      %244 = vmatprep.subr.bf16.mxu0 0
      %245 = vmatpush1.bf16.msra.mxu0 0
      %246 = vmatprep.subr.bf16.mxu0 0
      %247 = vmatpush1.bf16.msra.mxu0 0
      %248 = vmatprep.mubr.bf16.mxu0 0
      %249 = vmatmul.mubr.bf16.gmra.mrb[0].mxu0 %v210
      %v250 = vpop.f32.mrb[0].mxu0
      %v251 = vadd.f32 0.0, %v250
      %v252 = vpop.f32.mrb[0].mxu0
      %v253 = vpop.f32.mrb[0].mxu0
      %v254 = vpop.f32.mrb[0].mxu0
      %255 = vdwg.mxu0
      %v256 = vpack.c.bf16 %v251, %v251
      %vm257 = vcmask 123904
      %258 = vst.msk [vmem:[%s134] sm:$0x3] %vm257, %v256
      %v259 = vld [vmem:[%s127] sm:$0x3]
      %v260 = vld [vmem:[%s127 + $0x2] sm:$0x3]
      %v263 = vunpack.c.l.s4 1983009808
      %v264 = vunpack.c.0.s8 %v263
      %v265 = vlaneseq
      %v266 = vshrl.u32 %v265, 7
      %v267 = vsub.s32 %v264, %v266
      %v268 = vrot.slane %v259, %v267
      %269 = vrot.lane.b32.xlu0 %v268, 112
      %v270 = vpop.permute.xlu0 %269
      %271 = vrot.lane.b32.xlu0 %v268, 48
      %v272 = vpop.permute.xlu0 %271
      %v274 = vsel %vm148, %v270, 0
      %v277 = vsel %vm148, %v272, 0
      %279 = vmatprep.subr.bf16.mxu0 0
      %280 = vmatpush1.bf16.xpose.msra.mxu0 %v277
      %281 = vmatprep.subr.bf16.mxu0 0
      %282 = vmatpush1.bf16.xpose.msra.mxu0 0
      %283 = vmatprep.subr.bf16.mxu0 0
      %284 = vmatpush1.bf16.xpose.msra.mxu0 0
      %285 = vmatprep.subr.bf16.mxu0 0
      %286 = vmatpush1.bf16.xpose.msra.mxu0 0
      %287 = vmatprep.subr.bf16.mxu0 0
      %288 = vmatpush1.bf16.xpose.msra.mxu0 0
      %289 = vmatprep.subr.bf16.mxu0 0
      %290 = vmatpush1.bf16.xpose.msra.mxu0 0
      %291 = vmatprep.subr.bf16.mxu0 0
      %292 = vmatpush1.bf16.xpose.msra.mxu0 0
      %293 = vmatprep.subr.bf16.mxu0 0
      %294 = vmatpush1.bf16.xpose.msra.mxu0 0
      %295 = vmatprep.subr.bf16.mxu0 0
      %296 = vmatpush1.bf16.xpose.msra.mxu0 0
      %297 = vmatprep.subr.bf16.mxu0 0
      %298 = vmatpush1.bf16.xpose.msra.mxu0 0
      %299 = vmatprep.subr.bf16.mxu0 0
      %300 = vmatpush1.bf16.xpose.msra.mxu0 0
      %301 = vmatprep.subr.bf16.mxu0 0
      %302 = vmatpush1.bf16.xpose.msra.mxu0 0
      %303 = vmatprep.subr.bf16.mxu0 0
      %304 = vmatpush1.bf16.xpose.msra.mxu0 0
      %305 = vmatprep.subr.bf16.mxu0 0
      %306 = vmatpush1.bf16.xpose.msra.mxu0 0
      %307 = vmatprep.subr.bf16.mxu0 0
      %308 = vmatpush1.bf16.xpose.msra.mxu0 0
      %309 = vmatprep.subr.bf16.mxu0 0
      %310 = vmatpush1.bf16.xpose.msra.mxu0 0
      %311 = vmatprep.mubr.bf16.mxu0 0
      %312 = vmatmul.mubr.bf16.gmra.mrb[0].mxu0 %v274
      %v313 = vpop.f32.mrb[0].mxu0
      %v314 = vadd.f32 0.0, %v313
      %v315 = vpop.f32.mrb[0].mxu0
      %v316 = vpop.f32.mrb[0].mxu0
      %v317 = vpop.f32.mrb[0].mxu0
      %318 = vdwg.mxu0
      %v319 = vsel %vm195, %v314, -inf
      %320 = vmax.xlane.f32.xlu0 %v319
      %v321 = vpop.xlane.xlu0 %320
      %v322 = vsub.f32 %v314, %v321
      %v323 = vmul.f32 %v322, 1.442695
      %v324 = vpow.pop %v323
      %v325 = vsel %vm195, %v324, 0.0
      %326 = vadd.xlane.f32.xlu0 %v325
      %v327 = vpop.xlane.xlu0 %326
      %v328 = vrcp.pop %v327
      %v329 = vmul.f32 %v324, %v328
      %v330 = vpack.c.bf16 %v329, %v329
      %v333 = vunpack.c.l.s4 1983009808
      %v334 = vunpack.c.0.s8 %v333
      %v335 = vlaneseq
      %v336 = vshrl.u32 %v335, 7
      %v337 = vsub.s32 %v334, %v336
      %v338 = vrot.slane %v260, %v337
      %339 = vrot.lane.b32.xlu0 %v338, 112
      %v340 = vpop.permute.xlu0 %339
      %v342 = vsel %vm208, %v330, 0
      %v345 = vsel %vm212, %v340, 0
      %347 = vmatprep.subr.bf16.mxu0 0
      %348 = vmatpush1.bf16.msra.mxu0 %v345
      %349 = vmatprep.subr.bf16.mxu0 0
      %350 = vmatpush1.bf16.msra.mxu0 0
      %351 = vmatprep.subr.bf16.mxu0 0
      %352 = vmatpush1.bf16.msra.mxu0 0
      %353 = vmatprep.subr.bf16.mxu0 0
      %354 = vmatpush1.bf16.msra.mxu0 0
      %355 = vmatprep.subr.bf16.mxu0 0
      %356 = vmatpush1.bf16.msra.mxu0 0
      %357 = vmatprep.subr.bf16.mxu0 0
      %358 = vmatpush1.bf16.msra.mxu0 0
      %359 = vmatprep.subr.bf16.mxu0 0
      %360 = vmatpush1.bf16.msra.mxu0 0
      %361 = vmatprep.subr.bf16.mxu0 0
      %362 = vmatpush1.bf16.msra.mxu0 0
      %363 = vmatprep.subr.bf16.mxu0 0
      %364 = vmatpush1.bf16.msra.mxu0 0
      %365 = vmatprep.subr.bf16.mxu0 0
      %366 = vmatpush1.bf16.msra.mxu0 0
      %367 = vmatprep.subr.bf16.mxu0 0
      %368 = vmatpush1.bf16.msra.mxu0 0
      %369 = vmatprep.subr.bf16.mxu0 0
      %370 = vmatpush1.bf16.msra.mxu0 0
      %371 = vmatprep.subr.bf16.mxu0 0
      %372 = vmatpush1.bf16.msra.mxu0 0
      %373 = vmatprep.subr.bf16.mxu0 0
      %374 = vmatpush1.bf16.msra.mxu0 0
      %375 = vmatprep.subr.bf16.mxu0 0
      %376 = vmatpush1.bf16.msra.mxu0 0
      %377 = vmatprep.subr.bf16.mxu0 0
      %378 = vmatpush1.bf16.msra.mxu0 0
      %379 = vmatprep.mubr.bf16.mxu0 0
      %380 = vmatmul.mubr.bf16.gmra.mrb[0].mxu0 %v342
      %v381 = vpop.f32.mrb[0].mxu0
      %v382 = vadd.f32 0.0, %v381
      %v383 = vpop.f32.mrb[0].mxu0
      %v384 = vpop.f32.mrb[0].mxu0
      %v385 = vpop.f32.mrb[0].mxu0
      %386 = vdwg.mxu0
      %v387 = vpack.c.bf16 %v382, %v382
      %v390 = vunpack.c.l.s4 1983009808
      %v391 = vunpack.c.0.s8 %v390
      %v392 = vlaneseq
      %v393 = vshrl.u32 %v392, 7
      %v394 = vsub.s32 %v391, %v393
      %v395 = vrot.slane %v387, %v394
      %396 = vrot.lane.b32.xlu0 %v395, 16
      %v397 = vpop.permute.xlu0 %396
      %vm399 = vcmask 255104
      %400 = vst.msk [vmem:[%s134] sm:$0x3] %vm399, %v397
      %v401 = vld [vmem:[%s127] sm:$0x3]
      %v402 = vld [vmem:[%s127 + $0x2] sm:$0x3]
      %v405 = vunpack.c.l.s4 1983009808
      %v406 = vunpack.c.0.s8 %v405
      %v407 = vlaneseq
      %v408 = vshrl.u32 %v407, 7
      %v409 = vsub.s32 %v406, %v408
      %v410 = vrot.slane %v401, %v409
      %411 = vrot.lane.b32.xlu0 %v410, 96
      %v412 = vpop.permute.xlu0 %411
      %413 = vrot.lane.b32.xlu0 %v410, 32
      %v414 = vpop.permute.xlu0 %413
      %v416 = vsel %vm148, %v412, 0
      %v419 = vsel %vm148, %v414, 0
      %421 = vmatprep.subr.bf16.mxu0 0
      %422 = vmatpush1.bf16.xpose.msra.mxu0 %v419
      %423 = vmatprep.subr.bf16.mxu0 0
      %424 = vmatpush1.bf16.xpose.msra.mxu0 0
      %425 = vmatprep.subr.bf16.mxu0 0
      %426 = vmatpush1.bf16.xpose.msra.mxu0 0
      %427 = vmatprep.subr.bf16.mxu0 0
      %428 = vmatpush1.bf16.xpose.msra.mxu0 0
      %429 = vmatprep.subr.bf16.mxu0 0
      %430 = vmatpush1.bf16.xpose.msra.mxu0 0
      %431 = vmatprep.subr.bf16.mxu0 0
      %432 = vmatpush1.bf16.xpose.msra.mxu0 0
      %433 = vmatprep.subr.bf16.mxu0 0
      %434 = vmatpush1.bf16.xpose.msra.mxu0 0
      %435 = vmatprep.subr.bf16.mxu0 0
      %436 = vmatpush1.bf16.xpose.msra.mxu0 0
      %437 = vmatprep.subr.bf16.mxu0 0
      %438 = vmatpush1.bf16.xpose.msra.mxu0 0
      %439 = vmatprep.subr.bf16.mxu0 0
      %440 = vmatpush1.bf16.xpose.msra.mxu0 0
      %441 = vmatprep.subr.bf16.mxu0 0
      %442 = vmatpush1.bf16.xpose.msra.mxu0 0
      %443 = vmatprep.subr.bf16.mxu0 0
      %444 = vmatpush1.bf16.xpose.msra.mxu0 0
      %445 = vmatprep.subr.bf16.mxu0 0
      %446 = vmatpush1.bf16.xpose.msra.mxu0 0
      %447 = vmatprep.subr.bf16.mxu0 0
      %448 = vmatpush1.bf16.xpose.msra.mxu0 0
      %449 = vmatprep.subr.bf16.mxu0 0
      %450 = vmatpush1.bf16.xpose.msra.mxu0 0
      %451 = vmatprep.subr.bf16.mxu0 0
      %452 = vmatpush1.bf16.xpose.msra.mxu0 0
      %453 = vmatprep.mubr.bf16.mxu0 0
      %454 = vmatmul.mubr.bf16.gmra.mrb[0].mxu0 %v416
      %v455 = vpop.f32.mrb[0].mxu0
      %v456 = vadd.f32 0.0, %v455
      %v457 = vpop.f32.mrb[0].mxu0
      %v458 = vpop.f32.mrb[0].mxu0
      %v459 = vpop.f32.mrb[0].mxu0
      %460 = vdwg.mxu0
      %v461 = vsel %vm195, %v456, -inf
      %462 = vmax.xlane.f32.xlu0 %v461
      %v463 = vpop.xlane.xlu0 %462
      %v464 = vsub.f32 %v456, %v463
      %v465 = vmul.f32 %v464, 1.442695
      %v466 = vpow.pop %v465
      %v467 = vsel %vm195, %v466, 0.0
      %468 = vadd.xlane.f32.xlu0 %v467
      %v469 = vpop.xlane.xlu0 %468
      %v470 = vrcp.pop %v469
      %v471 = vmul.f32 %v466, %v470
      %v472 = vpack.c.bf16 %v471, %v471
      %v475 = vunpack.c.l.s4 1983009808
      %v476 = vunpack.c.0.s8 %v475
      %v477 = vlaneseq
      %v478 = vshrl.u32 %v477, 7
      %v479 = vsub.s32 %v476, %v478
      %v480 = vrot.slane %v402, %v479
      %481 = vrot.lane.b32.xlu0 %v480, 96
      %v482 = vpop.permute.xlu0 %481
      %v484 = vsel %vm208, %v472, 0
      %v487 = vsel %vm212, %v482, 0
      %489 = vmatprep.subr.bf16.mxu0 0
      %490 = vmatpush1.bf16.msra.mxu0 %v487
      %491 = vmatprep.subr.bf16.mxu0 0
      %492 = vmatpush1.bf16.msra.mxu0 0
      %493 = vmatprep.subr.bf16.mxu0 0
      %494 = vmatpush1.bf16.msra.mxu0 0
      %495 = vmatprep.subr.bf16.mxu0 0
      %496 = vmatpush1.bf16.msra.mxu0 0
      %497 = vmatprep.subr.bf16.mxu0 0
      %498 = vmatpush1.bf16.msra.mxu0 0
      %499 = vmatprep.subr.bf16.mxu0 0
      %500 = vmatpush1.bf16.msra.mxu0 0
      %501 = vmatprep.subr.bf16.mxu0 0
      %502 = vmatpush1.bf16.msra.mxu0 0
      %503 = vmatprep.subr.bf16.mxu0 0
      %504 = vmatpush1.bf16.msra.mxu0 0
      %505 = vmatprep.subr.bf16.mxu0 0
      %506 = vmatpush1.bf16.msra.mxu0 0
      %507 = vmatprep.subr.bf16.mxu0 0
      %508 = vmatpush1.bf16.msra.mxu0 0
      %509 = vmatprep.subr.bf16.mxu0 0
      %510 = vmatpush1.bf16.msra.mxu0 0
      %511 = vmatprep.subr.bf16.mxu0 0
      %512 = vmatpush1.bf16.msra.mxu0 0
      %513 = vmatprep.subr.bf16.mxu0 0
      %514 = vmatpush1.bf16.msra.mxu0 0
      %515 = vmatprep.subr.bf16.mxu0 0
      %516 = vmatpush1.bf16.msra.mxu0 0
      %517 = vmatprep.subr.bf16.mxu0 0
      %518 = vmatpush1.bf16.msra.mxu0 0
      %519 = vmatprep.subr.bf16.mxu0 0
      %520 = vmatpush1.bf16.msra.mxu0 0
      %521 = vmatprep.mubr.bf16.mxu0 0
      %522 = vmatmul.mubr.bf16.gmra.mrb[0].mxu0 %v484
      %v523 = vpop.f32.mrb[0].mxu0
      %v524 = vadd.f32 0.0, %v523
      %v525 = vpop.f32.mrb[0].mxu0
      %v526 = vpop.f32.mrb[0].mxu0
      %v527 = vpop.f32.mrb[0].mxu0
      %528 = vdwg.mxu0
      %v529 = vpack.c.bf16 %v524, %v524
      %v532 = vunpack.c.l.s4 1983009808
      %v533 = vunpack.c.0.s8 %v532
      %v534 = vlaneseq
      %v535 = vshrl.u32 %v534, 7
      %v536 = vsub.s32 %v533, %v535
      %v537 = vrot.slane %v529, %v536
      %538 = vrot.lane.b32.xlu0 %v537, 32
      %v539 = vpop.permute.xlu0 %538
      %vm541 = vcmask 386304
      %542 = vst.msk [vmem:[%s134] sm:$0x3] %vm541, %v539
      %v543 = vld [vmem:[%s127] sm:$0x3]
      %v544 = vld [vmem:[%s127 + $0x2] sm:$0x3]
      %v547 = vunpack.c.l.s4 1983009808
      %v548 = vunpack.c.0.s8 %v547
      %v549 = vlaneseq
      %v550 = vshrl.u32 %v549, 7
      %v551 = vsub.s32 %v548, %v550
      %v552 = vrot.slane %v543, %v551
      %553 = vrot.lane.b32.xlu0 %v552, 80
      %v554 = vpop.permute.xlu0 %553
      %555 = vrot.lane.b32.xlu0 %v552, 16
      %v556 = vpop.permute.xlu0 %555
      %v558 = vsel %vm148, %v554, 0
      %v561 = vsel %vm148, %v556, 0
      %563 = vmatprep.subr.bf16.mxu0 0
      %564 = vmatpush1.bf16.xpose.msra.mxu0 %v561
      %565 = vmatprep.subr.bf16.mxu0 0
      %566 = vmatpush1.bf16.xpose.msra.mxu0 0
      %567 = vmatprep.subr.bf16.mxu0 0
      %568 = vmatpush1.bf16.xpose.msra.mxu0 0
      %569 = vmatprep.subr.bf16.mxu0 0
      %570 = vmatpush1.bf16.xpose.msra.mxu0 0
      %571 = vmatprep.subr.bf16.mxu0 0
      %572 = vmatpush1.bf16.xpose.msra.mxu0 0
      %573 = vmatprep.subr.bf16.mxu0 0
      %574 = vmatpush1.bf16.xpose.msra.mxu0 0
      %575 = vmatprep.subr.bf16.mxu0 0
      %576 = vmatpush1.bf16.xpose.msra.mxu0 0
      %577 = vmatprep.subr.bf16.mxu0 0
      %578 = vmatpush1.bf16.xpose.msra.mxu0 0
      %579 = vmatprep.subr.bf16.mxu0 0
      %580 = vmatpush1.bf16.xpose.msra.mxu0 0
      %581 = vmatprep.subr.bf16.mxu0 0
      %582 = vmatpush1.bf16.xpose.msra.mxu0 0
      %583 = vmatprep.subr.bf16.mxu0 0
      %584 = vmatpush1.bf16.xpose.msra.mxu0 0
      %585 = vmatprep.subr.bf16.mxu0 0
      %586 = vmatpush1.bf16.xpose.msra.mxu0 0
      %587 = vmatprep.subr.bf16.mxu0 0
      %588 = vmatpush1.bf16.xpose.msra.mxu0 0
      %589 = vmatprep.subr.bf16.mxu0 0
      %590 = vmatpush1.bf16.xpose.msra.mxu0 0
      %591 = vmatprep.subr.bf16.mxu0 0
      %592 = vmatpush1.bf16.xpose.msra.mxu0 0
      %593 = vmatprep.subr.bf16.mxu0 0
      %594 = vmatpush1.bf16.xpose.msra.mxu0 0
      %595 = vmatprep.mubr.bf16.mxu0 0
      %596 = vmatmul.mubr.bf16.gmra.mrb[0].mxu0 %v558
      %v597 = vpop.f32.mrb[0].mxu0
      %v598 = vadd.f32 0.0, %v597
      %v599 = vpop.f32.mrb[0].mxu0
      %v600 = vpop.f32.mrb[0].mxu0
      %v601 = vpop.f32.mrb[0].mxu0
      %602 = vdwg.mxu0
      %v603 = vsel %vm195, %v598, -inf
      %604 = vmax.xlane.f32.xlu0 %v603
      %v605 = vpop.xlane.xlu0 %604
      %v606 = vsub.f32 %v598, %v605
      %v607 = vmul.f32 %v606, 1.442695
      %v608 = vpow.pop %v607
      %v609 = vsel %vm195, %v608, 0.0
      %610 = vadd.xlane.f32.xlu0 %v609
      %v611 = vpop.xlane.xlu0 %610
      %v612 = vrcp.pop %v611
      %v613 = vmul.f32 %v608, %v612
      %v614 = vpack.c.bf16 %v613, %v613
      %v617 = vunpack.c.l.s4 1983009808
      %v618 = vunpack.c.0.s8 %v617
      %v619 = vlaneseq
      %v620 = vshrl.u32 %v619, 7
      %v621 = vsub.s32 %v618, %v620
      %v622 = vrot.slane %v544, %v621
      %623 = vrot.lane.b32.xlu0 %v622, 80
      %v624 = vpop.permute.xlu0 %623
      %v626 = vsel %vm208, %v614, 0
      %v629 = vsel %vm212, %v624, 0
      %631 = vmatprep.subr.bf16.mxu0 0
      %632 = vmatpush1.bf16.msra.mxu0 %v629
      %633 = vmatprep.subr.bf16.mxu0 0
      %634 = vmatpush1.bf16.msra.mxu0 0
      %635 = vmatprep.subr.bf16.mxu0 0
      %636 = vmatpush1.bf16.msra.mxu0 0
      %637 = vmatprep.subr.bf16.mxu0 0
      %638 = vmatpush1.bf16.msra.mxu0 0
      %639 = vmatprep.subr.bf16.mxu0 0
      %640 = vmatpush1.bf16.msra.mxu0 0
      %641 = vmatprep.subr.bf16.mxu0 0
      %642 = vmatpush1.bf16.msra.mxu0 0
      %643 = vmatprep.subr.bf16.mxu0 0
      %644 = vmatpush1.bf16.msra.mxu0 0
      %645 = vmatprep.subr.bf16.mxu0 0
      %646 = vmatpush1.bf16.msra.mxu0 0
      %647 = vmatprep.subr.bf16.mxu0 0
      %648 = vmatpush1.bf16.msra.mxu0 0
      %649 = vmatprep.subr.bf16.mxu0 0
      %650 = vmatpush1.bf16.msra.mxu0 0
      %651 = vmatprep.subr.bf16.mxu0 0
      %652 = vmatpush1.bf16.msra.mxu0 0
      %653 = vmatprep.subr.bf16.mxu0 0
      %654 = vmatpush1.bf16.msra.mxu0 0
      %655 = vmatprep.subr.bf16.mxu0 0
      %656 = vmatpush1.bf16.msra.mxu0 0
      %657 = vmatprep.subr.bf16.mxu0 0
      %658 = vmatpush1.bf16.msra.mxu0 0
      %659 = vmatprep.subr.bf16.mxu0 0
      %660 = vmatpush1.bf16.msra.mxu0 0
      %661 = vmatprep.subr.bf16.mxu0 0
      %662 = vmatpush1.bf16.msra.mxu0 0
      %663 = vmatprep.mubr.bf16.mxu0 0
      %664 = vmatmul.mubr.bf16.gmra.mrb[0].mxu0 %v626
      %v665 = vpop.f32.mrb[0].mxu0
      %v666 = vadd.f32 0.0, %v665
      %v667 = vpop.f32.mrb[0].mxu0
      %v668 = vpop.f32.mrb[0].mxu0
      %v669 = vpop.f32.mrb[0].mxu0
      %670 = vdwg.mxu0
      %v671 = vpack.c.bf16 %v666, %v666
      %v674 = vunpack.c.l.s4 1983009808
      %v675 = vunpack.c.0.s8 %v674
      %v676 = vlaneseq
      %v677 = vshrl.u32 %v676, 7
      %v678 = vsub.s32 %v675, %v677
      %v679 = vrot.slane %v671, %v678
      %680 = vrot.lane.b32.xlu0 %v679, 48
      %v681 = vpop.permute.xlu0 %680
      %vm683 = vcmask 517504
      %684 = vst.msk [vmem:[%s134] sm:$0x3] %vm683, %v681
      %p685 = scmp.lt.s32.totalorder %s16, 1
      %s686 = scalar_select %p685, %s16, 1
      %p687 = scmp.lt.s32.totalorder %s17, 0
      %s688 = scalar_select %p687, %s17, 0
      %s689 = sadd.s32 %s688, %s686
      %s690 = smul.addr %s689, 2
      %s691 = scalar_lea.vmem %s1, %s690
      // Predicated region
      $region25: #{forward.37} parent=23 // pred_check
        %p692 = pneg %p70
      $region26: #{forward.37} parent=23 // pred_check_branch
        %694 = sbr.rel (%p692) target = $region28
      $region27: #{forward.37} parent=23 // pred_region
        _
      $region28: #{forward.37} parent=23 // pred_fallthru
        _
    $region24: #{forward.37} parent=5 // pred_fallthru
      _
    %p695 = scmp.le.s32.totalorder 2, %s7
    // Predicated region
    $region29: #{forward.37} parent=5 // pred_check
      %p696 = pneg %p695
    $region30: #{forward.37} parent=5 // pred_check_branch
      %698 = sbr.rel (%p696) target = $region32
    $region31: #{forward.37} parent=5 // pred_region
      %s699 = ssub.s32 %s7, 2
      // Predicated region
      $region33: #{forward.37} parent=31 // pred_check
        %p700 = pneg %p76
      $region34: #{forward.37} parent=31 // pred_check_branch
        %702 = sbr.rel (%p700) target = $region36
      $region35: #{forward.37} parent=31 // pred_region
        %p703 = scmp.lt.s32.totalorder %s18, 1
        %s704 = scalar_select %p703, %s18, 1
        %p705 = scmp.lt.s32.totalorder %s19, 0
        %s706 = scalar_select %p705, %s19, 0
        %s707 = sadd.s32 %s706, %s704
        %s708 = smul.addr %s707, 2
        %s709 = scalar_lea.vmem %s1, %s708
      $region36: #{forward.37} parent=31 // pred_fallthru
        _
    $region32: #{forward.37} parent=5 // pred_fallthru
      _
  $region6: #{forward.37} parent=0 // loop_footer
    %s11 = sadd.s32 1, %s7
  $region7: #{forward.37} parent=0 // loop_footer_branch
    %6 = sbr.rel target = $region3
  $region8: #{forward.37} parent=0 // loop_exit
    _

// kernel: forward.48
$region0: #{forward.48}
  #allocation0 [shape = 'u32[]', space=smem, size = 0x4, offset = 0x4, fixed_abs, tag = 'smem constant byte address 0x4 - core index']
  #allocation1 [shape = 'u32[144,128]{1,0:T(1,128)}', space=vmem, size = 0x12000, scoped, tag = 'internal scratch']
  %s0 = inlined_call_operand.vmem [shape: bf16[2,8,96], index: 0, kind: input, shape index: {}]
  %s1 = inlined_call_operand.vmem [shape: bf16[2,8,32], index: 1, kind: output, shape index: {}]
  %s2 = sld [smem:[#allocation0]]
  $region37: #{forward.48} parent=0
    _
  %s4 = ssub.s32 1, %s2
  %s5 = scalar_select 0, %s4, %s2
  loop: start=0, step=1, limit=4
  $region2: #{forward.48} parent=0 // loop_pre_header
    _
  $region3: #{forward.48} parent=0 // loop_header
    %s7 = sphi 0, %s11
    %p8 = scmp.ge.s32.totalorder %s7, 4
    %s14 = sphi 0, %s26
    %s15 = sphi 0, %s22
    %s16 = sphi 0, %s14
    %s17 = sphi 0, %s15
    %s18 = sphi 0, %s16
    %s19 = sphi 0, %s17
    %s29 = sphi 0, %s31
    %s32 = sphi 0, %s29
    %s33 = sphi 0, %s32
    %s49 = sphi 0, %s33
    %s57 = sphi 0, %s59
    %s60 = sphi 0, %s57
    %s61 = sphi 0, %s60
    %s77 = sphi 0, %s61
  $region4: #{forward.48} parent=0 // loop_header_branch
    %10 = sbr.rel (%p8) target = $region8
  $region5: #{forward.48} parent=0 // loop_body
    %s12 = ssub.s32 %s7, 1
    %s13 = ssub.s32 %s7, 2
    %s20 = sadd.s32 1, %s15
    %p21 = scmp.ge.s32.totalorder %s20, 1
    %s22 = scalar_select %p21, 0, %s20
    %s23 = sadd.s32 1, %s14
    %s24 = scalar_select %p21, %s23, %s14
    %p25 = scmp.ge.s32.totalorder %s24, 2
    %s26 = scalar_select %p25, 0, %s24
    %s27 = ssub.s32 %s14, %s26
    %p28 = scmp.eq.s32.totalorder %s27, 0
    %s30 = sadd.s32 %s29, 1
    %s31 = scalar_select %p28, %s29, %s30
    %p34 = pneg %p28
    %p35 = scmp.eq.s32.totalorder %s7, 1
    %p36 = por %p34, %p35
    %p37 = scmp.ne.s32.totalorder %s29, %s32
    %p38 = scmp.eq.s32.totalorder %s7, 0
    %p39 = por %p37, %p38
    %p40 = scmp.ne.s32.totalorder %s29, %s32
    %p41 = scmp.eq.s32.totalorder %s12, 1
    %p42 = por %p40, %p41
    %p43 = scmp.ne.s32.totalorder %s32, %s33
    %p44 = scmp.eq.s32.totalorder %s12, 0
    %p45 = por %p43, %p44
    %p46 = scmp.ne.s32.totalorder %s32, %s33
    %p47 = scmp.eq.s32.totalorder %s13, 1
    %p48 = por %p46, %p47
    %p50 = scmp.ne.s32.totalorder %s33, %s49
    %p51 = scmp.eq.s32.totalorder %s13, 0
    %p52 = por %p50, %p51
    %s53 = ssub.s32 %s14, %s26
    %s54 = ssub.s32 %s15, %s22
    %s55 = sor.u32 %s53, %s54
    %p56 = scmp.eq.s32.totalorder %s55, 0
    %s58 = sadd.s32 %s57, 1
    %s59 = scalar_select %p56, %s57, %s58
    %p62 = pneg %p56
    %p63 = scmp.eq.s32.totalorder %s7, 1
    %p64 = por %p62, %p63
    %p65 = scmp.ne.s32.totalorder %s57, %s60
    %p66 = scmp.eq.s32.totalorder %s7, 0
    %p67 = por %p65, %p66
    %p68 = scmp.ne.s32.totalorder %s57, %s60
    %p69 = scmp.eq.s32.totalorder %s12, 1
    %p70 = por %p68, %p69
    %p71 = scmp.ne.s32.totalorder %s60, %s61
    %p72 = scmp.eq.s32.totalorder %s12, 0
    %p73 = por %p71, %p72
    %p74 = scmp.ne.s32.totalorder %s60, %s61
    %p75 = scmp.eq.s32.totalorder %s13, 1
    %p76 = por %p74, %p75
    %p78 = scmp.ne.s32.totalorder %s61, %s77
    %p79 = scmp.eq.s32.totalorder %s13, 0
    %p80 = por %p78, %p79
    %p81 = scmp.le.s32.totalorder 1, %s7
    %p82 = scmp.lt.s32.totalorder %s7, 3
    %p83 = pnand %p81, %p82
    %p84 = pneg %p83
    // Predicated region
    $region9: #{forward.48} parent=5 // pred_check
      _
    $region10: #{forward.48} parent=5 // pred_check_branch
      %86 = sbr.rel (%p83) target = $region12
    $region11: #{forward.48} parent=5 // pred_region
      %s87 = ssub.s32 %s7, 1
    $region12: #{forward.48} parent=5 // pred_fallthru
      _
    %p88 = scmp.lt.s32.totalorder %s7, 2
    // Predicated region
    $region13: #{forward.48} parent=5 // pred_check
      %p89 = pneg %p88
    $region14: #{forward.48} parent=5 // pred_check_branch
      %91 = sbr.rel (%p89) target = $region16
    $region15: #{forward.48} parent=5 // pred_region
      // Predicated region
      $region17: #{forward.48} parent=15 // pred_check
        %p92 = pneg %p39
      $region18: #{forward.48} parent=15 // pred_check_branch
        %94 = sbr.rel (%p92) target = $region20
      $region19: #{forward.48} parent=15 // pred_region
        %p95 = scmp.lt.s32.totalorder %s14, 1
        %s96 = scalar_select %p95, %s14, 1
        %s97 = smul.addr %s96, 4
        %s98 = scalar_lea.vmem %s0, %s97
      $region20: #{forward.48} parent=15 // pred_fallthru
        _
    $region16: #{forward.48} parent=5 // pred_fallthru
      _
    %p99 = scmp.le.s32.totalorder 1, %s7
    %p100 = scmp.lt.s32.totalorder %s7, 3
    %p101 = pnand %p99, %p100
    %p102 = pneg %p101
    // Predicated region
    $region21: #{forward.48} parent=5 // pred_check
      _
    $region22: #{forward.48} parent=5 // pred_check_branch
      %104 = sbr.rel (%p101) target = $region24
    $region23: #{forward.48} parent=5 // pred_region
      %s105 = ssub.s32 %s7, 1
      %p106 = scmp.lt.s32.totalorder %s16, 1
      %s107 = scalar_select %p106, %s16, 1
      %s108 = smul.addr %s107, 4
      %s109 = scalar_lea.vmem %s0, %s108
      %p110 = pneg %p45
      %p111 = pneg %p42
      %p112 = pneg %p73
      %p113 = pneg %p70
      %p114 = scmp.lt.s32.totalorder %s16, 1
      %s115 = scalar_select %p114, %s16, 1
      %p116 = scmp.lt.s32.totalorder %s17, 0
      %s117 = scalar_select %p116, %s17, 0
      %s118 = sadd.s32 %s117, %s115
      %s119 = smul.addr %s118, 4
      %s120 = scalar_lea.vmem %s1, %s119
      %p121 = scmp.lt.s32.totalorder %s16, 1
      %s122 = scalar_select %p121, %s16, 1
      %s123 = smul.addr %s122, 4
      %s124 = scalar_lea.vmem %s0, %s123
      %p125 = scmp.lt.s32.totalorder %s16, 1
      %s126 = scalar_select %p125, %s16, 1
      %p127 = scmp.lt.s32.totalorder %s17, 0
      %s128 = scalar_select %p127, %s17, 0
      %s129 = sadd.s32 %s128, %s126
      %s130 = smul.addr %s129, 4
      %s131 = scalar_lea.vmem %s1, %s130
      %v133 = vld [vmem:[%s124] sm:$0xf]
      %v135 = vunpack.c.l.b16 %v133
      %v136 = vpack.c.b16 %v135, %v135
      %137 = vrot.lane.b32.xlu0 %v136, 96
      %v138 = vpop.permute.xlu0 %137
      %vm139 = vcmask 64512
      %v141 = vsel %vm139, %v133, 0
      %v144 = vsel %vm139, %v138, 0
      %146 = vmatprep.subr.bf16.mxu0 0
      %147 = vmatpush1.bf16.xpose.msra.mxu0 %v144
      %148 = vmatprep.subr.bf16.mxu0 0
      %149 = vmatpush1.bf16.xpose.msra.mxu0 0
      %150 = vmatprep.subr.bf16.mxu0 0
      %151 = vmatpush1.bf16.xpose.msra.mxu0 0
      %152 = vmatprep.subr.bf16.mxu0 0
      %153 = vmatpush1.bf16.xpose.msra.mxu0 0
      %154 = vmatprep.subr.bf16.mxu0 0
      %155 = vmatpush1.bf16.xpose.msra.mxu0 0
      %156 = vmatprep.subr.bf16.mxu0 0
      %157 = vmatpush1.bf16.xpose.msra.mxu0 0
      %158 = vmatprep.subr.bf16.mxu0 0
      %159 = vmatpush1.bf16.xpose.msra.mxu0 0
      %160 = vmatprep.subr.bf16.mxu0 0
      %161 = vmatpush1.bf16.xpose.msra.mxu0 0
      %162 = vmatprep.subr.bf16.mxu0 0
      %163 = vmatpush1.bf16.xpose.msra.mxu0 0
      %164 = vmatprep.subr.bf16.mxu0 0
      %165 = vmatpush1.bf16.xpose.msra.mxu0 0
      %166 = vmatprep.subr.bf16.mxu0 0
      %167 = vmatpush1.bf16.xpose.msra.mxu0 0
      %168 = vmatprep.subr.bf16.mxu0 0
      %169 = vmatpush1.bf16.xpose.msra.mxu0 0
      %170 = vmatprep.subr.bf16.mxu0 0
      %171 = vmatpush1.bf16.xpose.msra.mxu0 0
      %172 = vmatprep.subr.bf16.mxu0 0
      %173 = vmatpush1.bf16.xpose.msra.mxu0 0
      %174 = vmatprep.subr.bf16.mxu0 0
      %175 = vmatpush1.bf16.xpose.msra.mxu0 0
      %176 = vmatprep.subr.bf16.mxu0 0
      %177 = vmatpush1.bf16.xpose.msra.mxu0 0
      %178 = vmatprep.mubr.bf16.mxu0 0
      %179 = vmatmul.mubr.bf16.gmra.mrb[0].mxu0 %v141
      %v180 = vpop.f32.mrb[0].mxu0
      %v181 = vadd.f32 0.0, %v180
      %v182 = vpop.f32.mrb[0].mxu0
      %v183 = vpop.f32.mrb[0].mxu0
      %v184 = vpop.f32.mrb[0].mxu0
      %185 = vdwg.mxu0
      %v186 = vsel %vm139, %v181, -inf
      %187 = vmax.xlane.f32.xlu0 %v186
      %v188 = vpop.xlane.xlu0 %187
      %v189 = vsub.f32 %v181, %v188
      %v190 = vmul.f32 %v189, 1.442695
      %v191 = vpow.pop %v190
      %v192 = vsel %vm139, %v191, 0.0
      %193 = vadd.xlane.f32.xlu0 %v192
      %v194 = vpop.xlane.xlu0 %193
      %v195 = vrcp.pop %v194
      %v196 = vmul.f32 %v191, %v195
      %v197 = vpack.c.bf16 %v196, %v196
      %198 = vrot.lane.b32.xlu0 %v136, 64
      %v199 = vpop.permute.xlu0 %198
      %v201 = vsel %vm139, %v197, 0
      %vm203 = vcmask 1043456
      %v205 = vsel %vm203, %v199, 0
      %207 = vmatprep.subr.bf16.mxu0 0
      %208 = vmatpush1.bf16.msra.mxu0 %v205
      %209 = vmatprep.subr.bf16.mxu0 0
      %210 = vmatpush1.bf16.msra.mxu0 0
      %211 = vmatprep.subr.bf16.mxu0 0
      %212 = vmatpush1.bf16.msra.mxu0 0
      %213 = vmatprep.subr.bf16.mxu0 0
      %214 = vmatpush1.bf16.msra.mxu0 0
      %215 = vmatprep.subr.bf16.mxu0 0
      %216 = vmatpush1.bf16.msra.mxu0 0
      %217 = vmatprep.subr.bf16.mxu0 0
      %218 = vmatpush1.bf16.msra.mxu0 0
      %219 = vmatprep.subr.bf16.mxu0 0
      %220 = vmatpush1.bf16.msra.mxu0 0
      %221 = vmatprep.subr.bf16.mxu0 0
      %222 = vmatpush1.bf16.msra.mxu0 0
      %223 = vmatprep.subr.bf16.mxu0 0
      %224 = vmatpush1.bf16.msra.mxu0 0
      %225 = vmatprep.subr.bf16.mxu0 0
      %226 = vmatpush1.bf16.msra.mxu0 0
      %227 = vmatprep.subr.bf16.mxu0 0
      %228 = vmatpush1.bf16.msra.mxu0 0
      %229 = vmatprep.subr.bf16.mxu0 0
      %230 = vmatpush1.bf16.msra.mxu0 0
      %231 = vmatprep.subr.bf16.mxu0 0
      %232 = vmatpush1.bf16.msra.mxu0 0
      %233 = vmatprep.subr.bf16.mxu0 0
      %234 = vmatpush1.bf16.msra.mxu0 0
      %235 = vmatprep.subr.bf16.mxu0 0
      %236 = vmatpush1.bf16.msra.mxu0 0
      %237 = vmatprep.subr.bf16.mxu0 0
      %238 = vmatpush1.bf16.msra.mxu0 0
      %239 = vmatprep.mubr.bf16.mxu0 0
      %240 = vmatmul.mubr.bf16.gmra.mrb[0].mxu0 %v201
      %v241 = vpop.f32.mrb[0].mxu0
      %v242 = vadd.f32 0.0, %v241
      %v243 = vpop.f32.mrb[0].mxu0
      %v244 = vpop.f32.mrb[0].mxu0
      %v245 = vpop.f32.mrb[0].mxu0
      %246 = vdwg.mxu0
      %v247 = vpack.c.bf16 %v242, %v242
      %vm248 = vcmask 60416
      %249 = vst.msk [vmem:[%s131] sm:$0xf] %vm248, %v247
      %v250 = vld [vmem:[%s124] sm:$0xf]
      %v252 = vunpack.c.l.b16 %v250
      %v253 = vpack.c.b16 %v252, %v252
      %254 = vrot.lane.b32.xlu0 %v253, 120
      %v255 = vpop.permute.xlu0 %254
      %256 = vrot.lane.b32.xlu0 %v253, 88
      %v257 = vpop.permute.xlu0 %256
      %v259 = vsel %vm139, %v255, 0
      %v262 = vsel %vm139, %v257, 0
      %264 = vmatprep.subr.bf16.mxu0 0
      %265 = vmatpush1.bf16.xpose.msra.mxu0 %v262
      %266 = vmatprep.subr.bf16.mxu0 0
      %267 = vmatpush1.bf16.xpose.msra.mxu0 0
      %268 = vmatprep.subr.bf16.mxu0 0
      %269 = vmatpush1.bf16.xpose.msra.mxu0 0
      %270 = vmatprep.subr.bf16.mxu0 0
      %271 = vmatpush1.bf16.xpose.msra.mxu0 0
      %272 = vmatprep.subr.bf16.mxu0 0
      %273 = vmatpush1.bf16.xpose.msra.mxu0 0
      %274 = vmatprep.subr.bf16.mxu0 0
      %275 = vmatpush1.bf16.xpose.msra.mxu0 0
      %276 = vmatprep.subr.bf16.mxu0 0
      %277 = vmatpush1.bf16.xpose.msra.mxu0 0
      %278 = vmatprep.subr.bf16.mxu0 0
      %279 = vmatpush1.bf16.xpose.msra.mxu0 0
      %280 = vmatprep.subr.bf16.mxu0 0
      %281 = vmatpush1.bf16.xpose.msra.mxu0 0
      %282 = vmatprep.subr.bf16.mxu0 0
      %283 = vmatpush1.bf16.xpose.msra.mxu0 0
      %284 = vmatprep.subr.bf16.mxu0 0
      %285 = vmatpush1.bf16.xpose.msra.mxu0 0
      %286 = vmatprep.subr.bf16.mxu0 0
      %287 = vmatpush1.bf16.xpose.msra.mxu0 0
      %288 = vmatprep.subr.bf16.mxu0 0
      %289 = vmatpush1.bf16.xpose.msra.mxu0 0
      %290 = vmatprep.subr.bf16.mxu0 0
      %291 = vmatpush1.bf16.xpose.msra.mxu0 0
      %292 = vmatprep.subr.bf16.mxu0 0
      %293 = vmatpush1.bf16.xpose.msra.mxu0 0
      %294 = vmatprep.subr.bf16.mxu0 0
      %295 = vmatpush1.bf16.xpose.msra.mxu0 0
      %296 = vmatprep.mubr.bf16.mxu0 0
      %297 = vmatmul.mubr.bf16.gmra.mrb[0].mxu0 %v259
      %v298 = vpop.f32.mrb[0].mxu0
      %v299 = vadd.f32 0.0, %v298
      %v300 = vpop.f32.mrb[0].mxu0
      %v301 = vpop.f32.mrb[0].mxu0
      %v302 = vpop.f32.mrb[0].mxu0
      %303 = vdwg.mxu0
      %v304 = vsel %vm139, %v299, -inf
      %305 = vmax.xlane.f32.xlu0 %v304
      %v306 = vpop.xlane.xlu0 %305
      %v307 = vsub.f32 %v299, %v306
      %v308 = vmul.f32 %v307, 1.442695
      %v309 = vpow.pop %v308
      %v310 = vsel %vm139, %v309, 0.0
      %311 = vadd.xlane.f32.xlu0 %v310
      %v312 = vpop.xlane.xlu0 %311
      %v313 = vrcp.pop %v312
      %v314 = vmul.f32 %v309, %v313
      %v315 = vpack.c.bf16 %v314, %v314
      %316 = vrot.lane.b32.xlu0 %v253, 56
      %v317 = vpop.permute.xlu0 %316
      %v319 = vsel %vm139, %v315, 0
      %v322 = vsel %vm203, %v317, 0
      %324 = vmatprep.subr.bf16.mxu0 0
      %325 = vmatpush1.bf16.msra.mxu0 %v322
      %326 = vmatprep.subr.bf16.mxu0 0
      %327 = vmatpush1.bf16.msra.mxu0 0
      %328 = vmatprep.subr.bf16.mxu0 0
      %329 = vmatpush1.bf16.msra.mxu0 0
      %330 = vmatprep.subr.bf16.mxu0 0
      %331 = vmatpush1.bf16.msra.mxu0 0
      %332 = vmatprep.subr.bf16.mxu0 0
      %333 = vmatpush1.bf16.msra.mxu0 0
      %334 = vmatprep.subr.bf16.mxu0 0
      %335 = vmatpush1.bf16.msra.mxu0 0
      %336 = vmatprep.subr.bf16.mxu0 0
      %337 = vmatpush1.bf16.msra.mxu0 0
      %338 = vmatprep.subr.bf16.mxu0 0
      %339 = vmatpush1.bf16.msra.mxu0 0
      %340 = vmatprep.subr.bf16.mxu0 0
      %341 = vmatpush1.bf16.msra.mxu0 0
      %342 = vmatprep.subr.bf16.mxu0 0
      %343 = vmatpush1.bf16.msra.mxu0 0
      %344 = vmatprep.subr.bf16.mxu0 0
      %345 = vmatpush1.bf16.msra.mxu0 0
      %346 = vmatprep.subr.bf16.mxu0 0
      %347 = vmatpush1.bf16.msra.mxu0 0
      %348 = vmatprep.subr.bf16.mxu0 0
      %349 = vmatpush1.bf16.msra.mxu0 0
      %350 = vmatprep.subr.bf16.mxu0 0
      %351 = vmatpush1.bf16.msra.mxu0 0
      %352 = vmatprep.subr.bf16.mxu0 0
      %353 = vmatpush1.bf16.msra.mxu0 0
      %354 = vmatprep.subr.bf16.mxu0 0
      %355 = vmatpush1.bf16.msra.mxu0 0
      %356 = vmatprep.mubr.bf16.mxu0 0
      %357 = vmatmul.mubr.bf16.gmra.mrb[0].mxu0 %v319
      %v358 = vpop.f32.mrb[0].mxu0
      %v359 = vadd.f32 0.0, %v358
      %v360 = vpop.f32.mrb[0].mxu0
      %v361 = vpop.f32.mrb[0].mxu0
      %v362 = vpop.f32.mrb[0].mxu0
      %363 = vdwg.mxu0
      %v364 = vpack.c.bf16 %v359, %v359
      %v366 = vunpack.c.l.b16 %v364
      %v367 = vpack.c.b16 %v366, %v366
      %368 = vrot.lane.b32.xlu0 %v367, 8
      %v369 = vpop.permute.xlu0 %368
      %vm371 = vcmask 126016
      %372 = vst.msk [vmem:[%s131] sm:$0xf] %vm371, %v369
      %v373 = vld [vmem:[%s124] sm:$0xf]
      %v375 = vunpack.c.l.b16 %v373
      %v376 = vpack.c.b16 %v375, %v375
      %377 = vrot.lane.b32.xlu0 %v376, 112
      %v378 = vpop.permute.xlu0 %377
      %379 = vrot.lane.b32.xlu0 %v376, 80
      %v380 = vpop.permute.xlu0 %379
      %v382 = vsel %vm139, %v378, 0
      %v385 = vsel %vm139, %v380, 0
      %387 = vmatprep.subr.bf16.mxu0 0
      %388 = vmatpush1.bf16.xpose.msra.mxu0 %v385
      %389 = vmatprep.subr.bf16.mxu0 0
      %390 = vmatpush1.bf16.xpose.msra.mxu0 0
      %391 = vmatprep.subr.bf16.mxu0 0
      %392 = vmatpush1.bf16.xpose.msra.mxu0 0
      %393 = vmatprep.subr.bf16.mxu0 0
      %394 = vmatpush1.bf16.xpose.msra.mxu0 0
      %395 = vmatprep.subr.bf16.mxu0 0
      %396 = vmatpush1.bf16.xpose.msra.mxu0 0
      %397 = vmatprep.subr.bf16.mxu0 0
      %398 = vmatpush1.bf16.xpose.msra.mxu0 0
      %399 = vmatprep.subr.bf16.mxu0 0
      %400 = vmatpush1.bf16.xpose.msra.mxu0 0
      %401 = vmatprep.subr.bf16.mxu0 0
      %402 = vmatpush1.bf16.xpose.msra.mxu0 0
      %403 = vmatprep.subr.bf16.mxu0 0
      %404 = vmatpush1.bf16.xpose.msra.mxu0 0
      %405 = vmatprep.subr.bf16.mxu0 0
      %406 = vmatpush1.bf16.xpose.msra.mxu0 0
      %407 = vmatprep.subr.bf16.mxu0 0
      %408 = vmatpush1.bf16.xpose.msra.mxu0 0
      %409 = vmatprep.subr.bf16.mxu0 0
      %410 = vmatpush1.bf16.xpose.msra.mxu0 0
      %411 = vmatprep.subr.bf16.mxu0 0
      %412 = vmatpush1.bf16.xpose.msra.mxu0 0
      %413 = vmatprep.subr.bf16.mxu0 0
      %414 = vmatpush1.bf16.xpose.msra.mxu0 0
      %415 = vmatprep.subr.bf16.mxu0 0
      %416 = vmatpush1.bf16.xpose.msra.mxu0 0
      %417 = vmatprep.subr.bf16.mxu0 0
      %418 = vmatpush1.bf16.xpose.msra.mxu0 0
      %419 = vmatprep.mubr.bf16.mxu0 0
      %420 = vmatmul.mubr.bf16.gmra.mrb[0].mxu0 %v382
      %v421 = vpop.f32.mrb[0].mxu0
      %v422 = vadd.f32 0.0, %v421
      %v423 = vpop.f32.mrb[0].mxu0
      %v424 = vpop.f32.mrb[0].mxu0
      %v425 = vpop.f32.mrb[0].mxu0
      %426 = vdwg.mxu0
      %v427 = vsel %vm139, %v422, -inf
      %428 = vmax.xlane.f32.xlu0 %v427
      %v429 = vpop.xlane.xlu0 %428
      %v430 = vsub.f32 %v422, %v429
      %v431 = vmul.f32 %v430, 1.442695
      %v432 = vpow.pop %v431
      %v433 = vsel %vm139, %v432, 0.0
      %434 = vadd.xlane.f32.xlu0 %v433
      %v435 = vpop.xlane.xlu0 %434
      %v436 = vrcp.pop %v435
      %v437 = vmul.f32 %v432, %v436
      %v438 = vpack.c.bf16 %v437, %v437
      %439 = vrot.lane.b32.xlu0 %v376, 48
      %v440 = vpop.permute.xlu0 %439
      %v442 = vsel %vm139, %v438, 0
      %v445 = vsel %vm203, %v440, 0
      %447 = vmatprep.subr.bf16.mxu0 0
      %448 = vmatpush1.bf16.msra.mxu0 %v445
      %449 = vmatprep.subr.bf16.mxu0 0
      %450 = vmatpush1.bf16.msra.mxu0 0
      %451 = vmatprep.subr.bf16.mxu0 0
      %452 = vmatpush1.bf16.msra.mxu0 0
      %453 = vmatprep.subr.bf16.mxu0 0
      %454 = vmatpush1.bf16.msra.mxu0 0
      %455 = vmatprep.subr.bf16.mxu0 0
      %456 = vmatpush1.bf16.msra.mxu0 0
      %457 = vmatprep.subr.bf16.mxu0 0
      %458 = vmatpush1.bf16.msra.mxu0 0
      %459 = vmatprep.subr.bf16.mxu0 0
      %460 = vmatpush1.bf16.msra.mxu0 0
      %461 = vmatprep.subr.bf16.mxu0 0
      %462 = vmatpush1.bf16.msra.mxu0 0
      %463 = vmatprep.subr.bf16.mxu0 0
      %464 = vmatpush1.bf16.msra.mxu0 0
      %465 = vmatprep.subr.bf16.mxu0 0
      %466 = vmatpush1.bf16.msra.mxu0 0
      %467 = vmatprep.subr.bf16.mxu0 0
      %468 = vmatpush1.bf16.msra.mxu0 0
      %469 = vmatprep.subr.bf16.mxu0 0
      %470 = vmatpush1.bf16.msra.mxu0 0
      %471 = vmatprep.subr.bf16.mxu0 0
      %472 = vmatpush1.bf16.msra.mxu0 0
      %473 = vmatprep.subr.bf16.mxu0 0
      %474 = vmatpush1.bf16.msra.mxu0 0
      %475 = vmatprep.subr.bf16.mxu0 0
      %476 = vmatpush1.bf16.msra.mxu0 0
      %477 = vmatprep.subr.bf16.mxu0 0
      %478 = vmatpush1.bf16.msra.mxu0 0
      %479 = vmatprep.mubr.bf16.mxu0 0
      %480 = vmatmul.mubr.bf16.gmra.mrb[0].mxu0 %v442
      %v481 = vpop.f32.mrb[0].mxu0
      %v482 = vadd.f32 0.0, %v481
      %v483 = vpop.f32.mrb[0].mxu0
      %v484 = vpop.f32.mrb[0].mxu0
      %v485 = vpop.f32.mrb[0].mxu0
      %486 = vdwg.mxu0
      %v487 = vpack.c.bf16 %v482, %v482
      %v489 = vunpack.c.l.b16 %v487
      %v490 = vpack.c.b16 %v489, %v489
      %491 = vrot.lane.b32.xlu0 %v490, 16
      %v492 = vpop.permute.xlu0 %491
      %vm494 = vcmask 191616
      %495 = vst.msk [vmem:[%s131] sm:$0xf] %vm494, %v492
      %v496 = vld [vmem:[%s124] sm:$0xf]
      %v498 = vunpack.c.l.b16 %v496
      %v499 = vpack.c.b16 %v498, %v498
      %500 = vrot.lane.b32.xlu0 %v499, 104
      %v501 = vpop.permute.xlu0 %500
      %502 = vrot.lane.b32.xlu0 %v499, 72
      %v503 = vpop.permute.xlu0 %502
      %v505 = vsel %vm139, %v501, 0
      %v508 = vsel %vm139, %v503, 0
      %510 = vmatprep.subr.bf16.mxu0 0
      %511 = vmatpush1.bf16.xpose.msra.mxu0 %v508
      %512 = vmatprep.subr.bf16.mxu0 0
      %513 = vmatpush1.bf16.xpose.msra.mxu0 0
      %514 = vmatprep.subr.bf16.mxu0 0
      %515 = vmatpush1.bf16.xpose.msra.mxu0 0
      %516 = vmatprep.subr.bf16.mxu0 0
      %517 = vmatpush1.bf16.xpose.msra.mxu0 0
      %518 = vmatprep.subr.bf16.mxu0 0
      %519 = vmatpush1.bf16.xpose.msra.mxu0 0
      %520 = vmatprep.subr.bf16.mxu0 0
      %521 = vmatpush1.bf16.xpose.msra.mxu0 0
      %522 = vmatprep.subr.bf16.mxu0 0
      %523 = vmatpush1.bf16.xpose.msra.mxu0 0
      %524 = vmatprep.subr.bf16.mxu0 0
      %525 = vmatpush1.bf16.xpose.msra.mxu0 0
      %526 = vmatprep.subr.bf16.mxu0 0
      %527 = vmatpush1.bf16.xpose.msra.mxu0 0
      %528 = vmatprep.subr.bf16.mxu0 0
      %529 = vmatpush1.bf16.xpose.msra.mxu0 0
      %530 = vmatprep.subr.bf16.mxu0 0
      %531 = vmatpush1.bf16.xpose.msra.mxu0 0
      %532 = vmatprep.subr.bf16.mxu0 0
      %533 = vmatpush1.bf16.xpose.msra.mxu0 0
      %534 = vmatprep.subr.bf16.mxu0 0
      %535 = vmatpush1.bf16.xpose.msra.mxu0 0
      %536 = vmatprep.subr.bf16.mxu0 0
      %537 = vmatpush1.bf16.xpose.msra.mxu0 0
      %538 = vmatprep.subr.bf16.mxu0 0
      %539 = vmatpush1.bf16.xpose.msra.mxu0 0
      %540 = vmatprep.subr.bf16.mxu0 0
      %541 = vmatpush1.bf16.xpose.msra.mxu0 0
      %542 = vmatprep.mubr.bf16.mxu0 0
      %543 = vmatmul.mubr.bf16.gmra.mrb[0].mxu0 %v505
      %v544 = vpop.f32.mrb[0].mxu0
      %v545 = vadd.f32 0.0, %v544
      %v546 = vpop.f32.mrb[0].mxu0
      %v547 = vpop.f32.mrb[0].mxu0
      %v548 = vpop.f32.mrb[0].mxu0
      %549 = vdwg.mxu0
      %v550 = vsel %vm139, %v545, -inf
      %551 = vmax.xlane.f32.xlu0 %v550
      %v552 = vpop.xlane.xlu0 %551
      %v553 = vsub.f32 %v545, %v552
      %v554 = vmul.f32 %v553, 1.442695
      %v555 = vpow.pop %v554
      %v556 = vsel %vm139, %v555, 0.0
      %557 = vadd.xlane.f32.xlu0 %v556
      %v558 = vpop.xlane.xlu0 %557
      %v559 = vrcp.pop %v558
      %v560 = vmul.f32 %v555, %v559
      %v561 = vpack.c.bf16 %v560, %v560
      %562 = vrot.lane.b32.xlu0 %v499, 40
      %v563 = vpop.permute.xlu0 %562
      %v565 = vsel %vm139, %v561, 0
      %v568 = vsel %vm203, %v563, 0
      %570 = vmatprep.subr.bf16.mxu0 0
      %571 = vmatpush1.bf16.msra.mxu0 %v568
      %572 = vmatprep.subr.bf16.mxu0 0
      %573 = vmatpush1.bf16.msra.mxu0 0
      %574 = vmatprep.subr.bf16.mxu0 0
      %575 = vmatpush1.bf16.msra.mxu0 0
      %576 = vmatprep.subr.bf16.mxu0 0
      %577 = vmatpush1.bf16.msra.mxu0 0
      %578 = vmatprep.subr.bf16.mxu0 0
      %579 = vmatpush1.bf16.msra.mxu0 0
      %580 = vmatprep.subr.bf16.mxu0 0
      %581 = vmatpush1.bf16.msra.mxu0 0
      %582 = vmatprep.subr.bf16.mxu0 0
      %583 = vmatpush1.bf16.msra.mxu0 0
      %584 = vmatprep.subr.bf16.mxu0 0
      %585 = vmatpush1.bf16.msra.mxu0 0
      %586 = vmatprep.subr.bf16.mxu0 0
      %587 = vmatpush1.bf16.msra.mxu0 0
      %588 = vmatprep.subr.bf16.mxu0 0
      %589 = vmatpush1.bf16.msra.mxu0 0
      %590 = vmatprep.subr.bf16.mxu0 0
      %591 = vmatpush1.bf16.msra.mxu0 0
      %592 = vmatprep.subr.bf16.mxu0 0
      %593 = vmatpush1.bf16.msra.mxu0 0
      %594 = vmatprep.subr.bf16.mxu0 0
      %595 = vmatpush1.bf16.msra.mxu0 0
      %596 = vmatprep.subr.bf16.mxu0 0
      %597 = vmatpush1.bf16.msra.mxu0 0
      %598 = vmatprep.subr.bf16.mxu0 0
      %599 = vmatpush1.bf16.msra.mxu0 0
      %600 = vmatprep.subr.bf16.mxu0 0
      %601 = vmatpush1.bf16.msra.mxu0 0
      %602 = vmatprep.mubr.bf16.mxu0 0
      %603 = vmatmul.mubr.bf16.gmra.mrb[0].mxu0 %v565
      %v604 = vpop.f32.mrb[0].mxu0
      %v605 = vadd.f32 0.0, %v604
      %v606 = vpop.f32.mrb[0].mxu0
      %v607 = vpop.f32.mrb[0].mxu0
      %v608 = vpop.f32.mrb[0].mxu0
      %609 = vdwg.mxu0
      %v610 = vpack.c.bf16 %v605, %v605
      %v612 = vunpack.c.l.b16 %v610
      %v613 = vpack.c.b16 %v612, %v612
      %614 = vrot.lane.b32.xlu0 %v613, 24
      %v615 = vpop.permute.xlu0 %614
      %vm617 = vcmask 257216
      %618 = vst.msk [vmem:[%s131] sm:$0xf] %vm617, %v615
      %p619 = scmp.lt.s32.totalorder %s16, 1
      %s620 = scalar_select %p619, %s16, 1
      %p621 = scmp.lt.s32.totalorder %s17, 0
      %s622 = scalar_select %p621, %s17, 0
      %s623 = sadd.s32 %s622, %s620
      %s624 = smul.addr %s623, 4
      %s625 = scalar_lea.vmem %s1, %s624
      // Predicated region
      $region25: #{forward.48} parent=23 // pred_check
        %p626 = pneg %p70
      $region26: #{forward.48} parent=23 // pred_check_branch
        %628 = sbr.rel (%p626) target = $region28
      $region27: #{forward.48} parent=23 // pred_region
        _
      $region28: #{forward.48} parent=23 // pred_fallthru
        _
    $region24: #{forward.48} parent=5 // pred_fallthru
      _
    %p629 = scmp.le.s32.totalorder 2, %s7
    // Predicated region
    $region29: #{forward.48} parent=5 // pred_check
      %p630 = pneg %p629
    $region30: #{forward.48} parent=5 // pred_check_branch
      %632 = sbr.rel (%p630) target = $region32
    $region31: #{forward.48} parent=5 // pred_region
      %s633 = ssub.s32 %s7, 2
      // Predicated region
      $region33: #{forward.48} parent=31 // pred_check
        %p634 = pneg %p76
      $region34: #{forward.48} parent=31 // pred_check_branch
        %636 = sbr.rel (%p634) target = $region36
      $region35: #{forward.48} parent=31 // pred_region
        %p637 = scmp.lt.s32.totalorder %s18, 1
        %s638 = scalar_select %p637, %s18, 1
        %p639 = scmp.lt.s32.totalorder %s19, 0
        %s640 = scalar_select %p639, %s19, 0
        %s641 = sadd.s32 %s640, %s638
        %s642 = smul.addr %s641, 4
        %s643 = scalar_lea.vmem %s1, %s642
      $region36: #{forward.48} parent=31 // pred_fallthru
        _
    $region32: #{forward.48} parent=5 // pred_fallthru
      _
  $region6: #{forward.48} parent=0 // loop_footer
    %s11 = sadd.s32 1, %s7
  $region7: #{forward.48} parent=0 // loop_footer_branch
    %6 = sbr.rel target = $region3
  $region8: #{forward.48} parent=0 // loop_exit
    _

// kernel: forward.50
$region0: #{forward.50}
  #allocation0 [shape = 'u32[]', space=smem, size = 0x4, offset = 0x4, fixed_abs, tag = 'smem constant byte address 0x4 - core index']
  #allocation1 [shape = 'u32[144,128]{1,0:T(1,128)}', space=vmem, size = 0x12000, scoped, tag = 'internal scratch']
  %s0 = inlined_call_operand.vmem [shape: bf16[16,32], index: 0, kind: input, shape index: {}]
  %s1 = inlined_call_operand.vmem [shape: f32[1,32], index: 1, kind: input, shape index: {}]
  %s2 = inlined_call_operand.vmem [shape: f32[1,32], index: 2, kind: input, shape index: {}]
  %s3 = inlined_call_operand.vmem [shape: bf16[32,128], index: 3, kind: input, shape index: {}]
  %s4 = inlined_call_operand.vmem [shape: f32[1,128], index: 4, kind: input, shape index: {}]
  %s5 = inlined_call_operand.vmem [shape: bf16[16,128], index: 5, kind: output, shape index: {}]
  %s6 = sld [smem:[#allocation0]]
  $region30: #{forward.50} parent=0
    _
  %s8 = ssub.s32 1, %s6
  %s9 = scalar_select 0, %s8, %s6
  // Predicated region
  $region2: #{forward.50} parent=0 // pred_check
    _
  $region3: #{forward.50} parent=0 // pred_check_branch
    %11 = sbr.rel (0) target = $region5
  $region4: #{forward.50} parent=0 // pred_region
    _
  $region5: #{forward.50} parent=0 // pred_fallthru
    _
  // Predicated region
  $region6: #{forward.50} parent=0 // pred_check
    _
  $region7: #{forward.50} parent=0 // pred_check_branch
    %13 = sbr.rel (0) target = $region9
  $region8: #{forward.50} parent=0 // pred_region
    _
  $region9: #{forward.50} parent=0 // pred_fallthru
    _
  // Predicated region
  $region10: #{forward.50} parent=0 // pred_check
    _
  $region11: #{forward.50} parent=0 // pred_check_branch
    %15 = sbr.rel (0) target = $region13
  $region12: #{forward.50} parent=0 // pred_region
    _
  $region13: #{forward.50} parent=0 // pred_fallthru
    _
  // Predicated region
  $region14: #{forward.50} parent=0 // pred_check
    _
  $region15: #{forward.50} parent=0 // pred_check_branch
    %17 = sbr.rel (0) target = $region17
  $region16: #{forward.50} parent=0 // pred_region
    _
  $region17: #{forward.50} parent=0 // pred_fallthru
    _
  // Predicated region
  $region18: #{forward.50} parent=0 // pred_check
    _
  $region19: #{forward.50} parent=0 // pred_check_branch
    %19 = sbr.rel (0) target = $region21
  $region20: #{forward.50} parent=0 // pred_region
    _
  $region21: #{forward.50} parent=0 // pred_fallthru
    _
  %v21 = vld [vmem:[%s0] sm:$0xf]
  %v22 = vld [vmem:[%s0 + $0x4] sm:$0xf]
  %v23 = vunpack.c.l.bf16 %v21
  %v24 = vunpack.c.l.bf16 %v22
  %vm25 = vcmask 261120
  %v26 = vsel %vm25, %v23, 0.0
  %27 = vadd.xlane.f32.xlu0 %v26
  %v28 = vpop.xlane.xlu0 %27
  %v29 = vsel %vm25, %v24, 0.0
  %30 = vadd.xlane.f32.xlu0 %v29
  %v31 = vpop.xlane.xlu0 %30
  %v32 = vrcp.pop 32.0
  %v33 = vmul.f32 %v28, %v32
  %v34 = vmul.f32 %v31, %v32
  %v35 = vsub.f32 %v23, %v33
  %v36 = vsub.f32 %v24, %v34
  %v37 = vmul.f32 %v35, %v35
  %v38 = vmul.f32 %v36, %v36
  %v39 = vsel %vm25, %v37, 0.0
  %40 = vadd.xlane.f32.xlu0 %v39
  %v41 = vpop.xlane.xlu0 %40
  %v42 = vsel %vm25, %v38, 0.0
  %43 = vadd.xlane.f32.xlu0 %v42
  %v44 = vpop.xlane.xlu0 %43
  %v45 = vmul.f32 %v41, %v32
  %v46 = vmul.f32 %v44, %v32
  %v47 = vadd.f32 %v45, 1e-05
  %v48 = vadd.f32 %v46, 1e-05
  %v49 = vrsqrt.pop %v47
  %v50 = vrsqrt.pop %v48
  %v51 = vmul.f32 %v35, %v49
  %v52 = vmul.f32 %v36, %v50
  %v53 = vld [vmem:[%s1] sm:$0x1]
  %v55 = vlaneseq
  %v56 = vshrl.u32 %v55, 7
  %v57 = vsub.s32 0, %v56
  %v58 = vrot.slane %v53, %v57
  %v60 = vmul.f32 %v51, %v58
  %v61 = vmul.f32 %v52, %v58
  %v62 = vld [vmem:[%s2] sm:$0x1]
  %v64 = vlaneseq
  %v65 = vshrl.u32 %v64, 7
  %v66 = vsub.s32 0, %v65
  %v67 = vrot.slane %v62, %v66
  %v69 = vadd.f32 %v60, %v67
  %v70 = vadd.f32 %v61, %v67
  %v71 = vpack.c.bf16 %v70, %v69
  %v72 = vld [vmem:[%s3] sm:$0xf]
  %v73 = vld [vmem:[%s3 + $0x4] sm:$0xf]
  %v74 = vld [vmem:[%s3 + $0x8] sm:$0xf]
  %v75 = vld [vmem:[%s3 + $0xc] sm:$0xf]
  %v76 = vld [vmem:[%s4] sm:$0x1]
  %v78 = vlaneseq
  %v79 = vshrl.u32 %v78, 7
  %v80 = vsub.s32 0, %v79
  %v81 = vrot.slane %v76, %v80
  %v87 = vunpack.c.l.b16 %v72
  %v88 = vunpack.c.l.b16 %v73
  %v89 = vunpack.c.l.b16 %v74
  %v90 = vunpack.c.l.b16 %v75
  %v91 = vpack.c.b16 %v88, %v87
  %v92 = vpack.c.b16 %v90, %v89
  %v96 = vsel %vm25, %v71, 0
  %98 = vmatprep.subr.bf16.mxu0 0
  %99 = vmatpush1.bf16.msra.mxu0 %v91
  %100 = vmatprep.subr.bf16.mxu0 0
  %101 = vmatpush1.bf16.msra.mxu0 %v92
  %102 = vmatprep.subr.bf16.mxu0 0
  %103 = vmatpush1.bf16.msra.mxu0 0
  %104 = vmatprep.subr.bf16.mxu0 0
  %105 = vmatpush1.bf16.msra.mxu0 0
  %106 = vmatprep.subr.bf16.mxu0 0
  %107 = vmatpush1.bf16.msra.mxu0 0
  %108 = vmatprep.subr.bf16.mxu0 0
  %109 = vmatpush1.bf16.msra.mxu0 0
  %110 = vmatprep.subr.bf16.mxu0 0
  %111 = vmatpush1.bf16.msra.mxu0 0
  %112 = vmatprep.subr.bf16.mxu0 0
  %113 = vmatpush1.bf16.msra.mxu0 0
  %114 = vmatprep.subr.bf16.mxu0 0
  %115 = vmatpush1.bf16.msra.mxu0 0
  %116 = vmatprep.subr.bf16.mxu0 0
  %117 = vmatpush1.bf16.msra.mxu0 0
  %118 = vmatprep.subr.bf16.mxu0 0
  %119 = vmatpush1.bf16.msra.mxu0 0
  %120 = vmatprep.subr.bf16.mxu0 0
  %121 = vmatpush1.bf16.msra.mxu0 0
  %122 = vmatprep.subr.bf16.mxu0 0
  %123 = vmatpush1.bf16.msra.mxu0 0
  %124 = vmatprep.subr.bf16.mxu0 0
  %125 = vmatpush1.bf16.msra.mxu0 0
  %126 = vmatprep.subr.bf16.mxu0 0
  %127 = vmatpush1.bf16.msra.mxu0 0
  %128 = vmatprep.subr.bf16.mxu0 0
  %129 = vmatpush1.bf16.msra.mxu0 0
  %130 = vmatprep.mubr.bf16.mxu0 0
  %131 = vmatmul.mubr.bf16.gmra.mrb[0].mxu0 %v96
  %v132 = vpop.f32.mrb[0].mxu0
  %v133 = vadd.f32 %v81, %v132
  %v134 = vpop.f32.mrb[0].mxu0
  %v135 = vpop.f32.mrb[0].mxu0
  %v136 = vadd.f32 %v81, %v135
  %v137 = vpop.f32.mrb[0].mxu0
  %138 = vdwg.mxu0
  %v139 = vmul.f32 %v133, %v133
  %v140 = vmul.f32 %v136, %v136
  %v141 = vmul.f32 %v133, %v139
  %v142 = vmul.f32 %v136, %v140
  %v143 = vmul.f32 %v141, 0.044715
  %v144 = vmul.f32 %v142, 0.044715
  %v145 = vadd.f32 %v133, %v143
  %v146 = vadd.f32 %v136, %v144
  %v147 = vmul.f32 %v145, 0.7978846
  %v148 = vmul.f32 %v146, 0.7978846
  %v149 = vtanh.pop %v147
  %v150 = vtanh.pop %v148
  %v151 = vadd.f32 %v149, 1.0
  %v152 = vadd.f32 %v150, 1.0
  %v153 = vmul.f32 %v151, 0.5
  %v154 = vmul.f32 %v152, 0.5
  %v155 = vmul.f32 %v133, %v153
  %v156 = vmul.f32 %v136, %v154
  %v157 = vpack.c.bf16 %v156, %v155
  %v159 = vunpack.c.l.b16 %v157
  %v160 = vunpack.c.h.b16 %v157
  %v161 = vpack.c.b16 %v159, %v159
  %v162 = vpack.c.b16 %v160, %v160
  %165 = vst [vmem:[%s5] sm:$0xf] %v161
  %166 = vst [vmem:[%s5 + $0x4] sm:$0xf] %v162
  // Predicated region
  $region22: #{forward.50} parent=0 // pred_check
    _
  $region23: #{forward.50} parent=0 // pred_check_branch
    %168 = sbr.rel (0) target = $region25
  $region24: #{forward.50} parent=0 // pred_region
    _
  $region25: #{forward.50} parent=0 // pred_fallthru
    _
  // Predicated region
  $region26: #{forward.50} parent=0 // pred_check
    _
  $region27: #{forward.50} parent=0 // pred_check_branch
    %170 = sbr.rel (0) target = $region29
  $region28: #{forward.50} parent=0 // pred_region
    _
  $region29: #{forward.50} parent=0 // pred_fallthru
    _

// kernel: forward.51
$region0: #{forward.51}
  #allocation0 [shape = 'u32[]', space=smem, size = 0x4, offset = 0x4, fixed_abs, tag = 'smem constant byte address 0x4 - core index']
  #allocation1 [shape = 'u32[144,128]{1,0:T(1,128)}', space=vmem, size = 0x12000, scoped, tag = 'internal scratch']
  %s0 = inlined_call_operand.vmem [shape: bf16[16,128], index: 0, kind: input, shape index: {}]
  %s1 = inlined_call_operand.vmem [shape: bf16[128,128], index: 1, kind: input, shape index: {}]
  %s2 = inlined_call_operand.vmem [shape: f32[1,128], index: 2, kind: input, shape index: {}]
  %s3 = inlined_call_operand.vmem [shape: bf16[16,128], index: 3, kind: input, shape index: {}]
  %s4 = inlined_call_operand.vmem [shape: bf16[16,128], index: 4, kind: output, shape index: {}]
  %s5 = sld [smem:[#allocation0]]
  $region26: #{forward.51} parent=0
    _
  %s7 = ssub.s32 1, %s5
  %s8 = scalar_select 0, %s7, %s5
  // Predicated region
  $region2: #{forward.51} parent=0 // pred_check
    _
  $region3: #{forward.51} parent=0 // pred_check_branch
    %10 = sbr.rel (0) target = $region5
  $region4: #{forward.51} parent=0 // pred_region
    _
  $region5: #{forward.51} parent=0 // pred_fallthru
    _
  // Predicated region
  $region6: #{forward.51} parent=0 // pred_check
    _
  $region7: #{forward.51} parent=0 // pred_check_branch
    %12 = sbr.rel (0) target = $region9
  $region8: #{forward.51} parent=0 // pred_region
    _
  $region9: #{forward.51} parent=0 // pred_fallthru
    _
  // Predicated region
  $region10: #{forward.51} parent=0 // pred_check
    _
  $region11: #{forward.51} parent=0 // pred_check_branch
    %14 = sbr.rel (0) target = $region13
  $region12: #{forward.51} parent=0 // pred_region
    _
  $region13: #{forward.51} parent=0 // pred_fallthru
    _
  // Predicated region
  $region14: #{forward.51} parent=0 // pred_check
    _
  $region15: #{forward.51} parent=0 // pred_check_branch
    %16 = sbr.rel (0) target = $region17
  $region16: #{forward.51} parent=0 // pred_region
    _
  $region17: #{forward.51} parent=0 // pred_fallthru
    _
  %v18 = vld [vmem:[%s0] sm:$0xf]
  %v19 = vld [vmem:[%s0 + $0x4] sm:$0xf]
  %v20 = vld [vmem:[%s1] sm:$0xf]
  %v21 = vld [vmem:[%s1 + $0x4] sm:$0xf]
  %v22 = vld [vmem:[%s1 + $0x8] sm:$0xf]
  %v23 = vld [vmem:[%s1 + $0xc] sm:$0xf]
  %v24 = vld [vmem:[%s1 + $0x10] sm:$0xf]
  %v25 = vld [vmem:[%s1 + $0x14] sm:$0xf]
  %v26 = vld [vmem:[%s1 + $0x18] sm:$0xf]
  %v27 = vld [vmem:[%s1 + $0x1c] sm:$0xf]
  %v28 = vld [vmem:[%s1 + $0x20] sm:$0xf]
  %v29 = vld [vmem:[%s1 + $0x24] sm:$0xf]
  %v30 = vld [vmem:[%s1 + $0x28] sm:$0xf]
  %v31 = vld [vmem:[%s1 + $0x2c] sm:$0xf]
  %v32 = vld [vmem:[%s1 + $0x30] sm:$0xf]
  %v33 = vld [vmem:[%s1 + $0x34] sm:$0xf]
  %v34 = vld [vmem:[%s1 + $0x38] sm:$0xf]
  %v35 = vld [vmem:[%s1 + $0x3c] sm:$0xf]
  %v36 = vld [vmem:[%s2] sm:$0x1]
  %v38 = vlaneseq
  %v39 = vshrl.u32 %v38, 7
  %v40 = vsub.s32 0, %v39
  %v41 = vrot.slane %v36, %v40
  %v45 = vunpack.c.l.b16 %v18
  %v46 = vunpack.c.l.b16 %v19
  %v47 = vpack.c.b16 %v46, %v45
  %v65 = vunpack.c.l.b16 %v20
  %v66 = vunpack.c.l.b16 %v21
  %v67 = vunpack.c.l.b16 %v22
  %v68 = vunpack.c.l.b16 %v23
  %v69 = vunpack.c.l.b16 %v24
  %v70 = vunpack.c.l.b16 %v25
  %v71 = vunpack.c.l.b16 %v26
  %v72 = vunpack.c.l.b16 %v27
  %v73 = vunpack.c.l.b16 %v28
  %v74 = vunpack.c.l.b16 %v29
  %v75 = vunpack.c.l.b16 %v30
  %v76 = vunpack.c.l.b16 %v31
  %v77 = vunpack.c.l.b16 %v32
  %v78 = vunpack.c.l.b16 %v33
  %v79 = vunpack.c.l.b16 %v34
  %v80 = vunpack.c.l.b16 %v35
  %v81 = vpack.c.b16 %v66, %v65
  %v82 = vpack.c.b16 %v68, %v67
  %v83 = vpack.c.b16 %v70, %v69
  %v84 = vpack.c.b16 %v72, %v71
  %v85 = vpack.c.b16 %v74, %v73
  %v86 = vpack.c.b16 %v76, %v75
  %v87 = vpack.c.b16 %v78, %v77
  %v88 = vpack.c.b16 %v80, %v79
  %97 = vmatprep.subr.bf16.mxu0 0
  %98 = vmatpush1.bf16.msra.mxu0 %v81
  %99 = vmatprep.subr.bf16.mxu0 0
  %100 = vmatpush1.bf16.msra.mxu0 %v82
  %101 = vmatprep.subr.bf16.mxu0 0
  %102 = vmatpush1.bf16.msra.mxu0 %v83
  %103 = vmatprep.subr.bf16.mxu0 0
  %104 = vmatpush1.bf16.msra.mxu0 %v84
  %105 = vmatprep.subr.bf16.mxu0 0
  %106 = vmatpush1.bf16.msra.mxu0 %v85
  %107 = vmatprep.subr.bf16.mxu0 0
  %108 = vmatpush1.bf16.msra.mxu0 %v86
  %109 = vmatprep.subr.bf16.mxu0 0
  %110 = vmatpush1.bf16.msra.mxu0 %v87
  %111 = vmatprep.subr.bf16.mxu0 0
  %112 = vmatpush1.bf16.msra.mxu0 %v88
  %113 = vmatprep.subr.bf16.mxu0 0
  %114 = vmatpush1.bf16.msra.mxu0 0
  %115 = vmatprep.subr.bf16.mxu0 0
  %116 = vmatpush1.bf16.msra.mxu0 0
  %117 = vmatprep.subr.bf16.mxu0 0
  %118 = vmatpush1.bf16.msra.mxu0 0
  %119 = vmatprep.subr.bf16.mxu0 0
  %120 = vmatpush1.bf16.msra.mxu0 0
  %121 = vmatprep.subr.bf16.mxu0 0
  %122 = vmatpush1.bf16.msra.mxu0 0
  %123 = vmatprep.subr.bf16.mxu0 0
  %124 = vmatpush1.bf16.msra.mxu0 0
  %125 = vmatprep.subr.bf16.mxu0 0
  %126 = vmatpush1.bf16.msra.mxu0 0
  %127 = vmatprep.subr.bf16.mxu0 0
  %128 = vmatpush1.bf16.msra.mxu0 0
  %129 = vmatprep.mubr.bf16.mxu0 0
  %130 = vmatmul.mubr.bf16.gmra.mrb[0].mxu0 %v47
  %v131 = vpop.f32.mrb[0].mxu0
  %v132 = vadd.f32 %v41, %v131
  %v133 = vpop.f32.mrb[0].mxu0
  %v134 = vpop.f32.mrb[0].mxu0
  %v135 = vadd.f32 %v41, %v134
  %v136 = vpop.f32.mrb[0].mxu0
  %137 = vdwg.mxu0
  %v138 = vld [vmem:[%s3] sm:$0xf]
  %v139 = vld [vmem:[%s3 + $0x4] sm:$0xf]
  %v140 = vunpack.c.l.bf16 %v138
  %v141 = vunpack.c.l.bf16 %v139
  %v142 = vadd.f32 %v132, %v140
  %v143 = vadd.f32 %v135, %v141
  %v144 = vpack.c.bf16 %v143, %v142
  %v146 = vunpack.c.l.b16 %v144
  %v147 = vunpack.c.h.b16 %v144
  %v148 = vpack.c.b16 %v146, %v146
  %v149 = vpack.c.b16 %v147, %v147
  %152 = vst [vmem:[%s4] sm:$0xf] %v148
  %153 = vst [vmem:[%s4 + $0x4] sm:$0xf] %v149
  // Predicated region
  $region18: #{forward.51} parent=0 // pred_check
    _
  $region19: #{forward.51} parent=0 // pred_check_branch
    %155 = sbr.rel (0) target = $region21
  $region20: #{forward.51} parent=0 // pred_region
    _
  $region21: #{forward.51} parent=0 // pred_fallthru
    _
  // Predicated region
  $region22: #{forward.51} parent=0 // pred_check
    _
  $region23: #{forward.51} parent=0 // pred_check_branch
    %157 = sbr.rel (0) target = $region25
  $region24: #{forward.51} parent=0 // pred_region
    _
  $region25: #{forward.51} parent=0 // pred_fallthru
    _

// kernel: forward.49
$region0: #{forward.49}
  #allocation0 [shape = 'u32[]', space=smem, size = 0x4, offset = 0x4, fixed_abs, tag = 'smem constant byte address 0x4 - core index']
  #allocation1 [shape = 'u32[144,128]{1,0:T(1,128)}', space=vmem, size = 0x12000, scoped, tag = 'internal scratch']
  %s0 = inlined_call_operand.vmem [shape: bf16[16,32], index: 0, kind: input, shape index: {}]
  %s1 = inlined_call_operand.vmem [shape: bf16[32,128], index: 1, kind: input, shape index: {}]
  %s2 = inlined_call_operand.vmem [shape: f32[1,128], index: 2, kind: input, shape index: {}]
  %s3 = inlined_call_operand.vmem [shape: bf16[16,128], index: 3, kind: input, shape index: {}]
  %s4 = inlined_call_operand.vmem [shape: bf16[16,128], index: 4, kind: output, shape index: {}]
  %s5 = sld [smem:[#allocation0]]
  $region26: #{forward.49} parent=0
    _
  %s7 = ssub.s32 1, %s5
  %s8 = scalar_select 0, %s7, %s5
  // Predicated region
  $region2: #{forward.49} parent=0 // pred_check
    _
  $region3: #{forward.49} parent=0 // pred_check_branch
    %10 = sbr.rel (0) target = $region5
  $region4: #{forward.49} parent=0 // pred_region
    _
  $region5: #{forward.49} parent=0 // pred_fallthru
    _
  // Predicated region
  $region6: #{forward.49} parent=0 // pred_check
    _
  $region7: #{forward.49} parent=0 // pred_check_branch
    %12 = sbr.rel (0) target = $region9
  $region8: #{forward.49} parent=0 // pred_region
    _
  $region9: #{forward.49} parent=0 // pred_fallthru
    _
  // Predicated region
  $region10: #{forward.49} parent=0 // pred_check
    _
  $region11: #{forward.49} parent=0 // pred_check_branch
    %14 = sbr.rel (0) target = $region13
  $region12: #{forward.49} parent=0 // pred_region
    _
  $region13: #{forward.49} parent=0 // pred_fallthru
    _
  // Predicated region
  $region14: #{forward.49} parent=0 // pred_check
    _
  $region15: #{forward.49} parent=0 // pred_check_branch
    %16 = sbr.rel (0) target = $region17
  $region16: #{forward.49} parent=0 // pred_region
    _
  $region17: #{forward.49} parent=0 // pred_fallthru
    _
  %v18 = vld [vmem:[%s0] sm:$0xf]
  %v19 = vld [vmem:[%s0 + $0x4] sm:$0xf]
  %v20 = vld [vmem:[%s1] sm:$0xf]
  %v21 = vld [vmem:[%s1 + $0x4] sm:$0xf]
  %v22 = vld [vmem:[%s1 + $0x8] sm:$0xf]
  %v23 = vld [vmem:[%s1 + $0xc] sm:$0xf]
  %v24 = vld [vmem:[%s2] sm:$0x1]
  %v26 = vlaneseq
  %v27 = vshrl.u32 %v26, 7
  %v28 = vsub.s32 0, %v27
  %v29 = vrot.slane %v24, %v28
  %v33 = vunpack.c.l.b16 %v18
  %v34 = vunpack.c.l.b16 %v19
  %v35 = vpack.c.b16 %v34, %v33
  %v40 = vunpack.c.l.b16 %v20
  %v41 = vunpack.c.l.b16 %v21
  %v42 = vunpack.c.l.b16 %v22
  %v43 = vunpack.c.l.b16 %v23
  %v44 = vpack.c.b16 %v41, %v40
  %v45 = vpack.c.b16 %v43, %v42
  %vm48 = vcmask 261120
  %v50 = vsel %vm48, %v35, 0
  %52 = vmatprep.subr.bf16.mxu0 0
  %53 = vmatpush1.bf16.msra.mxu0 %v44
  %54 = vmatprep.subr.bf16.mxu0 0
  %55 = vmatpush1.bf16.msra.mxu0 %v45
  %56 = vmatprep.subr.bf16.mxu0 0
  %57 = vmatpush1.bf16.msra.mxu0 0
  %58 = vmatprep.subr.bf16.mxu0 0
  %59 = vmatpush1.bf16.msra.mxu0 0
  %60 = vmatprep.subr.bf16.mxu0 0
  %61 = vmatpush1.bf16.msra.mxu0 0
  %62 = vmatprep.subr.bf16.mxu0 0
  %63 = vmatpush1.bf16.msra.mxu0 0
  %64 = vmatprep.subr.bf16.mxu0 0
  %65 = vmatpush1.bf16.msra.mxu0 0
  %66 = vmatprep.subr.bf16.mxu0 0
  %67 = vmatpush1.bf16.msra.mxu0 0
  %68 = vmatprep.subr.bf16.mxu0 0
  %69 = vmatpush1.bf16.msra.mxu0 0
  %70 = vmatprep.subr.bf16.mxu0 0
  %71 = vmatpush1.bf16.msra.mxu0 0
  %72 = vmatprep.subr.bf16.mxu0 0
  %73 = vmatpush1.bf16.msra.mxu0 0
  %74 = vmatprep.subr.bf16.mxu0 0
  %75 = vmatpush1.bf16.msra.mxu0 0
  %76 = vmatprep.subr.bf16.mxu0 0
  %77 = vmatpush1.bf16.msra.mxu0 0
  %78 = vmatprep.subr.bf16.mxu0 0
  %79 = vmatpush1.bf16.msra.mxu0 0
  %80 = vmatprep.subr.bf16.mxu0 0
  %81 = vmatpush1.bf16.msra.mxu0 0
  %82 = vmatprep.subr.bf16.mxu0 0
  %83 = vmatpush1.bf16.msra.mxu0 0
  %84 = vmatprep.mubr.bf16.mxu0 0
  %85 = vmatmul.mubr.bf16.gmra.mrb[0].mxu0 %v50
  %v86 = vpop.f32.mrb[0].mxu0
  %v87 = vadd.f32 %v29, %v86
  %v88 = vpop.f32.mrb[0].mxu0
  %v89 = vpop.f32.mrb[0].mxu0
  %v90 = vadd.f32 %v29, %v89
  %v91 = vpop.f32.mrb[0].mxu0
  %92 = vdwg.mxu0
  %v93 = vld [vmem:[%s3] sm:$0xf]
  %v94 = vld [vmem:[%s3 + $0x4] sm:$0xf]
  %v95 = vunpack.c.l.bf16 %v93
  %v96 = vunpack.c.l.bf16 %v94
  %v97 = vadd.f32 %v87, %v95
  %v98 = vadd.f32 %v90, %v96
  %v99 = vpack.c.bf16 %v98, %v97
  %v101 = vunpack.c.l.b16 %v99
  %v102 = vunpack.c.h.b16 %v99
  %v103 = vpack.c.b16 %v101, %v101
  %v104 = vpack.c.b16 %v102, %v102
  %107 = vst [vmem:[%s4] sm:$0xf] %v103
  %108 = vst [vmem:[%s4 + $0x4] sm:$0xf] %v104
  // Predicated region
  $region18: #{forward.49} parent=0 // pred_check
    _
  $region19: #{forward.49} parent=0 // pred_check_branch
    %110 = sbr.rel (0) target = $region21
  $region20: #{forward.49} parent=0 // pred_region
    _
  $region21: #{forward.49} parent=0 // pred_fallthru
    _
  // Predicated region
  $region22: #{forward.49} parent=0 // pred_check
    _
  $region23: #{forward.49} parent=0 // pred_check_branch
    %112 = sbr.rel (0) target = $region25
  $region24: #{forward.49} parent=0 // pred_region
    _
  $region25: #{forward.49} parent=0 // pred_fallthru
    _

// kernel: forward.57
$region0: #{forward.57}
  #allocation0 [shape = 'u32[]', space=smem, size = 0x4, offset = 0x4, fixed_abs, tag = 'smem constant byte address 0x4 - core index']
  #allocation1 [shape = 'u32[144,128]{1,0:T(1,128)}', space=vmem, size = 0x12000, scoped, tag = 'internal scratch']
  %s0 = inlined_call_operand.vmem [shape: bf16[16,32], index: 0, kind: input, shape index: {}]
  %s1 = inlined_call_operand.vmem [shape: f32[1,32], index: 1, kind: input, shape index: {}]
  %s2 = inlined_call_operand.vmem [shape: f32[1,32], index: 2, kind: input, shape index: {}]
  %s3 = inlined_call_operand.vmem [shape: bf16[32,384], index: 3, kind: input, shape index: {}]
  %s4 = inlined_call_operand.vmem [shape: f32[1,384], index: 4, kind: input, shape index: {}]
  %s5 = inlined_call_operand.vmem [shape: f32[16,384], index: 5, kind: output, shape index: {}]
  %s6 = sld [smem:[#allocation0]]
  $region30: #{forward.57} parent=0
    _
  %s8 = ssub.s32 1, %s6
  %s9 = scalar_select 0, %s8, %s6
  // Predicated region
  $region2: #{forward.57} parent=0 // pred_check
    _
  $region3: #{forward.57} parent=0 // pred_check_branch
    %11 = sbr.rel (0) target = $region5
  $region4: #{forward.57} parent=0 // pred_region
    _
  $region5: #{forward.57} parent=0 // pred_fallthru
    _
  // Predicated region
  $region6: #{forward.57} parent=0 // pred_check
    _
  $region7: #{forward.57} parent=0 // pred_check_branch
    %13 = sbr.rel (0) target = $region9
  $region8: #{forward.57} parent=0 // pred_region
    _
  $region9: #{forward.57} parent=0 // pred_fallthru
    _
  // Predicated region
  $region10: #{forward.57} parent=0 // pred_check
    _
  $region11: #{forward.57} parent=0 // pred_check_branch
    %15 = sbr.rel (0) target = $region13
  $region12: #{forward.57} parent=0 // pred_region
    _
  $region13: #{forward.57} parent=0 // pred_fallthru
    _
  // Predicated region
  $region14: #{forward.57} parent=0 // pred_check
    _
  $region15: #{forward.57} parent=0 // pred_check_branch
    %17 = sbr.rel (0) target = $region17
  $region16: #{forward.57} parent=0 // pred_region
    _
  $region17: #{forward.57} parent=0 // pred_fallthru
    _
  // Predicated region
  $region18: #{forward.57} parent=0 // pred_check
    _
  $region19: #{forward.57} parent=0 // pred_check_branch
    %19 = sbr.rel (0) target = $region21
  $region20: #{forward.57} parent=0 // pred_region
    _
  $region21: #{forward.57} parent=0 // pred_fallthru
    _
  %v21 = vld [vmem:[%s0] sm:$0xf]
  %v22 = vld [vmem:[%s0 + $0x4] sm:$0xf]
  %v23 = vunpack.c.l.bf16 %v21
  %v24 = vunpack.c.l.bf16 %v22
  %vm25 = vcmask 261120
  %v26 = vsel %vm25, %v23, 0.0
  %27 = vadd.xlane.f32.xlu0 %v26
  %v28 = vpop.xlane.xlu0 %27
  %v29 = vsel %vm25, %v24, 0.0
  %30 = vadd.xlane.f32.xlu0 %v29
  %v31 = vpop.xlane.xlu0 %30
  %v32 = vrcp.pop 32.0
  %v33 = vmul.f32 %v28, %v32
  %v34 = vmul.f32 %v31, %v32
  %v35 = vsub.f32 %v23, %v33
  %v36 = vsub.f32 %v24, %v34
  %v37 = vmul.f32 %v35, %v35
  %v38 = vmul.f32 %v36, %v36
  %v39 = vsel %vm25, %v37, 0.0
  %40 = vadd.xlane.f32.xlu0 %v39
  %v41 = vpop.xlane.xlu0 %40
  %v42 = vsel %vm25, %v38, 0.0
  %43 = vadd.xlane.f32.xlu0 %v42
  %v44 = vpop.xlane.xlu0 %43
  %v45 = vmul.f32 %v41, %v32
  %v46 = vmul.f32 %v44, %v32
  %v47 = vadd.f32 %v45, 1e-05
  %v48 = vadd.f32 %v46, 1e-05
  %v49 = vrsqrt.pop %v47
  %v50 = vrsqrt.pop %v48
  %v51 = vmul.f32 %v35, %v49
  %v52 = vmul.f32 %v36, %v50
  %v53 = vld [vmem:[%s1] sm:$0x1]
  %v55 = vlaneseq
  %v56 = vshrl.u32 %v55, 7
  %v57 = vsub.s32 0, %v56
  %v58 = vrot.slane %v53, %v57
  %v60 = vmul.f32 %v51, %v58
  %v61 = vmul.f32 %v52, %v58
  %v62 = vld [vmem:[%s2] sm:$0x1]
  %v64 = vlaneseq
  %v65 = vshrl.u32 %v64, 7
  %v66 = vsub.s32 0, %v65
  %v67 = vrot.slane %v62, %v66
  %v69 = vadd.f32 %v60, %v67
  %v70 = vadd.f32 %v61, %v67
  %v71 = vpack.c.bf16 %v70, %v69
  %v72 = vld [vmem:[%s3] sm:$0xff]
  %v73 = vld [vmem:[%s3 + $0x8] sm:$0xf]
  %v74 = vld [vmem:[%s3 + $0xc] sm:$0xff]
  %v75 = vld [vmem:[%s3 + $0x14] sm:$0xf]
  %v76 = vld [vmem:[%s3 + $0x18] sm:$0xff]
  %v77 = vld [vmem:[%s3 + $0x20] sm:$0xf]
  %v78 = vld [vmem:[%s3 + $0x24] sm:$0xff]
  %v79 = vld [vmem:[%s3 + $0x2c] sm:$0xf]
  %v80 = vld [vmem:[%s4] sm:$0x7]
  %v82 = vlaneseq
  %v83 = vshrl.u32 %v82, 7
  %v84 = vsub.s32 0, %v83
  %v85 = vrot.slane %v80, %v84
  %v86 = vlaneseq
  %v87 = vshrl.u32 %v86, 7
  %v88 = vsub.s32 1, %v87
  %v89 = vrot.slane %v80, %v88
  %v90 = vlaneseq
  %v91 = vshrl.u32 %v90, 7
  %v92 = vsub.s32 2, %v91
  %v93 = vrot.slane %v80, %v92
  %v105 = vunpack.c.l.b16 %v72
  %v106 = vunpack.c.h.b16 %v72
  %v107 = vunpack.c.l.b16 %v73
  %v108 = vunpack.c.l.b16 %v74
  %v109 = vunpack.c.h.b16 %v74
  %v110 = vunpack.c.l.b16 %v75
  %v111 = vunpack.c.l.b16 %v76
  %v112 = vunpack.c.h.b16 %v76
  %v113 = vunpack.c.l.b16 %v77
  %v114 = vunpack.c.l.b16 %v78
  %v115 = vunpack.c.h.b16 %v78
  %v116 = vunpack.c.l.b16 %v79
  %v117 = vpack.c.b16 %v108, %v105
  %v118 = vpack.c.b16 %v109, %v106
  %v119 = vpack.c.b16 %v110, %v107
  %v120 = vpack.c.b16 %v114, %v111
  %v121 = vpack.c.b16 %v115, %v112
  %v122 = vpack.c.b16 %v116, %v113
  %v130 = vsel %vm25, %v71, 0
  %132 = vmatprep.subr.bf16.mxu0 %v118
  %133 = vmatpush1.bf16.msra.mxu0 %v117
  %134 = vmatprep.subr.bf16.mxu0 %v121
  %135 = vmatpush1.bf16.msra.mxu0 %v120
  %136 = vmatprep.subr.bf16.mxu0 0
  %137 = vmatpush1.bf16.msra.mxu0 0
  %138 = vmatprep.subr.bf16.mxu0 0
  %139 = vmatpush1.bf16.msra.mxu0 0
  %140 = vmatprep.subr.bf16.mxu0 0
  %141 = vmatpush1.bf16.msra.mxu0 0
  %142 = vmatprep.subr.bf16.mxu0 0
  %143 = vmatpush1.bf16.msra.mxu0 0
  %144 = vmatprep.subr.bf16.mxu0 0
  %145 = vmatpush1.bf16.msra.mxu0 0
  %146 = vmatprep.subr.bf16.mxu0 0
  %147 = vmatpush1.bf16.msra.mxu0 0
  %148 = vmatprep.subr.bf16.mxu0 0
  %149 = vmatpush1.bf16.msra.mxu0 0
  %150 = vmatprep.subr.bf16.mxu0 0
  %151 = vmatpush1.bf16.msra.mxu0 0
  %152 = vmatprep.subr.bf16.mxu0 0
  %153 = vmatpush1.bf16.msra.mxu0 0
  %154 = vmatprep.subr.bf16.mxu0 0
  %155 = vmatpush1.bf16.msra.mxu0 0
  %156 = vmatprep.subr.bf16.mxu0 0
  %157 = vmatpush1.bf16.msra.mxu0 0
  %158 = vmatprep.subr.bf16.mxu0 0
  %159 = vmatpush1.bf16.msra.mxu0 0
  %160 = vmatprep.subr.bf16.mxu0 0
  %161 = vmatpush1.bf16.msra.mxu0 0
  %162 = vmatprep.subr.bf16.mxu0 0
  %163 = vmatpush1.bf16.msra.mxu0 0
  %164 = vmatprep.mubr.bf16.mxu0 0
  %165 = vmatmul.mubr.bf16.gmra.mrb[0].mxu0 %v130
  %v166 = vpop.f32.mrb[0].mxu0
  %v167 = vadd.f32 %v85, %v166
  %v168 = vpop.f32.mrb[0].mxu0
  %v169 = vadd.f32 %v89, %v168
  %v170 = vpop.f32.mrb[0].mxu0
  %v171 = vadd.f32 %v85, %v170
  %v172 = vpop.f32.mrb[0].mxu0
  %v173 = vadd.f32 %v89, %v172
  %174 = vdwg.mxu0
  %175 = vmatprep.subr.bf16.mxu0 0
  %176 = vmatpush1.bf16.msra.mxu0 %v119
  %177 = vmatprep.subr.bf16.mxu0 0
  %178 = vmatpush1.bf16.msra.mxu0 %v122
  %179 = vmatprep.subr.bf16.mxu0 0
  %180 = vmatpush1.bf16.msra.mxu0 0
  %181 = vmatprep.subr.bf16.mxu0 0
  %182 = vmatpush1.bf16.msra.mxu0 0
  %183 = vmatprep.subr.bf16.mxu0 0
  %184 = vmatpush1.bf16.msra.mxu0 0
  %185 = vmatprep.subr.bf16.mxu0 0
  %186 = vmatpush1.bf16.msra.mxu0 0
  %187 = vmatprep.subr.bf16.mxu0 0
  %188 = vmatpush1.bf16.msra.mxu0 0
  %189 = vmatprep.subr.bf16.mxu0 0
  %190 = vmatpush1.bf16.msra.mxu0 0
  %191 = vmatprep.subr.bf16.mxu0 0
  %192 = vmatpush1.bf16.msra.mxu0 0
  %193 = vmatprep.subr.bf16.mxu0 0
  %194 = vmatpush1.bf16.msra.mxu0 0
  %195 = vmatprep.subr.bf16.mxu0 0
  %196 = vmatpush1.bf16.msra.mxu0 0
  %197 = vmatprep.subr.bf16.mxu0 0
  %198 = vmatpush1.bf16.msra.mxu0 0
  %199 = vmatprep.subr.bf16.mxu0 0
  %200 = vmatpush1.bf16.msra.mxu0 0
  %201 = vmatprep.subr.bf16.mxu0 0
  %202 = vmatpush1.bf16.msra.mxu0 0
  %203 = vmatprep.subr.bf16.mxu0 0
  %204 = vmatpush1.bf16.msra.mxu0 0
  %205 = vmatprep.subr.bf16.mxu0 0
  %206 = vmatpush1.bf16.msra.mxu0 0
  %207 = vmatprep.mubr.bf16.mxu0 0
  %208 = vmatmul.mubr.bf16.gmra.mrb[0].mxu0 %v130
  %v209 = vpop.f32.mrb[0].mxu0
  %v210 = vadd.f32 %v93, %v209
  %v211 = vpop.f32.mrb[0].mxu0
  %v212 = vpop.f32.mrb[0].mxu0
  %v213 = vadd.f32 %v93, %v212
  %v214 = vpop.f32.mrb[0].mxu0
  %215 = vdwg.mxu0
  %216 = vst [vmem:[%s5] sm:$0xff] %v167
  %217 = vst [vmem:[%s5 + $0x8] sm:$0xff] %v169
  %218 = vst [vmem:[%s5 + $0x10] sm:$0xff] %v210
  %219 = vst [vmem:[%s5 + $0x18] sm:$0xff] %v171
  %220 = vst [vmem:[%s5 + $0x20] sm:$0xff] %v173
  %221 = vst [vmem:[%s5 + $0x28] sm:$0xff] %v213
  // Predicated region
  $region22: #{forward.57} parent=0 // pred_check
    _
  $region23: #{forward.57} parent=0 // pred_check_branch
    %223 = sbr.rel (0) target = $region25
  $region24: #{forward.57} parent=0 // pred_region
    _
  $region25: #{forward.57} parent=0 // pred_fallthru
    _
  // Predicated region
  $region26: #{forward.57} parent=0 // pred_check
    _
  $region27: #{forward.57} parent=0 // pred_check_branch
    %225 = sbr.rel (0) target = $region29
  $region28: #{forward.57} parent=0 // pred_region
    _
  $region29: #{forward.57} parent=0 // pred_fallthru
    _

</llo_original>
